<compile_context>
chip_gen: v6e
topology: v6e:2x2x1
jax: 0.10.0
libtpu: 0.0.40
codegen_flags: <defaults>
</compile_context>

<pallas_src>
import functools

import jax
import jax.numpy as jnp
from jax.experimental import pallas as pl
from jax.experimental.pallas import tpu as pltpu


# ---------------------------------------------------------------------------
# Fused multi-layer GRU (+ optional FC head) kernel.
#   grid = (num_batch_tiles,)  -- "parallel" (independent recurrences per tile)
#   activations are time-major (T, Bt, F) for dense (Bt, F) per-step stores.
# Per layer:
#   1) hoisted projection: gi = reshape(x, (T*Bt, in)) @ W_ih + b_comb
#      (ONE bf16 matmul with f32 accumulation for all time steps)
#   2) serial recurrence over T with lax.fori_loop:
#        gh = bf16(h) @ W_hh                         (f32 accumulation)
#        rz = sigmoid(gi_rz + gh_rz)                 (b_ih + b_hh folded into gi)
#        n  = tanh(gi_n + r * (gh_n + b_hh_n))
#        h  = n + z * (h - n)
#   3) final h of each layer written to its lane-aligned column slice of h_n.
# Optional tail: logits = h_n @ W_fc + b_fc  (f32) while h_n is still in VMEM.
# ---------------------------------------------------------------------------
def gru_stack_kernel(*refs, num_layers, T, Bt, H, E, fuse_fc):
    x_ref = refs[0]
    idx = 1
    layer_refs = []
    for _ in range(num_layers):
        layer_refs.append(refs[idx:idx + 4])      # (wih, whh, b_comb, bhh_n)
        idx += 4
    if fuse_fc:
        fcw_ref = refs[idx]
        fcb_ref = refs[idx + 1]
        idx += 2
    out_ref = refs[idx]; idx += 1                 # logits (Bt,V) or h_n (Bt,L*H)
    gi_ref = refs[idx]; idx += 1                  # (T, Bt, 3H) f32 scratch
    if fuse_fc:
        hn_ref = refs[idx]; idx += 1              # (Bt, L*H) f32 scratch
    else:
        hn_ref = out_ref
    seq_ref = refs[idx] if num_layers > 1 else None   # (T, Bt, H) bf16 scratch

    # Unroll scaled with Bt: deep unroll at large Bt spills vregs (64-vreg
    # budget) and contends for the load/store slots.
    if T <= 8:
        unroll = True
    elif Bt <= 16:
        unroll = 8
    elif Bt <= 64:
        unroll = 4
    else:
        unroll = 2

    def project(inp_bf16_2d, wih_ref, b_comb_ref):
        # One big bf16 matmul for all time steps; bias broadcast happens once
        # here, outside the serial loop.
        gi = jnp.dot(inp_bf16_2d, wih_ref[...],
                     preferred_element_type=jnp.float32)
        gi_ref[...] = (gi + b_comb_ref[...]).reshape(T, Bt, 3 * H)

    def recur(whh_ref, bhh_n_ref, write_seq):
        whh = whh_ref[...]                                   # bf16, resident
        bhh_n = jnp.broadcast_to(bhh_n_ref[...], (Bt, H))    # hoisted broadcast

        def step(t, h):
            gi_t = gi_ref[t]                                 # (Bt, 3H) dense load
            gh = jnp.dot(h.astype(jnp.bfloat16), whh,
                         preferred_element_type=jnp.float32)
            rz = jax.nn.sigmoid(gi_t[:, :2 * H] + gh[:, :2 * H])  # one EUP stream
            r = rz[:, :H]
            z = rz[:, H:]
            n = jnp.tanh(gi_t[:, 2 * H:] + r * (gh[:, 2 * H:] + bhh_n))
            h_new = n + z * (h - n)
            if write_seq:
                seq_ref[t] = h_new.astype(jnp.bfloat16)      # dense (Bt, H) store
            return h_new

        h0 = jnp.zeros((Bt, H), jnp.float32)
        return jax.lax.fori_loop(0, T, step, h0, unroll=unroll)

    # ---- layer 0 (input width E) ----
    wih, whh, b_comb, bhh_n = layer_refs[0]
    project(x_ref[...].reshape(T * Bt, E), wih, b_comb)
    h_last = recur(whh, bhh_n, write_seq=(num_layers > 1))
    hn_ref[:, 0:H] = h_last

    # ---- layers 1..L-1 (input width H), sequence stays resident in VMEM ----
    for l in range(1, num_layers):
        wih, whh, b_comb, bhh_n = layer_refs[l]
        project(seq_ref[...].reshape(T * Bt, H), wih, b_comb)
        h_last = recur(whh, bhh_n, write_seq=(l < num_layers - 1))
        hn_ref[:, l * H:(l + 1) * H] = h_last

    # ---- fused FC head (f32) while h_n is still in VMEM ----
    if fuse_fc:
        out_ref[...] = (jnp.dot(hn_ref[...], fcw_ref[...],
                                preferred_element_type=jnp.float32)
                        + fcb_ref[...])


def gru_forward(x_tm, layers, fc_w=None, fc_b=None, *, batch_tile=None):
    """x_tm: (T, B, E) time-major bf16 activations.

    Returns logits (B, V) when fc_w/fc_b are given (fused FC head), otherwise
    h_n (B, num_layers*H).
    """
    T, B, E = x_tm.shape
    H = layers[0]["whh"].shape[0]
    L = len(layers)
    fuse_fc = fc_w is not None

    if batch_tile is None:
        if B >= 512 and B % 256 == 0:
            batch_tile = 256   # fills 256-row MXU (v6e/v7x), >=2 tiles for megacore
        elif B > 128 and B % 128 == 0:
            batch_tile = 128
        else:
            batch_tile = B
    assert B % batch_tile == 0
    # Lane/sublane alignment assumed by the in-kernel slices & reshapes.
    # TODO(synk): pad H/E to multiples of 128 (and Bt to 8) for odd sizes like
    # the spec's hidden=400 instead of asserting.
    assert H % 128 == 0 and E % 128 == 0 and batch_tile % 8 == 0

    in_specs = [pl.BlockSpec((T, batch_tile, E), lambda b: (0, b, 0))]
    args = [x_tm]
    flops = 0
    transcendentals = 0
    bytes_accessed = int(x_tm.size) * 2
    weight_bytes = 0
    in_size = E
    for layer in layers:
        bih, bhh = layer["bih"], layer["bhh"]                # (1, 3H) each, f32
        # Fold b_ih into the hoisted projection; pre-sum the r/z hidden biases.
        # The n-gate hidden bias must stay inside r*(...), matching PyTorch.
        b_comb = bih.at[:, :2 * H].add(bhh[:, :2 * H])       # (1, 3H) f32
        bhh_n = bhh[:, 2 * H:]                               # (1, H)  f32
        # TODO(synk): on v7x, try pipeline_mode=pl.Buffered(1) on these
        # grid-invariant weight blocks to halve resident-weight VMEM.
        in_specs += [
            pl.BlockSpec((in_size, 3 * H), lambda b: (0, 0)),  # W_ih^T (bf16)
            pl.BlockSpec((H, 3 * H), lambda b: (0, 0)),        # W_hh^T (bf16)
            pl.BlockSpec((1, 3 * H), lambda b: (0, 0)),        # combined bias
            pl.BlockSpec((1, H), lambda b: (0, 0)),            # b_hh (n gate)
        ]
        args += [layer["wih"].astype(jnp.bfloat16),
                 layer["whh"].astype(jnp.bfloat16), b_comb, bhh_n]
        flops += 2 * T * B * in_size * 3 * H + 2 * T * B * H * 3 * H
        transcendentals += T * B * 3 * H
        weight_bytes += (in_size + H) * 3 * H * 2 + 4 * H * 4
        in_size = H
    bytes_accessed += weight_bytes

    if fuse_fc:
        K, V = fc_w.shape
        in_specs += [pl.BlockSpec((K, V), lambda b: (0, 0)),
                     pl.BlockSpec((1, V), lambda b: (0, 0))]
        args += [fc_w, fc_b]
        flops += 2 * B * K * V
        bytes_accessed += K * V * 4 + V * 4 + B * V * 4
        out_shape = jax.ShapeDtypeStruct((B, V), jnp.float32)
        out_spec = pl.BlockSpec((batch_tile, V), lambda b: (b, 0))
    else:
        bytes_accessed += B * L * H * 4
        out_shape = jax.ShapeDtypeStruct((B, L * H), jnp.float32)
        out_spec = pl.BlockSpec((batch_tile, L * H), lambda b: (b, 0))

    # Scratch: gi (f32), optional h_n (f32, fused-FC path), optional inter-layer
    # sequence (bf16).
    # TODO(synk): for long sequences on v7x (64 MiB VMEM/TC), chunk the hoisted
    # projection over time into a double-buffered (2, Tc, Bt, 3H) slab instead
    # of holding all T steps of gi.
    scratch_shapes = [pltpu.VMEM((T, batch_tile, 3 * H), jnp.float32)]
    if fuse_fc:
        scratch_shapes.append(pltpu.VMEM((batch_tile, L * H), jnp.float32))
    if L > 1:
        scratch_shapes.append(pltpu.VMEM((T, batch_tile, H), jnp.bfloat16))

    vmem_needed = (
        2 * T * batch_tile * E * 2                 # double-buffered x block (bf16)
        + 2 * weight_bytes                         # default 2x-buffered weights
        + T * batch_tile * 3 * H * 4               # gi scratch
        + (T * batch_tile * H * 2 if L > 1 else 0))
    if fuse_fc:
        vmem_needed += (batch_tile * L * H * 4
                        + 2 * (int(fc_w.size) * 4 + int(fc_b.size) * 4)
                        + 2 * batch_tile * fc_w.shape[1] * 4)
    else:
        vmem_needed += 2 * batch_tile * L * H * 4
    vmem_limit = int(min(100 * 2 ** 20, max(2 * vmem_needed, 32 * 2 ** 20)))

    kernel = functools.partial(
        gru_stack_kernel, num_layers=L, T=T, Bt=batch_tile, H=H, E=E,
        fuse_fc=fuse_fc)

    return pl.pallas_call(
        kernel,
        out_shape=out_shape,
        grid_spec=pltpu.PrefetchScalarGridSpec(
            num_scalar_prefetch=0,
            grid=(B // batch_tile,),
            in_specs=in_specs,
            out_specs=out_spec,
            scratch_shapes=scratch_shapes,
        ),
        compiler_params=pltpu.CompilerParams(
            dimension_semantics=("parallel",),     # batch tiles are independent
            vmem_limit_bytes=vmem_limit),
        cost_estimate=pl.CostEstimate(
            flops=int(flops), transcendentals=int(transcendentals),
            bytes_accessed=int(bytes_accessed)),
    )(*args)


# ---------------------------------------------------------------------------
# Fallback FC kernel (only used when the FC weight is too big to fuse):
#   logits = h_n @ W_fc + b_fc, tiled over a 128-padded vocab axis.
# ---------------------------------------------------------------------------
def fc_kernel(h_ref, w_ref, b_ref, o_ref):
    o_ref[...] = (jnp.dot(h_ref[...], w_ref[...],
                          preferred_element_type=jnp.float32) + b_ref[...])


def fc(h, w, b, *, v_tile=512):
    B, K = h.shape
    V = w.shape[1]
    v_pad = 128 * pl.cdiv(V, 128)
    if v_pad != V:
        w = jnp.pad(w, ((0, 0), (0, v_pad - V)))
        b = jnp.pad(b, ((0, 0), (0, v_pad - V)))
    v_tile = min(v_tile, v_pad)
    while v_pad % v_tile:
        v_tile //= 2            # lands on a divisor (v_pad is a multiple of 128)
    # TODO(synk): for very large K (= num_layers*hidden), also tile K with an
    # "arbitrary" reduction axis + accumulator scratch.
    out = pl.pallas_call(
        fc_kernel,
        out_shape=jax.ShapeDtypeStruct((B, v_pad), jnp.float32),
        grid_spec=pltpu.PrefetchScalarGridSpec(
            num_scalar_prefetch=0,
            grid=(v_pad // v_tile,),
            in_specs=[
                pl.BlockSpec((B, K), lambda j: (0, 0)),
                pl.BlockSpec((K, v_tile), lambda j: (0, j)),
                pl.BlockSpec((1, v_tile), lambda j: (0, j)),
            ],
            out_specs=pl.BlockSpec((B, v_tile), lambda j: (0, j)),
        ),
        compiler_params=pltpu.CompilerParams(
            dimension_semantics=("parallel",)),
        cost_estimate=pl.CostEstimate(
            flops=2 * B * K * v_pad, transcendentals=0,
            bytes_accessed=B * K * 4 + K * v_pad * 4 + B * v_pad * 4),
    )(h, w, b)
    return out[:, :V]


# ---------------------------------------------------------------------------
# Full forward pass (embedding gather is glue; everything else is Pallas)
# ---------------------------------------------------------------------------
def gru_compress_forward(tokens, params):
    # Embedding lookup (memory-bound gather) kept as plain-JAX glue; gather
    # directly into time-major layout (T, B, E) and cast to bf16 (the MXU input
    # dtype), halving the HBM traffic into the kernel.
    # TODO(synk): for large T*B*E, move the gather inside the kernel via
    # scalar-prefetched token ids + pl.Element row indexing to avoid the HBM
    # round trip of the activation tensor.
    x_tm = jnp.take(params["embedding"], tokens.T, axis=0).astype(jnp.bfloat16)
    fc_w, fc_b = params["fc_w"], params["fc_b"]
    # Fuse the FC head when its weight comfortably fits VMEM (incl. 2x buffering).
    if int(fc_w.size) * 4 <= 8 * 2 ** 20:
        return gru_forward(x_tm, params["gru"], fc_w, fc_b)
    h_n = gru_forward(x_tm, params["gru"])
    return fc(h_n, fc_w, fc_b)


# ---------------------------------------------------------------------------
# Pure-JAX reference (same math, same bf16 matmul-input rounding, batch-first)
# ---------------------------------------------------------------------------
def gru_compress_reference(tokens, params, matmul_dtype=jnp.bfloat16):
    embeds = jnp.take(params["embedding"], tokens, axis=0)   # (B, T, E)
    x = embeds
    h_last = []
    for layer in params["gru"]:
        H = layer["whh"].shape[0]
        B = x.shape[0]
        wih = layer["wih"].astype(matmul_dtype)
        whh = layer["whh"].astype(matmul_dtype)

        def step(h, x_t, wih=wih, whh=whh, layer=layer, H=H):
            gi = jnp.dot(x_t.astype(matmul_dtype), wih,
                         preferred_element_type=jnp.float32) + layer["bih"]
            gh = jnp.dot(h.astype(matmul_dtype), whh,
                         preferred_element_type=jnp.float32) + layer["bhh"]
            r = jax.nn.sigmoid(gi[:, :H] + gh[:, :H])
            z = jax.nn.sigmoid(gi[:, H:2 * H] + gh[:, H:2 * H])
            n = jnp.tanh(gi[:, 2 * H:] + r * gh[:, 2 * H:])
            h_new = (1.0 - z) * n + z * h
            return h_new, h_new

        h0 = jnp.zeros((B, H), jnp.float32)
        _, ys = jax.lax.scan(step, h0, jnp.swapaxes(x, 0, 1))
        y = jnp.swapaxes(ys, 0, 1)
        h_last.append(y[:, -1, :])
        x = y
    h_n = jnp.concatenate(h_last, axis=-1)
    return h_n @ params["fc_w"] + params["fc_b"]


# ---------------------------------------------------------------------------
# Deterministic parameter init (PyTorch-style uniform(-1/sqrt(H), 1/sqrt(H)))
# ---------------------------------------------------------------------------
def init_params(key, vocab_size, embed_size, hidden_size, num_layers):
    bound = 1.0 / jnp.sqrt(jnp.float32(hidden_size))
    keys = jax.random.split(key, 1 + 4 * num_layers + 2)
    ki = iter(keys)

    params = {}
    params["embedding"] = jax.random.normal(
        next(ki), (vocab_size, embed_size), jnp.float32)

    gru_layers = []
    in_size = embed_size
    for _ in range(num_layers):
        wih = jax.random.uniform(next(ki), (in_size, 3 * hidden_size),
                                 jnp.float32, -bound, bound)
        whh = jax.random.uniform(next(ki), (hidden_size, 3 * hidden_size),
                                 jnp.float32, -bound, bound)
        bih = jax.random.uniform(next(ki), (1, 3 * hidden_size),
                                 jnp.float32, -bound, bound)
        bhh = jax.random.uniform(next(ki), (1, 3 * hidden_size),
                                 jnp.float32, -bound, bound)
        gru_layers.append(dict(wih=wih, whh=whh, bih=bih, bhh=bhh))
        in_size = hidden_size
    params["gru"] = gru_layers

    fc_bound = 1.0 / jnp.sqrt(jnp.float32(num_layers * hidden_size))
    params["fc_w"] = jax.random.uniform(
        next(ki), (num_layers * hidden_size, vocab_size),
        jnp.float32, -fc_bound, fc_bound)
    params["fc_b"] = jax.random.uniform(
        next(ki), (1, vocab_size), jnp.float32, -fc_bound, fc_bound)
    return params


if __name__ == "__main__":
    # Small, TPU-tile-friendly shapes consistent with the module's forward.
    BATCH = 8
    SEQ = 8
    VOCAB = 256
    EMBED = 128
    HIDDEN = 128
    NUM_LAYERS = 4

    key = jax.random.PRNGKey(0)
    pkey, tkey = jax.random.split(key)
    params = init_params(pkey, VOCAB, EMBED, HIDDEN, NUM_LAYERS)
    tokens = jax.random.randint(tkey, (BATCH, SEQ), 0, VOCAB, dtype=jnp.int32)

    fwd = jax.jit(gru_compress_forward)
    logits = jax.block_until_ready(fwd(tokens, params))

    ref = jax.block_until_ready(gru_compress_reference(tokens, params))
    assert logits.shape == (BATCH, VOCAB)
    assert jnp.allclose(logits, ref, atol=5e-3, rtol=5e-3), "mismatch vs reference"

    print("KERNEL_OK")
</pallas_src>

<mosaic_0001>
module attributes {stable_mosaic.version = 11 : i64} {
  func.func @gru_stack_kernel(%arg0: i32, %arg1: memref<8x8x128xbf16, #tpu.memory_space<vmem>>, %arg2: memref<128x384xbf16, #tpu.memory_space<vmem>>, %arg3: memref<128x384xbf16, #tpu.memory_space<vmem>>, %arg4: memref<1x384xf32, #tpu.memory_space<vmem>>, %arg5: memref<1x128xf32, #tpu.memory_space<vmem>>, %arg6: memref<128x384xbf16, #tpu.memory_space<vmem>>, %arg7: memref<128x384xbf16, #tpu.memory_space<vmem>>, %arg8: memref<1x384xf32, #tpu.memory_space<vmem>>, %arg9: memref<1x128xf32, #tpu.memory_space<vmem>>, %arg10: memref<128x384xbf16, #tpu.memory_space<vmem>>, %arg11: memref<128x384xbf16, #tpu.memory_space<vmem>>, %arg12: memref<1x384xf32, #tpu.memory_space<vmem>>, %arg13: memref<1x128xf32, #tpu.memory_space<vmem>>, %arg14: memref<128x384xbf16, #tpu.memory_space<vmem>>, %arg15: memref<128x384xbf16, #tpu.memory_space<vmem>>, %arg16: memref<1x384xf32, #tpu.memory_space<vmem>>, %arg17: memref<1x128xf32, #tpu.memory_space<vmem>>, %arg18: memref<512x256xf32, #tpu.memory_space<vmem>>, %arg19: memref<1x256xf32, #tpu.memory_space<vmem>>, %arg20: memref<8x256xf32, #tpu.memory_space<vmem>>, %arg21: memref<8x8x384xf32, #tpu.memory_space<vmem>>, %arg22: memref<8x512xf32, #tpu.memory_space<vmem>>, %arg23: memref<8x8x128xbf16, #tpu.memory_space<vmem>>) attributes {dimension_semantics = [#tpu.dimension_semantics<parallel>], iteration_bounds = array<i64: 1>, scalar_prefetch = 0 : i64, scratch_operands = 3 : i64, tpu.core_type = #tpu.core_type<tc>, window_params = [{transform_indices = @transform_0, window_bounds = array<i64: 8, 8, 128>}, {pipeline_mode = #tpu.pipeline_mode<synchronous>, transform_indices = @transform_1, window_bounds = array<i64: 128, 384>}, {pipeline_mode = #tpu.pipeline_mode<synchronous>, transform_indices = @transform_2, window_bounds = array<i64: 128, 384>}, {pipeline_mode = #tpu.pipeline_mode<synchronous>, transform_indices = @transform_3, window_bounds = array<i64: 1, 384>}, {pipeline_mode = #tpu.pipeline_mode<synchronous>, transform_indices = @transform_4, window_bounds = array<i64: 1, 128>}, {pipeline_mode = #tpu.pipeline_mode<synchronous>, transform_indices = @transform_5, window_bounds = array<i64: 128, 384>}, {pipeline_mode = #tpu.pipeline_mode<synchronous>, transform_indices = @transform_6, window_bounds = array<i64: 128, 384>}, {pipeline_mode = #tpu.pipeline_mode<synchronous>, transform_indices = @transform_7, window_bounds = array<i64: 1, 384>}, {pipeline_mode = #tpu.pipeline_mode<synchronous>, transform_indices = @transform_8, window_bounds = array<i64: 1, 128>}, {pipeline_mode = #tpu.pipeline_mode<synchronous>, transform_indices = @transform_9, window_bounds = array<i64: 128, 384>}, {pipeline_mode = #tpu.pipeline_mode<synchronous>, transform_indices = @transform_10, window_bounds = array<i64: 128, 384>}, {pipeline_mode = #tpu.pipeline_mode<synchronous>, transform_indices = @transform_11, window_bounds = array<i64: 1, 384>}, {pipeline_mode = #tpu.pipeline_mode<synchronous>, transform_indices = @transform_12, window_bounds = array<i64: 1, 128>}, {pipeline_mode = #tpu.pipeline_mode<synchronous>, transform_indices = @transform_13, window_bounds = array<i64: 128, 384>}, {pipeline_mode = #tpu.pipeline_mode<synchronous>, transform_indices = @transform_14, window_bounds = array<i64: 128, 384>}, {pipeline_mode = #tpu.pipeline_mode<synchronous>, transform_indices = @transform_15, window_bounds = array<i64: 1, 384>}, {pipeline_mode = #tpu.pipeline_mode<synchronous>, transform_indices = @transform_16, window_bounds = array<i64: 1, 128>}, {pipeline_mode = #tpu.pipeline_mode<synchronous>, transform_indices = @transform_17, window_bounds = array<i64: 512, 256>}, {pipeline_mode = #tpu.pipeline_mode<synchronous>, transform_indices = @transform_18, window_bounds = array<i64: 1, 256>}, {transform_indices = @transform_19, window_bounds = array<i64: 8, 256>}]} {
    %c0 = arith.constant 0 : index
    %c0_0 = arith.constant 0 : index
    %c0_1 = arith.constant 0 : index
    %0 = vector.load %arg1[%c0, %c0_0, %c0_1] : memref<8x8x128xbf16, #tpu.memory_space<vmem>>, vector<8x8x128xbf16>
    %1 = vector.shape_cast %0 : vector<8x8x128xbf16> to vector<64x128xbf16>
    %c0_2 = arith.constant 0 : index
    %c0_3 = arith.constant 0 : index
    %2 = vector.load %arg2[%c0_2, %c0_3] : memref<128x384xbf16, #tpu.memory_space<vmem>>, vector<128x384xbf16>
    %cst = arith.constant dense<0.000000e+00> : vector<64x384xf32>
    %3 = tpu.matmul %1, %2, %cst {dimension_numbers = #tpu.dot_dimension_numbers<[1], [0], [0], [1], [0, 0, 1, 1], [], []>} : vector<64x128xbf16>, vector<128x384xbf16>, vector<64x384xf32> -> vector<64x384xf32>
    %c0_4 = arith.constant 0 : index
    %c0_5 = arith.constant 0 : index
    %4 = vector.load %arg4[%c0_4, %c0_5] : memref<1x384xf32, #tpu.memory_space<vmem>>, vector<1x384xf32>
    %5 = vector.broadcast %4 : vector<1x384xf32> to vector<64x384xf32>
    %6 = arith.addf %3, %5 : vector<64x384xf32>
    %7 = vector.shape_cast %6 : vector<64x384xf32> to vector<8x8x384xf32>
    %c0_6 = arith.constant 0 : index
    %c0_7 = arith.constant 0 : index
    %c0_8 = arith.constant 0 : index
    %8 = vector.load %arg21[%c0_6, %c0_7, %c0_8] : memref<8x8x384xf32, #tpu.memory_space<vmem>>, vector<8x8x384xf32>
    tpu.vector_store %arg21[%c0_6, %c0_7, %c0_8], %7 {strides = array<i32>} : memref<8x8x384xf32, #tpu.memory_space<vmem>>, vector<8x8x384xf32>,
    %c0_9 = arith.constant 0 : index
    %c0_10 = arith.constant 0 : index
    %9 = vector.load %arg3[%c0_9, %c0_10] : memref<128x384xbf16, #tpu.memory_space<vmem>>, vector<128x384xbf16>
    %c0_11 = arith.constant 0 : index
    %c0_12 = arith.constant 0 : index
    %10 = vector.load %arg5[%c0_11, %c0_12] : memref<1x128xf32, #tpu.memory_space<vmem>>, vector<1x128xf32>
    %11 = vector.shape_cast %10 : vector<1x128xf32> to vector<1x128xf32>
    %12 = vector.broadcast %11 : vector<1x128xf32> to vector<8x128xf32>
    %cst_13 = arith.constant 0.000000e+00 : f32
    %13 = vector.broadcast %cst_13 : f32 to vector<8x128xf32>
    %c0_i32 = arith.constant 0 : i32
    %14 = arith.index_cast %c0_i32 : i32 to index
    %c0_14 = arith.constant 0 : index
    %c0_15 = arith.constant 0 : index
    %15 = vector.load %arg21[%14, %c0_14, %c0_15] : memref<8x8x384xf32, #tpu.memory_space<vmem>>, vector<1x8x384xf32>
    %16 = vector.shape_cast %15 : vector<1x8x384xf32> to vector<8x384xf32>
    %17 = arith.truncf %13 : vector<8x128xf32> to vector<8x128xbf16>
    %cst_16 = arith.constant dense<0.000000e+00> : vector<8x384xf32>
    %18 = tpu.matmul %17, %9, %cst_16 {dimension_numbers = #tpu.dot_dimension_numbers<[1], [0], [0], [1], [0, 0, 1, 1], [], []>} : vector<8x128xbf16>, vector<128x384xbf16>, vector<8x384xf32> -> vector<8x384xf32>
    %19 = vector.extract_strided_slice %16 {offsets = [0, 0], sizes = [8, 256], strides = [1, 1]} : vector<8x384xf32> to vector<8x256xf32>
    %20 = vector.extract_strided_slice %18 {offsets = [0, 0], sizes = [8, 256], strides = [1, 1]} : vector<8x384xf32> to vector<8x256xf32>
    %21 = arith.addf %19, %20 : vector<8x256xf32>
    %22 = arith.negf %21 : vector<8x256xf32>
    %23 = math.exp %22 : vector<8x256xf32>
    %cst_17 = arith.constant 1.000000e+00 : f32
    %24 = vector.broadcast %cst_17 : f32 to vector<8x256xf32>
    %25 = arith.addf %24, %23 : vector<8x256xf32>
    %26 = arith.divf %24, %25 : vector<8x256xf32>
    %27 = vector.extract_strided_slice %26 {offsets = [0, 0], sizes = [8, 128], strides = [1, 1]} : vector<8x256xf32> to vector<8x128xf32>
    %28 = vector.extract_strided_slice %26 {offsets = [0, 128], sizes = [8, 128], strides = [1, 1]} : vector<8x256xf32> to vector<8x128xf32>
    %29 = vector.extract_strided_slice %16 {offsets = [0, 256], sizes = [8, 128], strides = [1, 1]} : vector<8x384xf32> to vector<8x128xf32>
    %30 = vector.extract_strided_slice %18 {offsets = [0, 256], sizes = [8, 128], strides = [1, 1]} : vector<8x384xf32> to vector<8x128xf32>
    %31 = arith.addf %30, %12 : vector<8x128xf32>
    %32 = arith.mulf %27, %31 : vector<8x128xf32>
    %33 = arith.addf %29, %32 : vector<8x128xf32>
    %34 = math.tanh %33 : vector<8x128xf32>
    %35 = arith.subf %13, %34 : vector<8x128xf32>
    %36 = arith.mulf %28, %35 : vector<8x128xf32>
    %37 = arith.addf %34, %36 : vector<8x128xf32>
    %38 = arith.truncf %37 : vector<8x128xf32> to vector<8x128xbf16>
    %39 = arith.index_cast %c0_i32 : i32 to index
    %c0_18 = arith.constant 0 : index
    %c0_19 = arith.constant 0 : index
    %40 = vector.load %arg23[%39, %c0_18, %c0_19] : memref<8x8x128xbf16, #tpu.memory_space<vmem>>, vector<1x8x128xbf16>
    %41 = vector.shape_cast %40 : vector<1x8x128xbf16> to vector<8x128xbf16>
    %42 = vector.shape_cast %38 : vector<8x128xbf16> to vector<1x8x128xbf16>
    tpu.vector_store %arg23[%39, %c0_18, %c0_19], %42 {strides = array<i32>} : memref<8x8x128xbf16, #tpu.memory_space<vmem>>, vector<1x8x128xbf16>,
    %c1_i32 = arith.constant 1 : i32
    %43 = arith.index_cast %c1_i32 : i32 to index
    %c0_20 = arith.constant 0 : index
    %c0_21 = arith.constant 0 : index
    %44 = vector.load %arg21[%43, %c0_20, %c0_21] : memref<8x8x384xf32, #tpu.memory_space<vmem>>, vector<1x8x384xf32>
    %45 = vector.shape_cast %44 : vector<1x8x384xf32> to vector<8x384xf32>
    %46 = arith.truncf %37 : vector<8x128xf32> to vector<8x128xbf16>
    %cst_22 = arith.constant dense<0.000000e+00> : vector<8x384xf32>
    %47 = tpu.matmul %46, %9, %cst_22 {dimension_numbers = #tpu.dot_dimension_numbers<[1], [0], [0], [1], [0, 0, 1, 1], [], []>} : vector<8x128xbf16>, vector<128x384xbf16>, vector<8x384xf32> -> vector<8x384xf32>
    %48 = vector.extract_strided_slice %45 {offsets = [0, 0], sizes = [8, 256], strides = [1, 1]} : vector<8x384xf32> to vector<8x256xf32>
    %49 = vector.extract_strided_slice %47 {offsets = [0, 0], sizes = [8, 256], strides = [1, 1]} : vector<8x384xf32> to vector<8x256xf32>
    %50 = arith.addf %48, %49 : vector<8x256xf32>
    %51 = arith.negf %50 : vector<8x256xf32>
    %52 = math.exp %51 : vector<8x256xf32>
    %cst_23 = arith.constant 1.000000e+00 : f32
    %53 = vector.broadcast %cst_23 : f32 to vector<8x256xf32>
    %54 = arith.addf %53, %52 : vector<8x256xf32>
    %55 = arith.divf %53, %54 : vector<8x256xf32>
    %56 = vector.extract_strided_slice %55 {offsets = [0, 0], sizes = [8, 128], strides = [1, 1]} : vector<8x256xf32> to vector<8x128xf32>
    %57 = vector.extract_strided_slice %55 {offsets = [0, 128], sizes = [8, 128], strides = [1, 1]} : vector<8x256xf32> to vector<8x128xf32>
    %58 = vector.extract_strided_slice %45 {offsets = [0, 256], sizes = [8, 128], strides = [1, 1]} : vector<8x384xf32> to vector<8x128xf32>
    %59 = vector.extract_strided_slice %47 {offsets = [0, 256], sizes = [8, 128], strides = [1, 1]} : vector<8x384xf32> to vector<8x128xf32>
    %60 = arith.addf %59, %12 : vector<8x128xf32>
    %61 = arith.mulf %56, %60 : vector<8x128xf32>
    %62 = arith.addf %58, %61 : vector<8x128xf32>
    %63 = math.tanh %62 : vector<8x128xf32>
    %64 = arith.subf %37, %63 : vector<8x128xf32>
    %65 = arith.mulf %57, %64 : vector<8x128xf32>
    %66 = arith.addf %63, %65 : vector<8x128xf32>
    %67 = arith.truncf %66 : vector<8x128xf32> to vector<8x128xbf16>
    %68 = arith.index_cast %c1_i32 : i32 to index
    %c0_24 = arith.constant 0 : index
    %c0_25 = arith.constant 0 : index
    %69 = vector.load %arg23[%68, %c0_24, %c0_25] : memref<8x8x128xbf16, #tpu.memory_space<vmem>>, vector<1x8x128xbf16>
    %70 = vector.shape_cast %69 : vector<1x8x128xbf16> to vector<8x128xbf16>
    %71 = vector.shape_cast %67 : vector<8x128xbf16> to vector<1x8x128xbf16>
    tpu.vector_store %arg23[%68, %c0_24, %c0_25], %71 {strides = array<i32>} : memref<8x8x128xbf16, #tpu.memory_space<vmem>>, vector<1x8x128xbf16>,
    %c2_i32 = arith.constant 2 : i32
    %72 = arith.index_cast %c2_i32 : i32 to index
    %c0_26 = arith.constant 0 : index
    %c0_27 = arith.constant 0 : index
    %73 = vector.load %arg21[%72, %c0_26, %c0_27] : memref<8x8x384xf32, #tpu.memory_space<vmem>>, vector<1x8x384xf32>
    %74 = vector.shape_cast %73 : vector<1x8x384xf32> to vector<8x384xf32>
    %75 = arith.truncf %66 : vector<8x128xf32> to vector<8x128xbf16>
    %cst_28 = arith.constant dense<0.000000e+00> : vector<8x384xf32>
    %76 = tpu.matmul %75, %9, %cst_28 {dimension_numbers = #tpu.dot_dimension_numbers<[1], [0], [0], [1], [0, 0, 1, 1], [], []>} : vector<8x128xbf16>, vector<128x384xbf16>, vector<8x384xf32> -> vector<8x384xf32>
    %77 = vector.extract_strided_slice %74 {offsets = [0, 0], sizes = [8, 256], strides = [1, 1]} : vector<8x384xf32> to vector<8x256xf32>
    %78 = vector.extract_strided_slice %76 {offsets = [0, 0], sizes = [8, 256], strides = [1, 1]} : vector<8x384xf32> to vector<8x256xf32>
    %79 = arith.addf %77, %78 : vector<8x256xf32>
    %80 = arith.negf %79 : vector<8x256xf32>
    %81 = math.exp %80 : vector<8x256xf32>
    %cst_29 = arith.constant 1.000000e+00 : f32
    %82 = vector.broadcast %cst_29 : f32 to vector<8x256xf32>
    %83 = arith.addf %82, %81 : vector<8x256xf32>
    %84 = arith.divf %82, %83 : vector<8x256xf32>
    %85 = vector.extract_strided_slice %84 {offsets = [0, 0], sizes = [8, 128], strides = [1, 1]} : vector<8x256xf32> to vector<8x128xf32>
    %86 = vector.extract_strided_slice %84 {offsets = [0, 128], sizes = [8, 128], strides = [1, 1]} : vector<8x256xf32> to vector<8x128xf32>
    %87 = vector.extract_strided_slice %74 {offsets = [0, 256], sizes = [8, 128], strides = [1, 1]} : vector<8x384xf32> to vector<8x128xf32>
    %88 = vector.extract_strided_slice %76 {offsets = [0, 256], sizes = [8, 128], strides = [1, 1]} : vector<8x384xf32> to vector<8x128xf32>
    %89 = arith.addf %88, %12 : vector<8x128xf32>
    %90 = arith.mulf %85, %89 : vector<8x128xf32>
    %91 = arith.addf %87, %90 : vector<8x128xf32>
    %92 = math.tanh %91 : vector<8x128xf32>
    %93 = arith.subf %66, %92 : vector<8x128xf32>
    %94 = arith.mulf %86, %93 : vector<8x128xf32>
    %95 = arith.addf %92, %94 : vector<8x128xf32>
    %96 = arith.truncf %95 : vector<8x128xf32> to vector<8x128xbf16>
    %97 = arith.index_cast %c2_i32 : i32 to index
    %c0_30 = arith.constant 0 : index
    %c0_31 = arith.constant 0 : index
    %98 = vector.load %arg23[%97, %c0_30, %c0_31] : memref<8x8x128xbf16, #tpu.memory_space<vmem>>, vector<1x8x128xbf16>
    %99 = vector.shape_cast %98 : vector<1x8x128xbf16> to vector<8x128xbf16>
    %100 = vector.shape_cast %96 : vector<8x128xbf16> to vector<1x8x128xbf16>
    tpu.vector_store %arg23[%97, %c0_30, %c0_31], %100 {strides = array<i32>} : memref<8x8x128xbf16, #tpu.memory_space<vmem>>, vector<1x8x128xbf16>,
    %c3_i32 = arith.constant 3 : i32
    %101 = arith.index_cast %c3_i32 : i32 to index
    %c0_32 = arith.constant 0 : index
    %c0_33 = arith.constant 0 : index
    %102 = vector.load %arg21[%101, %c0_32, %c0_33] : memref<8x8x384xf32, #tpu.memory_space<vmem>>, vector<1x8x384xf32>
    %103 = vector.shape_cast %102 : vector<1x8x384xf32> to vector<8x384xf32>
    %104 = arith.truncf %95 : vector<8x128xf32> to vector<8x128xbf16>
    %cst_34 = arith.constant dense<0.000000e+00> : vector<8x384xf32>
    %105 = tpu.matmul %104, %9, %cst_34 {dimension_numbers = #tpu.dot_dimension_numbers<[1], [0], [0], [1], [0, 0, 1, 1], [], []>} : vector<8x128xbf16>, vector<128x384xbf16>, vector<8x384xf32> -> vector<8x384xf32>
    %106 = vector.extract_strided_slice %103 {offsets = [0, 0], sizes = [8, 256], strides = [1, 1]} : vector<8x384xf32> to vector<8x256xf32>
    %107 = vector.extract_strided_slice %105 {offsets = [0, 0], sizes = [8, 256], strides = [1, 1]} : vector<8x384xf32> to vector<8x256xf32>
    %108 = arith.addf %106, %107 : vector<8x256xf32>
    %109 = arith.negf %108 : vector<8x256xf32>
    %110 = math.exp %109 : vector<8x256xf32>
    %cst_35 = arith.constant 1.000000e+00 : f32
    %111 = vector.broadcast %cst_35 : f32 to vector<8x256xf32>
    %112 = arith.addf %111, %110 : vector<8x256xf32>
    %113 = arith.divf %111, %112 : vector<8x256xf32>
    %114 = vector.extract_strided_slice %113 {offsets = [0, 0], sizes = [8, 128], strides = [1, 1]} : vector<8x256xf32> to vector<8x128xf32>
    %115 = vector.extract_strided_slice %113 {offsets = [0, 128], sizes = [8, 128], strides = [1, 1]} : vector<8x256xf32> to vector<8x128xf32>
    %116 = vector.extract_strided_slice %103 {offsets = [0, 256], sizes = [8, 128], strides = [1, 1]} : vector<8x384xf32> to vector<8x128xf32>
    %117 = vector.extract_strided_slice %105 {offsets = [0, 256], sizes = [8, 128], strides = [1, 1]} : vector<8x384xf32> to vector<8x128xf32>
    %118 = arith.addf %117, %12 : vector<8x128xf32>
    %119 = arith.mulf %114, %118 : vector<8x128xf32>
    %120 = arith.addf %116, %119 : vector<8x128xf32>
    %121 = math.tanh %120 : vector<8x128xf32>
    %122 = arith.subf %95, %121 : vector<8x128xf32>
    %123 = arith.mulf %115, %122 : vector<8x128xf32>
    %124 = arith.addf %121, %123 : vector<8x128xf32>
    %125 = arith.truncf %124 : vector<8x128xf32> to vector<8x128xbf16>
    %126 = arith.index_cast %c3_i32 : i32 to index
    %c0_36 = arith.constant 0 : index
    %c0_37 = arith.constant 0 : index
    %127 = vector.load %arg23[%126, %c0_36, %c0_37] : memref<8x8x128xbf16, #tpu.memory_space<vmem>>, vector<1x8x128xbf16>
    %128 = vector.shape_cast %127 : vector<1x8x128xbf16> to vector<8x128xbf16>
    %129 = vector.shape_cast %125 : vector<8x128xbf16> to vector<1x8x128xbf16>
    tpu.vector_store %arg23[%126, %c0_36, %c0_37], %129 {strides = array<i32>} : memref<8x8x128xbf16, #tpu.memory_space<vmem>>, vector<1x8x128xbf16>,
    %c4_i32 = arith.constant 4 : i32
    %130 = arith.index_cast %c4_i32 : i32 to index
    %c0_38 = arith.constant 0 : index
    %c0_39 = arith.constant 0 : index
    %131 = vector.load %arg21[%130, %c0_38, %c0_39] : memref<8x8x384xf32, #tpu.memory_space<vmem>>, vector<1x8x384xf32>
    %132 = vector.shape_cast %131 : vector<1x8x384xf32> to vector<8x384xf32>
    %133 = arith.truncf %124 : vector<8x128xf32> to vector<8x128xbf16>
    %cst_40 = arith.constant dense<0.000000e+00> : vector<8x384xf32>
    %134 = tpu.matmul %133, %9, %cst_40 {dimension_numbers = #tpu.dot_dimension_numbers<[1], [0], [0], [1], [0, 0, 1, 1], [], []>} : vector<8x128xbf16>, vector<128x384xbf16>, vector<8x384xf32> -> vector<8x384xf32>
    %135 = vector.extract_strided_slice %132 {offsets = [0, 0], sizes = [8, 256], strides = [1, 1]} : vector<8x384xf32> to vector<8x256xf32>
    %136 = vector.extract_strided_slice %134 {offsets = [0, 0], sizes = [8, 256], strides = [1, 1]} : vector<8x384xf32> to vector<8x256xf32>
    %137 = arith.addf %135, %136 : vector<8x256xf32>
    %138 = arith.negf %137 : vector<8x256xf32>
    %139 = math.exp %138 : vector<8x256xf32>
    %cst_41 = arith.constant 1.000000e+00 : f32
    %140 = vector.broadcast %cst_41 : f32 to vector<8x256xf32>
    %141 = arith.addf %140, %139 : vector<8x256xf32>
    %142 = arith.divf %140, %141 : vector<8x256xf32>
    %143 = vector.extract_strided_slice %142 {offsets = [0, 0], sizes = [8, 128], strides = [1, 1]} : vector<8x256xf32> to vector<8x128xf32>
    %144 = vector.extract_strided_slice %142 {offsets = [0, 128], sizes = [8, 128], strides = [1, 1]} : vector<8x256xf32> to vector<8x128xf32>
    %145 = vector.extract_strided_slice %132 {offsets = [0, 256], sizes = [8, 128], strides = [1, 1]} : vector<8x384xf32> to vector<8x128xf32>
    %146 = vector.extract_strided_slice %134 {offsets = [0, 256], sizes = [8, 128], strides = [1, 1]} : vector<8x384xf32> to vector<8x128xf32>
    %147 = arith.addf %146, %12 : vector<8x128xf32>
    %148 = arith.mulf %143, %147 : vector<8x128xf32>
    %149 = arith.addf %145, %148 : vector<8x128xf32>
    %150 = math.tanh %149 : vector<8x128xf32>
    %151 = arith.subf %124, %150 : vector<8x128xf32>
    %152 = arith.mulf %144, %151 : vector<8x128xf32>
    %153 = arith.addf %150, %152 : vector<8x128xf32>
    %154 = arith.truncf %153 : vector<8x128xf32> to vector<8x128xbf16>
    %155 = arith.index_cast %c4_i32 : i32 to index
    %c0_42 = arith.constant 0 : index
    %c0_43 = arith.constant 0 : index
    %156 = vector.load %arg23[%155, %c0_42, %c0_43] : memref<8x8x128xbf16, #tpu.memory_space<vmem>>, vector<1x8x128xbf16>
    %157 = vector.shape_cast %156 : vector<1x8x128xbf16> to vector<8x128xbf16>
    %158 = vector.shape_cast %154 : vector<8x128xbf16> to vector<1x8x128xbf16>
    tpu.vector_store %arg23[%155, %c0_42, %c0_43], %158 {strides = array<i32>} : memref<8x8x128xbf16, #tpu.memory_space<vmem>>, vector<1x8x128xbf16>,
    %c5_i32 = arith.constant 5 : i32
    %159 = arith.index_cast %c5_i32 : i32 to index
    %c0_44 = arith.constant 0 : index
    %c0_45 = arith.constant 0 : index
    %160 = vector.load %arg21[%159, %c0_44, %c0_45] : memref<8x8x384xf32, #tpu.memory_space<vmem>>, vector<1x8x384xf32>
    %161 = vector.shape_cast %160 : vector<1x8x384xf32> to vector<8x384xf32>
    %162 = arith.truncf %153 : vector<8x128xf32> to vector<8x128xbf16>
    %cst_46 = arith.constant dense<0.000000e+00> : vector<8x384xf32>
    %163 = tpu.matmul %162, %9, %cst_46 {dimension_numbers = #tpu.dot_dimension_numbers<[1], [0], [0], [1], [0, 0, 1, 1], [], []>} : vector<8x128xbf16>, vector<128x384xbf16>, vector<8x384xf32> -> vector<8x384xf32>
    %164 = vector.extract_strided_slice %161 {offsets = [0, 0], sizes = [8, 256], strides = [1, 1]} : vector<8x384xf32> to vector<8x256xf32>
    %165 = vector.extract_strided_slice %163 {offsets = [0, 0], sizes = [8, 256], strides = [1, 1]} : vector<8x384xf32> to vector<8x256xf32>
    %166 = arith.addf %164, %165 : vector<8x256xf32>
    %167 = arith.negf %166 : vector<8x256xf32>
    %168 = math.exp %167 : vector<8x256xf32>
    %cst_47 = arith.constant 1.000000e+00 : f32
    %169 = vector.broadcast %cst_47 : f32 to vector<8x256xf32>
    %170 = arith.addf %169, %168 : vector<8x256xf32>
    %171 = arith.divf %169, %170 : vector<8x256xf32>
    %172 = vector.extract_strided_slice %171 {offsets = [0, 0], sizes = [8, 128], strides = [1, 1]} : vector<8x256xf32> to vector<8x128xf32>
    %173 = vector.extract_strided_slice %171 {offsets = [0, 128], sizes = [8, 128], strides = [1, 1]} : vector<8x256xf32> to vector<8x128xf32>
    %174 = vector.extract_strided_slice %161 {offsets = [0, 256], sizes = [8, 128], strides = [1, 1]} : vector<8x384xf32> to vector<8x128xf32>
    %175 = vector.extract_strided_slice %163 {offsets = [0, 256], sizes = [8, 128], strides = [1, 1]} : vector<8x384xf32> to vector<8x128xf32>
    %176 = arith.addf %175, %12 : vector<8x128xf32>
    %177 = arith.mulf %172, %176 : vector<8x128xf32>
    %178 = arith.addf %174, %177 : vector<8x128xf32>
    %179 = math.tanh %178 : vector<8x128xf32>
    %180 = arith.subf %153, %179 : vector<8x128xf32>
    %181 = arith.mulf %173, %180 : vector<8x128xf32>
    %182 = arith.addf %179, %181 : vector<8x128xf32>
    %183 = arith.truncf %182 : vector<8x128xf32> to vector<8x128xbf16>
    %184 = arith.index_cast %c5_i32 : i32 to index
    %c0_48 = arith.constant 0 : index
    %c0_49 = arith.constant 0 : index
    %185 = vector.load %arg23[%184, %c0_48, %c0_49] : memref<8x8x128xbf16, #tpu.memory_space<vmem>>, vector<1x8x128xbf16>
    %186 = vector.shape_cast %185 : vector<1x8x128xbf16> to vector<8x128xbf16>
    %187 = vector.shape_cast %183 : vector<8x128xbf16> to vector<1x8x128xbf16>
    tpu.vector_store %arg23[%184, %c0_48, %c0_49], %187 {strides = array<i32>} : memref<8x8x128xbf16, #tpu.memory_space<vmem>>, vector<1x8x128xbf16>,
    %c6_i32 = arith.constant 6 : i32
    %188 = arith.index_cast %c6_i32 : i32 to index
    %c0_50 = arith.constant 0 : index
    %c0_51 = arith.constant 0 : index
    %189 = vector.load %arg21[%188, %c0_50, %c0_51] : memref<8x8x384xf32, #tpu.memory_space<vmem>>, vector<1x8x384xf32>
    %190 = vector.shape_cast %189 : vector<1x8x384xf32> to vector<8x384xf32>
    %191 = arith.truncf %182 : vector<8x128xf32> to vector<8x128xbf16>
    %cst_52 = arith.constant dense<0.000000e+00> : vector<8x384xf32>
    %192 = tpu.matmul %191, %9, %cst_52 {dimension_numbers = #tpu.dot_dimension_numbers<[1], [0], [0], [1], [0, 0, 1, 1], [], []>} : vector<8x128xbf16>, vector<128x384xbf16>, vector<8x384xf32> -> vector<8x384xf32>
    %193 = vector.extract_strided_slice %190 {offsets = [0, 0], sizes = [8, 256], strides = [1, 1]} : vector<8x384xf32> to vector<8x256xf32>
    %194 = vector.extract_strided_slice %192 {offsets = [0, 0], sizes = [8, 256], strides = [1, 1]} : vector<8x384xf32> to vector<8x256xf32>
    %195 = arith.addf %193, %194 : vector<8x256xf32>
    %196 = arith.negf %195 : vector<8x256xf32>
    %197 = math.exp %196 : vector<8x256xf32>
    %cst_53 = arith.constant 1.000000e+00 : f32
    %198 = vector.broadcast %cst_53 : f32 to vector<8x256xf32>
    %199 = arith.addf %198, %197 : vector<8x256xf32>
    %200 = arith.divf %198, %199 : vector<8x256xf32>
    %201 = vector.extract_strided_slice %200 {offsets = [0, 0], sizes = [8, 128], strides = [1, 1]} : vector<8x256xf32> to vector<8x128xf32>
    %202 = vector.extract_strided_slice %200 {offsets = [0, 128], sizes = [8, 128], strides = [1, 1]} : vector<8x256xf32> to vector<8x128xf32>
    %203 = vector.extract_strided_slice %190 {offsets = [0, 256], sizes = [8, 128], strides = [1, 1]} : vector<8x384xf32> to vector<8x128xf32>
    %204 = vector.extract_strided_slice %192 {offsets = [0, 256], sizes = [8, 128], strides = [1, 1]} : vector<8x384xf32> to vector<8x128xf32>
    %205 = arith.addf %204, %12 : vector<8x128xf32>
    %206 = arith.mulf %201, %205 : vector<8x128xf32>
    %207 = arith.addf %203, %206 : vector<8x128xf32>
    %208 = math.tanh %207 : vector<8x128xf32>
    %209 = arith.subf %182, %208 : vector<8x128xf32>
    %210 = arith.mulf %202, %209 : vector<8x128xf32>
    %211 = arith.addf %208, %210 : vector<8x128xf32>
    %212 = arith.truncf %211 : vector<8x128xf32> to vector<8x128xbf16>
    %213 = arith.index_cast %c6_i32 : i32 to index
    %c0_54 = arith.constant 0 : index
    %c0_55 = arith.constant 0 : index
    %214 = vector.load %arg23[%213, %c0_54, %c0_55] : memref<8x8x128xbf16, #tpu.memory_space<vmem>>, vector<1x8x128xbf16>
    %215 = vector.shape_cast %214 : vector<1x8x128xbf16> to vector<8x128xbf16>
    %216 = vector.shape_cast %212 : vector<8x128xbf16> to vector<1x8x128xbf16>
    tpu.vector_store %arg23[%213, %c0_54, %c0_55], %216 {strides = array<i32>} : memref<8x8x128xbf16, #tpu.memory_space<vmem>>, vector<1x8x128xbf16>,
    %c7_i32 = arith.constant 7 : i32
    %217 = arith.index_cast %c7_i32 : i32 to index
    %c0_56 = arith.constant 0 : index
    %c0_57 = arith.constant 0 : index
    %218 = vector.load %arg21[%217, %c0_56, %c0_57] : memref<8x8x384xf32, #tpu.memory_space<vmem>>, vector<1x8x384xf32>
    %219 = vector.shape_cast %218 : vector<1x8x384xf32> to vector<8x384xf32>
    %220 = arith.truncf %211 : vector<8x128xf32> to vector<8x128xbf16>
    %cst_58 = arith.constant dense<0.000000e+00> : vector<8x384xf32>
    %221 = tpu.matmul %220, %9, %cst_58 {dimension_numbers = #tpu.dot_dimension_numbers<[1], [0], [0], [1], [0, 0, 1, 1], [], []>} : vector<8x128xbf16>, vector<128x384xbf16>, vector<8x384xf32> -> vector<8x384xf32>
    %222 = vector.extract_strided_slice %219 {offsets = [0, 0], sizes = [8, 256], strides = [1, 1]} : vector<8x384xf32> to vector<8x256xf32>
    %223 = vector.extract_strided_slice %221 {offsets = [0, 0], sizes = [8, 256], strides = [1, 1]} : vector<8x384xf32> to vector<8x256xf32>
    %224 = arith.addf %222, %223 : vector<8x256xf32>
    %225 = arith.negf %224 : vector<8x256xf32>
    %226 = math.exp %225 : vector<8x256xf32>
    %cst_59 = arith.constant 1.000000e+00 : f32
    %227 = vector.broadcast %cst_59 : f32 to vector<8x256xf32>
    %228 = arith.addf %227, %226 : vector<8x256xf32>
    %229 = arith.divf %227, %228 : vector<8x256xf32>
    %230 = vector.extract_strided_slice %229 {offsets = [0, 0], sizes = [8, 128], strides = [1, 1]} : vector<8x256xf32> to vector<8x128xf32>
    %231 = vector.extract_strided_slice %229 {offsets = [0, 128], sizes = [8, 128], strides = [1, 1]} : vector<8x256xf32> to vector<8x128xf32>
    %232 = vector.extract_strided_slice %219 {offsets = [0, 256], sizes = [8, 128], strides = [1, 1]} : vector<8x384xf32> to vector<8x128xf32>
    %233 = vector.extract_strided_slice %221 {offsets = [0, 256], sizes = [8, 128], strides = [1, 1]} : vector<8x384xf32> to vector<8x128xf32>
    %234 = arith.addf %233, %12 : vector<8x128xf32>
    %235 = arith.mulf %230, %234 : vector<8x128xf32>
    %236 = arith.addf %232, %235 : vector<8x128xf32>
    %237 = math.tanh %236 : vector<8x128xf32>
    %238 = arith.subf %211, %237 : vector<8x128xf32>
    %239 = arith.mulf %231, %238 : vector<8x128xf32>
    %240 = arith.addf %237, %239 : vector<8x128xf32>
    %241 = arith.truncf %240 : vector<8x128xf32> to vector<8x128xbf16>
    %242 = arith.index_cast %c7_i32 : i32 to index
    %c0_60 = arith.constant 0 : index
    %c0_61 = arith.constant 0 : index
    %243 = vector.load %arg23[%242, %c0_60, %c0_61] : memref<8x8x128xbf16, #tpu.memory_space<vmem>>, vector<1x8x128xbf16>
    %244 = vector.shape_cast %243 : vector<1x8x128xbf16> to vector<8x128xbf16>
    %245 = vector.shape_cast %241 : vector<8x128xbf16> to vector<1x8x128xbf16>
    tpu.vector_store %arg23[%242, %c0_60, %c0_61], %245 {strides = array<i32>} : memref<8x8x128xbf16, #tpu.memory_space<vmem>>, vector<1x8x128xbf16>,
    %c8_i32 = arith.constant 8 : i32
    %c0_62 = arith.constant 0 : index
    %c0_63 = arith.constant 0 : index
    %246 = vector.load %arg22[%c0_62, %c0_63] : memref<8x512xf32, #tpu.memory_space<vmem>>, vector<8x128xf32>
    tpu.vector_store %arg22[%c0_62, %c0_63], %240 {strides = array<i32>} : memref<8x512xf32, #tpu.memory_space<vmem>>, vector<8x128xf32>,
    %c0_64 = arith.constant 0 : index
    %c0_65 = arith.constant 0 : index
    %c0_66 = arith.constant 0 : index
    %247 = vector.load %arg23[%c0_64, %c0_65, %c0_66] : memref<8x8x128xbf16, #tpu.memory_space<vmem>>, vector<8x8x128xbf16>
    %248 = vector.shape_cast %247 : vector<8x8x128xbf16> to vector<64x128xbf16>
    %c0_67 = arith.constant 0 : index
    %c0_68 = arith.constant 0 : index
    %249 = vector.load %arg6[%c0_67, %c0_68] : memref<128x384xbf16, #tpu.memory_space<vmem>>, vector<128x384xbf16>
    %cst_69 = arith.constant dense<0.000000e+00> : vector<64x384xf32>
    %250 = tpu.matmul %248, %249, %cst_69 {dimension_numbers = #tpu.dot_dimension_numbers<[1], [0], [0], [1], [0, 0, 1, 1], [], []>} : vector<64x128xbf16>, vector<128x384xbf16>, vector<64x384xf32> -> vector<64x384xf32>
    %c0_70 = arith.constant 0 : index
    %c0_71 = arith.constant 0 : index
    %251 = vector.load %arg8[%c0_70, %c0_71] : memref<1x384xf32, #tpu.memory_space<vmem>>, vector<1x384xf32>
    %252 = vector.broadcast %251 : vector<1x384xf32> to vector<64x384xf32>
    %253 = arith.addf %250, %252 : vector<64x384xf32>
    %254 = vector.shape_cast %253 : vector<64x384xf32> to vector<8x8x384xf32>
    %c0_72 = arith.constant 0 : index
    %c0_73 = arith.constant 0 : index
    %c0_74 = arith.constant 0 : index
    %255 = vector.load %arg21[%c0_72, %c0_73, %c0_74] : memref<8x8x384xf32, #tpu.memory_space<vmem>>, vector<8x8x384xf32>
    tpu.vector_store %arg21[%c0_72, %c0_73, %c0_74], %254 {strides = array<i32>} : memref<8x8x384xf32, #tpu.memory_space<vmem>>, vector<8x8x384xf32>,
    %c0_75 = arith.constant 0 : index
    %c0_76 = arith.constant 0 : index
    %256 = vector.load %arg7[%c0_75, %c0_76] : memref<128x384xbf16, #tpu.memory_space<vmem>>, vector<128x384xbf16>
    %c0_77 = arith.constant 0 : index
    %c0_78 = arith.constant 0 : index
    %257 = vector.load %arg9[%c0_77, %c0_78] : memref<1x128xf32, #tpu.memory_space<vmem>>, vector<1x128xf32>
    %258 = vector.shape_cast %257 : vector<1x128xf32> to vector<1x128xf32>
    %259 = vector.broadcast %258 : vector<1x128xf32> to vector<8x128xf32>
    %cst_79 = arith.constant 0.000000e+00 : f32
    %260 = vector.broadcast %cst_79 : f32 to vector<8x128xf32>
    %c0_i32_80 = arith.constant 0 : i32
    %261 = arith.index_cast %c0_i32_80 : i32 to index
    %c0_81 = arith.constant 0 : index
    %c0_82 = arith.constant 0 : index
    %262 = vector.load %arg21[%261, %c0_81, %c0_82] : memref<8x8x384xf32, #tpu.memory_space<vmem>>, vector<1x8x384xf32>
    %263 = vector.shape_cast %262 : vector<1x8x384xf32> to vector<8x384xf32>
    %264 = arith.truncf %260 : vector<8x128xf32> to vector<8x128xbf16>
    %cst_83 = arith.constant dense<0.000000e+00> : vector<8x384xf32>
    %265 = tpu.matmul %264, %256, %cst_83 {dimension_numbers = #tpu.dot_dimension_numbers<[1], [0], [0], [1], [0, 0, 1, 1], [], []>} : vector<8x128xbf16>, vector<128x384xbf16>, vector<8x384xf32> -> vector<8x384xf32>
    %266 = vector.extract_strided_slice %263 {offsets = [0, 0], sizes = [8, 256], strides = [1, 1]} : vector<8x384xf32> to vector<8x256xf32>
    %267 = vector.extract_strided_slice %265 {offsets = [0, 0], sizes = [8, 256], strides = [1, 1]} : vector<8x384xf32> to vector<8x256xf32>
    %268 = arith.addf %266, %267 : vector<8x256xf32>
    %269 = arith.negf %268 : vector<8x256xf32>
    %270 = math.exp %269 : vector<8x256xf32>
    %cst_84 = arith.constant 1.000000e+00 : f32
    %271 = vector.broadcast %cst_84 : f32 to vector<8x256xf32>
    %272 = arith.addf %271, %270 : vector<8x256xf32>
    %273 = arith.divf %271, %272 : vector<8x256xf32>
    %274 = vector.extract_strided_slice %273 {offsets = [0, 0], sizes = [8, 128], strides = [1, 1]} : vector<8x256xf32> to vector<8x128xf32>
    %275 = vector.extract_strided_slice %273 {offsets = [0, 128], sizes = [8, 128], strides = [1, 1]} : vector<8x256xf32> to vector<8x128xf32>
    %276 = vector.extract_strided_slice %263 {offsets = [0, 256], sizes = [8, 128], strides = [1, 1]} : vector<8x384xf32> to vector<8x128xf32>
    %277 = vector.extract_strided_slice %265 {offsets = [0, 256], sizes = [8, 128], strides = [1, 1]} : vector<8x384xf32> to vector<8x128xf32>
    %278 = arith.addf %277, %259 : vector<8x128xf32>
    %279 = arith.mulf %274, %278 : vector<8x128xf32>
    %280 = arith.addf %276, %279 : vector<8x128xf32>
    %281 = math.tanh %280 : vector<8x128xf32>
    %282 = arith.subf %260, %281 : vector<8x128xf32>
    %283 = arith.mulf %275, %282 : vector<8x128xf32>
    %284 = arith.addf %281, %283 : vector<8x128xf32>
    %285 = arith.truncf %284 : vector<8x128xf32> to vector<8x128xbf16>
    %286 = arith.index_cast %c0_i32_80 : i32 to index
    %c0_85 = arith.constant 0 : index
    %c0_86 = arith.constant 0 : index
    %287 = vector.load %arg23[%286, %c0_85, %c0_86] : memref<8x8x128xbf16, #tpu.memory_space<vmem>>, vector<1x8x128xbf16>
    %288 = vector.shape_cast %287 : vector<1x8x128xbf16> to vector<8x128xbf16>
    %289 = vector.shape_cast %285 : vector<8x128xbf16> to vector<1x8x128xbf16>
    tpu.vector_store %arg23[%286, %c0_85, %c0_86], %289 {strides = array<i32>} : memref<8x8x128xbf16, #tpu.memory_space<vmem>>, vector<1x8x128xbf16>,
    %c1_i32_87 = arith.constant 1 : i32
    %290 = arith.index_cast %c1_i32_87 : i32 to index
    %c0_88 = arith.constant 0 : index
    %c0_89 = arith.constant 0 : index
    %291 = vector.load %arg21[%290, %c0_88, %c0_89] : memref<8x8x384xf32, #tpu.memory_space<vmem>>, vector<1x8x384xf32>
    %292 = vector.shape_cast %291 : vector<1x8x384xf32> to vector<8x384xf32>
    %293 = arith.truncf %284 : vector<8x128xf32> to vector<8x128xbf16>
    %cst_90 = arith.constant dense<0.000000e+00> : vector<8x384xf32>
    %294 = tpu.matmul %293, %256, %cst_90 {dimension_numbers = #tpu.dot_dimension_numbers<[1], [0], [0], [1], [0, 0, 1, 1], [], []>} : vector<8x128xbf16>, vector<128x384xbf16>, vector<8x384xf32> -> vector<8x384xf32>
    %295 = vector.extract_strided_slice %292 {offsets = [0, 0], sizes = [8, 256], strides = [1, 1]} : vector<8x384xf32> to vector<8x256xf32>
    %296 = vector.extract_strided_slice %294 {offsets = [0, 0], sizes = [8, 256], strides = [1, 1]} : vector<8x384xf32> to vector<8x256xf32>
    %297 = arith.addf %295, %296 : vector<8x256xf32>
    %298 = arith.negf %297 : vector<8x256xf32>
    %299 = math.exp %298 : vector<8x256xf32>
    %cst_91 = arith.constant 1.000000e+00 : f32
    %300 = vector.broadcast %cst_91 : f32 to vector<8x256xf32>
    %301 = arith.addf %300, %299 : vector<8x256xf32>
    %302 = arith.divf %300, %301 : vector<8x256xf32>
    %303 = vector.extract_strided_slice %302 {offsets = [0, 0], sizes = [8, 128], strides = [1, 1]} : vector<8x256xf32> to vector<8x128xf32>
    %304 = vector.extract_strided_slice %302 {offsets = [0, 128], sizes = [8, 128], strides = [1, 1]} : vector<8x256xf32> to vector<8x128xf32>
    %305 = vector.extract_strided_slice %292 {offsets = [0, 256], sizes = [8, 128], strides = [1, 1]} : vector<8x384xf32> to vector<8x128xf32>
    %306 = vector.extract_strided_slice %294 {offsets = [0, 256], sizes = [8, 128], strides = [1, 1]} : vector<8x384xf32> to vector<8x128xf32>
    %307 = arith.addf %306, %259 : vector<8x128xf32>
    %308 = arith.mulf %303, %307 : vector<8x128xf32>
    %309 = arith.addf %305, %308 : vector<8x128xf32>
    %310 = math.tanh %309 : vector<8x128xf32>
    %311 = arith.subf %284, %310 : vector<8x128xf32>
    %312 = arith.mulf %304, %311 : vector<8x128xf32>
    %313 = arith.addf %310, %312 : vector<8x128xf32>
    %314 = arith.truncf %313 : vector<8x128xf32> to vector<8x128xbf16>
    %315 = arith.index_cast %c1_i32_87 : i32 to index
    %c0_92 = arith.constant 0 : index
    %c0_93 = arith.constant 0 : index
    %316 = vector.load %arg23[%315, %c0_92, %c0_93] : memref<8x8x128xbf16, #tpu.memory_space<vmem>>, vector<1x8x128xbf16>
    %317 = vector.shape_cast %316 : vector<1x8x128xbf16> to vector<8x128xbf16>
    %318 = vector.shape_cast %314 : vector<8x128xbf16> to vector<1x8x128xbf16>
    tpu.vector_store %arg23[%315, %c0_92, %c0_93], %318 {strides = array<i32>} : memref<8x8x128xbf16, #tpu.memory_space<vmem>>, vector<1x8x128xbf16>,
    %c2_i32_94 = arith.constant 2 : i32
    %319 = arith.index_cast %c2_i32_94 : i32 to index
    %c0_95 = arith.constant 0 : index
    %c0_96 = arith.constant 0 : index
    %320 = vector.load %arg21[%319, %c0_95, %c0_96] : memref<8x8x384xf32, #tpu.memory_space<vmem>>, vector<1x8x384xf32>
    %321 = vector.shape_cast %320 : vector<1x8x384xf32> to vector<8x384xf32>
    %322 = arith.truncf %313 : vector<8x128xf32> to vector<8x128xbf16>
    %cst_97 = arith.constant dense<0.000000e+00> : vector<8x384xf32>
    %323 = tpu.matmul %322, %256, %cst_97 {dimension_numbers = #tpu.dot_dimension_numbers<[1], [0], [0], [1], [0, 0, 1, 1], [], []>} : vector<8x128xbf16>, vector<128x384xbf16>, vector<8x384xf32> -> vector<8x384xf32>
    %324 = vector.extract_strided_slice %321 {offsets = [0, 0], sizes = [8, 256], strides = [1, 1]} : vector<8x384xf32> to vector<8x256xf32>
    %325 = vector.extract_strided_slice %323 {offsets = [0, 0], sizes = [8, 256], strides = [1, 1]} : vector<8x384xf32> to vector<8x256xf32>
    %326 = arith.addf %324, %325 : vector<8x256xf32>
    %327 = arith.negf %326 : vector<8x256xf32>
    %328 = math.exp %327 : vector<8x256xf32>
    %cst_98 = arith.constant 1.000000e+00 : f32
    %329 = vector.broadcast %cst_98 : f32 to vector<8x256xf32>
    %330 = arith.addf %329, %328 : vector<8x256xf32>
    %331 = arith.divf %329, %330 : vector<8x256xf32>
    %332 = vector.extract_strided_slice %331 {offsets = [0, 0], sizes = [8, 128], strides = [1, 1]} : vector<8x256xf32> to vector<8x128xf32>
    %333 = vector.extract_strided_slice %331 {offsets = [0, 128], sizes = [8, 128], strides = [1, 1]} : vector<8x256xf32> to vector<8x128xf32>
    %334 = vector.extract_strided_slice %321 {offsets = [0, 256], sizes = [8, 128], strides = [1, 1]} : vector<8x384xf32> to vector<8x128xf32>
    %335 = vector.extract_strided_slice %323 {offsets = [0, 256], sizes = [8, 128], strides = [1, 1]} : vector<8x384xf32> to vector<8x128xf32>
    %336 = arith.addf %335, %259 : vector<8x128xf32>
    %337 = arith.mulf %332, %336 : vector<8x128xf32>
    %338 = arith.addf %334, %337 : vector<8x128xf32>
    %339 = math.tanh %338 : vector<8x128xf32>
    %340 = arith.subf %313, %339 : vector<8x128xf32>
    %341 = arith.mulf %333, %340 : vector<8x128xf32>
    %342 = arith.addf %339, %341 : vector<8x128xf32>
    %343 = arith.truncf %342 : vector<8x128xf32> to vector<8x128xbf16>
    %344 = arith.index_cast %c2_i32_94 : i32 to index
    %c0_99 = arith.constant 0 : index
    %c0_100 = arith.constant 0 : index
    %345 = vector.load %arg23[%344, %c0_99, %c0_100] : memref<8x8x128xbf16, #tpu.memory_space<vmem>>, vector<1x8x128xbf16>
    %346 = vector.shape_cast %345 : vector<1x8x128xbf16> to vector<8x128xbf16>
    %347 = vector.shape_cast %343 : vector<8x128xbf16> to vector<1x8x128xbf16>
    tpu.vector_store %arg23[%344, %c0_99, %c0_100], %347 {strides = array<i32>} : memref<8x8x128xbf16, #tpu.memory_space<vmem>>, vector<1x8x128xbf16>,
    %c3_i32_101 = arith.constant 3 : i32
    %348 = arith.index_cast %c3_i32_101 : i32 to index
    %c0_102 = arith.constant 0 : index
    %c0_103 = arith.constant 0 : index
    %349 = vector.load %arg21[%348, %c0_102, %c0_103] : memref<8x8x384xf32, #tpu.memory_space<vmem>>, vector<1x8x384xf32>
    %350 = vector.shape_cast %349 : vector<1x8x384xf32> to vector<8x384xf32>
    %351 = arith.truncf %342 : vector<8x128xf32> to vector<8x128xbf16>
    %cst_104 = arith.constant dense<0.000000e+00> : vector<8x384xf32>
    %352 = tpu.matmul %351, %256, %cst_104 {dimension_numbers = #tpu.dot_dimension_numbers<[1], [0], [0], [1], [0, 0, 1, 1], [], []>} : vector<8x128xbf16>, vector<128x384xbf16>, vector<8x384xf32> -> vector<8x384xf32>
    %353 = vector.extract_strided_slice %350 {offsets = [0, 0], sizes = [8, 256], strides = [1, 1]} : vector<8x384xf32> to vector<8x256xf32>
    %354 = vector.extract_strided_slice %352 {offsets = [0, 0], sizes = [8, 256], strides = [1, 1]} : vector<8x384xf32> to vector<8x256xf32>
    %355 = arith.addf %353, %354 : vector<8x256xf32>
    %356 = arith.negf %355 : vector<8x256xf32>
    %357 = math.exp %356 : vector<8x256xf32>
    %cst_105 = arith.constant 1.000000e+00 : f32
    %358 = vector.broadcast %cst_105 : f32 to vector<8x256xf32>
    %359 = arith.addf %358, %357 : vector<8x256xf32>
    %360 = arith.divf %358, %359 : vector<8x256xf32>
    %361 = vector.extract_strided_slice %360 {offsets = [0, 0], sizes = [8, 128], strides = [1, 1]} : vector<8x256xf32> to vector<8x128xf32>
    %362 = vector.extract_strided_slice %360 {offsets = [0, 128], sizes = [8, 128], strides = [1, 1]} : vector<8x256xf32> to vector<8x128xf32>
    %363 = vector.extract_strided_slice %350 {offsets = [0, 256], sizes = [8, 128], strides = [1, 1]} : vector<8x384xf32> to vector<8x128xf32>
    %364 = vector.extract_strided_slice %352 {offsets = [0, 256], sizes = [8, 128], strides = [1, 1]} : vector<8x384xf32> to vector<8x128xf32>
    %365 = arith.addf %364, %259 : vector<8x128xf32>
    %366 = arith.mulf %361, %365 : vector<8x128xf32>
    %367 = arith.addf %363, %366 : vector<8x128xf32>
    %368 = math.tanh %367 : vector<8x128xf32>
    %369 = arith.subf %342, %368 : vector<8x128xf32>
    %370 = arith.mulf %362, %369 : vector<8x128xf32>
    %371 = arith.addf %368, %370 : vector<8x128xf32>
    %372 = arith.truncf %371 : vector<8x128xf32> to vector<8x128xbf16>
    %373 = arith.index_cast %c3_i32_101 : i32 to index
    %c0_106 = arith.constant 0 : index
    %c0_107 = arith.constant 0 : index
    %374 = vector.load %arg23[%373, %c0_106, %c0_107] : memref<8x8x128xbf16, #tpu.memory_space<vmem>>, vector<1x8x128xbf16>
    %375 = vector.shape_cast %374 : vector<1x8x128xbf16> to vector<8x128xbf16>
    %376 = vector.shape_cast %372 : vector<8x128xbf16> to vector<1x8x128xbf16>
    tpu.vector_store %arg23[%373, %c0_106, %c0_107], %376 {strides = array<i32>} : memref<8x8x128xbf16, #tpu.memory_space<vmem>>, vector<1x8x128xbf16>,
    %c4_i32_108 = arith.constant 4 : i32
    %377 = arith.index_cast %c4_i32_108 : i32 to index
    %c0_109 = arith.constant 0 : index
    %c0_110 = arith.constant 0 : index
    %378 = vector.load %arg21[%377, %c0_109, %c0_110] : memref<8x8x384xf32, #tpu.memory_space<vmem>>, vector<1x8x384xf32>
    %379 = vector.shape_cast %378 : vector<1x8x384xf32> to vector<8x384xf32>
    %380 = arith.truncf %371 : vector<8x128xf32> to vector<8x128xbf16>
    %cst_111 = arith.constant dense<0.000000e+00> : vector<8x384xf32>
    %381 = tpu.matmul %380, %256, %cst_111 {dimension_numbers = #tpu.dot_dimension_numbers<[1], [0], [0], [1], [0, 0, 1, 1], [], []>} : vector<8x128xbf16>, vector<128x384xbf16>, vector<8x384xf32> -> vector<8x384xf32>
    %382 = vector.extract_strided_slice %379 {offsets = [0, 0], sizes = [8, 256], strides = [1, 1]} : vector<8x384xf32> to vector<8x256xf32>
    %383 = vector.extract_strided_slice %381 {offsets = [0, 0], sizes = [8, 256], strides = [1, 1]} : vector<8x384xf32> to vector<8x256xf32>
    %384 = arith.addf %382, %383 : vector<8x256xf32>
    %385 = arith.negf %384 : vector<8x256xf32>
    %386 = math.exp %385 : vector<8x256xf32>
    %cst_112 = arith.constant 1.000000e+00 : f32
    %387 = vector.broadcast %cst_112 : f32 to vector<8x256xf32>
    %388 = arith.addf %387, %386 : vector<8x256xf32>
    %389 = arith.divf %387, %388 : vector<8x256xf32>
    %390 = vector.extract_strided_slice %389 {offsets = [0, 0], sizes = [8, 128], strides = [1, 1]} : vector<8x256xf32> to vector<8x128xf32>
    %391 = vector.extract_strided_slice %389 {offsets = [0, 128], sizes = [8, 128], strides = [1, 1]} : vector<8x256xf32> to vector<8x128xf32>
    %392 = vector.extract_strided_slice %379 {offsets = [0, 256], sizes = [8, 128], strides = [1, 1]} : vector<8x384xf32> to vector<8x128xf32>
    %393 = vector.extract_strided_slice %381 {offsets = [0, 256], sizes = [8, 128], strides = [1, 1]} : vector<8x384xf32> to vector<8x128xf32>
    %394 = arith.addf %393, %259 : vector<8x128xf32>
    %395 = arith.mulf %390, %394 : vector<8x128xf32>
    %396 = arith.addf %392, %395 : vector<8x128xf32>
    %397 = math.tanh %396 : vector<8x128xf32>
    %398 = arith.subf %371, %397 : vector<8x128xf32>
    %399 = arith.mulf %391, %398 : vector<8x128xf32>
    %400 = arith.addf %397, %399 : vector<8x128xf32>
    %401 = arith.truncf %400 : vector<8x128xf32> to vector<8x128xbf16>
    %402 = arith.index_cast %c4_i32_108 : i32 to index
    %c0_113 = arith.constant 0 : index
    %c0_114 = arith.constant 0 : index
    %403 = vector.load %arg23[%402, %c0_113, %c0_114] : memref<8x8x128xbf16, #tpu.memory_space<vmem>>, vector<1x8x128xbf16>
    %404 = vector.shape_cast %403 : vector<1x8x128xbf16> to vector<8x128xbf16>
    %405 = vector.shape_cast %401 : vector<8x128xbf16> to vector<1x8x128xbf16>
    tpu.vector_store %arg23[%402, %c0_113, %c0_114], %405 {strides = array<i32>} : memref<8x8x128xbf16, #tpu.memory_space<vmem>>, vector<1x8x128xbf16>,
    %c5_i32_115 = arith.constant 5 : i32
    %406 = arith.index_cast %c5_i32_115 : i32 to index
    %c0_116 = arith.constant 0 : index
    %c0_117 = arith.constant 0 : index
    %407 = vector.load %arg21[%406, %c0_116, %c0_117] : memref<8x8x384xf32, #tpu.memory_space<vmem>>, vector<1x8x384xf32>
    %408 = vector.shape_cast %407 : vector<1x8x384xf32> to vector<8x384xf32>
    %409 = arith.truncf %400 : vector<8x128xf32> to vector<8x128xbf16>
    %cst_118 = arith.constant dense<0.000000e+00> : vector<8x384xf32>
    %410 = tpu.matmul %409, %256, %cst_118 {dimension_numbers = #tpu.dot_dimension_numbers<[1], [0], [0], [1], [0, 0, 1, 1], [], []>} : vector<8x128xbf16>, vector<128x384xbf16>, vector<8x384xf32> -> vector<8x384xf32>
    %411 = vector.extract_strided_slice %408 {offsets = [0, 0], sizes = [8, 256], strides = [1, 1]} : vector<8x384xf32> to vector<8x256xf32>
    %412 = vector.extract_strided_slice %410 {offsets = [0, 0], sizes = [8, 256], strides = [1, 1]} : vector<8x384xf32> to vector<8x256xf32>
    %413 = arith.addf %411, %412 : vector<8x256xf32>
    %414 = arith.negf %413 : vector<8x256xf32>
    %415 = math.exp %414 : vector<8x256xf32>
    %cst_119 = arith.constant 1.000000e+00 : f32
    %416 = vector.broadcast %cst_119 : f32 to vector<8x256xf32>
    %417 = arith.addf %416, %415 : vector<8x256xf32>
    %418 = arith.divf %416, %417 : vector<8x256xf32>
    %419 = vector.extract_strided_slice %418 {offsets = [0, 0], sizes = [8, 128], strides = [1, 1]} : vector<8x256xf32> to vector<8x128xf32>
    %420 = vector.extract_strided_slice %418 {offsets = [0, 128], sizes = [8, 128], strides = [1, 1]} : vector<8x256xf32> to vector<8x128xf32>
    %421 = vector.extract_strided_slice %408 {offsets = [0, 256], sizes = [8, 128], strides = [1, 1]} : vector<8x384xf32> to vector<8x128xf32>
    %422 = vector.extract_strided_slice %410 {offsets = [0, 256], sizes = [8, 128], strides = [1, 1]} : vector<8x384xf32> to vector<8x128xf32>
    %423 = arith.addf %422, %259 : vector<8x128xf32>
    %424 = arith.mulf %419, %423 : vector<8x128xf32>
    %425 = arith.addf %421, %424 : vector<8x128xf32>
    %426 = math.tanh %425 : vector<8x128xf32>
    %427 = arith.subf %400, %426 : vector<8x128xf32>
    %428 = arith.mulf %420, %427 : vector<8x128xf32>
    %429 = arith.addf %426, %428 : vector<8x128xf32>
    %430 = arith.truncf %429 : vector<8x128xf32> to vector<8x128xbf16>
    %431 = arith.index_cast %c5_i32_115 : i32 to index
    %c0_120 = arith.constant 0 : index
    %c0_121 = arith.constant 0 : index
    %432 = vector.load %arg23[%431, %c0_120, %c0_121] : memref<8x8x128xbf16, #tpu.memory_space<vmem>>, vector<1x8x128xbf16>
    %433 = vector.shape_cast %432 : vector<1x8x128xbf16> to vector<8x128xbf16>
    %434 = vector.shape_cast %430 : vector<8x128xbf16> to vector<1x8x128xbf16>
    tpu.vector_store %arg23[%431, %c0_120, %c0_121], %434 {strides = array<i32>} : memref<8x8x128xbf16, #tpu.memory_space<vmem>>, vector<1x8x128xbf16>,
    %c6_i32_122 = arith.constant 6 : i32
    %435 = arith.index_cast %c6_i32_122 : i32 to index
    %c0_123 = arith.constant 0 : index
    %c0_124 = arith.constant 0 : index
    %436 = vector.load %arg21[%435, %c0_123, %c0_124] : memref<8x8x384xf32, #tpu.memory_space<vmem>>, vector<1x8x384xf32>
    %437 = vector.shape_cast %436 : vector<1x8x384xf32> to vector<8x384xf32>
    %438 = arith.truncf %429 : vector<8x128xf32> to vector<8x128xbf16>
    %cst_125 = arith.constant dense<0.000000e+00> : vector<8x384xf32>
    %439 = tpu.matmul %438, %256, %cst_125 {dimension_numbers = #tpu.dot_dimension_numbers<[1], [0], [0], [1], [0, 0, 1, 1], [], []>} : vector<8x128xbf16>, vector<128x384xbf16>, vector<8x384xf32> -> vector<8x384xf32>
    %440 = vector.extract_strided_slice %437 {offsets = [0, 0], sizes = [8, 256], strides = [1, 1]} : vector<8x384xf32> to vector<8x256xf32>
    %441 = vector.extract_strided_slice %439 {offsets = [0, 0], sizes = [8, 256], strides = [1, 1]} : vector<8x384xf32> to vector<8x256xf32>
    %442 = arith.addf %440, %441 : vector<8x256xf32>
    %443 = arith.negf %442 : vector<8x256xf32>
    %444 = math.exp %443 : vector<8x256xf32>
    %cst_126 = arith.constant 1.000000e+00 : f32
    %445 = vector.broadcast %cst_126 : f32 to vector<8x256xf32>
    %446 = arith.addf %445, %444 : vector<8x256xf32>
    %447 = arith.divf %445, %446 : vector<8x256xf32>
    %448 = vector.extract_strided_slice %447 {offsets = [0, 0], sizes = [8, 128], strides = [1, 1]} : vector<8x256xf32> to vector<8x128xf32>
    %449 = vector.extract_strided_slice %447 {offsets = [0, 128], sizes = [8, 128], strides = [1, 1]} : vector<8x256xf32> to vector<8x128xf32>
    %450 = vector.extract_strided_slice %437 {offsets = [0, 256], sizes = [8, 128], strides = [1, 1]} : vector<8x384xf32> to vector<8x128xf32>
    %451 = vector.extract_strided_slice %439 {offsets = [0, 256], sizes = [8, 128], strides = [1, 1]} : vector<8x384xf32> to vector<8x128xf32>
    %452 = arith.addf %451, %259 : vector<8x128xf32>
    %453 = arith.mulf %448, %452 : vector<8x128xf32>
    %454 = arith.addf %450, %453 : vector<8x128xf32>
    %455 = math.tanh %454 : vector<8x128xf32>
    %456 = arith.subf %429, %455 : vector<8x128xf32>
    %457 = arith.mulf %449, %456 : vector<8x128xf32>
    %458 = arith.addf %455, %457 : vector<8x128xf32>
    %459 = arith.truncf %458 : vector<8x128xf32> to vector<8x128xbf16>
    %460 = arith.index_cast %c6_i32_122 : i32 to index
    %c0_127 = arith.constant 0 : index
    %c0_128 = arith.constant 0 : index
    %461 = vector.load %arg23[%460, %c0_127, %c0_128] : memref<8x8x128xbf16, #tpu.memory_space<vmem>>, vector<1x8x128xbf16>
    %462 = vector.shape_cast %461 : vector<1x8x128xbf16> to vector<8x128xbf16>
    %463 = vector.shape_cast %459 : vector<8x128xbf16> to vector<1x8x128xbf16>
    tpu.vector_store %arg23[%460, %c0_127, %c0_128], %463 {strides = array<i32>} : memref<8x8x128xbf16, #tpu.memory_space<vmem>>, vector<1x8x128xbf16>,
    %c7_i32_129 = arith.constant 7 : i32
    %464 = arith.index_cast %c7_i32_129 : i32 to index
    %c0_130 = arith.constant 0 : index
    %c0_131 = arith.constant 0 : index
    %465 = vector.load %arg21[%464, %c0_130, %c0_131] : memref<8x8x384xf32, #tpu.memory_space<vmem>>, vector<1x8x384xf32>
    %466 = vector.shape_cast %465 : vector<1x8x384xf32> to vector<8x384xf32>
    %467 = arith.truncf %458 : vector<8x128xf32> to vector<8x128xbf16>
    %cst_132 = arith.constant dense<0.000000e+00> : vector<8x384xf32>
    %468 = tpu.matmul %467, %256, %cst_132 {dimension_numbers = #tpu.dot_dimension_numbers<[1], [0], [0], [1], [0, 0, 1, 1], [], []>} : vector<8x128xbf16>, vector<128x384xbf16>, vector<8x384xf32> -> vector<8x384xf32>
    %469 = vector.extract_strided_slice %466 {offsets = [0, 0], sizes = [8, 256], strides = [1, 1]} : vector<8x384xf32> to vector<8x256xf32>
    %470 = vector.extract_strided_slice %468 {offsets = [0, 0], sizes = [8, 256], strides = [1, 1]} : vector<8x384xf32> to vector<8x256xf32>
    %471 = arith.addf %469, %470 : vector<8x256xf32>
    %472 = arith.negf %471 : vector<8x256xf32>
    %473 = math.exp %472 : vector<8x256xf32>
    %cst_133 = arith.constant 1.000000e+00 : f32
    %474 = vector.broadcast %cst_133 : f32 to vector<8x256xf32>
    %475 = arith.addf %474, %473 : vector<8x256xf32>
    %476 = arith.divf %474, %475 : vector<8x256xf32>
    %477 = vector.extract_strided_slice %476 {offsets = [0, 0], sizes = [8, 128], strides = [1, 1]} : vector<8x256xf32> to vector<8x128xf32>
    %478 = vector.extract_strided_slice %476 {offsets = [0, 128], sizes = [8, 128], strides = [1, 1]} : vector<8x256xf32> to vector<8x128xf32>
    %479 = vector.extract_strided_slice %466 {offsets = [0, 256], sizes = [8, 128], strides = [1, 1]} : vector<8x384xf32> to vector<8x128xf32>
    %480 = vector.extract_strided_slice %468 {offsets = [0, 256], sizes = [8, 128], strides = [1, 1]} : vector<8x384xf32> to vector<8x128xf32>
    %481 = arith.addf %480, %259 : vector<8x128xf32>
    %482 = arith.mulf %477, %481 : vector<8x128xf32>
    %483 = arith.addf %479, %482 : vector<8x128xf32>
    %484 = math.tanh %483 : vector<8x128xf32>
    %485 = arith.subf %458, %484 : vector<8x128xf32>
    %486 = arith.mulf %478, %485 : vector<8x128xf32>
    %487 = arith.addf %484, %486 : vector<8x128xf32>
    %488 = arith.truncf %487 : vector<8x128xf32> to vector<8x128xbf16>
    %489 = arith.index_cast %c7_i32_129 : i32 to index
    %c0_134 = arith.constant 0 : index
    %c0_135 = arith.constant 0 : index
    %490 = vector.load %arg23[%489, %c0_134, %c0_135] : memref<8x8x128xbf16, #tpu.memory_space<vmem>>, vector<1x8x128xbf16>
    %491 = vector.shape_cast %490 : vector<1x8x128xbf16> to vector<8x128xbf16>
    %492 = vector.shape_cast %488 : vector<8x128xbf16> to vector<1x8x128xbf16>
    tpu.vector_store %arg23[%489, %c0_134, %c0_135], %492 {strides = array<i32>} : memref<8x8x128xbf16, #tpu.memory_space<vmem>>, vector<1x8x128xbf16>,
    %c8_i32_136 = arith.constant 8 : i32
    %c0_137 = arith.constant 0 : index
    %c128 = arith.constant 128 : index
    %493 = vector.load %arg22[%c0_137, %c128] : memref<8x512xf32, #tpu.memory_space<vmem>>, vector<8x128xf32>
    tpu.vector_store %arg22[%c0_137, %c128], %487 {strides = array<i32>} : memref<8x512xf32, #tpu.memory_space<vmem>>, vector<8x128xf32>,
    %c0_138 = arith.constant 0 : index
    %c0_139 = arith.constant 0 : index
    %c0_140 = arith.constant 0 : index
    %494 = vector.load %arg23[%c0_138, %c0_139, %c0_140] : memref<8x8x128xbf16, #tpu.memory_space<vmem>>, vector<8x8x128xbf16>
    %495 = vector.shape_cast %494 : vector<8x8x128xbf16> to vector<64x128xbf16>
    %c0_141 = arith.constant 0 : index
    %c0_142 = arith.constant 0 : index
    %496 = vector.load %arg10[%c0_141, %c0_142] : memref<128x384xbf16, #tpu.memory_space<vmem>>, vector<128x384xbf16>
    %cst_143 = arith.constant dense<0.000000e+00> : vector<64x384xf32>
    %497 = tpu.matmul %495, %496, %cst_143 {dimension_numbers = #tpu.dot_dimension_numbers<[1], [0], [0], [1], [0, 0, 1, 1], [], []>} : vector<64x128xbf16>, vector<128x384xbf16>, vector<64x384xf32> -> vector<64x384xf32>
    %c0_144 = arith.constant 0 : index
    %c0_145 = arith.constant 0 : index
    %498 = vector.load %arg12[%c0_144, %c0_145] : memref<1x384xf32, #tpu.memory_space<vmem>>, vector<1x384xf32>
    %499 = vector.broadcast %498 : vector<1x384xf32> to vector<64x384xf32>
    %500 = arith.addf %497, %499 : vector<64x384xf32>
    %501 = vector.shape_cast %500 : vector<64x384xf32> to vector<8x8x384xf32>
    %c0_146 = arith.constant 0 : index
    %c0_147 = arith.constant 0 : index
    %c0_148 = arith.constant 0 : index
    %502 = vector.load %arg21[%c0_146, %c0_147, %c0_148] : memref<8x8x384xf32, #tpu.memory_space<vmem>>, vector<8x8x384xf32>
    tpu.vector_store %arg21[%c0_146, %c0_147, %c0_148], %501 {strides = array<i32>} : memref<8x8x384xf32, #tpu.memory_space<vmem>>, vector<8x8x384xf32>,
    %c0_149 = arith.constant 0 : index
    %c0_150 = arith.constant 0 : index
    %503 = vector.load %arg11[%c0_149, %c0_150] : memref<128x384xbf16, #tpu.memory_space<vmem>>, vector<128x384xbf16>
    %c0_151 = arith.constant 0 : index
    %c0_152 = arith.constant 0 : index
    %504 = vector.load %arg13[%c0_151, %c0_152] : memref<1x128xf32, #tpu.memory_space<vmem>>, vector<1x128xf32>
    %505 = vector.shape_cast %504 : vector<1x128xf32> to vector<1x128xf32>
    %506 = vector.broadcast %505 : vector<1x128xf32> to vector<8x128xf32>
    %cst_153 = arith.constant 0.000000e+00 : f32
    %507 = vector.broadcast %cst_153 : f32 to vector<8x128xf32>
    %c0_i32_154 = arith.constant 0 : i32
    %508 = arith.index_cast %c0_i32_154 : i32 to index
    %c0_155 = arith.constant 0 : index
    %c0_156 = arith.constant 0 : index
    %509 = vector.load %arg21[%508, %c0_155, %c0_156] : memref<8x8x384xf32, #tpu.memory_space<vmem>>, vector<1x8x384xf32>
    %510 = vector.shape_cast %509 : vector<1x8x384xf32> to vector<8x384xf32>
    %511 = arith.truncf %507 : vector<8x128xf32> to vector<8x128xbf16>
    %cst_157 = arith.constant dense<0.000000e+00> : vector<8x384xf32>
    %512 = tpu.matmul %511, %503, %cst_157 {dimension_numbers = #tpu.dot_dimension_numbers<[1], [0], [0], [1], [0, 0, 1, 1], [], []>} : vector<8x128xbf16>, vector<128x384xbf16>, vector<8x384xf32> -> vector<8x384xf32>
    %513 = vector.extract_strided_slice %510 {offsets = [0, 0], sizes = [8, 256], strides = [1, 1]} : vector<8x384xf32> to vector<8x256xf32>
    %514 = vector.extract_strided_slice %512 {offsets = [0, 0], sizes = [8, 256], strides = [1, 1]} : vector<8x384xf32> to vector<8x256xf32>
    %515 = arith.addf %513, %514 : vector<8x256xf32>
    %516 = arith.negf %515 : vector<8x256xf32>
    %517 = math.exp %516 : vector<8x256xf32>
    %cst_158 = arith.constant 1.000000e+00 : f32
    %518 = vector.broadcast %cst_158 : f32 to vector<8x256xf32>
    %519 = arith.addf %518, %517 : vector<8x256xf32>
    %520 = arith.divf %518, %519 : vector<8x256xf32>
    %521 = vector.extract_strided_slice %520 {offsets = [0, 0], sizes = [8, 128], strides = [1, 1]} : vector<8x256xf32> to vector<8x128xf32>
    %522 = vector.extract_strided_slice %520 {offsets = [0, 128], sizes = [8, 128], strides = [1, 1]} : vector<8x256xf32> to vector<8x128xf32>
    %523 = vector.extract_strided_slice %510 {offsets = [0, 256], sizes = [8, 128], strides = [1, 1]} : vector<8x384xf32> to vector<8x128xf32>
    %524 = vector.extract_strided_slice %512 {offsets = [0, 256], sizes = [8, 128], strides = [1, 1]} : vector<8x384xf32> to vector<8x128xf32>
    %525 = arith.addf %524, %506 : vector<8x128xf32>
    %526 = arith.mulf %521, %525 : vector<8x128xf32>
    %527 = arith.addf %523, %526 : vector<8x128xf32>
    %528 = math.tanh %527 : vector<8x128xf32>
    %529 = arith.subf %507, %528 : vector<8x128xf32>
    %530 = arith.mulf %522, %529 : vector<8x128xf32>
    %531 = arith.addf %528, %530 : vector<8x128xf32>
    %532 = arith.truncf %531 : vector<8x128xf32> to vector<8x128xbf16>
    %533 = arith.index_cast %c0_i32_154 : i32 to index
    %c0_159 = arith.constant 0 : index
    %c0_160 = arith.constant 0 : index
    %534 = vector.load %arg23[%533, %c0_159, %c0_160] : memref<8x8x128xbf16, #tpu.memory_space<vmem>>, vector<1x8x128xbf16>
    %535 = vector.shape_cast %534 : vector<1x8x128xbf16> to vector<8x128xbf16>
    %536 = vector.shape_cast %532 : vector<8x128xbf16> to vector<1x8x128xbf16>
    tpu.vector_store %arg23[%533, %c0_159, %c0_160], %536 {strides = array<i32>} : memref<8x8x128xbf16, #tpu.memory_space<vmem>>, vector<1x8x128xbf16>,
    %c1_i32_161 = arith.constant 1 : i32
    %537 = arith.index_cast %c1_i32_161 : i32 to index
    %c0_162 = arith.constant 0 : index
    %c0_163 = arith.constant 0 : index
    %538 = vector.load %arg21[%537, %c0_162, %c0_163] : memref<8x8x384xf32, #tpu.memory_space<vmem>>, vector<1x8x384xf32>
    %539 = vector.shape_cast %538 : vector<1x8x384xf32> to vector<8x384xf32>
    %540 = arith.truncf %531 : vector<8x128xf32> to vector<8x128xbf16>
    %cst_164 = arith.constant dense<0.000000e+00> : vector<8x384xf32>
    %541 = tpu.matmul %540, %503, %cst_164 {dimension_numbers = #tpu.dot_dimension_numbers<[1], [0], [0], [1], [0, 0, 1, 1], [], []>} : vector<8x128xbf16>, vector<128x384xbf16>, vector<8x384xf32> -> vector<8x384xf32>
    %542 = vector.extract_strided_slice %539 {offsets = [0, 0], sizes = [8, 256], strides = [1, 1]} : vector<8x384xf32> to vector<8x256xf32>
    %543 = vector.extract_strided_slice %541 {offsets = [0, 0], sizes = [8, 256], strides = [1, 1]} : vector<8x384xf32> to vector<8x256xf32>
    %544 = arith.addf %542, %543 : vector<8x256xf32>
    %545 = arith.negf %544 : vector<8x256xf32>
    %546 = math.exp %545 : vector<8x256xf32>
    %cst_165 = arith.constant 1.000000e+00 : f32
    %547 = vector.broadcast %cst_165 : f32 to vector<8x256xf32>
    %548 = arith.addf %547, %546 : vector<8x256xf32>
    %549 = arith.divf %547, %548 : vector<8x256xf32>
    %550 = vector.extract_strided_slice %549 {offsets = [0, 0], sizes = [8, 128], strides = [1, 1]} : vector<8x256xf32> to vector<8x128xf32>
    %551 = vector.extract_strided_slice %549 {offsets = [0, 128], sizes = [8, 128], strides = [1, 1]} : vector<8x256xf32> to vector<8x128xf32>
    %552 = vector.extract_strided_slice %539 {offsets = [0, 256], sizes = [8, 128], strides = [1, 1]} : vector<8x384xf32> to vector<8x128xf32>
    %553 = vector.extract_strided_slice %541 {offsets = [0, 256], sizes = [8, 128], strides = [1, 1]} : vector<8x384xf32> to vector<8x128xf32>
    %554 = arith.addf %553, %506 : vector<8x128xf32>
    %555 = arith.mulf %550, %554 : vector<8x128xf32>
    %556 = arith.addf %552, %555 : vector<8x128xf32>
    %557 = math.tanh %556 : vector<8x128xf32>
    %558 = arith.subf %531, %557 : vector<8x128xf32>
    %559 = arith.mulf %551, %558 : vector<8x128xf32>
    %560 = arith.addf %557, %559 : vector<8x128xf32>
    %561 = arith.truncf %560 : vector<8x128xf32> to vector<8x128xbf16>
    %562 = arith.index_cast %c1_i32_161 : i32 to index
    %c0_166 = arith.constant 0 : index
    %c0_167 = arith.constant 0 : index
    %563 = vector.load %arg23[%562, %c0_166, %c0_167] : memref<8x8x128xbf16, #tpu.memory_space<vmem>>, vector<1x8x128xbf16>
    %564 = vector.shape_cast %563 : vector<1x8x128xbf16> to vector<8x128xbf16>
    %565 = vector.shape_cast %561 : vector<8x128xbf16> to vector<1x8x128xbf16>
    tpu.vector_store %arg23[%562, %c0_166, %c0_167], %565 {strides = array<i32>} : memref<8x8x128xbf16, #tpu.memory_space<vmem>>, vector<1x8x128xbf16>,
    %c2_i32_168 = arith.constant 2 : i32
    %566 = arith.index_cast %c2_i32_168 : i32 to index
    %c0_169 = arith.constant 0 : index
    %c0_170 = arith.constant 0 : index
    %567 = vector.load %arg21[%566, %c0_169, %c0_170] : memref<8x8x384xf32, #tpu.memory_space<vmem>>, vector<1x8x384xf32>
    %568 = vector.shape_cast %567 : vector<1x8x384xf32> to vector<8x384xf32>
    %569 = arith.truncf %560 : vector<8x128xf32> to vector<8x128xbf16>
    %cst_171 = arith.constant dense<0.000000e+00> : vector<8x384xf32>
    %570 = tpu.matmul %569, %503, %cst_171 {dimension_numbers = #tpu.dot_dimension_numbers<[1], [0], [0], [1], [0, 0, 1, 1], [], []>} : vector<8x128xbf16>, vector<128x384xbf16>, vector<8x384xf32> -> vector<8x384xf32>
    %571 = vector.extract_strided_slice %568 {offsets = [0, 0], sizes = [8, 256], strides = [1, 1]} : vector<8x384xf32> to vector<8x256xf32>
    %572 = vector.extract_strided_slice %570 {offsets = [0, 0], sizes = [8, 256], strides = [1, 1]} : vector<8x384xf32> to vector<8x256xf32>
    %573 = arith.addf %571, %572 : vector<8x256xf32>
    %574 = arith.negf %573 : vector<8x256xf32>
    %575 = math.exp %574 : vector<8x256xf32>
    %cst_172 = arith.constant 1.000000e+00 : f32
    %576 = vector.broadcast %cst_172 : f32 to vector<8x256xf32>
    %577 = arith.addf %576, %575 : vector<8x256xf32>
    %578 = arith.divf %576, %577 : vector<8x256xf32>
    %579 = vector.extract_strided_slice %578 {offsets = [0, 0], sizes = [8, 128], strides = [1, 1]} : vector<8x256xf32> to vector<8x128xf32>
    %580 = vector.extract_strided_slice %578 {offsets = [0, 128], sizes = [8, 128], strides = [1, 1]} : vector<8x256xf32> to vector<8x128xf32>
    %581 = vector.extract_strided_slice %568 {offsets = [0, 256], sizes = [8, 128], strides = [1, 1]} : vector<8x384xf32> to vector<8x128xf32>
    %582 = vector.extract_strided_slice %570 {offsets = [0, 256], sizes = [8, 128], strides = [1, 1]} : vector<8x384xf32> to vector<8x128xf32>
    %583 = arith.addf %582, %506 : vector<8x128xf32>
    %584 = arith.mulf %579, %583 : vector<8x128xf32>
    %585 = arith.addf %581, %584 : vector<8x128xf32>
    %586 = math.tanh %585 : vector<8x128xf32>
    %587 = arith.subf %560, %586 : vector<8x128xf32>
    %588 = arith.mulf %580, %587 : vector<8x128xf32>
    %589 = arith.addf %586, %588 : vector<8x128xf32>
    %590 = arith.truncf %589 : vector<8x128xf32> to vector<8x128xbf16>
    %591 = arith.index_cast %c2_i32_168 : i32 to index
    %c0_173 = arith.constant 0 : index
    %c0_174 = arith.constant 0 : index
    %592 = vector.load %arg23[%591, %c0_173, %c0_174] : memref<8x8x128xbf16, #tpu.memory_space<vmem>>, vector<1x8x128xbf16>
    %593 = vector.shape_cast %592 : vector<1x8x128xbf16> to vector<8x128xbf16>
    %594 = vector.shape_cast %590 : vector<8x128xbf16> to vector<1x8x128xbf16>
    tpu.vector_store %arg23[%591, %c0_173, %c0_174], %594 {strides = array<i32>} : memref<8x8x128xbf16, #tpu.memory_space<vmem>>, vector<1x8x128xbf16>,
    %c3_i32_175 = arith.constant 3 : i32
    %595 = arith.index_cast %c3_i32_175 : i32 to index
    %c0_176 = arith.constant 0 : index
    %c0_177 = arith.constant 0 : index
    %596 = vector.load %arg21[%595, %c0_176, %c0_177] : memref<8x8x384xf32, #tpu.memory_space<vmem>>, vector<1x8x384xf32>
    %597 = vector.shape_cast %596 : vector<1x8x384xf32> to vector<8x384xf32>
    %598 = arith.truncf %589 : vector<8x128xf32> to vector<8x128xbf16>
    %cst_178 = arith.constant dense<0.000000e+00> : vector<8x384xf32>
    %599 = tpu.matmul %598, %503, %cst_178 {dimension_numbers = #tpu.dot_dimension_numbers<[1], [0], [0], [1], [0, 0, 1, 1], [], []>} : vector<8x128xbf16>, vector<128x384xbf16>, vector<8x384xf32> -> vector<8x384xf32>
    %600 = vector.extract_strided_slice %597 {offsets = [0, 0], sizes = [8, 256], strides = [1, 1]} : vector<8x384xf32> to vector<8x256xf32>
    %601 = vector.extract_strided_slice %599 {offsets = [0, 0], sizes = [8, 256], strides = [1, 1]} : vector<8x384xf32> to vector<8x256xf32>
    %602 = arith.addf %600, %601 : vector<8x256xf32>
    %603 = arith.negf %602 : vector<8x256xf32>
    %604 = math.exp %603 : vector<8x256xf32>
    %cst_179 = arith.constant 1.000000e+00 : f32
    %605 = vector.broadcast %cst_179 : f32 to vector<8x256xf32>
    %606 = arith.addf %605, %604 : vector<8x256xf32>
    %607 = arith.divf %605, %606 : vector<8x256xf32>
    %608 = vector.extract_strided_slice %607 {offsets = [0, 0], sizes = [8, 128], strides = [1, 1]} : vector<8x256xf32> to vector<8x128xf32>
    %609 = vector.extract_strided_slice %607 {offsets = [0, 128], sizes = [8, 128], strides = [1, 1]} : vector<8x256xf32> to vector<8x128xf32>
    %610 = vector.extract_strided_slice %597 {offsets = [0, 256], sizes = [8, 128], strides = [1, 1]} : vector<8x384xf32> to vector<8x128xf32>
    %611 = vector.extract_strided_slice %599 {offsets = [0, 256], sizes = [8, 128], strides = [1, 1]} : vector<8x384xf32> to vector<8x128xf32>
    %612 = arith.addf %611, %506 : vector<8x128xf32>
    %613 = arith.mulf %608, %612 : vector<8x128xf32>
    %614 = arith.addf %610, %613 : vector<8x128xf32>
    %615 = math.tanh %614 : vector<8x128xf32>
    %616 = arith.subf %589, %615 : vector<8x128xf32>
    %617 = arith.mulf %609, %616 : vector<8x128xf32>
    %618 = arith.addf %615, %617 : vector<8x128xf32>
    %619 = arith.truncf %618 : vector<8x128xf32> to vector<8x128xbf16>
    %620 = arith.index_cast %c3_i32_175 : i32 to index
    %c0_180 = arith.constant 0 : index
    %c0_181 = arith.constant 0 : index
    %621 = vector.load %arg23[%620, %c0_180, %c0_181] : memref<8x8x128xbf16, #tpu.memory_space<vmem>>, vector<1x8x128xbf16>
    %622 = vector.shape_cast %621 : vector<1x8x128xbf16> to vector<8x128xbf16>
    %623 = vector.shape_cast %619 : vector<8x128xbf16> to vector<1x8x128xbf16>
    tpu.vector_store %arg23[%620, %c0_180, %c0_181], %623 {strides = array<i32>} : memref<8x8x128xbf16, #tpu.memory_space<vmem>>, vector<1x8x128xbf16>,
    %c4_i32_182 = arith.constant 4 : i32
    %624 = arith.index_cast %c4_i32_182 : i32 to index
    %c0_183 = arith.constant 0 : index
    %c0_184 = arith.constant 0 : index
    %625 = vector.load %arg21[%624, %c0_183, %c0_184] : memref<8x8x384xf32, #tpu.memory_space<vmem>>, vector<1x8x384xf32>
    %626 = vector.shape_cast %625 : vector<1x8x384xf32> to vector<8x384xf32>
    %627 = arith.truncf %618 : vector<8x128xf32> to vector<8x128xbf16>
    %cst_185 = arith.constant dense<0.000000e+00> : vector<8x384xf32>
    %628 = tpu.matmul %627, %503, %cst_185 {dimension_numbers = #tpu.dot_dimension_numbers<[1], [0], [0], [1], [0, 0, 1, 1], [], []>} : vector<8x128xbf16>, vector<128x384xbf16>, vector<8x384xf32> -> vector<8x384xf32>
    %629 = vector.extract_strided_slice %626 {offsets = [0, 0], sizes = [8, 256], strides = [1, 1]} : vector<8x384xf32> to vector<8x256xf32>
    %630 = vector.extract_strided_slice %628 {offsets = [0, 0], sizes = [8, 256], strides = [1, 1]} : vector<8x384xf32> to vector<8x256xf32>
    %631 = arith.addf %629, %630 : vector<8x256xf32>
    %632 = arith.negf %631 : vector<8x256xf32>
    %633 = math.exp %632 : vector<8x256xf32>
    %cst_186 = arith.constant 1.000000e+00 : f32
    %634 = vector.broadcast %cst_186 : f32 to vector<8x256xf32>
    %635 = arith.addf %634, %633 : vector<8x256xf32>
    %636 = arith.divf %634, %635 : vector<8x256xf32>
    %637 = vector.extract_strided_slice %636 {offsets = [0, 0], sizes = [8, 128], strides = [1, 1]} : vector<8x256xf32> to vector<8x128xf32>
    %638 = vector.extract_strided_slice %636 {offsets = [0, 128], sizes = [8, 128], strides = [1, 1]} : vector<8x256xf32> to vector<8x128xf32>
    %639 = vector.extract_strided_slice %626 {offsets = [0, 256], sizes = [8, 128], strides = [1, 1]} : vector<8x384xf32> to vector<8x128xf32>
    %640 = vector.extract_strided_slice %628 {offsets = [0, 256], sizes = [8, 128], strides = [1, 1]} : vector<8x384xf32> to vector<8x128xf32>
    %641 = arith.addf %640, %506 : vector<8x128xf32>
    %642 = arith.mulf %637, %641 : vector<8x128xf32>
    %643 = arith.addf %639, %642 : vector<8x128xf32>
    %644 = math.tanh %643 : vector<8x128xf32>
    %645 = arith.subf %618, %644 : vector<8x128xf32>
    %646 = arith.mulf %638, %645 : vector<8x128xf32>
    %647 = arith.addf %644, %646 : vector<8x128xf32>
    %648 = arith.truncf %647 : vector<8x128xf32> to vector<8x128xbf16>
    %649 = arith.index_cast %c4_i32_182 : i32 to index
    %c0_187 = arith.constant 0 : index
    %c0_188 = arith.constant 0 : index
    %650 = vector.load %arg23[%649, %c0_187, %c0_188] : memref<8x8x128xbf16, #tpu.memory_space<vmem>>, vector<1x8x128xbf16>
    %651 = vector.shape_cast %650 : vector<1x8x128xbf16> to vector<8x128xbf16>
    %652 = vector.shape_cast %648 : vector<8x128xbf16> to vector<1x8x128xbf16>
    tpu.vector_store %arg23[%649, %c0_187, %c0_188], %652 {strides = array<i32>} : memref<8x8x128xbf16, #tpu.memory_space<vmem>>, vector<1x8x128xbf16>,
    %c5_i32_189 = arith.constant 5 : i32
    %653 = arith.index_cast %c5_i32_189 : i32 to index
    %c0_190 = arith.constant 0 : index
    %c0_191 = arith.constant 0 : index
    %654 = vector.load %arg21[%653, %c0_190, %c0_191] : memref<8x8x384xf32, #tpu.memory_space<vmem>>, vector<1x8x384xf32>
    %655 = vector.shape_cast %654 : vector<1x8x384xf32> to vector<8x384xf32>
    %656 = arith.truncf %647 : vector<8x128xf32> to vector<8x128xbf16>
    %cst_192 = arith.constant dense<0.000000e+00> : vector<8x384xf32>
    %657 = tpu.matmul %656, %503, %cst_192 {dimension_numbers = #tpu.dot_dimension_numbers<[1], [0], [0], [1], [0, 0, 1, 1], [], []>} : vector<8x128xbf16>, vector<128x384xbf16>, vector<8x384xf32> -> vector<8x384xf32>
    %658 = vector.extract_strided_slice %655 {offsets = [0, 0], sizes = [8, 256], strides = [1, 1]} : vector<8x384xf32> to vector<8x256xf32>
    %659 = vector.extract_strided_slice %657 {offsets = [0, 0], sizes = [8, 256], strides = [1, 1]} : vector<8x384xf32> to vector<8x256xf32>
    %660 = arith.addf %658, %659 : vector<8x256xf32>
    %661 = arith.negf %660 : vector<8x256xf32>
    %662 = math.exp %661 : vector<8x256xf32>
    %cst_193 = arith.constant 1.000000e+00 : f32
    %663 = vector.broadcast %cst_193 : f32 to vector<8x256xf32>
    %664 = arith.addf %663, %662 : vector<8x256xf32>
    %665 = arith.divf %663, %664 : vector<8x256xf32>
    %666 = vector.extract_strided_slice %665 {offsets = [0, 0], sizes = [8, 128], strides = [1, 1]} : vector<8x256xf32> to vector<8x128xf32>
    %667 = vector.extract_strided_slice %665 {offsets = [0, 128], sizes = [8, 128], strides = [1, 1]} : vector<8x256xf32> to vector<8x128xf32>
    %668 = vector.extract_strided_slice %655 {offsets = [0, 256], sizes = [8, 128], strides = [1, 1]} : vector<8x384xf32> to vector<8x128xf32>
    %669 = vector.extract_strided_slice %657 {offsets = [0, 256], sizes = [8, 128], strides = [1, 1]} : vector<8x384xf32> to vector<8x128xf32>
    %670 = arith.addf %669, %506 : vector<8x128xf32>
    %671 = arith.mulf %666, %670 : vector<8x128xf32>
    %672 = arith.addf %668, %671 : vector<8x128xf32>
    %673 = math.tanh %672 : vector<8x128xf32>
    %674 = arith.subf %647, %673 : vector<8x128xf32>
    %675 = arith.mulf %667, %674 : vector<8x128xf32>
    %676 = arith.addf %673, %675 : vector<8x128xf32>
    %677 = arith.truncf %676 : vector<8x128xf32> to vector<8x128xbf16>
    %678 = arith.index_cast %c5_i32_189 : i32 to index
    %c0_194 = arith.constant 0 : index
    %c0_195 = arith.constant 0 : index
    %679 = vector.load %arg23[%678, %c0_194, %c0_195] : memref<8x8x128xbf16, #tpu.memory_space<vmem>>, vector<1x8x128xbf16>
    %680 = vector.shape_cast %679 : vector<1x8x128xbf16> to vector<8x128xbf16>
    %681 = vector.shape_cast %677 : vector<8x128xbf16> to vector<1x8x128xbf16>
    tpu.vector_store %arg23[%678, %c0_194, %c0_195], %681 {strides = array<i32>} : memref<8x8x128xbf16, #tpu.memory_space<vmem>>, vector<1x8x128xbf16>,
    %c6_i32_196 = arith.constant 6 : i32
    %682 = arith.index_cast %c6_i32_196 : i32 to index
    %c0_197 = arith.constant 0 : index
    %c0_198 = arith.constant 0 : index
    %683 = vector.load %arg21[%682, %c0_197, %c0_198] : memref<8x8x384xf32, #tpu.memory_space<vmem>>, vector<1x8x384xf32>
    %684 = vector.shape_cast %683 : vector<1x8x384xf32> to vector<8x384xf32>
    %685 = arith.truncf %676 : vector<8x128xf32> to vector<8x128xbf16>
    %cst_199 = arith.constant dense<0.000000e+00> : vector<8x384xf32>
    %686 = tpu.matmul %685, %503, %cst_199 {dimension_numbers = #tpu.dot_dimension_numbers<[1], [0], [0], [1], [0, 0, 1, 1], [], []>} : vector<8x128xbf16>, vector<128x384xbf16>, vector<8x384xf32> -> vector<8x384xf32>
    %687 = vector.extract_strided_slice %684 {offsets = [0, 0], sizes = [8, 256], strides = [1, 1]} : vector<8x384xf32> to vector<8x256xf32>
    %688 = vector.extract_strided_slice %686 {offsets = [0, 0], sizes = [8, 256], strides = [1, 1]} : vector<8x384xf32> to vector<8x256xf32>
    %689 = arith.addf %687, %688 : vector<8x256xf32>
    %690 = arith.negf %689 : vector<8x256xf32>
    %691 = math.exp %690 : vector<8x256xf32>
    %cst_200 = arith.constant 1.000000e+00 : f32
    %692 = vector.broadcast %cst_200 : f32 to vector<8x256xf32>
    %693 = arith.addf %692, %691 : vector<8x256xf32>
    %694 = arith.divf %692, %693 : vector<8x256xf32>
    %695 = vector.extract_strided_slice %694 {offsets = [0, 0], sizes = [8, 128], strides = [1, 1]} : vector<8x256xf32> to vector<8x128xf32>
    %696 = vector.extract_strided_slice %694 {offsets = [0, 128], sizes = [8, 128], strides = [1, 1]} : vector<8x256xf32> to vector<8x128xf32>
    %697 = vector.extract_strided_slice %684 {offsets = [0, 256], sizes = [8, 128], strides = [1, 1]} : vector<8x384xf32> to vector<8x128xf32>
    %698 = vector.extract_strided_slice %686 {offsets = [0, 256], sizes = [8, 128], strides = [1, 1]} : vector<8x384xf32> to vector<8x128xf32>
    %699 = arith.addf %698, %506 : vector<8x128xf32>
    %700 = arith.mulf %695, %699 : vector<8x128xf32>
    %701 = arith.addf %697, %700 : vector<8x128xf32>
    %702 = math.tanh %701 : vector<8x128xf32>
    %703 = arith.subf %676, %702 : vector<8x128xf32>
    %704 = arith.mulf %696, %703 : vector<8x128xf32>
    %705 = arith.addf %702, %704 : vector<8x128xf32>
    %706 = arith.truncf %705 : vector<8x128xf32> to vector<8x128xbf16>
    %707 = arith.index_cast %c6_i32_196 : i32 to index
    %c0_201 = arith.constant 0 : index
    %c0_202 = arith.constant 0 : index
    %708 = vector.load %arg23[%707, %c0_201, %c0_202] : memref<8x8x128xbf16, #tpu.memory_space<vmem>>, vector<1x8x128xbf16>
    %709 = vector.shape_cast %708 : vector<1x8x128xbf16> to vector<8x128xbf16>
    %710 = vector.shape_cast %706 : vector<8x128xbf16> to vector<1x8x128xbf16>
    tpu.vector_store %arg23[%707, %c0_201, %c0_202], %710 {strides = array<i32>} : memref<8x8x128xbf16, #tpu.memory_space<vmem>>, vector<1x8x128xbf16>,
    %c7_i32_203 = arith.constant 7 : i32
    %711 = arith.index_cast %c7_i32_203 : i32 to index
    %c0_204 = arith.constant 0 : index
    %c0_205 = arith.constant 0 : index
    %712 = vector.load %arg21[%711, %c0_204, %c0_205] : memref<8x8x384xf32, #tpu.memory_space<vmem>>, vector<1x8x384xf32>
    %713 = vector.shape_cast %712 : vector<1x8x384xf32> to vector<8x384xf32>
    %714 = arith.truncf %705 : vector<8x128xf32> to vector<8x128xbf16>
    %cst_206 = arith.constant dense<0.000000e+00> : vector<8x384xf32>
    %715 = tpu.matmul %714, %503, %cst_206 {dimension_numbers = #tpu.dot_dimension_numbers<[1], [0], [0], [1], [0, 0, 1, 1], [], []>} : vector<8x128xbf16>, vector<128x384xbf16>, vector<8x384xf32> -> vector<8x384xf32>
    %716 = vector.extract_strided_slice %713 {offsets = [0, 0], sizes = [8, 256], strides = [1, 1]} : vector<8x384xf32> to vector<8x256xf32>
    %717 = vector.extract_strided_slice %715 {offsets = [0, 0], sizes = [8, 256], strides = [1, 1]} : vector<8x384xf32> to vector<8x256xf32>
    %718 = arith.addf %716, %717 : vector<8x256xf32>
    %719 = arith.negf %718 : vector<8x256xf32>
    %720 = math.exp %719 : vector<8x256xf32>
    %cst_207 = arith.constant 1.000000e+00 : f32
    %721 = vector.broadcast %cst_207 : f32 to vector<8x256xf32>
    %722 = arith.addf %721, %720 : vector<8x256xf32>
    %723 = arith.divf %721, %722 : vector<8x256xf32>
    %724 = vector.extract_strided_slice %723 {offsets = [0, 0], sizes = [8, 128], strides = [1, 1]} : vector<8x256xf32> to vector<8x128xf32>
    %725 = vector.extract_strided_slice %723 {offsets = [0, 128], sizes = [8, 128], strides = [1, 1]} : vector<8x256xf32> to vector<8x128xf32>
    %726 = vector.extract_strided_slice %713 {offsets = [0, 256], sizes = [8, 128], strides = [1, 1]} : vector<8x384xf32> to vector<8x128xf32>
    %727 = vector.extract_strided_slice %715 {offsets = [0, 256], sizes = [8, 128], strides = [1, 1]} : vector<8x384xf32> to vector<8x128xf32>
    %728 = arith.addf %727, %506 : vector<8x128xf32>
    %729 = arith.mulf %724, %728 : vector<8x128xf32>
    %730 = arith.addf %726, %729 : vector<8x128xf32>
    %731 = math.tanh %730 : vector<8x128xf32>
    %732 = arith.subf %705, %731 : vector<8x128xf32>
    %733 = arith.mulf %725, %732 : vector<8x128xf32>
    %734 = arith.addf %731, %733 : vector<8x128xf32>
    %735 = arith.truncf %734 : vector<8x128xf32> to vector<8x128xbf16>
    %736 = arith.index_cast %c7_i32_203 : i32 to index
    %c0_208 = arith.constant 0 : index
    %c0_209 = arith.constant 0 : index
    %737 = vector.load %arg23[%736, %c0_208, %c0_209] : memref<8x8x128xbf16, #tpu.memory_space<vmem>>, vector<1x8x128xbf16>
    %738 = vector.shape_cast %737 : vector<1x8x128xbf16> to vector<8x128xbf16>
    %739 = vector.shape_cast %735 : vector<8x128xbf16> to vector<1x8x128xbf16>
    tpu.vector_store %arg23[%736, %c0_208, %c0_209], %739 {strides = array<i32>} : memref<8x8x128xbf16, #tpu.memory_space<vmem>>, vector<1x8x128xbf16>,
    %c8_i32_210 = arith.constant 8 : i32
    %c0_211 = arith.constant 0 : index
    %c256 = arith.constant 256 : index
    %740 = vector.load %arg22[%c0_211, %c256] : memref<8x512xf32, #tpu.memory_space<vmem>>, vector<8x128xf32>
    tpu.vector_store %arg22[%c0_211, %c256], %734 {strides = array<i32>} : memref<8x512xf32, #tpu.memory_space<vmem>>, vector<8x128xf32>,
    %c0_212 = arith.constant 0 : index
    %c0_213 = arith.constant 0 : index
    %c0_214 = arith.constant 0 : index
    %741 = vector.load %arg23[%c0_212, %c0_213, %c0_214] : memref<8x8x128xbf16, #tpu.memory_space<vmem>>, vector<8x8x128xbf16>
    %742 = vector.shape_cast %741 : vector<8x8x128xbf16> to vector<64x128xbf16>
    %c0_215 = arith.constant 0 : index
    %c0_216 = arith.constant 0 : index
    %743 = vector.load %arg14[%c0_215, %c0_216] : memref<128x384xbf16, #tpu.memory_space<vmem>>, vector<128x384xbf16>
    %cst_217 = arith.constant dense<0.000000e+00> : vector<64x384xf32>
    %744 = tpu.matmul %742, %743, %cst_217 {dimension_numbers = #tpu.dot_dimension_numbers<[1], [0], [0], [1], [0, 0, 1, 1], [], []>} : vector<64x128xbf16>, vector<128x384xbf16>, vector<64x384xf32> -> vector<64x384xf32>
    %c0_218 = arith.constant 0 : index
    %c0_219 = arith.constant 0 : index
    %745 = vector.load %arg16[%c0_218, %c0_219] : memref<1x384xf32, #tpu.memory_space<vmem>>, vector<1x384xf32>
    %746 = vector.broadcast %745 : vector<1x384xf32> to vector<64x384xf32>
    %747 = arith.addf %744, %746 : vector<64x384xf32>
    %748 = vector.shape_cast %747 : vector<64x384xf32> to vector<8x8x384xf32>
    %c0_220 = arith.constant 0 : index
    %c0_221 = arith.constant 0 : index
    %c0_222 = arith.constant 0 : index
    %749 = vector.load %arg21[%c0_220, %c0_221, %c0_222] : memref<8x8x384xf32, #tpu.memory_space<vmem>>, vector<8x8x384xf32>
    tpu.vector_store %arg21[%c0_220, %c0_221, %c0_222], %748 {strides = array<i32>} : memref<8x8x384xf32, #tpu.memory_space<vmem>>, vector<8x8x384xf32>,
    %c0_223 = arith.constant 0 : index
    %c0_224 = arith.constant 0 : index
    %750 = vector.load %arg15[%c0_223, %c0_224] : memref<128x384xbf16, #tpu.memory_space<vmem>>, vector<128x384xbf16>
    %c0_225 = arith.constant 0 : index
    %c0_226 = arith.constant 0 : index
    %751 = vector.load %arg17[%c0_225, %c0_226] : memref<1x128xf32, #tpu.memory_space<vmem>>, vector<1x128xf32>
    %752 = vector.shape_cast %751 : vector<1x128xf32> to vector<1x128xf32>
    %753 = vector.broadcast %752 : vector<1x128xf32> to vector<8x128xf32>
    %cst_227 = arith.constant 0.000000e+00 : f32
    %754 = vector.broadcast %cst_227 : f32 to vector<8x128xf32>
    %c0_i32_228 = arith.constant 0 : i32
    %755 = arith.index_cast %c0_i32_228 : i32 to index
    %c0_229 = arith.constant 0 : index
    %c0_230 = arith.constant 0 : index
    %756 = vector.load %arg21[%755, %c0_229, %c0_230] : memref<8x8x384xf32, #tpu.memory_space<vmem>>, vector<1x8x384xf32>
    %757 = vector.shape_cast %756 : vector<1x8x384xf32> to vector<8x384xf32>
    %758 = arith.truncf %754 : vector<8x128xf32> to vector<8x128xbf16>
    %cst_231 = arith.constant dense<0.000000e+00> : vector<8x384xf32>
    %759 = tpu.matmul %758, %750, %cst_231 {dimension_numbers = #tpu.dot_dimension_numbers<[1], [0], [0], [1], [0, 0, 1, 1], [], []>} : vector<8x128xbf16>, vector<128x384xbf16>, vector<8x384xf32> -> vector<8x384xf32>
    %760 = vector.extract_strided_slice %757 {offsets = [0, 0], sizes = [8, 256], strides = [1, 1]} : vector<8x384xf32> to vector<8x256xf32>
    %761 = vector.extract_strided_slice %759 {offsets = [0, 0], sizes = [8, 256], strides = [1, 1]} : vector<8x384xf32> to vector<8x256xf32>
    %762 = arith.addf %760, %761 : vector<8x256xf32>
    %763 = arith.negf %762 : vector<8x256xf32>
    %764 = math.exp %763 : vector<8x256xf32>
    %cst_232 = arith.constant 1.000000e+00 : f32
    %765 = vector.broadcast %cst_232 : f32 to vector<8x256xf32>
    %766 = arith.addf %765, %764 : vector<8x256xf32>
    %767 = arith.divf %765, %766 : vector<8x256xf32>
    %768 = vector.extract_strided_slice %767 {offsets = [0, 0], sizes = [8, 128], strides = [1, 1]} : vector<8x256xf32> to vector<8x128xf32>
    %769 = vector.extract_strided_slice %767 {offsets = [0, 128], sizes = [8, 128], strides = [1, 1]} : vector<8x256xf32> to vector<8x128xf32>
    %770 = vector.extract_strided_slice %757 {offsets = [0, 256], sizes = [8, 128], strides = [1, 1]} : vector<8x384xf32> to vector<8x128xf32>
    %771 = vector.extract_strided_slice %759 {offsets = [0, 256], sizes = [8, 128], strides = [1, 1]} : vector<8x384xf32> to vector<8x128xf32>
    %772 = arith.addf %771, %753 : vector<8x128xf32>
    %773 = arith.mulf %768, %772 : vector<8x128xf32>
    %774 = arith.addf %770, %773 : vector<8x128xf32>
    %775 = math.tanh %774 : vector<8x128xf32>
    %776 = arith.subf %754, %775 : vector<8x128xf32>
    %777 = arith.mulf %769, %776 : vector<8x128xf32>
    %778 = arith.addf %775, %777 : vector<8x128xf32>
    %c1_i32_233 = arith.constant 1 : i32
    %779 = arith.index_cast %c1_i32_233 : i32 to index
    %c0_234 = arith.constant 0 : index
    %c0_235 = arith.constant 0 : index
    %780 = vector.load %arg21[%779, %c0_234, %c0_235] : memref<8x8x384xf32, #tpu.memory_space<vmem>>, vector<1x8x384xf32>
    %781 = vector.shape_cast %780 : vector<1x8x384xf32> to vector<8x384xf32>
    %782 = arith.truncf %778 : vector<8x128xf32> to vector<8x128xbf16>
    %cst_236 = arith.constant dense<0.000000e+00> : vector<8x384xf32>
    %783 = tpu.matmul %782, %750, %cst_236 {dimension_numbers = #tpu.dot_dimension_numbers<[1], [0], [0], [1], [0, 0, 1, 1], [], []>} : vector<8x128xbf16>, vector<128x384xbf16>, vector<8x384xf32> -> vector<8x384xf32>
    %784 = vector.extract_strided_slice %781 {offsets = [0, 0], sizes = [8, 256], strides = [1, 1]} : vector<8x384xf32> to vector<8x256xf32>
    %785 = vector.extract_strided_slice %783 {offsets = [0, 0], sizes = [8, 256], strides = [1, 1]} : vector<8x384xf32> to vector<8x256xf32>
    %786 = arith.addf %784, %785 : vector<8x256xf32>
    %787 = arith.negf %786 : vector<8x256xf32>
    %788 = math.exp %787 : vector<8x256xf32>
    %cst_237 = arith.constant 1.000000e+00 : f32
    %789 = vector.broadcast %cst_237 : f32 to vector<8x256xf32>
    %790 = arith.addf %789, %788 : vector<8x256xf32>
    %791 = arith.divf %789, %790 : vector<8x256xf32>
    %792 = vector.extract_strided_slice %791 {offsets = [0, 0], sizes = [8, 128], strides = [1, 1]} : vector<8x256xf32> to vector<8x128xf32>
    %793 = vector.extract_strided_slice %791 {offsets = [0, 128], sizes = [8, 128], strides = [1, 1]} : vector<8x256xf32> to vector<8x128xf32>
    %794 = vector.extract_strided_slice %781 {offsets = [0, 256], sizes = [8, 128], strides = [1, 1]} : vector<8x384xf32> to vector<8x128xf32>
    %795 = vector.extract_strided_slice %783 {offsets = [0, 256], sizes = [8, 128], strides = [1, 1]} : vector<8x384xf32> to vector<8x128xf32>
    %796 = arith.addf %795, %753 : vector<8x128xf32>
    %797 = arith.mulf %792, %796 : vector<8x128xf32>
    %798 = arith.addf %794, %797 : vector<8x128xf32>
    %799 = math.tanh %798 : vector<8x128xf32>
    %800 = arith.subf %778, %799 : vector<8x128xf32>
    %801 = arith.mulf %793, %800 : vector<8x128xf32>
    %802 = arith.addf %799, %801 : vector<8x128xf32>
    %c2_i32_238 = arith.constant 2 : i32
    %803 = arith.index_cast %c2_i32_238 : i32 to index
    %c0_239 = arith.constant 0 : index
    %c0_240 = arith.constant 0 : index
    %804 = vector.load %arg21[%803, %c0_239, %c0_240] : memref<8x8x384xf32, #tpu.memory_space<vmem>>, vector<1x8x384xf32>
    %805 = vector.shape_cast %804 : vector<1x8x384xf32> to vector<8x384xf32>
    %806 = arith.truncf %802 : vector<8x128xf32> to vector<8x128xbf16>
    %cst_241 = arith.constant dense<0.000000e+00> : vector<8x384xf32>
    %807 = tpu.matmul %806, %750, %cst_241 {dimension_numbers = #tpu.dot_dimension_numbers<[1], [0], [0], [1], [0, 0, 1, 1], [], []>} : vector<8x128xbf16>, vector<128x384xbf16>, vector<8x384xf32> -> vector<8x384xf32>
    %808 = vector.extract_strided_slice %805 {offsets = [0, 0], sizes = [8, 256], strides = [1, 1]} : vector<8x384xf32> to vector<8x256xf32>
    %809 = vector.extract_strided_slice %807 {offsets = [0, 0], sizes = [8, 256], strides = [1, 1]} : vector<8x384xf32> to vector<8x256xf32>
    %810 = arith.addf %808, %809 : vector<8x256xf32>
    %811 = arith.negf %810 : vector<8x256xf32>
    %812 = math.exp %811 : vector<8x256xf32>
    %cst_242 = arith.constant 1.000000e+00 : f32
    %813 = vector.broadcast %cst_242 : f32 to vector<8x256xf32>
    %814 = arith.addf %813, %812 : vector<8x256xf32>
    %815 = arith.divf %813, %814 : vector<8x256xf32>
    %816 = vector.extract_strided_slice %815 {offsets = [0, 0], sizes = [8, 128], strides = [1, 1]} : vector<8x256xf32> to vector<8x128xf32>
    %817 = vector.extract_strided_slice %815 {offsets = [0, 128], sizes = [8, 128], strides = [1, 1]} : vector<8x256xf32> to vector<8x128xf32>
    %818 = vector.extract_strided_slice %805 {offsets = [0, 256], sizes = [8, 128], strides = [1, 1]} : vector<8x384xf32> to vector<8x128xf32>
    %819 = vector.extract_strided_slice %807 {offsets = [0, 256], sizes = [8, 128], strides = [1, 1]} : vector<8x384xf32> to vector<8x128xf32>
    %820 = arith.addf %819, %753 : vector<8x128xf32>
    %821 = arith.mulf %816, %820 : vector<8x128xf32>
    %822 = arith.addf %818, %821 : vector<8x128xf32>
    %823 = math.tanh %822 : vector<8x128xf32>
    %824 = arith.subf %802, %823 : vector<8x128xf32>
    %825 = arith.mulf %817, %824 : vector<8x128xf32>
    %826 = arith.addf %823, %825 : vector<8x128xf32>
    %c3_i32_243 = arith.constant 3 : i32
    %827 = arith.index_cast %c3_i32_243 : i32 to index
    %c0_244 = arith.constant 0 : index
    %c0_245 = arith.constant 0 : index
    %828 = vector.load %arg21[%827, %c0_244, %c0_245] : memref<8x8x384xf32, #tpu.memory_space<vmem>>, vector<1x8x384xf32>
    %829 = vector.shape_cast %828 : vector<1x8x384xf32> to vector<8x384xf32>
    %830 = arith.truncf %826 : vector<8x128xf32> to vector<8x128xbf16>
    %cst_246 = arith.constant dense<0.000000e+00> : vector<8x384xf32>
    %831 = tpu.matmul %830, %750, %cst_246 {dimension_numbers = #tpu.dot_dimension_numbers<[1], [0], [0], [1], [0, 0, 1, 1], [], []>} : vector<8x128xbf16>, vector<128x384xbf16>, vector<8x384xf32> -> vector<8x384xf32>
    %832 = vector.extract_strided_slice %829 {offsets = [0, 0], sizes = [8, 256], strides = [1, 1]} : vector<8x384xf32> to vector<8x256xf32>
    %833 = vector.extract_strided_slice %831 {offsets = [0, 0], sizes = [8, 256], strides = [1, 1]} : vector<8x384xf32> to vector<8x256xf32>
    %834 = arith.addf %832, %833 : vector<8x256xf32>
    %835 = arith.negf %834 : vector<8x256xf32>
    %836 = math.exp %835 : vector<8x256xf32>
    %cst_247 = arith.constant 1.000000e+00 : f32
    %837 = vector.broadcast %cst_247 : f32 to vector<8x256xf32>
    %838 = arith.addf %837, %836 : vector<8x256xf32>
    %839 = arith.divf %837, %838 : vector<8x256xf32>
    %840 = vector.extract_strided_slice %839 {offsets = [0, 0], sizes = [8, 128], strides = [1, 1]} : vector<8x256xf32> to vector<8x128xf32>
    %841 = vector.extract_strided_slice %839 {offsets = [0, 128], sizes = [8, 128], strides = [1, 1]} : vector<8x256xf32> to vector<8x128xf32>
    %842 = vector.extract_strided_slice %829 {offsets = [0, 256], sizes = [8, 128], strides = [1, 1]} : vector<8x384xf32> to vector<8x128xf32>
    %843 = vector.extract_strided_slice %831 {offsets = [0, 256], sizes = [8, 128], strides = [1, 1]} : vector<8x384xf32> to vector<8x128xf32>
    %844 = arith.addf %843, %753 : vector<8x128xf32>
    %845 = arith.mulf %840, %844 : vector<8x128xf32>
    %846 = arith.addf %842, %845 : vector<8x128xf32>
    %847 = math.tanh %846 : vector<8x128xf32>
    %848 = arith.subf %826, %847 : vector<8x128xf32>
    %849 = arith.mulf %841, %848 : vector<8x128xf32>
    %850 = arith.addf %847, %849 : vector<8x128xf32>
    %c4_i32_248 = arith.constant 4 : i32
    %851 = arith.index_cast %c4_i32_248 : i32 to index
    %c0_249 = arith.constant 0 : index
    %c0_250 = arith.constant 0 : index
    %852 = vector.load %arg21[%851, %c0_249, %c0_250] : memref<8x8x384xf32, #tpu.memory_space<vmem>>, vector<1x8x384xf32>
    %853 = vector.shape_cast %852 : vector<1x8x384xf32> to vector<8x384xf32>
    %854 = arith.truncf %850 : vector<8x128xf32> to vector<8x128xbf16>
    %cst_251 = arith.constant dense<0.000000e+00> : vector<8x384xf32>
    %855 = tpu.matmul %854, %750, %cst_251 {dimension_numbers = #tpu.dot_dimension_numbers<[1], [0], [0], [1], [0, 0, 1, 1], [], []>} : vector<8x128xbf16>, vector<128x384xbf16>, vector<8x384xf32> -> vector<8x384xf32>
    %856 = vector.extract_strided_slice %853 {offsets = [0, 0], sizes = [8, 256], strides = [1, 1]} : vector<8x384xf32> to vector<8x256xf32>
    %857 = vector.extract_strided_slice %855 {offsets = [0, 0], sizes = [8, 256], strides = [1, 1]} : vector<8x384xf32> to vector<8x256xf32>
    %858 = arith.addf %856, %857 : vector<8x256xf32>
    %859 = arith.negf %858 : vector<8x256xf32>
    %860 = math.exp %859 : vector<8x256xf32>
    %cst_252 = arith.constant 1.000000e+00 : f32
    %861 = vector.broadcast %cst_252 : f32 to vector<8x256xf32>
    %862 = arith.addf %861, %860 : vector<8x256xf32>
    %863 = arith.divf %861, %862 : vector<8x256xf32>
    %864 = vector.extract_strided_slice %863 {offsets = [0, 0], sizes = [8, 128], strides = [1, 1]} : vector<8x256xf32> to vector<8x128xf32>
    %865 = vector.extract_strided_slice %863 {offsets = [0, 128], sizes = [8, 128], strides = [1, 1]} : vector<8x256xf32> to vector<8x128xf32>
    %866 = vector.extract_strided_slice %853 {offsets = [0, 256], sizes = [8, 128], strides = [1, 1]} : vector<8x384xf32> to vector<8x128xf32>
    %867 = vector.extract_strided_slice %855 {offsets = [0, 256], sizes = [8, 128], strides = [1, 1]} : vector<8x384xf32> to vector<8x128xf32>
    %868 = arith.addf %867, %753 : vector<8x128xf32>
    %869 = arith.mulf %864, %868 : vector<8x128xf32>
    %870 = arith.addf %866, %869 : vector<8x128xf32>
    %871 = math.tanh %870 : vector<8x128xf32>
    %872 = arith.subf %850, %871 : vector<8x128xf32>
    %873 = arith.mulf %865, %872 : vector<8x128xf32>
    %874 = arith.addf %871, %873 : vector<8x128xf32>
    %c5_i32_253 = arith.constant 5 : i32
    %875 = arith.index_cast %c5_i32_253 : i32 to index
    %c0_254 = arith.constant 0 : index
    %c0_255 = arith.constant 0 : index
    %876 = vector.load %arg21[%875, %c0_254, %c0_255] : memref<8x8x384xf32, #tpu.memory_space<vmem>>, vector<1x8x384xf32>
    %877 = vector.shape_cast %876 : vector<1x8x384xf32> to vector<8x384xf32>
    %878 = arith.truncf %874 : vector<8x128xf32> to vector<8x128xbf16>
    %cst_256 = arith.constant dense<0.000000e+00> : vector<8x384xf32>
    %879 = tpu.matmul %878, %750, %cst_256 {dimension_numbers = #tpu.dot_dimension_numbers<[1], [0], [0], [1], [0, 0, 1, 1], [], []>} : vector<8x128xbf16>, vector<128x384xbf16>, vector<8x384xf32> -> vector<8x384xf32>
    %880 = vector.extract_strided_slice %877 {offsets = [0, 0], sizes = [8, 256], strides = [1, 1]} : vector<8x384xf32> to vector<8x256xf32>
    %881 = vector.extract_strided_slice %879 {offsets = [0, 0], sizes = [8, 256], strides = [1, 1]} : vector<8x384xf32> to vector<8x256xf32>
    %882 = arith.addf %880, %881 : vector<8x256xf32>
    %883 = arith.negf %882 : vector<8x256xf32>
    %884 = math.exp %883 : vector<8x256xf32>
    %cst_257 = arith.constant 1.000000e+00 : f32
    %885 = vector.broadcast %cst_257 : f32 to vector<8x256xf32>
    %886 = arith.addf %885, %884 : vector<8x256xf32>
    %887 = arith.divf %885, %886 : vector<8x256xf32>
    %888 = vector.extract_strided_slice %887 {offsets = [0, 0], sizes = [8, 128], strides = [1, 1]} : vector<8x256xf32> to vector<8x128xf32>
    %889 = vector.extract_strided_slice %887 {offsets = [0, 128], sizes = [8, 128], strides = [1, 1]} : vector<8x256xf32> to vector<8x128xf32>
    %890 = vector.extract_strided_slice %877 {offsets = [0, 256], sizes = [8, 128], strides = [1, 1]} : vector<8x384xf32> to vector<8x128xf32>
    %891 = vector.extract_strided_slice %879 {offsets = [0, 256], sizes = [8, 128], strides = [1, 1]} : vector<8x384xf32> to vector<8x128xf32>
    %892 = arith.addf %891, %753 : vector<8x128xf32>
    %893 = arith.mulf %888, %892 : vector<8x128xf32>
    %894 = arith.addf %890, %893 : vector<8x128xf32>
    %895 = math.tanh %894 : vector<8x128xf32>
    %896 = arith.subf %874, %895 : vector<8x128xf32>
    %897 = arith.mulf %889, %896 : vector<8x128xf32>
    %898 = arith.addf %895, %897 : vector<8x128xf32>
    %c6_i32_258 = arith.constant 6 : i32
    %899 = arith.index_cast %c6_i32_258 : i32 to index
    %c0_259 = arith.constant 0 : index
    %c0_260 = arith.constant 0 : index
    %900 = vector.load %arg21[%899, %c0_259, %c0_260] : memref<8x8x384xf32, #tpu.memory_space<vmem>>, vector<1x8x384xf32>
    %901 = vector.shape_cast %900 : vector<1x8x384xf32> to vector<8x384xf32>
    %902 = arith.truncf %898 : vector<8x128xf32> to vector<8x128xbf16>
    %cst_261 = arith.constant dense<0.000000e+00> : vector<8x384xf32>
    %903 = tpu.matmul %902, %750, %cst_261 {dimension_numbers = #tpu.dot_dimension_numbers<[1], [0], [0], [1], [0, 0, 1, 1], [], []>} : vector<8x128xbf16>, vector<128x384xbf16>, vector<8x384xf32> -> vector<8x384xf32>
    %904 = vector.extract_strided_slice %901 {offsets = [0, 0], sizes = [8, 256], strides = [1, 1]} : vector<8x384xf32> to vector<8x256xf32>
    %905 = vector.extract_strided_slice %903 {offsets = [0, 0], sizes = [8, 256], strides = [1, 1]} : vector<8x384xf32> to vector<8x256xf32>
    %906 = arith.addf %904, %905 : vector<8x256xf32>
    %907 = arith.negf %906 : vector<8x256xf32>
    %908 = math.exp %907 : vector<8x256xf32>
    %cst_262 = arith.constant 1.000000e+00 : f32
    %909 = vector.broadcast %cst_262 : f32 to vector<8x256xf32>
    %910 = arith.addf %909, %908 : vector<8x256xf32>
    %911 = arith.divf %909, %910 : vector<8x256xf32>
    %912 = vector.extract_strided_slice %911 {offsets = [0, 0], sizes = [8, 128], strides = [1, 1]} : vector<8x256xf32> to vector<8x128xf32>
    %913 = vector.extract_strided_slice %911 {offsets = [0, 128], sizes = [8, 128], strides = [1, 1]} : vector<8x256xf32> to vector<8x128xf32>
    %914 = vector.extract_strided_slice %901 {offsets = [0, 256], sizes = [8, 128], strides = [1, 1]} : vector<8x384xf32> to vector<8x128xf32>
    %915 = vector.extract_strided_slice %903 {offsets = [0, 256], sizes = [8, 128], strides = [1, 1]} : vector<8x384xf32> to vector<8x128xf32>
    %916 = arith.addf %915, %753 : vector<8x128xf32>
    %917 = arith.mulf %912, %916 : vector<8x128xf32>
    %918 = arith.addf %914, %917 : vector<8x128xf32>
    %919 = math.tanh %918 : vector<8x128xf32>
    %920 = arith.subf %898, %919 : vector<8x128xf32>
    %921 = arith.mulf %913, %920 : vector<8x128xf32>
    %922 = arith.addf %919, %921 : vector<8x128xf32>
    %c7_i32_263 = arith.constant 7 : i32
    %923 = arith.index_cast %c7_i32_263 : i32 to index
    %c0_264 = arith.constant 0 : index
    %c0_265 = arith.constant 0 : index
    %924 = vector.load %arg21[%923, %c0_264, %c0_265] : memref<8x8x384xf32, #tpu.memory_space<vmem>>, vector<1x8x384xf32>
    %925 = vector.shape_cast %924 : vector<1x8x384xf32> to vector<8x384xf32>
    %926 = arith.truncf %922 : vector<8x128xf32> to vector<8x128xbf16>
    %cst_266 = arith.constant dense<0.000000e+00> : vector<8x384xf32>
    %927 = tpu.matmul %926, %750, %cst_266 {dimension_numbers = #tpu.dot_dimension_numbers<[1], [0], [0], [1], [0, 0, 1, 1], [], []>} : vector<8x128xbf16>, vector<128x384xbf16>, vector<8x384xf32> -> vector<8x384xf32>
    %928 = vector.extract_strided_slice %925 {offsets = [0, 0], sizes = [8, 256], strides = [1, 1]} : vector<8x384xf32> to vector<8x256xf32>
    %929 = vector.extract_strided_slice %927 {offsets = [0, 0], sizes = [8, 256], strides = [1, 1]} : vector<8x384xf32> to vector<8x256xf32>
    %930 = arith.addf %928, %929 : vector<8x256xf32>
    %931 = arith.negf %930 : vector<8x256xf32>
    %932 = math.exp %931 : vector<8x256xf32>
    %cst_267 = arith.constant 1.000000e+00 : f32
    %933 = vector.broadcast %cst_267 : f32 to vector<8x256xf32>
    %934 = arith.addf %933, %932 : vector<8x256xf32>
    %935 = arith.divf %933, %934 : vector<8x256xf32>
    %936 = vector.extract_strided_slice %935 {offsets = [0, 0], sizes = [8, 128], strides = [1, 1]} : vector<8x256xf32> to vector<8x128xf32>
    %937 = vector.extract_strided_slice %935 {offsets = [0, 128], sizes = [8, 128], strides = [1, 1]} : vector<8x256xf32> to vector<8x128xf32>
    %938 = vector.extract_strided_slice %925 {offsets = [0, 256], sizes = [8, 128], strides = [1, 1]} : vector<8x384xf32> to vector<8x128xf32>
    %939 = vector.extract_strided_slice %927 {offsets = [0, 256], sizes = [8, 128], strides = [1, 1]} : vector<8x384xf32> to vector<8x128xf32>
    %940 = arith.addf %939, %753 : vector<8x128xf32>
    %941 = arith.mulf %936, %940 : vector<8x128xf32>
    %942 = arith.addf %938, %941 : vector<8x128xf32>
    %943 = math.tanh %942 : vector<8x128xf32>
    %944 = arith.subf %922, %943 : vector<8x128xf32>
    %945 = arith.mulf %937, %944 : vector<8x128xf32>
    %946 = arith.addf %943, %945 : vector<8x128xf32>
    %c8_i32_268 = arith.constant 8 : i32
    %c0_269 = arith.constant 0 : index
    %c384 = arith.constant 384 : index
    %947 = vector.load %arg22[%c0_269, %c384] : memref<8x512xf32, #tpu.memory_space<vmem>>, vector<8x128xf32>
    tpu.vector_store %arg22[%c0_269, %c384], %946 {strides = array<i32>} : memref<8x512xf32, #tpu.memory_space<vmem>>, vector<8x128xf32>,
    %c0_270 = arith.constant 0 : index
    %c0_271 = arith.constant 0 : index
    %948 = vector.load %arg22[%c0_270, %c0_271] : memref<8x512xf32, #tpu.memory_space<vmem>>, vector<8x512xf32>
    %c0_272 = arith.constant 0 : index
    %c0_273 = arith.constant 0 : index
    %949 = vector.load %arg18[%c0_272, %c0_273] : memref<512x256xf32, #tpu.memory_space<vmem>>, vector<512x256xf32>
    %cst_274 = arith.constant dense<0.000000e+00> : vector<8x256xf32>
    %950 = tpu.matmul %948, %949, %cst_274 {dimension_numbers = #tpu.dot_dimension_numbers<[1], [0], [0], [1], [0, 0, 1, 1], [], []>} : vector<8x512xf32>, vector<512x256xf32>, vector<8x256xf32> -> vector<8x256xf32>
    %c0_275 = arith.constant 0 : index
    %c0_276 = arith.constant 0 : index
    %951 = vector.load %arg19[%c0_275, %c0_276] : memref<1x256xf32, #tpu.memory_space<vmem>>, vector<1x256xf32>
    %952 = vector.broadcast %951 : vector<1x256xf32> to vector<8x256xf32>
    %953 = arith.addf %950, %952 : vector<8x256xf32>
    %c0_277 = arith.constant 0 : index
    %c0_278 = arith.constant 0 : index
    %954 = vector.load %arg20[%c0_277, %c0_278] : memref<8x256xf32, #tpu.memory_space<vmem>>, vector<8x256xf32>
    tpu.vector_store %arg20[%c0_277, %c0_278], %953 {strides = array<i32>} : memref<8x256xf32, #tpu.memory_space<vmem>>, vector<8x256xf32>,
    return
  }
  func.func @transform_0(%arg0: i32) -> (i32, i32, i32) {
    %c0_i32 = arith.constant 0 : i32
    %c0_i32_0 = arith.constant 0 : i32
    %c0_i32_1 = arith.constant 0 : i32
    return %c0_i32, %arg0, %c0_i32_0 : i32, i32, i32
  }
  func.func @transform_1(%arg0: i32) -> (i32, i32) {
    %c0_i32 = arith.constant 0 : i32
    %c0_i32_0 = arith.constant 0 : i32
    %c0_i32_1 = arith.constant 0 : i32
    return %c0_i32, %c0_i32_0 : i32, i32
  }
  func.func @transform_2(%arg0: i32) -> (i32, i32) {
    %c0_i32 = arith.constant 0 : i32
    %c0_i32_0 = arith.constant 0 : i32
    %c0_i32_1 = arith.constant 0 : i32
    return %c0_i32, %c0_i32_0 : i32, i32
  }
  func.func @transform_3(%arg0: i32) -> (i32, i32) {
    %c0_i32 = arith.constant 0 : i32
    %c0_i32_0 = arith.constant 0 : i32
    %c0_i32_1 = arith.constant 0 : i32
    return %c0_i32, %c0_i32_0 : i32, i32
  }
  func.func @transform_4(%arg0: i32) -> (i32, i32) {
    %c0_i32 = arith.constant 0 : i32
    %c0_i32_0 = arith.constant 0 : i32
    %c0_i32_1 = arith.constant 0 : i32
    return %c0_i32, %c0_i32_0 : i32, i32
  }
  func.func @transform_5(%arg0: i32) -> (i32, i32) {
    %c0_i32 = arith.constant 0 : i32
    %c0_i32_0 = arith.constant 0 : i32
    %c0_i32_1 = arith.constant 0 : i32
    return %c0_i32, %c0_i32_0 : i32, i32
  }
  func.func @transform_6(%arg0: i32) -> (i32, i32) {
    %c0_i32 = arith.constant 0 : i32
    %c0_i32_0 = arith.constant 0 : i32
    %c0_i32_1 = arith.constant 0 : i32
    return %c0_i32, %c0_i32_0 : i32, i32
  }
  func.func @transform_7(%arg0: i32) -> (i32, i32) {
    %c0_i32 = arith.constant 0 : i32
    %c0_i32_0 = arith.constant 0 : i32
    %c0_i32_1 = arith.constant 0 : i32
    return %c0_i32, %c0_i32_0 : i32, i32
  }
  func.func @transform_8(%arg0: i32) -> (i32, i32) {
    %c0_i32 = arith.constant 0 : i32
    %c0_i32_0 = arith.constant 0 : i32
    %c0_i32_1 = arith.constant 0 : i32
    return %c0_i32, %c0_i32_0 : i32, i32
  }
  func.func @transform_9(%arg0: i32) -> (i32, i32) {
    %c0_i32 = arith.constant 0 : i32
    %c0_i32_0 = arith.constant 0 : i32
    %c0_i32_1 = arith.constant 0 : i32
    return %c0_i32, %c0_i32_0 : i32, i32
  }
  func.func @transform_10(%arg0: i32) -> (i32, i32) {
    %c0_i32 = arith.constant 0 : i32
    %c0_i32_0 = arith.constant 0 : i32
    %c0_i32_1 = arith.constant 0 : i32
    return %c0_i32, %c0_i32_0 : i32, i32
  }
  func.func @transform_11(%arg0: i32) -> (i32, i32) {
    %c0_i32 = arith.constant 0 : i32
    %c0_i32_0 = arith.constant 0 : i32
    %c0_i32_1 = arith.constant 0 : i32
    return %c0_i32, %c0_i32_0 : i32, i32
  }
  func.func @transform_12(%arg0: i32) -> (i32, i32) {
    %c0_i32 = arith.constant 0 : i32
    %c0_i32_0 = arith.constant 0 : i32
    %c0_i32_1 = arith.constant 0 : i32
    return %c0_i32, %c0_i32_0 : i32, i32
  }
  func.func @transform_13(%arg0: i32) -> (i32, i32) {
    %c0_i32 = arith.constant 0 : i32
    %c0_i32_0 = arith.constant 0 : i32
    %c0_i32_1 = arith.constant 0 : i32
    return %c0_i32, %c0_i32_0 : i32, i32
  }
  func.func @transform_14(%arg0: i32) -> (i32, i32) {
    %c0_i32 = arith.constant 0 : i32
    %c0_i32_0 = arith.constant 0 : i32
    %c0_i32_1 = arith.constant 0 : i32
    return %c0_i32, %c0_i32_0 : i32, i32
  }
  func.func @transform_15(%arg0: i32) -> (i32, i32) {
    %c0_i32 = arith.constant 0 : i32
    %c0_i32_0 = arith.constant 0 : i32
    %c0_i32_1 = arith.constant 0 : i32
    return %c0_i32, %c0_i32_0 : i32, i32
  }
  func.func @transform_16(%arg0: i32) -> (i32, i32) {
    %c0_i32 = arith.constant 0 : i32
    %c0_i32_0 = arith.constant 0 : i32
    %c0_i32_1 = arith.constant 0 : i32
    return %c0_i32, %c0_i32_0 : i32, i32
  }
  func.func @transform_17(%arg0: i32) -> (i32, i32) {
    %c0_i32 = arith.constant 0 : i32
    %c0_i32_0 = arith.constant 0 : i32
    %c0_i32_1 = arith.constant 0 : i32
    return %c0_i32, %c0_i32_0 : i32, i32
  }
  func.func @transform_18(%arg0: i32) -> (i32, i32) {
    %c0_i32 = arith.constant 0 : i32
    %c0_i32_0 = arith.constant 0 : i32
    %c0_i32_1 = arith.constant 0 : i32
    return %c0_i32, %c0_i32_0 : i32, i32
  }
  func.func @transform_19(%arg0: i32) -> (i32, i32) {
    %c0_i32 = arith.constant 0 : i32
    %c0_i32_0 = arith.constant 0 : i32
    return %arg0, %c0_i32 : i32, i32
  }
}

</mosaic_0001>

<llo_original>
// kernel: gru_compress_forward.1
$region0: #{gru_compress_forward.1}
  #allocation0 [shape = 'u32[]', space=smem, size = 0x4, offset = 0x4, fixed_abs, tag = 'smem constant byte address 0x4 - core index']
  #allocation1 [shape = 'u32[144,128]{1,0:T(1,128)}', space=vmem, size = 0x12000, scoped, tag = 'internal scratch']
  #allocation2 [shape = 'f32[8,8,384]{2,1,0:T(8,128)}', space=vmem, size = 0x18000, scoped, tag = 'scratch operand']
  #allocation3 [shape = 'f32[8,512]{1,0:T(8,128)}', space=vmem, size = 0x4000, scoped, tag = 'scratch operand']
  #allocation4 [shape = 'bf16[8,8,128]{2,1,0:T(8,128)(2,1)}', space=vmem, size = 0x4000, scoped, tag = 'scratch operand']
  %s0 = inlined_call_operand.vmem [shape: bf16[8,8,128], index: 0, kind: input, shape index: {}]
  %s1 = inlined_call_operand.vmem [shape: bf16[128,384], index: 1, kind: input, shape index: {}]
  %s2 = inlined_call_operand.vmem [shape: bf16[128,384], index: 2, kind: input, shape index: {}]
  %s3 = inlined_call_operand.vmem [shape: f32[1,384], index: 3, kind: input, shape index: {}]
  %s4 = inlined_call_operand.vmem [shape: f32[1,128], index: 4, kind: input, shape index: {}]
  %s5 = inlined_call_operand.vmem [shape: bf16[128,384], index: 5, kind: input, shape index: {}]
  %s6 = inlined_call_operand.vmem [shape: bf16[128,384], index: 6, kind: input, shape index: {}]
  %s7 = inlined_call_operand.vmem [shape: f32[1,384], index: 7, kind: input, shape index: {}]
  %s8 = inlined_call_operand.vmem [shape: f32[1,128], index: 8, kind: input, shape index: {}]
  %s9 = inlined_call_operand.vmem [shape: bf16[128,384], index: 9, kind: input, shape index: {}]
  %s10 = inlined_call_operand.vmem [shape: bf16[128,384], index: 10, kind: input, shape index: {}]
  %s11 = inlined_call_operand.vmem [shape: f32[1,384], index: 11, kind: input, shape index: {}]
  %s12 = inlined_call_operand.vmem [shape: f32[1,128], index: 12, kind: input, shape index: {}]
  %s13 = inlined_call_operand.vmem [shape: bf16[128,384], index: 13, kind: input, shape index: {}]
  %s14 = inlined_call_operand.vmem [shape: bf16[128,384], index: 14, kind: input, shape index: {}]
  %s15 = inlined_call_operand.vmem [shape: f32[1,384], index: 15, kind: input, shape index: {}]
  %s16 = inlined_call_operand.vmem [shape: f32[1,128], index: 16, kind: input, shape index: {}]
  %s17 = inlined_call_operand.vmem [shape: f32[512,256], index: 17, kind: input, shape index: {}]
  %s18 = inlined_call_operand.vmem [shape: f32[1,256], index: 18, kind: input, shape index: {}]
  %s19 = inlined_call_operand.hbm [shape: f32[8,256], index: 19, kind: output, shape index: {}]
  %s20 = sld [smem:[#allocation0]]
  $region86: #{gru_compress_forward.1} parent=0
    _
  %s22 = ssub.s32 1, %s20
  %s23 = scalar_select 0, %s22, %s20
  $region1: #{gru_compress_forward.1} parent=0
    #allocation5 [shape = 'u8[8192]{0}', space=vmem, size = 0x2000, scoped, tag = 'output window, operand 0, single buffered']
    #allocation6 [shape = 's32[1]{0}', space=sflag, size = 0x4, scoped, tag = 'scoped memory for gru_compress_forward.1']
    %24 = vsyncpa [#allocation6], 0
    // Predicated region
    $region2: #{gru_compress_forward.1} parent=1 // pred_check
      _
    $region3: #{gru_compress_forward.1} parent=1 // pred_check_branch
      %26 = sbr.rel (0) target = $region5
    $region4: #{gru_compress_forward.1} parent=1 // pred_region
      _
    $region5: #{gru_compress_forward.1} parent=1 // pred_fallthru
      _
    // Predicated region
    $region6: #{gru_compress_forward.1} parent=1 // pred_check
      _
    $region7: #{gru_compress_forward.1} parent=1 // pred_check_branch
      %28 = sbr.rel (0) target = $region9
    $region8: #{gru_compress_forward.1} parent=1 // pred_region
      _
    $region9: #{gru_compress_forward.1} parent=1 // pred_fallthru
      _
    // Predicated region
    $region10: #{gru_compress_forward.1} parent=1 // pred_check
      _
    $region11: #{gru_compress_forward.1} parent=1 // pred_check_branch
      %30 = sbr.rel (0) target = $region13
    $region12: #{gru_compress_forward.1} parent=1 // pred_region
      _
    $region13: #{gru_compress_forward.1} parent=1 // pred_fallthru
      _
    // Predicated region
    $region14: #{gru_compress_forward.1} parent=1 // pred_check
      _
    $region15: #{gru_compress_forward.1} parent=1 // pred_check_branch
      %32 = sbr.rel (0) target = $region17
    $region16: #{gru_compress_forward.1} parent=1 // pred_region
      _
    $region17: #{gru_compress_forward.1} parent=1 // pred_fallthru
      _
    // Predicated region
    $region18: #{gru_compress_forward.1} parent=1 // pred_check
      _
    $region19: #{gru_compress_forward.1} parent=1 // pred_check_branch
      %34 = sbr.rel (0) target = $region21
    $region20: #{gru_compress_forward.1} parent=1 // pred_region
      _
    $region21: #{gru_compress_forward.1} parent=1 // pred_fallthru
      _
    // Predicated region
    $region22: #{gru_compress_forward.1} parent=1 // pred_check
      _
    $region23: #{gru_compress_forward.1} parent=1 // pred_check_branch
      %36 = sbr.rel (0) target = $region25
    $region24: #{gru_compress_forward.1} parent=1 // pred_region
      _
    $region25: #{gru_compress_forward.1} parent=1 // pred_fallthru
      _
    // Predicated region
    $region26: #{gru_compress_forward.1} parent=1 // pred_check
      _
    $region27: #{gru_compress_forward.1} parent=1 // pred_check_branch
      %38 = sbr.rel (0) target = $region29
    $region28: #{gru_compress_forward.1} parent=1 // pred_region
      _
    $region29: #{gru_compress_forward.1} parent=1 // pred_fallthru
      _
    // Predicated region
    $region30: #{gru_compress_forward.1} parent=1 // pred_check
      _
    $region31: #{gru_compress_forward.1} parent=1 // pred_check_branch
      %40 = sbr.rel (0) target = $region33
    $region32: #{gru_compress_forward.1} parent=1 // pred_region
      _
    $region33: #{gru_compress_forward.1} parent=1 // pred_fallthru
      _
    // Predicated region
    $region34: #{gru_compress_forward.1} parent=1 // pred_check
      _
    $region35: #{gru_compress_forward.1} parent=1 // pred_check_branch
      %42 = sbr.rel (0) target = $region37
    $region36: #{gru_compress_forward.1} parent=1 // pred_region
      _
    $region37: #{gru_compress_forward.1} parent=1 // pred_fallthru
      _
    // Predicated region
    $region38: #{gru_compress_forward.1} parent=1 // pred_check
      _
    $region39: #{gru_compress_forward.1} parent=1 // pred_check_branch
      %44 = sbr.rel (0) target = $region41
    $region40: #{gru_compress_forward.1} parent=1 // pred_region
      _
    $region41: #{gru_compress_forward.1} parent=1 // pred_fallthru
      _
    // Predicated region
    $region42: #{gru_compress_forward.1} parent=1 // pred_check
      _
    $region43: #{gru_compress_forward.1} parent=1 // pred_check_branch
      %46 = sbr.rel (0) target = $region45
    $region44: #{gru_compress_forward.1} parent=1 // pred_region
      _
    $region45: #{gru_compress_forward.1} parent=1 // pred_fallthru
      _
    // Predicated region
    $region46: #{gru_compress_forward.1} parent=1 // pred_check
      _
    $region47: #{gru_compress_forward.1} parent=1 // pred_check_branch
      %48 = sbr.rel (0) target = $region49
    $region48: #{gru_compress_forward.1} parent=1 // pred_region
      _
    $region49: #{gru_compress_forward.1} parent=1 // pred_fallthru
      _
    // Predicated region
    $region50: #{gru_compress_forward.1} parent=1 // pred_check
      _
    $region51: #{gru_compress_forward.1} parent=1 // pred_check_branch
      %50 = sbr.rel (0) target = $region53
    $region52: #{gru_compress_forward.1} parent=1 // pred_region
      _
    $region53: #{gru_compress_forward.1} parent=1 // pred_fallthru
      _
    // Predicated region
    $region54: #{gru_compress_forward.1} parent=1 // pred_check
      _
    $region55: #{gru_compress_forward.1} parent=1 // pred_check_branch
      %52 = sbr.rel (0) target = $region57
    $region56: #{gru_compress_forward.1} parent=1 // pred_region
      _
    $region57: #{gru_compress_forward.1} parent=1 // pred_fallthru
      _
    // Predicated region
    $region58: #{gru_compress_forward.1} parent=1 // pred_check
      _
    $region59: #{gru_compress_forward.1} parent=1 // pred_check_branch
      %54 = sbr.rel (0) target = $region61
    $region60: #{gru_compress_forward.1} parent=1 // pred_region
      _
    $region61: #{gru_compress_forward.1} parent=1 // pred_fallthru
      _
    // Predicated region
    $region62: #{gru_compress_forward.1} parent=1 // pred_check
      _
    $region63: #{gru_compress_forward.1} parent=1 // pred_check_branch
      %56 = sbr.rel (0) target = $region65
    $region64: #{gru_compress_forward.1} parent=1 // pred_region
      _
    $region65: #{gru_compress_forward.1} parent=1 // pred_fallthru
      _
    // Predicated region
    $region66: #{gru_compress_forward.1} parent=1 // pred_check
      _
    $region67: #{gru_compress_forward.1} parent=1 // pred_check_branch
      %58 = sbr.rel (0) target = $region69
    $region68: #{gru_compress_forward.1} parent=1 // pred_region
      _
    $region69: #{gru_compress_forward.1} parent=1 // pred_fallthru
      _
    // Predicated region
    $region70: #{gru_compress_forward.1} parent=1 // pred_check
      _
    $region71: #{gru_compress_forward.1} parent=1 // pred_check_branch
      %60 = sbr.rel (0) target = $region73
    $region72: #{gru_compress_forward.1} parent=1 // pred_region
      _
    $region73: #{gru_compress_forward.1} parent=1 // pred_fallthru
      _
    // Predicated region
    $region74: #{gru_compress_forward.1} parent=1 // pred_check
      _
    $region75: #{gru_compress_forward.1} parent=1 // pred_check_branch
      %62 = sbr.rel (0) target = $region77
    $region76: #{gru_compress_forward.1} parent=1 // pred_region
      _
    $region77: #{gru_compress_forward.1} parent=1 // pred_fallthru
      _
    %v64 = vld [vmem:[%s0] sm:$0xf]
    %v65 = vld [vmem:[%s0 + $0x4] sm:$0xf]
    %v66 = vld [vmem:[%s0 + $0x8] sm:$0xf]
    %v67 = vld [vmem:[%s0 + $0xc] sm:$0xf]
    %v68 = vld [vmem:[%s0 + $0x10] sm:$0xf]
    %v69 = vld [vmem:[%s0 + $0x14] sm:$0xf]
    %v70 = vld [vmem:[%s0 + $0x18] sm:$0xf]
    %v71 = vld [vmem:[%s0 + $0x1c] sm:$0xf]
    %v72 = vld [vmem:[%s1] sm:$0xff]
    %v73 = vld [vmem:[%s1 + $0x8] sm:$0xf]
    %v74 = vld [vmem:[%s1 + $0xc] sm:$0xff]
    %v75 = vld [vmem:[%s1 + $0x14] sm:$0xf]
    %v76 = vld [vmem:[%s1 + $0x18] sm:$0xff]
    %v77 = vld [vmem:[%s1 + $0x20] sm:$0xf]
    %v78 = vld [vmem:[%s1 + $0x24] sm:$0xff]
    %v79 = vld [vmem:[%s1 + $0x2c] sm:$0xf]
    %v80 = vld [vmem:[%s1 + $0x30] sm:$0xff]
    %v81 = vld [vmem:[%s1 + $0x38] sm:$0xf]
    %v82 = vld [vmem:[%s1 + $0x3c] sm:$0xff]
    %v83 = vld [vmem:[%s1 + $0x44] sm:$0xf]
    %v84 = vld [vmem:[%s1 + $0x48] sm:$0xff]
    %v85 = vld [vmem:[%s1 + $0x50] sm:$0xf]
    %v86 = vld [vmem:[%s1 + $0x54] sm:$0xff]
    %v87 = vld [vmem:[%s1 + $0x5c] sm:$0xf]
    %v88 = vld [vmem:[%s1 + $0x60] sm:$0xff]
    %v89 = vld [vmem:[%s1 + $0x68] sm:$0xf]
    %v90 = vld [vmem:[%s1 + $0x6c] sm:$0xff]
    %v91 = vld [vmem:[%s1 + $0x74] sm:$0xf]
    %v92 = vld [vmem:[%s1 + $0x78] sm:$0xff]
    %v93 = vld [vmem:[%s1 + $0x80] sm:$0xf]
    %v94 = vld [vmem:[%s1 + $0x84] sm:$0xff]
    %v95 = vld [vmem:[%s1 + $0x8c] sm:$0xf]
    %v96 = vld [vmem:[%s1 + $0x90] sm:$0xff]
    %v97 = vld [vmem:[%s1 + $0x98] sm:$0xf]
    %v98 = vld [vmem:[%s1 + $0x9c] sm:$0xff]
    %v99 = vld [vmem:[%s1 + $0xa4] sm:$0xf]
    %v100 = vld [vmem:[%s1 + $0xa8] sm:$0xff]
    %v101 = vld [vmem:[%s1 + $0xb0] sm:$0xf]
    %v102 = vld [vmem:[%s1 + $0xb4] sm:$0xff]
    %v103 = vld [vmem:[%s1 + $0xbc] sm:$0xf]
    %v104 = vld [vmem:[%s3] sm:$0x7]
    %v106 = vlaneseq
    %v107 = vshrl.u32 %v106, 7
    %v108 = vsub.s32 0, %v107
    %v109 = vrot.slane %v104, %v108
    %v110 = vlaneseq
    %v111 = vshrl.u32 %v110, 7
    %v112 = vsub.s32 1, %v111
    %v113 = vrot.slane %v104, %v112
    %v114 = vlaneseq
    %v115 = vshrl.u32 %v114, 7
    %v116 = vsub.s32 2, %v115
    %v117 = vrot.slane %v104, %v116
    %v129 = vunpack.c.l.b16 %v64
    %v130 = vunpack.c.l.b16 %v65
    %v131 = vunpack.c.l.b16 %v66
    %v132 = vunpack.c.l.b16 %v67
    %v133 = vunpack.c.l.b16 %v68
    %v134 = vunpack.c.l.b16 %v69
    %v135 = vunpack.c.l.b16 %v70
    %v136 = vunpack.c.l.b16 %v71
    %v137 = vpack.c.b16 %v130, %v129
    %v138 = vpack.c.b16 %v132, %v131
    %v139 = vpack.c.b16 %v134, %v133
    %v140 = vpack.c.b16 %v136, %v135
    %v177 = vunpack.c.l.b16 %v72
    %v178 = vunpack.c.h.b16 %v72
    %v179 = vunpack.c.l.b16 %v73
    %v180 = vunpack.c.l.b16 %v74
    %v181 = vunpack.c.h.b16 %v74
    %v182 = vunpack.c.l.b16 %v75
    %v183 = vunpack.c.l.b16 %v76
    %v184 = vunpack.c.h.b16 %v76
    %v185 = vunpack.c.l.b16 %v77
    %v186 = vunpack.c.l.b16 %v78
    %v187 = vunpack.c.h.b16 %v78
    %v188 = vunpack.c.l.b16 %v79
    %v189 = vunpack.c.l.b16 %v80
    %v190 = vunpack.c.h.b16 %v80
    %v191 = vunpack.c.l.b16 %v81
    %v192 = vunpack.c.l.b16 %v82
    %v193 = vunpack.c.h.b16 %v82
    %v194 = vunpack.c.l.b16 %v83
    %v195 = vunpack.c.l.b16 %v84
    %v196 = vunpack.c.h.b16 %v84
    %v197 = vunpack.c.l.b16 %v85
    %v198 = vunpack.c.l.b16 %v86
    %v199 = vunpack.c.h.b16 %v86
    %v200 = vunpack.c.l.b16 %v87
    %v201 = vunpack.c.l.b16 %v88
    %v202 = vunpack.c.h.b16 %v88
    %v203 = vunpack.c.l.b16 %v89
    %v204 = vunpack.c.l.b16 %v90
    %v205 = vunpack.c.h.b16 %v90
    %v206 = vunpack.c.l.b16 %v91
    %v207 = vunpack.c.l.b16 %v92
    %v208 = vunpack.c.h.b16 %v92
    %v209 = vunpack.c.l.b16 %v93
    %v210 = vunpack.c.l.b16 %v94
    %v211 = vunpack.c.h.b16 %v94
    %v212 = vunpack.c.l.b16 %v95
    %v213 = vunpack.c.l.b16 %v96
    %v214 = vunpack.c.h.b16 %v96
    %v215 = vunpack.c.l.b16 %v97
    %v216 = vunpack.c.l.b16 %v98
    %v217 = vunpack.c.h.b16 %v98
    %v218 = vunpack.c.l.b16 %v99
    %v219 = vunpack.c.l.b16 %v100
    %v220 = vunpack.c.h.b16 %v100
    %v221 = vunpack.c.l.b16 %v101
    %v222 = vunpack.c.l.b16 %v102
    %v223 = vunpack.c.h.b16 %v102
    %v224 = vunpack.c.l.b16 %v103
    %v225 = vpack.c.b16 %v180, %v177
    %v226 = vpack.c.b16 %v181, %v178
    %v227 = vpack.c.b16 %v182, %v179
    %v228 = vpack.c.b16 %v186, %v183
    %v229 = vpack.c.b16 %v187, %v184
    %v230 = vpack.c.b16 %v188, %v185
    %v231 = vpack.c.b16 %v192, %v189
    %v232 = vpack.c.b16 %v193, %v190
    %v233 = vpack.c.b16 %v194, %v191
    %v234 = vpack.c.b16 %v198, %v195
    %v235 = vpack.c.b16 %v199, %v196
    %v236 = vpack.c.b16 %v200, %v197
    %v237 = vpack.c.b16 %v204, %v201
    %v238 = vpack.c.b16 %v205, %v202
    %v239 = vpack.c.b16 %v206, %v203
    %v240 = vpack.c.b16 %v210, %v207
    %v241 = vpack.c.b16 %v211, %v208
    %v242 = vpack.c.b16 %v212, %v209
    %v243 = vpack.c.b16 %v216, %v213
    %v244 = vpack.c.b16 %v217, %v214
    %v245 = vpack.c.b16 %v218, %v215
    %v246 = vpack.c.b16 %v222, %v219
    %v247 = vpack.c.b16 %v223, %v220
    %v248 = vpack.c.b16 %v224, %v221
    %273 = vmatprep.subr.bf16.mxu0 %v247
    %274 = vmatpush1.bf16.msra.mxu0 %v246
    %275 = vmatprep.subr.bf16.mxu0 %v244
    %276 = vmatpush1.bf16.msra.mxu0 %v243
    %277 = vmatprep.subr.bf16.mxu0 %v241
    %278 = vmatpush1.bf16.msra.mxu0 %v240
    %279 = vmatprep.subr.bf16.mxu0 %v238
    %280 = vmatpush1.bf16.msra.mxu0 %v237
    %281 = vmatprep.subr.bf16.mxu0 %v235
    %282 = vmatpush1.bf16.msra.mxu0 %v234
    %283 = vmatprep.subr.bf16.mxu0 %v232
    %284 = vmatpush1.bf16.msra.mxu0 %v231
    %285 = vmatprep.subr.bf16.mxu0 %v229
    %286 = vmatpush1.bf16.msra.mxu0 %v228
    %287 = vmatprep.subr.bf16.mxu0 %v226
    %288 = vmatpush1.bf16.msra.mxu0 %v225
    %289 = vmatprep.subr.bf16.mxu0 0
    %290 = vmatpush2.bf16.msra.mxu0 0
    %291 = vmatprep.subr.bf16.mxu0 0
    %292 = vmatpush2.bf16.msra.mxu0 0
    %293 = vmatprep.subr.bf16.mxu0 0
    %294 = vmatpush2.bf16.msra.mxu0 0
    %295 = vmatprep.subr.bf16.mxu0 0
    %296 = vmatpush2.bf16.msra.mxu0 0
    %297 = vmatprep.subr.bf16.mxu0 0
    %298 = vmatpush2.bf16.msra.mxu0 0
    %299 = vmatprep.subr.bf16.mxu0 0
    %300 = vmatpush2.bf16.msra.mxu0 0
    %301 = vmatprep.subr.bf16.mxu0 0
    %302 = vmatpush2.bf16.msra.mxu0 0
    %303 = vmatprep.subr.bf16.mxu0 0
    %304 = vmatpush2.bf16.msra.mxu0 0
    %305 = vmatprep.mubr.bf16.mxu0 0
    %306 = vmatmul.mubr.bf16.gmra.mxu0 %v137
    %v307 = vpop.f32.mrf.mxu0
    %v308 = vadd.f32 %v109, %v307
    %v309 = vpop.f32.mrf.mxu0
    %v310 = vadd.f32 %v113, %v309
    %v311 = vpop.f32.mrf.mxu0
    %v312 = vadd.f32 %v109, %v311
    %v313 = vpop.f32.mrf.mxu0
    %v314 = vadd.f32 %v113, %v313
    %315 = vmatprep.mubr.bf16.mxu0 0
    %316 = vmatmul.mubr.bf16.gmra.mxu0 %v138
    %v317 = vpop.f32.mrf.mxu0
    %v318 = vadd.f32 %v109, %v317
    %v319 = vpop.f32.mrf.mxu0
    %v320 = vadd.f32 %v113, %v319
    %v321 = vpop.f32.mrf.mxu0
    %v322 = vadd.f32 %v109, %v321
    %v323 = vpop.f32.mrf.mxu0
    %v324 = vadd.f32 %v113, %v323
    %325 = vmatprep.mubr.bf16.mxu0 0
    %326 = vmatmul.mubr.bf16.gmra.mxu0 %v139
    %v327 = vpop.f32.mrf.mxu0
    %v328 = vadd.f32 %v109, %v327
    %v329 = vpop.f32.mrf.mxu0
    %v330 = vadd.f32 %v113, %v329
    %v331 = vpop.f32.mrf.mxu0
    %v332 = vadd.f32 %v109, %v331
    %v333 = vpop.f32.mrf.mxu0
    %v334 = vadd.f32 %v113, %v333
    %335 = vmatprep.mubr.bf16.mxu0 0
    %336 = vmatmul.mubr.bf16.gmra.mxu0 %v140
    %v337 = vpop.f32.mrf.mxu0
    %v338 = vadd.f32 %v109, %v337
    %v339 = vpop.f32.mrf.mxu0
    %v340 = vadd.f32 %v113, %v339
    %v341 = vpop.f32.mrf.mxu0
    %v342 = vadd.f32 %v109, %v341
    %v343 = vpop.f32.mrf.mxu0
    %v344 = vadd.f32 %v113, %v343
    %345 = vdwg.mxu0
    %346 = vmatprep.subr.bf16.mxu0 0
    %347 = vmatpush1.bf16.msra.mxu0 %v248
    %348 = vmatprep.subr.bf16.mxu0 0
    %349 = vmatpush1.bf16.msra.mxu0 %v245
    %350 = vmatprep.subr.bf16.mxu0 0
    %351 = vmatpush1.bf16.msra.mxu0 %v242
    %352 = vmatprep.subr.bf16.mxu0 0
    %353 = vmatpush1.bf16.msra.mxu0 %v239
    %354 = vmatprep.subr.bf16.mxu0 0
    %355 = vmatpush1.bf16.msra.mxu0 %v236
    %356 = vmatprep.subr.bf16.mxu0 0
    %357 = vmatpush1.bf16.msra.mxu0 %v233
    %358 = vmatprep.subr.bf16.mxu0 0
    %359 = vmatpush1.bf16.msra.mxu0 %v230
    %360 = vmatprep.subr.bf16.mxu0 0
    %361 = vmatpush1.bf16.msra.mxu0 %v227
    %362 = vmatprep.subr.bf16.mxu0 0
    %363 = vmatpush2.bf16.msra.mxu0 0
    %364 = vmatprep.subr.bf16.mxu0 0
    %365 = vmatpush2.bf16.msra.mxu0 0
    %366 = vmatprep.subr.bf16.mxu0 0
    %367 = vmatpush2.bf16.msra.mxu0 0
    %368 = vmatprep.subr.bf16.mxu0 0
    %369 = vmatpush2.bf16.msra.mxu0 0
    %370 = vmatprep.subr.bf16.mxu0 0
    %371 = vmatpush2.bf16.msra.mxu0 0
    %372 = vmatprep.subr.bf16.mxu0 0
    %373 = vmatpush2.bf16.msra.mxu0 0
    %374 = vmatprep.subr.bf16.mxu0 0
    %375 = vmatpush2.bf16.msra.mxu0 0
    %376 = vmatprep.subr.bf16.mxu0 0
    %377 = vmatpush2.bf16.msra.mxu0 0
    %378 = vmatprep.mubr.bf16.mxu0 0
    %379 = vmatmul.mubr.bf16.gmra.mxu0 %v137
    %v380 = vpop.f32.mrf.mxu0
    %v381 = vadd.f32 %v117, %v380
    %v382 = vpop.f32.mrf.mxu0
    %v383 = vpop.f32.mrf.mxu0
    %v384 = vadd.f32 %v117, %v383
    %v385 = vpop.f32.mrf.mxu0
    %386 = vmatprep.mubr.bf16.mxu0 0
    %387 = vmatmul.mubr.bf16.gmra.mxu0 %v138
    %v388 = vpop.f32.mrf.mxu0
    %v389 = vadd.f32 %v117, %v388
    %v390 = vpop.f32.mrf.mxu0
    %v391 = vpop.f32.mrf.mxu0
    %v392 = vadd.f32 %v117, %v391
    %v393 = vpop.f32.mrf.mxu0
    %394 = vmatprep.mubr.bf16.mxu0 0
    %395 = vmatmul.mubr.bf16.gmra.mxu0 %v139
    %v396 = vpop.f32.mrf.mxu0
    %v397 = vadd.f32 %v117, %v396
    %v398 = vpop.f32.mrf.mxu0
    %v399 = vpop.f32.mrf.mxu0
    %v400 = vadd.f32 %v117, %v399
    %v401 = vpop.f32.mrf.mxu0
    %402 = vmatprep.mubr.bf16.mxu0 0
    %403 = vmatmul.mubr.bf16.gmra.mxu0 %v140
    %v404 = vpop.f32.mrf.mxu0
    %v405 = vadd.f32 %v117, %v404
    %v406 = vpop.f32.mrf.mxu0
    %v407 = vpop.f32.mrf.mxu0
    %v408 = vadd.f32 %v117, %v407
    %v409 = vpop.f32.mrf.mxu0
    %410 = vdwg.mxu0
    %411 = vst [vmem:[#allocation2] sm:$0xff] %v308
    %412 = vst [vmem:[#allocation2 + $0x8] sm:$0xff] %v310
    %413 = vst [vmem:[#allocation2 + $0x10] sm:$0xff] %v381
    %414 = vst [vmem:[#allocation2 + $0x18] sm:$0xff] %v312
    %415 = vst [vmem:[#allocation2 + $0x20] sm:$0xff] %v314
    %416 = vst [vmem:[#allocation2 + $0x28] sm:$0xff] %v384
    %417 = vst [vmem:[#allocation2 + $0x30] sm:$0xff] %v318
    %418 = vst [vmem:[#allocation2 + $0x38] sm:$0xff] %v320
    %419 = vst [vmem:[#allocation2 + $0x40] sm:$0xff] %v389
    %420 = vst [vmem:[#allocation2 + $0x48] sm:$0xff] %v322
    %421 = vst [vmem:[#allocation2 + $0x50] sm:$0xff] %v324
    %422 = vst [vmem:[#allocation2 + $0x58] sm:$0xff] %v392
    %423 = vst [vmem:[#allocation2 + $0x60] sm:$0xff] %v328
    %424 = vst [vmem:[#allocation2 + $0x68] sm:$0xff] %v330
    %425 = vst [vmem:[#allocation2 + $0x70] sm:$0xff] %v397
    %426 = vst [vmem:[#allocation2 + $0x78] sm:$0xff] %v332
    %427 = vst [vmem:[#allocation2 + $0x80] sm:$0xff] %v334
    %428 = vst [vmem:[#allocation2 + $0x88] sm:$0xff] %v400
    %429 = vst [vmem:[#allocation2 + $0x90] sm:$0xff] %v338
    %430 = vst [vmem:[#allocation2 + $0x98] sm:$0xff] %v340
    %431 = vst [vmem:[#allocation2 + $0xa0] sm:$0xff] %v405
    %432 = vst [vmem:[#allocation2 + $0xa8] sm:$0xff] %v342
    %433 = vst [vmem:[#allocation2 + $0xb0] sm:$0xff] %v344
    %434 = vst [vmem:[#allocation2 + $0xb8] sm:$0xff] %v408
    %v435 = vld [vmem:[%s2] sm:$0xff]
    %v436 = vld [vmem:[%s2 + $0x8] sm:$0xf]
    %v437 = vld [vmem:[%s2 + $0xc] sm:$0xff]
    %v438 = vld [vmem:[%s2 + $0x14] sm:$0xf]
    %v439 = vld [vmem:[%s2 + $0x18] sm:$0xff]
    %v440 = vld [vmem:[%s2 + $0x20] sm:$0xf]
    %v441 = vld [vmem:[%s2 + $0x24] sm:$0xff]
    %v442 = vld [vmem:[%s2 + $0x2c] sm:$0xf]
    %v443 = vld [vmem:[%s2 + $0x30] sm:$0xff]
    %v444 = vld [vmem:[%s2 + $0x38] sm:$0xf]
    %v445 = vld [vmem:[%s2 + $0x3c] sm:$0xff]
    %v446 = vld [vmem:[%s2 + $0x44] sm:$0xf]
    %v447 = vld [vmem:[%s2 + $0x48] sm:$0xff]
    %v448 = vld [vmem:[%s2 + $0x50] sm:$0xf]
    %v449 = vld [vmem:[%s2 + $0x54] sm:$0xff]
    %v450 = vld [vmem:[%s2 + $0x5c] sm:$0xf]
    %v451 = vld [vmem:[%s2 + $0x60] sm:$0xff]
    %v452 = vld [vmem:[%s2 + $0x68] sm:$0xf]
    %v453 = vld [vmem:[%s2 + $0x6c] sm:$0xff]
    %v454 = vld [vmem:[%s2 + $0x74] sm:$0xf]
    %v455 = vld [vmem:[%s2 + $0x78] sm:$0xff]
    %v456 = vld [vmem:[%s2 + $0x80] sm:$0xf]
    %v457 = vld [vmem:[%s2 + $0x84] sm:$0xff]
    %v458 = vld [vmem:[%s2 + $0x8c] sm:$0xf]
    %v459 = vld [vmem:[%s2 + $0x90] sm:$0xff]
    %v460 = vld [vmem:[%s2 + $0x98] sm:$0xf]
    %v461 = vld [vmem:[%s2 + $0x9c] sm:$0xff]
    %v462 = vld [vmem:[%s2 + $0xa4] sm:$0xf]
    %v463 = vld [vmem:[%s2 + $0xa8] sm:$0xff]
    %v464 = vld [vmem:[%s2 + $0xb0] sm:$0xf]
    %v465 = vld [vmem:[%s2 + $0xb4] sm:$0xff]
    %v466 = vld [vmem:[%s2 + $0xbc] sm:$0xf]
    %v467 = vld [vmem:[%s4] sm:$0x1]
    %v469 = vlaneseq
    %v470 = vshrl.u32 %v469, 7
    %v471 = vsub.s32 0, %v470
    %v472 = vrot.slane %v467, %v471
    %v474 = vld [vmem:[#allocation2] sm:$0xff]
    %v475 = vld [vmem:[#allocation2 + $0x8] sm:$0xff]
    %v476 = vld [vmem:[#allocation2 + $0x10] sm:$0xff]
    %v509 = vunpack.c.l.b16 %v435
    %v510 = vunpack.c.h.b16 %v435
    %v511 = vunpack.c.l.b16 %v436
    %v512 = vunpack.c.l.b16 %v437
    %v513 = vunpack.c.h.b16 %v437
    %v514 = vunpack.c.l.b16 %v438
    %v515 = vunpack.c.l.b16 %v439
    %v516 = vunpack.c.h.b16 %v439
    %v517 = vunpack.c.l.b16 %v440
    %v518 = vunpack.c.l.b16 %v441
    %v519 = vunpack.c.h.b16 %v441
    %v520 = vunpack.c.l.b16 %v442
    %v521 = vunpack.c.l.b16 %v443
    %v522 = vunpack.c.h.b16 %v443
    %v523 = vunpack.c.l.b16 %v444
    %v524 = vunpack.c.l.b16 %v445
    %v525 = vunpack.c.h.b16 %v445
    %v526 = vunpack.c.l.b16 %v446
    %v527 = vunpack.c.l.b16 %v447
    %v528 = vunpack.c.h.b16 %v447
    %v529 = vunpack.c.l.b16 %v448
    %v530 = vunpack.c.l.b16 %v449
    %v531 = vunpack.c.h.b16 %v449
    %v532 = vunpack.c.l.b16 %v450
    %v533 = vunpack.c.l.b16 %v451
    %v534 = vunpack.c.h.b16 %v451
    %v535 = vunpack.c.l.b16 %v452
    %v536 = vunpack.c.l.b16 %v453
    %v537 = vunpack.c.h.b16 %v453
    %v538 = vunpack.c.l.b16 %v454
    %v539 = vunpack.c.l.b16 %v455
    %v540 = vunpack.c.h.b16 %v455
    %v541 = vunpack.c.l.b16 %v456
    %v542 = vunpack.c.l.b16 %v457
    %v543 = vunpack.c.h.b16 %v457
    %v544 = vunpack.c.l.b16 %v458
    %v545 = vunpack.c.l.b16 %v459
    %v546 = vunpack.c.h.b16 %v459
    %v547 = vunpack.c.l.b16 %v460
    %v548 = vunpack.c.l.b16 %v461
    %v549 = vunpack.c.h.b16 %v461
    %v550 = vunpack.c.l.b16 %v462
    %v551 = vunpack.c.l.b16 %v463
    %v552 = vunpack.c.h.b16 %v463
    %v553 = vunpack.c.l.b16 %v464
    %v554 = vunpack.c.l.b16 %v465
    %v555 = vunpack.c.h.b16 %v465
    %v556 = vunpack.c.l.b16 %v466
    %v557 = vpack.c.b16 %v512, %v509
    %v558 = vpack.c.b16 %v513, %v510
    %v559 = vpack.c.b16 %v514, %v511
    %v560 = vpack.c.b16 %v518, %v515
    %v561 = vpack.c.b16 %v519, %v516
    %v562 = vpack.c.b16 %v520, %v517
    %v563 = vpack.c.b16 %v524, %v521
    %v564 = vpack.c.b16 %v525, %v522
    %v565 = vpack.c.b16 %v526, %v523
    %v566 = vpack.c.b16 %v530, %v527
    %v567 = vpack.c.b16 %v531, %v528
    %v568 = vpack.c.b16 %v532, %v529
    %v569 = vpack.c.b16 %v536, %v533
    %v570 = vpack.c.b16 %v537, %v534
    %v571 = vpack.c.b16 %v538, %v535
    %v572 = vpack.c.b16 %v542, %v539
    %v573 = vpack.c.b16 %v543, %v540
    %v574 = vpack.c.b16 %v544, %v541
    %v575 = vpack.c.b16 %v548, %v545
    %v576 = vpack.c.b16 %v549, %v546
    %v577 = vpack.c.b16 %v550, %v547
    %v578 = vpack.c.b16 %v554, %v551
    %v579 = vpack.c.b16 %v555, %v552
    %v580 = vpack.c.b16 %v556, %v553
    %605 = vmatprep.subr.bf16.mxu0 %v579
    %606 = vmatpush1.bf16.msra.mxu0 %v578
    %607 = vmatprep.subr.bf16.mxu0 %v576
    %608 = vmatpush1.bf16.msra.mxu0 %v575
    %609 = vmatprep.subr.bf16.mxu0 %v573
    %610 = vmatpush1.bf16.msra.mxu0 %v572
    %611 = vmatprep.subr.bf16.mxu0 %v570
    %612 = vmatpush1.bf16.msra.mxu0 %v569
    %613 = vmatprep.subr.bf16.mxu0 %v567
    %614 = vmatpush1.bf16.msra.mxu0 %v566
    %615 = vmatprep.subr.bf16.mxu0 %v564
    %616 = vmatpush1.bf16.msra.mxu0 %v563
    %617 = vmatprep.subr.bf16.mxu0 %v561
    %618 = vmatpush1.bf16.msra.mxu0 %v560
    %619 = vmatprep.subr.bf16.mxu0 %v558
    %620 = vmatpush1.bf16.msra.mxu0 %v557
    %621 = vmatprep.subr.bf16.mxu0 0
    %622 = vmatpush2.bf16.msra.mxu0 0
    %623 = vmatprep.subr.bf16.mxu0 0
    %624 = vmatpush2.bf16.msra.mxu0 0
    %625 = vmatprep.subr.bf16.mxu0 0
    %626 = vmatpush2.bf16.msra.mxu0 0
    %627 = vmatprep.subr.bf16.mxu0 0
    %628 = vmatpush2.bf16.msra.mxu0 0
    %629 = vmatprep.subr.bf16.mxu0 0
    %630 = vmatpush2.bf16.msra.mxu0 0
    %631 = vmatprep.subr.bf16.mxu0 0
    %632 = vmatpush2.bf16.msra.mxu0 0
    %633 = vmatprep.subr.bf16.mxu0 0
    %634 = vmatpush2.bf16.msra.mxu0 0
    %635 = vmatprep.subr.bf16.mxu0 0
    %636 = vmatpush2.bf16.msra.mxu0 0
    %637 = vmatprep.mubr.bf16.mxu0 0
    %638 = vmatmul.mubr.bf16.gmra.mxu0 0
    %v639 = vpop.f32.mrf.mxu0
    %v640 = vadd.f32 0.0, %v639
    %v641 = vpop.f32.mrf.mxu0
    %v642 = vadd.f32 0.0, %v641
    %v643 = vpop.f32.mrf.mxu0
    %v644 = vpop.f32.mrf.mxu0
    %645 = vdwg.mxu0
    %646 = vmatprep.subr.bf16.mxu0 0
    %647 = vmatpush1.bf16.msra.mxu0 %v580
    %648 = vmatprep.subr.bf16.mxu0 0
    %649 = vmatpush1.bf16.msra.mxu0 %v577
    %650 = vmatprep.subr.bf16.mxu0 0
    %651 = vmatpush1.bf16.msra.mxu0 %v574
    %652 = vmatprep.subr.bf16.mxu0 0
    %653 = vmatpush1.bf16.msra.mxu0 %v571
    %654 = vmatprep.subr.bf16.mxu0 0
    %655 = vmatpush1.bf16.msra.mxu0 %v568
    %656 = vmatprep.subr.bf16.mxu0 0
    %657 = vmatpush1.bf16.msra.mxu0 %v565
    %658 = vmatprep.subr.bf16.mxu0 0
    %659 = vmatpush1.bf16.msra.mxu0 %v562
    %660 = vmatprep.subr.bf16.mxu0 0
    %661 = vmatpush1.bf16.msra.mxu0 %v559
    %662 = vmatprep.subr.bf16.mxu0 0
    %663 = vmatpush2.bf16.msra.mxu0 0
    %664 = vmatprep.subr.bf16.mxu0 0
    %665 = vmatpush2.bf16.msra.mxu0 0
    %666 = vmatprep.subr.bf16.mxu0 0
    %667 = vmatpush2.bf16.msra.mxu0 0
    %668 = vmatprep.subr.bf16.mxu0 0
    %669 = vmatpush2.bf16.msra.mxu0 0
    %670 = vmatprep.subr.bf16.mxu0 0
    %671 = vmatpush2.bf16.msra.mxu0 0
    %672 = vmatprep.subr.bf16.mxu0 0
    %673 = vmatpush2.bf16.msra.mxu0 0
    %674 = vmatprep.subr.bf16.mxu0 0
    %675 = vmatpush2.bf16.msra.mxu0 0
    %676 = vmatprep.subr.bf16.mxu0 0
    %677 = vmatpush2.bf16.msra.mxu0 0
    %678 = vmatprep.mubr.bf16.mxu0 0
    %679 = vmatmul.mubr.bf16.gmra.mxu0 0
    %v680 = vpop.f32.mrf.mxu0
    %v681 = vadd.f32 0.0, %v680
    %v682 = vpop.f32.mrf.mxu0
    %v683 = vpop.f32.mrf.mxu0
    %v684 = vpop.f32.mrf.mxu0
    %685 = vdwg.mxu0
    %v686 = vadd.f32 %v474, %v640
    %v687 = vadd.f32 %v475, %v642
    %v688 = vxor.u32 %v686, 2147483648
    %v689 = vxor.u32 %v687, 2147483648
    %v690 = vmul.f32 %v688, 1.442695
    %v691 = vpow.pop %v690
    %v692 = vmul.f32 %v689, 1.442695
    %v693 = vpow.pop %v692
    %v694 = vadd.f32 %v691, 1.0
    %v695 = vadd.f32 %v693, 1.0
    %v696 = vrcp.pop %v694
    %v697 = vmul.f32 1.0, %v696
    %v698 = vrcp.pop %v695
    %v699 = vmul.f32 1.0, %v698
    %v700 = vadd.f32 %v681, %v472
    %v701 = vmul.f32 %v697, %v700
    %v702 = vadd.f32 %v476, %v701
    %v703 = vtanh.pop %v702
    %v704 = vsub.f32 0.0, %v703
    %v705 = vmul.f32 %v699, %v704
    %v706 = vadd.f32 %v703, %v705
    %v707 = vpack.c.bf16 %v706, %v706
    %708 = vst [vmem:[#allocation4] sm:$0xf] %v707
    %s709 = scalar_lea.vmem [#allocation2], 24
    %v710 = vld [vmem:[%s709] sm:$0xff]
    %v711 = vld [vmem:[%s709 + $0x8] sm:$0xff]
    %v712 = vld [vmem:[%s709 + $0x10] sm:$0xff]
    %713 = vmatprep.subr.bf16.mxu0 %v579
    %714 = vmatpush1.bf16.msra.mxu0 %v578
    %715 = vmatprep.subr.bf16.mxu0 %v576
    %716 = vmatpush1.bf16.msra.mxu0 %v575
    %717 = vmatprep.subr.bf16.mxu0 %v573
    %718 = vmatpush1.bf16.msra.mxu0 %v572
    %719 = vmatprep.subr.bf16.mxu0 %v570
    %720 = vmatpush1.bf16.msra.mxu0 %v569
    %721 = vmatprep.subr.bf16.mxu0 %v567
    %722 = vmatpush1.bf16.msra.mxu0 %v566
    %723 = vmatprep.subr.bf16.mxu0 %v564
    %724 = vmatpush1.bf16.msra.mxu0 %v563
    %725 = vmatprep.subr.bf16.mxu0 %v561
    %726 = vmatpush1.bf16.msra.mxu0 %v560
    %727 = vmatprep.subr.bf16.mxu0 %v558
    %728 = vmatpush1.bf16.msra.mxu0 %v557
    %729 = vmatprep.subr.bf16.mxu0 0
    %730 = vmatpush2.bf16.msra.mxu0 0
    %731 = vmatprep.subr.bf16.mxu0 0
    %732 = vmatpush2.bf16.msra.mxu0 0
    %733 = vmatprep.subr.bf16.mxu0 0
    %734 = vmatpush2.bf16.msra.mxu0 0
    %735 = vmatprep.subr.bf16.mxu0 0
    %736 = vmatpush2.bf16.msra.mxu0 0
    %737 = vmatprep.subr.bf16.mxu0 0
    %738 = vmatpush2.bf16.msra.mxu0 0
    %739 = vmatprep.subr.bf16.mxu0 0
    %740 = vmatpush2.bf16.msra.mxu0 0
    %741 = vmatprep.subr.bf16.mxu0 0
    %742 = vmatpush2.bf16.msra.mxu0 0
    %743 = vmatprep.subr.bf16.mxu0 0
    %744 = vmatpush2.bf16.msra.mxu0 0
    %745 = vmatprep.mubr.bf16.mxu0 0
    %746 = vmatmul.mubr.bf16.gmra.mxu0 %v707
    %v747 = vpop.f32.mrf.mxu0
    %v748 = vadd.f32 0.0, %v747
    %v749 = vpop.f32.mrf.mxu0
    %v750 = vadd.f32 0.0, %v749
    %v751 = vpop.f32.mrf.mxu0
    %v752 = vpop.f32.mrf.mxu0
    %753 = vdwg.mxu0
    %754 = vmatprep.subr.bf16.mxu0 0
    %755 = vmatpush1.bf16.msra.mxu0 %v580
    %756 = vmatprep.subr.bf16.mxu0 0
    %757 = vmatpush1.bf16.msra.mxu0 %v577
    %758 = vmatprep.subr.bf16.mxu0 0
    %759 = vmatpush1.bf16.msra.mxu0 %v574
    %760 = vmatprep.subr.bf16.mxu0 0
    %761 = vmatpush1.bf16.msra.mxu0 %v571
    %762 = vmatprep.subr.bf16.mxu0 0
    %763 = vmatpush1.bf16.msra.mxu0 %v568
    %764 = vmatprep.subr.bf16.mxu0 0
    %765 = vmatpush1.bf16.msra.mxu0 %v565
    %766 = vmatprep.subr.bf16.mxu0 0
    %767 = vmatpush1.bf16.msra.mxu0 %v562
    %768 = vmatprep.subr.bf16.mxu0 0
    %769 = vmatpush1.bf16.msra.mxu0 %v559
    %770 = vmatprep.subr.bf16.mxu0 0
    %771 = vmatpush2.bf16.msra.mxu0 0
    %772 = vmatprep.subr.bf16.mxu0 0
    %773 = vmatpush2.bf16.msra.mxu0 0
    %774 = vmatprep.subr.bf16.mxu0 0
    %775 = vmatpush2.bf16.msra.mxu0 0
    %776 = vmatprep.subr.bf16.mxu0 0
    %777 = vmatpush2.bf16.msra.mxu0 0
    %778 = vmatprep.subr.bf16.mxu0 0
    %779 = vmatpush2.bf16.msra.mxu0 0
    %780 = vmatprep.subr.bf16.mxu0 0
    %781 = vmatpush2.bf16.msra.mxu0 0
    %782 = vmatprep.subr.bf16.mxu0 0
    %783 = vmatpush2.bf16.msra.mxu0 0
    %784 = vmatprep.subr.bf16.mxu0 0
    %785 = vmatpush2.bf16.msra.mxu0 0
    %786 = vmatprep.mubr.bf16.mxu0 0
    %787 = vmatmul.mubr.bf16.gmra.mxu0 %v707
    %v788 = vpop.f32.mrf.mxu0
    %v789 = vadd.f32 0.0, %v788
    %v790 = vpop.f32.mrf.mxu0
    %v791 = vpop.f32.mrf.mxu0
    %v792 = vpop.f32.mrf.mxu0
    %793 = vdwg.mxu0
    %v794 = vadd.f32 %v710, %v748
    %v795 = vadd.f32 %v711, %v750
    %v796 = vxor.u32 %v794, 2147483648
    %v797 = vxor.u32 %v795, 2147483648
    %v798 = vmul.f32 %v796, 1.442695
    %v799 = vpow.pop %v798
    %v800 = vmul.f32 %v797, 1.442695
    %v801 = vpow.pop %v800
    %v802 = vadd.f32 %v799, 1.0
    %v803 = vadd.f32 %v801, 1.0
    %v804 = vrcp.pop %v802
    %v805 = vmul.f32 1.0, %v804
    %v806 = vrcp.pop %v803
    %v807 = vmul.f32 1.0, %v806
    %v808 = vadd.f32 %v789, %v472
    %v809 = vmul.f32 %v805, %v808
    %v810 = vadd.f32 %v712, %v809
    %v811 = vtanh.pop %v810
    %v812 = vsub.f32 %v706, %v811
    %v813 = vmul.f32 %v807, %v812
    %v814 = vadd.f32 %v811, %v813
    %v815 = vpack.c.bf16 %v814, %v814
    %s816 = scalar_lea.vmem [#allocation4], 4
    %817 = vst [vmem:[%s816] sm:$0xf] %v815
    %s818 = scalar_lea.vmem [#allocation2], 48
    %v819 = vld [vmem:[%s818] sm:$0xff]
    %v820 = vld [vmem:[%s818 + $0x8] sm:$0xff]
    %v821 = vld [vmem:[%s818 + $0x10] sm:$0xff]
    %822 = vmatprep.subr.bf16.mxu0 %v579
    %823 = vmatpush1.bf16.msra.mxu0 %v578
    %824 = vmatprep.subr.bf16.mxu0 %v576
    %825 = vmatpush1.bf16.msra.mxu0 %v575
    %826 = vmatprep.subr.bf16.mxu0 %v573
    %827 = vmatpush1.bf16.msra.mxu0 %v572
    %828 = vmatprep.subr.bf16.mxu0 %v570
    %829 = vmatpush1.bf16.msra.mxu0 %v569
    %830 = vmatprep.subr.bf16.mxu0 %v567
    %831 = vmatpush1.bf16.msra.mxu0 %v566
    %832 = vmatprep.subr.bf16.mxu0 %v564
    %833 = vmatpush1.bf16.msra.mxu0 %v563
    %834 = vmatprep.subr.bf16.mxu0 %v561
    %835 = vmatpush1.bf16.msra.mxu0 %v560
    %836 = vmatprep.subr.bf16.mxu0 %v558
    %837 = vmatpush1.bf16.msra.mxu0 %v557
    %838 = vmatprep.subr.bf16.mxu0 0
    %839 = vmatpush2.bf16.msra.mxu0 0
    %840 = vmatprep.subr.bf16.mxu0 0
    %841 = vmatpush2.bf16.msra.mxu0 0
    %842 = vmatprep.subr.bf16.mxu0 0
    %843 = vmatpush2.bf16.msra.mxu0 0
    %844 = vmatprep.subr.bf16.mxu0 0
    %845 = vmatpush2.bf16.msra.mxu0 0
    %846 = vmatprep.subr.bf16.mxu0 0
    %847 = vmatpush2.bf16.msra.mxu0 0
    %848 = vmatprep.subr.bf16.mxu0 0
    %849 = vmatpush2.bf16.msra.mxu0 0
    %850 = vmatprep.subr.bf16.mxu0 0
    %851 = vmatpush2.bf16.msra.mxu0 0
    %852 = vmatprep.subr.bf16.mxu0 0
    %853 = vmatpush2.bf16.msra.mxu0 0
    %854 = vmatprep.mubr.bf16.mxu0 0
    %855 = vmatmul.mubr.bf16.gmra.mxu0 %v815
    %v856 = vpop.f32.mrf.mxu0
    %v857 = vadd.f32 0.0, %v856
    %v858 = vpop.f32.mrf.mxu0
    %v859 = vadd.f32 0.0, %v858
    %v860 = vpop.f32.mrf.mxu0
    %v861 = vpop.f32.mrf.mxu0
    %862 = vdwg.mxu0
    %863 = vmatprep.subr.bf16.mxu0 0
    %864 = vmatpush1.bf16.msra.mxu0 %v580
    %865 = vmatprep.subr.bf16.mxu0 0
    %866 = vmatpush1.bf16.msra.mxu0 %v577
    %867 = vmatprep.subr.bf16.mxu0 0
    %868 = vmatpush1.bf16.msra.mxu0 %v574
    %869 = vmatprep.subr.bf16.mxu0 0
    %870 = vmatpush1.bf16.msra.mxu0 %v571
    %871 = vmatprep.subr.bf16.mxu0 0
    %872 = vmatpush1.bf16.msra.mxu0 %v568
    %873 = vmatprep.subr.bf16.mxu0 0
    %874 = vmatpush1.bf16.msra.mxu0 %v565
    %875 = vmatprep.subr.bf16.mxu0 0
    %876 = vmatpush1.bf16.msra.mxu0 %v562
    %877 = vmatprep.subr.bf16.mxu0 0
    %878 = vmatpush1.bf16.msra.mxu0 %v559
    %879 = vmatprep.subr.bf16.mxu0 0
    %880 = vmatpush2.bf16.msra.mxu0 0
    %881 = vmatprep.subr.bf16.mxu0 0
    %882 = vmatpush2.bf16.msra.mxu0 0
    %883 = vmatprep.subr.bf16.mxu0 0
    %884 = vmatpush2.bf16.msra.mxu0 0
    %885 = vmatprep.subr.bf16.mxu0 0
    %886 = vmatpush2.bf16.msra.mxu0 0
    %887 = vmatprep.subr.bf16.mxu0 0
    %888 = vmatpush2.bf16.msra.mxu0 0
    %889 = vmatprep.subr.bf16.mxu0 0
    %890 = vmatpush2.bf16.msra.mxu0 0
    %891 = vmatprep.subr.bf16.mxu0 0
    %892 = vmatpush2.bf16.msra.mxu0 0
    %893 = vmatprep.subr.bf16.mxu0 0
    %894 = vmatpush2.bf16.msra.mxu0 0
    %895 = vmatprep.mubr.bf16.mxu0 0
    %896 = vmatmul.mubr.bf16.gmra.mxu0 %v815
    %v897 = vpop.f32.mrf.mxu0
    %v898 = vadd.f32 0.0, %v897
    %v899 = vpop.f32.mrf.mxu0
    %v900 = vpop.f32.mrf.mxu0
    %v901 = vpop.f32.mrf.mxu0
    %902 = vdwg.mxu0
    %v903 = vadd.f32 %v819, %v857
    %v904 = vadd.f32 %v820, %v859
    %v905 = vxor.u32 %v903, 2147483648
    %v906 = vxor.u32 %v904, 2147483648
    %v907 = vmul.f32 %v905, 1.442695
    %v908 = vpow.pop %v907
    %v909 = vmul.f32 %v906, 1.442695
    %v910 = vpow.pop %v909
    %v911 = vadd.f32 %v908, 1.0
    %v912 = vadd.f32 %v910, 1.0
    %v913 = vrcp.pop %v911
    %v914 = vmul.f32 1.0, %v913
    %v915 = vrcp.pop %v912
    %v916 = vmul.f32 1.0, %v915
    %v917 = vadd.f32 %v898, %v472
    %v918 = vmul.f32 %v914, %v917
    %v919 = vadd.f32 %v821, %v918
    %v920 = vtanh.pop %v919
    %v921 = vsub.f32 %v814, %v920
    %v922 = vmul.f32 %v916, %v921
    %v923 = vadd.f32 %v920, %v922
    %v924 = vpack.c.bf16 %v923, %v923
    %s925 = scalar_lea.vmem [#allocation4], 8
    %926 = vst [vmem:[%s925] sm:$0xf] %v924
    %s927 = scalar_lea.vmem [#allocation2], 72
    %v928 = vld [vmem:[%s927] sm:$0xff]
    %v929 = vld [vmem:[%s927 + $0x8] sm:$0xff]
    %v930 = vld [vmem:[%s927 + $0x10] sm:$0xff]
    %931 = vmatprep.subr.bf16.mxu0 %v579
    %932 = vmatpush1.bf16.msra.mxu0 %v578
    %933 = vmatprep.subr.bf16.mxu0 %v576
    %934 = vmatpush1.bf16.msra.mxu0 %v575
    %935 = vmatprep.subr.bf16.mxu0 %v573
    %936 = vmatpush1.bf16.msra.mxu0 %v572
    %937 = vmatprep.subr.bf16.mxu0 %v570
    %938 = vmatpush1.bf16.msra.mxu0 %v569
    %939 = vmatprep.subr.bf16.mxu0 %v567
    %940 = vmatpush1.bf16.msra.mxu0 %v566
    %941 = vmatprep.subr.bf16.mxu0 %v564
    %942 = vmatpush1.bf16.msra.mxu0 %v563
    %943 = vmatprep.subr.bf16.mxu0 %v561
    %944 = vmatpush1.bf16.msra.mxu0 %v560
    %945 = vmatprep.subr.bf16.mxu0 %v558
    %946 = vmatpush1.bf16.msra.mxu0 %v557
    %947 = vmatprep.subr.bf16.mxu0 0
    %948 = vmatpush2.bf16.msra.mxu0 0
    %949 = vmatprep.subr.bf16.mxu0 0
    %950 = vmatpush2.bf16.msra.mxu0 0
    %951 = vmatprep.subr.bf16.mxu0 0
    %952 = vmatpush2.bf16.msra.mxu0 0
    %953 = vmatprep.subr.bf16.mxu0 0
    %954 = vmatpush2.bf16.msra.mxu0 0
    %955 = vmatprep.subr.bf16.mxu0 0
    %956 = vmatpush2.bf16.msra.mxu0 0
    %957 = vmatprep.subr.bf16.mxu0 0
    %958 = vmatpush2.bf16.msra.mxu0 0
    %959 = vmatprep.subr.bf16.mxu0 0
    %960 = vmatpush2.bf16.msra.mxu0 0
    %961 = vmatprep.subr.bf16.mxu0 0
    %962 = vmatpush2.bf16.msra.mxu0 0
    %963 = vmatprep.mubr.bf16.mxu0 0
    %964 = vmatmul.mubr.bf16.gmra.mxu0 %v924
    %v965 = vpop.f32.mrf.mxu0
    %v966 = vadd.f32 0.0, %v965
    %v967 = vpop.f32.mrf.mxu0
    %v968 = vadd.f32 0.0, %v967
    %v969 = vpop.f32.mrf.mxu0
    %v970 = vpop.f32.mrf.mxu0
    %971 = vdwg.mxu0
    %972 = vmatprep.subr.bf16.mxu0 0
    %973 = vmatpush1.bf16.msra.mxu0 %v580
    %974 = vmatprep.subr.bf16.mxu0 0
    %975 = vmatpush1.bf16.msra.mxu0 %v577
    %976 = vmatprep.subr.bf16.mxu0 0
    %977 = vmatpush1.bf16.msra.mxu0 %v574
    %978 = vmatprep.subr.bf16.mxu0 0
    %979 = vmatpush1.bf16.msra.mxu0 %v571
    %980 = vmatprep.subr.bf16.mxu0 0
    %981 = vmatpush1.bf16.msra.mxu0 %v568
    %982 = vmatprep.subr.bf16.mxu0 0
    %983 = vmatpush1.bf16.msra.mxu0 %v565
    %984 = vmatprep.subr.bf16.mxu0 0
    %985 = vmatpush1.bf16.msra.mxu0 %v562
    %986 = vmatprep.subr.bf16.mxu0 0
    %987 = vmatpush1.bf16.msra.mxu0 %v559
    %988 = vmatprep.subr.bf16.mxu0 0
    %989 = vmatpush2.bf16.msra.mxu0 0
    %990 = vmatprep.subr.bf16.mxu0 0
    %991 = vmatpush2.bf16.msra.mxu0 0
    %992 = vmatprep.subr.bf16.mxu0 0
    %993 = vmatpush2.bf16.msra.mxu0 0
    %994 = vmatprep.subr.bf16.mxu0 0
    %995 = vmatpush2.bf16.msra.mxu0 0
    %996 = vmatprep.subr.bf16.mxu0 0
    %997 = vmatpush2.bf16.msra.mxu0 0
    %998 = vmatprep.subr.bf16.mxu0 0
    %999 = vmatpush2.bf16.msra.mxu0 0
    %1000 = vmatprep.subr.bf16.mxu0 0
    %1001 = vmatpush2.bf16.msra.mxu0 0
    %1002 = vmatprep.subr.bf16.mxu0 0
    %1003 = vmatpush2.bf16.msra.mxu0 0
    %1004 = vmatprep.mubr.bf16.mxu0 0
    %1005 = vmatmul.mubr.bf16.gmra.mxu0 %v924
    %v1006 = vpop.f32.mrf.mxu0
    %v1007 = vadd.f32 0.0, %v1006
    %v1008 = vpop.f32.mrf.mxu0
    %v1009 = vpop.f32.mrf.mxu0
    %v1010 = vpop.f32.mrf.mxu0
    %1011 = vdwg.mxu0
    %v1012 = vadd.f32 %v928, %v966
    %v1013 = vadd.f32 %v929, %v968
    %v1014 = vxor.u32 %v1012, 2147483648
    %v1015 = vxor.u32 %v1013, 2147483648
    %v1016 = vmul.f32 %v1014, 1.442695
    %v1017 = vpow.pop %v1016
    %v1018 = vmul.f32 %v1015, 1.442695
    %v1019 = vpow.pop %v1018
    %v1020 = vadd.f32 %v1017, 1.0
    %v1021 = vadd.f32 %v1019, 1.0
    %v1022 = vrcp.pop %v1020
    %v1023 = vmul.f32 1.0, %v1022
    %v1024 = vrcp.pop %v1021
    %v1025 = vmul.f32 1.0, %v1024
    %v1026 = vadd.f32 %v1007, %v472
    %v1027 = vmul.f32 %v1023, %v1026
    %v1028 = vadd.f32 %v930, %v1027
    %v1029 = vtanh.pop %v1028
    %v1030 = vsub.f32 %v923, %v1029
    %v1031 = vmul.f32 %v1025, %v1030
    %v1032 = vadd.f32 %v1029, %v1031
    %v1033 = vpack.c.bf16 %v1032, %v1032
    %s1034 = scalar_lea.vmem [#allocation4], 12
    %1035 = vst [vmem:[%s1034] sm:$0xf] %v1033
    %s1036 = scalar_lea.vmem [#allocation2], 96
    %v1037 = vld [vmem:[%s1036] sm:$0xff]
    %v1038 = vld [vmem:[%s1036 + $0x8] sm:$0xff]
    %v1039 = vld [vmem:[%s1036 + $0x10] sm:$0xff]
    %1040 = vmatprep.subr.bf16.mxu0 %v579
    %1041 = vmatpush1.bf16.msra.mxu0 %v578
    %1042 = vmatprep.subr.bf16.mxu0 %v576
    %1043 = vmatpush1.bf16.msra.mxu0 %v575
    %1044 = vmatprep.subr.bf16.mxu0 %v573
    %1045 = vmatpush1.bf16.msra.mxu0 %v572
    %1046 = vmatprep.subr.bf16.mxu0 %v570
    %1047 = vmatpush1.bf16.msra.mxu0 %v569
    %1048 = vmatprep.subr.bf16.mxu0 %v567
    %1049 = vmatpush1.bf16.msra.mxu0 %v566
    %1050 = vmatprep.subr.bf16.mxu0 %v564
    %1051 = vmatpush1.bf16.msra.mxu0 %v563
    %1052 = vmatprep.subr.bf16.mxu0 %v561
    %1053 = vmatpush1.bf16.msra.mxu0 %v560
    %1054 = vmatprep.subr.bf16.mxu0 %v558
    %1055 = vmatpush1.bf16.msra.mxu0 %v557
    %1056 = vmatprep.subr.bf16.mxu0 0
    %1057 = vmatpush2.bf16.msra.mxu0 0
    %1058 = vmatprep.subr.bf16.mxu0 0
    %1059 = vmatpush2.bf16.msra.mxu0 0
    %1060 = vmatprep.subr.bf16.mxu0 0
    %1061 = vmatpush2.bf16.msra.mxu0 0
    %1062 = vmatprep.subr.bf16.mxu0 0
    %1063 = vmatpush2.bf16.msra.mxu0 0
    %1064 = vmatprep.subr.bf16.mxu0 0
    %1065 = vmatpush2.bf16.msra.mxu0 0
    %1066 = vmatprep.subr.bf16.mxu0 0
    %1067 = vmatpush2.bf16.msra.mxu0 0
    %1068 = vmatprep.subr.bf16.mxu0 0
    %1069 = vmatpush2.bf16.msra.mxu0 0
    %1070 = vmatprep.subr.bf16.mxu0 0
    %1071 = vmatpush2.bf16.msra.mxu0 0
    %1072 = vmatprep.mubr.bf16.mxu0 0
    %1073 = vmatmul.mubr.bf16.gmra.mxu0 %v1033
    %v1074 = vpop.f32.mrf.mxu0
    %v1075 = vadd.f32 0.0, %v1074
    %v1076 = vpop.f32.mrf.mxu0
    %v1077 = vadd.f32 0.0, %v1076
    %v1078 = vpop.f32.mrf.mxu0
    %v1079 = vpop.f32.mrf.mxu0
    %1080 = vdwg.mxu0
    %1081 = vmatprep.subr.bf16.mxu0 0
    %1082 = vmatpush1.bf16.msra.mxu0 %v580
    %1083 = vmatprep.subr.bf16.mxu0 0
    %1084 = vmatpush1.bf16.msra.mxu0 %v577
    %1085 = vmatprep.subr.bf16.mxu0 0
    %1086 = vmatpush1.bf16.msra.mxu0 %v574
    %1087 = vmatprep.subr.bf16.mxu0 0
    %1088 = vmatpush1.bf16.msra.mxu0 %v571
    %1089 = vmatprep.subr.bf16.mxu0 0
    %1090 = vmatpush1.bf16.msra.mxu0 %v568
    %1091 = vmatprep.subr.bf16.mxu0 0
    %1092 = vmatpush1.bf16.msra.mxu0 %v565
    %1093 = vmatprep.subr.bf16.mxu0 0
    %1094 = vmatpush1.bf16.msra.mxu0 %v562
    %1095 = vmatprep.subr.bf16.mxu0 0
    %1096 = vmatpush1.bf16.msra.mxu0 %v559
    %1097 = vmatprep.subr.bf16.mxu0 0
    %1098 = vmatpush2.bf16.msra.mxu0 0
    %1099 = vmatprep.subr.bf16.mxu0 0
    %1100 = vmatpush2.bf16.msra.mxu0 0
    %1101 = vmatprep.subr.bf16.mxu0 0
    %1102 = vmatpush2.bf16.msra.mxu0 0
    %1103 = vmatprep.subr.bf16.mxu0 0
    %1104 = vmatpush2.bf16.msra.mxu0 0
    %1105 = vmatprep.subr.bf16.mxu0 0
    %1106 = vmatpush2.bf16.msra.mxu0 0
    %1107 = vmatprep.subr.bf16.mxu0 0
    %1108 = vmatpush2.bf16.msra.mxu0 0
    %1109 = vmatprep.subr.bf16.mxu0 0
    %1110 = vmatpush2.bf16.msra.mxu0 0
    %1111 = vmatprep.subr.bf16.mxu0 0
    %1112 = vmatpush2.bf16.msra.mxu0 0
    %1113 = vmatprep.mubr.bf16.mxu0 0
    %1114 = vmatmul.mubr.bf16.gmra.mxu0 %v1033
    %v1115 = vpop.f32.mrf.mxu0
    %v1116 = vadd.f32 0.0, %v1115
    %v1117 = vpop.f32.mrf.mxu0
    %v1118 = vpop.f32.mrf.mxu0
    %v1119 = vpop.f32.mrf.mxu0
    %1120 = vdwg.mxu0
    %v1121 = vadd.f32 %v1037, %v1075
    %v1122 = vadd.f32 %v1038, %v1077
    %v1123 = vxor.u32 %v1121, 2147483648
    %v1124 = vxor.u32 %v1122, 2147483648
    %v1125 = vmul.f32 %v1123, 1.442695
    %v1126 = vpow.pop %v1125
    %v1127 = vmul.f32 %v1124, 1.442695
    %v1128 = vpow.pop %v1127
    %v1129 = vadd.f32 %v1126, 1.0
    %v1130 = vadd.f32 %v1128, 1.0
    %v1131 = vrcp.pop %v1129
    %v1132 = vmul.f32 1.0, %v1131
    %v1133 = vrcp.pop %v1130
    %v1134 = vmul.f32 1.0, %v1133
    %v1135 = vadd.f32 %v1116, %v472
    %v1136 = vmul.f32 %v1132, %v1135
    %v1137 = vadd.f32 %v1039, %v1136
    %v1138 = vtanh.pop %v1137
    %v1139 = vsub.f32 %v1032, %v1138
    %v1140 = vmul.f32 %v1134, %v1139
    %v1141 = vadd.f32 %v1138, %v1140
    %v1142 = vpack.c.bf16 %v1141, %v1141
    %s1143 = scalar_lea.vmem [#allocation4], 16
    %1144 = vst [vmem:[%s1143] sm:$0xf] %v1142
    %s1145 = scalar_lea.vmem [#allocation2], 120
    %v1146 = vld [vmem:[%s1145] sm:$0xff]
    %v1147 = vld [vmem:[%s1145 + $0x8] sm:$0xff]
    %v1148 = vld [vmem:[%s1145 + $0x10] sm:$0xff]
    %1149 = vmatprep.subr.bf16.mxu0 %v579
    %1150 = vmatpush1.bf16.msra.mxu0 %v578
    %1151 = vmatprep.subr.bf16.mxu0 %v576
    %1152 = vmatpush1.bf16.msra.mxu0 %v575
    %1153 = vmatprep.subr.bf16.mxu0 %v573
    %1154 = vmatpush1.bf16.msra.mxu0 %v572
    %1155 = vmatprep.subr.bf16.mxu0 %v570
    %1156 = vmatpush1.bf16.msra.mxu0 %v569
    %1157 = vmatprep.subr.bf16.mxu0 %v567
    %1158 = vmatpush1.bf16.msra.mxu0 %v566
    %1159 = vmatprep.subr.bf16.mxu0 %v564
    %1160 = vmatpush1.bf16.msra.mxu0 %v563
    %1161 = vmatprep.subr.bf16.mxu0 %v561
    %1162 = vmatpush1.bf16.msra.mxu0 %v560
    %1163 = vmatprep.subr.bf16.mxu0 %v558
    %1164 = vmatpush1.bf16.msra.mxu0 %v557
    %1165 = vmatprep.subr.bf16.mxu0 0
    %1166 = vmatpush2.bf16.msra.mxu0 0
    %1167 = vmatprep.subr.bf16.mxu0 0
    %1168 = vmatpush2.bf16.msra.mxu0 0
    %1169 = vmatprep.subr.bf16.mxu0 0
    %1170 = vmatpush2.bf16.msra.mxu0 0
    %1171 = vmatprep.subr.bf16.mxu0 0
    %1172 = vmatpush2.bf16.msra.mxu0 0
    %1173 = vmatprep.subr.bf16.mxu0 0
    %1174 = vmatpush2.bf16.msra.mxu0 0
    %1175 = vmatprep.subr.bf16.mxu0 0
    %1176 = vmatpush2.bf16.msra.mxu0 0
    %1177 = vmatprep.subr.bf16.mxu0 0
    %1178 = vmatpush2.bf16.msra.mxu0 0
    %1179 = vmatprep.subr.bf16.mxu0 0
    %1180 = vmatpush2.bf16.msra.mxu0 0
    %1181 = vmatprep.mubr.bf16.mxu0 0
    %1182 = vmatmul.mubr.bf16.gmra.mxu0 %v1142
    %v1183 = vpop.f32.mrf.mxu0
    %v1184 = vadd.f32 0.0, %v1183
    %v1185 = vpop.f32.mrf.mxu0
    %v1186 = vadd.f32 0.0, %v1185
    %v1187 = vpop.f32.mrf.mxu0
    %v1188 = vpop.f32.mrf.mxu0
    %1189 = vdwg.mxu0
    %1190 = vmatprep.subr.bf16.mxu0 0
    %1191 = vmatpush1.bf16.msra.mxu0 %v580
    %1192 = vmatprep.subr.bf16.mxu0 0
    %1193 = vmatpush1.bf16.msra.mxu0 %v577
    %1194 = vmatprep.subr.bf16.mxu0 0
    %1195 = vmatpush1.bf16.msra.mxu0 %v574
    %1196 = vmatprep.subr.bf16.mxu0 0
    %1197 = vmatpush1.bf16.msra.mxu0 %v571
    %1198 = vmatprep.subr.bf16.mxu0 0
    %1199 = vmatpush1.bf16.msra.mxu0 %v568
    %1200 = vmatprep.subr.bf16.mxu0 0
    %1201 = vmatpush1.bf16.msra.mxu0 %v565
    %1202 = vmatprep.subr.bf16.mxu0 0
    %1203 = vmatpush1.bf16.msra.mxu0 %v562
    %1204 = vmatprep.subr.bf16.mxu0 0
    %1205 = vmatpush1.bf16.msra.mxu0 %v559
    %1206 = vmatprep.subr.bf16.mxu0 0
    %1207 = vmatpush2.bf16.msra.mxu0 0
    %1208 = vmatprep.subr.bf16.mxu0 0
    %1209 = vmatpush2.bf16.msra.mxu0 0
    %1210 = vmatprep.subr.bf16.mxu0 0
    %1211 = vmatpush2.bf16.msra.mxu0 0
    %1212 = vmatprep.subr.bf16.mxu0 0
    %1213 = vmatpush2.bf16.msra.mxu0 0
    %1214 = vmatprep.subr.bf16.mxu0 0
    %1215 = vmatpush2.bf16.msra.mxu0 0
    %1216 = vmatprep.subr.bf16.mxu0 0
    %1217 = vmatpush2.bf16.msra.mxu0 0
    %1218 = vmatprep.subr.bf16.mxu0 0
    %1219 = vmatpush2.bf16.msra.mxu0 0
    %1220 = vmatprep.subr.bf16.mxu0 0
    %1221 = vmatpush2.bf16.msra.mxu0 0
    %1222 = vmatprep.mubr.bf16.mxu0 0
    %1223 = vmatmul.mubr.bf16.gmra.mxu0 %v1142
    %v1224 = vpop.f32.mrf.mxu0
    %v1225 = vadd.f32 0.0, %v1224
    %v1226 = vpop.f32.mrf.mxu0
    %v1227 = vpop.f32.mrf.mxu0
    %v1228 = vpop.f32.mrf.mxu0
    %1229 = vdwg.mxu0
    %v1230 = vadd.f32 %v1146, %v1184
    %v1231 = vadd.f32 %v1147, %v1186
    %v1232 = vxor.u32 %v1230, 2147483648
    %v1233 = vxor.u32 %v1231, 2147483648
    %v1234 = vmul.f32 %v1232, 1.442695
    %v1235 = vpow.pop %v1234
    %v1236 = vmul.f32 %v1233, 1.442695
    %v1237 = vpow.pop %v1236
    %v1238 = vadd.f32 %v1235, 1.0
    %v1239 = vadd.f32 %v1237, 1.0
    %v1240 = vrcp.pop %v1238
    %v1241 = vmul.f32 1.0, %v1240
    %v1242 = vrcp.pop %v1239
    %v1243 = vmul.f32 1.0, %v1242
    %v1244 = vadd.f32 %v1225, %v472
    %v1245 = vmul.f32 %v1241, %v1244
    %v1246 = vadd.f32 %v1148, %v1245
    %v1247 = vtanh.pop %v1246
    %v1248 = vsub.f32 %v1141, %v1247
    %v1249 = vmul.f32 %v1243, %v1248
    %v1250 = vadd.f32 %v1247, %v1249
    %v1251 = vpack.c.bf16 %v1250, %v1250
    %s1252 = scalar_lea.vmem [#allocation4], 20
    %1253 = vst [vmem:[%s1252] sm:$0xf] %v1251
    %s1254 = scalar_lea.vmem [#allocation2], 144
    %v1255 = vld [vmem:[%s1254] sm:$0xff]
    %v1256 = vld [vmem:[%s1254 + $0x8] sm:$0xff]
    %v1257 = vld [vmem:[%s1254 + $0x10] sm:$0xff]
    %1258 = vmatprep.subr.bf16.mxu0 %v579
    %1259 = vmatpush1.bf16.msra.mxu0 %v578
    %1260 = vmatprep.subr.bf16.mxu0 %v576
    %1261 = vmatpush1.bf16.msra.mxu0 %v575
    %1262 = vmatprep.subr.bf16.mxu0 %v573
    %1263 = vmatpush1.bf16.msra.mxu0 %v572
    %1264 = vmatprep.subr.bf16.mxu0 %v570
    %1265 = vmatpush1.bf16.msra.mxu0 %v569
    %1266 = vmatprep.subr.bf16.mxu0 %v567
    %1267 = vmatpush1.bf16.msra.mxu0 %v566
    %1268 = vmatprep.subr.bf16.mxu0 %v564
    %1269 = vmatpush1.bf16.msra.mxu0 %v563
    %1270 = vmatprep.subr.bf16.mxu0 %v561
    %1271 = vmatpush1.bf16.msra.mxu0 %v560
    %1272 = vmatprep.subr.bf16.mxu0 %v558
    %1273 = vmatpush1.bf16.msra.mxu0 %v557
    %1274 = vmatprep.subr.bf16.mxu0 0
    %1275 = vmatpush2.bf16.msra.mxu0 0
    %1276 = vmatprep.subr.bf16.mxu0 0
    %1277 = vmatpush2.bf16.msra.mxu0 0
    %1278 = vmatprep.subr.bf16.mxu0 0
    %1279 = vmatpush2.bf16.msra.mxu0 0
    %1280 = vmatprep.subr.bf16.mxu0 0
    %1281 = vmatpush2.bf16.msra.mxu0 0
    %1282 = vmatprep.subr.bf16.mxu0 0
    %1283 = vmatpush2.bf16.msra.mxu0 0
    %1284 = vmatprep.subr.bf16.mxu0 0
    %1285 = vmatpush2.bf16.msra.mxu0 0
    %1286 = vmatprep.subr.bf16.mxu0 0
    %1287 = vmatpush2.bf16.msra.mxu0 0
    %1288 = vmatprep.subr.bf16.mxu0 0
    %1289 = vmatpush2.bf16.msra.mxu0 0
    %1290 = vmatprep.mubr.bf16.mxu0 0
    %1291 = vmatmul.mubr.bf16.gmra.mxu0 %v1251
    %v1292 = vpop.f32.mrf.mxu0
    %v1293 = vadd.f32 0.0, %v1292
    %v1294 = vpop.f32.mrf.mxu0
    %v1295 = vadd.f32 0.0, %v1294
    %v1296 = vpop.f32.mrf.mxu0
    %v1297 = vpop.f32.mrf.mxu0
    %1298 = vdwg.mxu0
    %1299 = vmatprep.subr.bf16.mxu0 0
    %1300 = vmatpush1.bf16.msra.mxu0 %v580
    %1301 = vmatprep.subr.bf16.mxu0 0
    %1302 = vmatpush1.bf16.msra.mxu0 %v577
    %1303 = vmatprep.subr.bf16.mxu0 0
    %1304 = vmatpush1.bf16.msra.mxu0 %v574
    %1305 = vmatprep.subr.bf16.mxu0 0
    %1306 = vmatpush1.bf16.msra.mxu0 %v571
    %1307 = vmatprep.subr.bf16.mxu0 0
    %1308 = vmatpush1.bf16.msra.mxu0 %v568
    %1309 = vmatprep.subr.bf16.mxu0 0
    %1310 = vmatpush1.bf16.msra.mxu0 %v565
    %1311 = vmatprep.subr.bf16.mxu0 0
    %1312 = vmatpush1.bf16.msra.mxu0 %v562
    %1313 = vmatprep.subr.bf16.mxu0 0
    %1314 = vmatpush1.bf16.msra.mxu0 %v559
    %1315 = vmatprep.subr.bf16.mxu0 0
    %1316 = vmatpush2.bf16.msra.mxu0 0
    %1317 = vmatprep.subr.bf16.mxu0 0
    %1318 = vmatpush2.bf16.msra.mxu0 0
    %1319 = vmatprep.subr.bf16.mxu0 0
    %1320 = vmatpush2.bf16.msra.mxu0 0
    %1321 = vmatprep.subr.bf16.mxu0 0
    %1322 = vmatpush2.bf16.msra.mxu0 0
    %1323 = vmatprep.subr.bf16.mxu0 0
    %1324 = vmatpush2.bf16.msra.mxu0 0
    %1325 = vmatprep.subr.bf16.mxu0 0
    %1326 = vmatpush2.bf16.msra.mxu0 0
    %1327 = vmatprep.subr.bf16.mxu0 0
    %1328 = vmatpush2.bf16.msra.mxu0 0
    %1329 = vmatprep.subr.bf16.mxu0 0
    %1330 = vmatpush2.bf16.msra.mxu0 0
    %1331 = vmatprep.mubr.bf16.mxu0 0
    %1332 = vmatmul.mubr.bf16.gmra.mxu0 %v1251
    %v1333 = vpop.f32.mrf.mxu0
    %v1334 = vadd.f32 0.0, %v1333
    %v1335 = vpop.f32.mrf.mxu0
    %v1336 = vpop.f32.mrf.mxu0
    %v1337 = vpop.f32.mrf.mxu0
    %1338 = vdwg.mxu0
    %v1339 = vadd.f32 %v1255, %v1293
    %v1340 = vadd.f32 %v1256, %v1295
    %v1341 = vxor.u32 %v1339, 2147483648
    %v1342 = vxor.u32 %v1340, 2147483648
    %v1343 = vmul.f32 %v1341, 1.442695
    %v1344 = vpow.pop %v1343
    %v1345 = vmul.f32 %v1342, 1.442695
    %v1346 = vpow.pop %v1345
    %v1347 = vadd.f32 %v1344, 1.0
    %v1348 = vadd.f32 %v1346, 1.0
    %v1349 = vrcp.pop %v1347
    %v1350 = vmul.f32 1.0, %v1349
    %v1351 = vrcp.pop %v1348
    %v1352 = vmul.f32 1.0, %v1351
    %v1353 = vadd.f32 %v1334, %v472
    %v1354 = vmul.f32 %v1350, %v1353
    %v1355 = vadd.f32 %v1257, %v1354
    %v1356 = vtanh.pop %v1355
    %v1357 = vsub.f32 %v1250, %v1356
    %v1358 = vmul.f32 %v1352, %v1357
    %v1359 = vadd.f32 %v1356, %v1358
    %v1360 = vpack.c.bf16 %v1359, %v1359
    %s1361 = scalar_lea.vmem [#allocation4], 24
    %1362 = vst [vmem:[%s1361] sm:$0xf] %v1360
    %s1363 = scalar_lea.vmem [#allocation2], 168
    %v1364 = vld [vmem:[%s1363] sm:$0xff]
    %v1365 = vld [vmem:[%s1363 + $0x8] sm:$0xff]
    %v1366 = vld [vmem:[%s1363 + $0x10] sm:$0xff]
    %1367 = vmatprep.subr.bf16.mxu0 %v579
    %1368 = vmatpush1.bf16.msra.mxu0 %v578
    %1369 = vmatprep.subr.bf16.mxu0 %v576
    %1370 = vmatpush1.bf16.msra.mxu0 %v575
    %1371 = vmatprep.subr.bf16.mxu0 %v573
    %1372 = vmatpush1.bf16.msra.mxu0 %v572
    %1373 = vmatprep.subr.bf16.mxu0 %v570
    %1374 = vmatpush1.bf16.msra.mxu0 %v569
    %1375 = vmatprep.subr.bf16.mxu0 %v567
    %1376 = vmatpush1.bf16.msra.mxu0 %v566
    %1377 = vmatprep.subr.bf16.mxu0 %v564
    %1378 = vmatpush1.bf16.msra.mxu0 %v563
    %1379 = vmatprep.subr.bf16.mxu0 %v561
    %1380 = vmatpush1.bf16.msra.mxu0 %v560
    %1381 = vmatprep.subr.bf16.mxu0 %v558
    %1382 = vmatpush1.bf16.msra.mxu0 %v557
    %1383 = vmatprep.subr.bf16.mxu0 0
    %1384 = vmatpush2.bf16.msra.mxu0 0
    %1385 = vmatprep.subr.bf16.mxu0 0
    %1386 = vmatpush2.bf16.msra.mxu0 0
    %1387 = vmatprep.subr.bf16.mxu0 0
    %1388 = vmatpush2.bf16.msra.mxu0 0
    %1389 = vmatprep.subr.bf16.mxu0 0
    %1390 = vmatpush2.bf16.msra.mxu0 0
    %1391 = vmatprep.subr.bf16.mxu0 0
    %1392 = vmatpush2.bf16.msra.mxu0 0
    %1393 = vmatprep.subr.bf16.mxu0 0
    %1394 = vmatpush2.bf16.msra.mxu0 0
    %1395 = vmatprep.subr.bf16.mxu0 0
    %1396 = vmatpush2.bf16.msra.mxu0 0
    %1397 = vmatprep.subr.bf16.mxu0 0
    %1398 = vmatpush2.bf16.msra.mxu0 0
    %1399 = vmatprep.mubr.bf16.mxu0 0
    %1400 = vmatmul.mubr.bf16.gmra.mxu0 %v1360
    %v1401 = vpop.f32.mrf.mxu0
    %v1402 = vadd.f32 0.0, %v1401
    %v1403 = vpop.f32.mrf.mxu0
    %v1404 = vadd.f32 0.0, %v1403
    %v1405 = vpop.f32.mrf.mxu0
    %v1406 = vpop.f32.mrf.mxu0
    %1407 = vdwg.mxu0
    %1408 = vmatprep.subr.bf16.mxu0 0
    %1409 = vmatpush1.bf16.msra.mxu0 %v580
    %1410 = vmatprep.subr.bf16.mxu0 0
    %1411 = vmatpush1.bf16.msra.mxu0 %v577
    %1412 = vmatprep.subr.bf16.mxu0 0
    %1413 = vmatpush1.bf16.msra.mxu0 %v574
    %1414 = vmatprep.subr.bf16.mxu0 0
    %1415 = vmatpush1.bf16.msra.mxu0 %v571
    %1416 = vmatprep.subr.bf16.mxu0 0
    %1417 = vmatpush1.bf16.msra.mxu0 %v568
    %1418 = vmatprep.subr.bf16.mxu0 0
    %1419 = vmatpush1.bf16.msra.mxu0 %v565
    %1420 = vmatprep.subr.bf16.mxu0 0
    %1421 = vmatpush1.bf16.msra.mxu0 %v562
    %1422 = vmatprep.subr.bf16.mxu0 0
    %1423 = vmatpush1.bf16.msra.mxu0 %v559
    %1424 = vmatprep.subr.bf16.mxu0 0
    %1425 = vmatpush2.bf16.msra.mxu0 0
    %1426 = vmatprep.subr.bf16.mxu0 0
    %1427 = vmatpush2.bf16.msra.mxu0 0
    %1428 = vmatprep.subr.bf16.mxu0 0
    %1429 = vmatpush2.bf16.msra.mxu0 0
    %1430 = vmatprep.subr.bf16.mxu0 0
    %1431 = vmatpush2.bf16.msra.mxu0 0
    %1432 = vmatprep.subr.bf16.mxu0 0
    %1433 = vmatpush2.bf16.msra.mxu0 0
    %1434 = vmatprep.subr.bf16.mxu0 0
    %1435 = vmatpush2.bf16.msra.mxu0 0
    %1436 = vmatprep.subr.bf16.mxu0 0
    %1437 = vmatpush2.bf16.msra.mxu0 0
    %1438 = vmatprep.subr.bf16.mxu0 0
    %1439 = vmatpush2.bf16.msra.mxu0 0
    %1440 = vmatprep.mubr.bf16.mxu0 0
    %1441 = vmatmul.mubr.bf16.gmra.mxu0 %v1360
    %v1442 = vpop.f32.mrf.mxu0
    %v1443 = vadd.f32 0.0, %v1442
    %v1444 = vpop.f32.mrf.mxu0
    %v1445 = vpop.f32.mrf.mxu0
    %v1446 = vpop.f32.mrf.mxu0
    %1447 = vdwg.mxu0
    %v1448 = vadd.f32 %v1364, %v1402
    %v1449 = vadd.f32 %v1365, %v1404
    %v1450 = vxor.u32 %v1448, 2147483648
    %v1451 = vxor.u32 %v1449, 2147483648
    %v1452 = vmul.f32 %v1450, 1.442695
    %v1453 = vpow.pop %v1452
    %v1454 = vmul.f32 %v1451, 1.442695
    %v1455 = vpow.pop %v1454
    %v1456 = vadd.f32 %v1453, 1.0
    %v1457 = vadd.f32 %v1455, 1.0
    %v1458 = vrcp.pop %v1456
    %v1459 = vmul.f32 1.0, %v1458
    %v1460 = vrcp.pop %v1457
    %v1461 = vmul.f32 1.0, %v1460
    %v1462 = vadd.f32 %v1443, %v472
    %v1463 = vmul.f32 %v1459, %v1462
    %v1464 = vadd.f32 %v1366, %v1463
    %v1465 = vtanh.pop %v1464
    %v1466 = vsub.f32 %v1359, %v1465
    %v1467 = vmul.f32 %v1461, %v1466
    %v1468 = vadd.f32 %v1465, %v1467
    %v1469 = vpack.c.bf16 %v1468, %v1468
    %s1470 = scalar_lea.vmem [#allocation4], 28
    %1471 = vst [vmem:[%s1470] sm:$0xf] %v1469
    %1472 = vst [vmem:[#allocation3] sm:$0xff] %v1468
    %v1473 = vld [vmem:[#allocation4] sm:$0xf]
    %v1474 = vld [vmem:[#allocation4 + $0x4] sm:$0xf]
    %v1475 = vld [vmem:[#allocation4 + $0x8] sm:$0xf]
    %v1476 = vld [vmem:[#allocation4 + $0xc] sm:$0xf]
    %v1477 = vld [vmem:[#allocation4 + $0x10] sm:$0xf]
    %v1478 = vld [vmem:[#allocation4 + $0x14] sm:$0xf]
    %v1479 = vld [vmem:[#allocation4 + $0x18] sm:$0xf]
    %v1480 = vld [vmem:[#allocation4 + $0x1c] sm:$0xf]
    %v1481 = vld [vmem:[%s5] sm:$0xff]
    %v1482 = vld [vmem:[%s5 + $0x8] sm:$0xf]
    %v1483 = vld [vmem:[%s5 + $0xc] sm:$0xff]
    %v1484 = vld [vmem:[%s5 + $0x14] sm:$0xf]
    %v1485 = vld [vmem:[%s5 + $0x18] sm:$0xff]
    %v1486 = vld [vmem:[%s5 + $0x20] sm:$0xf]
    %v1487 = vld [vmem:[%s5 + $0x24] sm:$0xff]
    %v1488 = vld [vmem:[%s5 + $0x2c] sm:$0xf]
    %v1489 = vld [vmem:[%s5 + $0x30] sm:$0xff]
    %v1490 = vld [vmem:[%s5 + $0x38] sm:$0xf]
    %v1491 = vld [vmem:[%s5 + $0x3c] sm:$0xff]
    %v1492 = vld [vmem:[%s5 + $0x44] sm:$0xf]
    %v1493 = vld [vmem:[%s5 + $0x48] sm:$0xff]
    %v1494 = vld [vmem:[%s5 + $0x50] sm:$0xf]
    %v1495 = vld [vmem:[%s5 + $0x54] sm:$0xff]
    %v1496 = vld [vmem:[%s5 + $0x5c] sm:$0xf]
    %v1497 = vld [vmem:[%s5 + $0x60] sm:$0xff]
    %v1498 = vld [vmem:[%s5 + $0x68] sm:$0xf]
    %v1499 = vld [vmem:[%s5 + $0x6c] sm:$0xff]
    %v1500 = vld [vmem:[%s5 + $0x74] sm:$0xf]
    %v1501 = vld [vmem:[%s5 + $0x78] sm:$0xff]
    %v1502 = vld [vmem:[%s5 + $0x80] sm:$0xf]
    %v1503 = vld [vmem:[%s5 + $0x84] sm:$0xff]
    %v1504 = vld [vmem:[%s5 + $0x8c] sm:$0xf]
    %v1505 = vld [vmem:[%s5 + $0x90] sm:$0xff]
    %v1506 = vld [vmem:[%s5 + $0x98] sm:$0xf]
    %v1507 = vld [vmem:[%s5 + $0x9c] sm:$0xff]
    %v1508 = vld [vmem:[%s5 + $0xa4] sm:$0xf]
    %v1509 = vld [vmem:[%s5 + $0xa8] sm:$0xff]
    %v1510 = vld [vmem:[%s5 + $0xb0] sm:$0xf]
    %v1511 = vld [vmem:[%s5 + $0xb4] sm:$0xff]
    %v1512 = vld [vmem:[%s5 + $0xbc] sm:$0xf]
    %v1513 = vld [vmem:[%s7] sm:$0x7]
    %v1515 = vlaneseq
    %v1516 = vshrl.u32 %v1515, 7
    %v1517 = vsub.s32 0, %v1516
    %v1518 = vrot.slane %v1513, %v1517
    %v1519 = vlaneseq
    %v1520 = vshrl.u32 %v1519, 7
    %v1521 = vsub.s32 1, %v1520
    %v1522 = vrot.slane %v1513, %v1521
    %v1523 = vlaneseq
    %v1524 = vshrl.u32 %v1523, 7
    %v1525 = vsub.s32 2, %v1524
    %v1526 = vrot.slane %v1513, %v1525
    %v1538 = vunpack.c.l.b16 %v1473
    %v1539 = vunpack.c.l.b16 %v1474
    %v1540 = vunpack.c.l.b16 %v1475
    %v1541 = vunpack.c.l.b16 %v1476
    %v1542 = vunpack.c.l.b16 %v1477
    %v1543 = vunpack.c.l.b16 %v1478
    %v1544 = vunpack.c.l.b16 %v1479
    %v1545 = vunpack.c.l.b16 %v1480
    %v1546 = vpack.c.b16 %v1539, %v1538
    %v1547 = vpack.c.b16 %v1541, %v1540
    %v1548 = vpack.c.b16 %v1543, %v1542
    %v1549 = vpack.c.b16 %v1545, %v1544
    %v1586 = vunpack.c.l.b16 %v1481
    %v1587 = vunpack.c.h.b16 %v1481
    %v1588 = vunpack.c.l.b16 %v1482
    %v1589 = vunpack.c.l.b16 %v1483
    %v1590 = vunpack.c.h.b16 %v1483
    %v1591 = vunpack.c.l.b16 %v1484
    %v1592 = vunpack.c.l.b16 %v1485
    %v1593 = vunpack.c.h.b16 %v1485
    %v1594 = vunpack.c.l.b16 %v1486
    %v1595 = vunpack.c.l.b16 %v1487
    %v1596 = vunpack.c.h.b16 %v1487
    %v1597 = vunpack.c.l.b16 %v1488
    %v1598 = vunpack.c.l.b16 %v1489
    %v1599 = vunpack.c.h.b16 %v1489
    %v1600 = vunpack.c.l.b16 %v1490
    %v1601 = vunpack.c.l.b16 %v1491
    %v1602 = vunpack.c.h.b16 %v1491
    %v1603 = vunpack.c.l.b16 %v1492
    %v1604 = vunpack.c.l.b16 %v1493
    %v1605 = vunpack.c.h.b16 %v1493
    %v1606 = vunpack.c.l.b16 %v1494
    %v1607 = vunpack.c.l.b16 %v1495
    %v1608 = vunpack.c.h.b16 %v1495
    %v1609 = vunpack.c.l.b16 %v1496
    %v1610 = vunpack.c.l.b16 %v1497
    %v1611 = vunpack.c.h.b16 %v1497
    %v1612 = vunpack.c.l.b16 %v1498
    %v1613 = vunpack.c.l.b16 %v1499
    %v1614 = vunpack.c.h.b16 %v1499
    %v1615 = vunpack.c.l.b16 %v1500
    %v1616 = vunpack.c.l.b16 %v1501
    %v1617 = vunpack.c.h.b16 %v1501
    %v1618 = vunpack.c.l.b16 %v1502
    %v1619 = vunpack.c.l.b16 %v1503
    %v1620 = vunpack.c.h.b16 %v1503
    %v1621 = vunpack.c.l.b16 %v1504
    %v1622 = vunpack.c.l.b16 %v1505
    %v1623 = vunpack.c.h.b16 %v1505
    %v1624 = vunpack.c.l.b16 %v1506
    %v1625 = vunpack.c.l.b16 %v1507
    %v1626 = vunpack.c.h.b16 %v1507
    %v1627 = vunpack.c.l.b16 %v1508
    %v1628 = vunpack.c.l.b16 %v1509
    %v1629 = vunpack.c.h.b16 %v1509
    %v1630 = vunpack.c.l.b16 %v1510
    %v1631 = vunpack.c.l.b16 %v1511
    %v1632 = vunpack.c.h.b16 %v1511
    %v1633 = vunpack.c.l.b16 %v1512
    %v1634 = vpack.c.b16 %v1589, %v1586
    %v1635 = vpack.c.b16 %v1590, %v1587
    %v1636 = vpack.c.b16 %v1591, %v1588
    %v1637 = vpack.c.b16 %v1595, %v1592
    %v1638 = vpack.c.b16 %v1596, %v1593
    %v1639 = vpack.c.b16 %v1597, %v1594
    %v1640 = vpack.c.b16 %v1601, %v1598
    %v1641 = vpack.c.b16 %v1602, %v1599
    %v1642 = vpack.c.b16 %v1603, %v1600
    %v1643 = vpack.c.b16 %v1607, %v1604
    %v1644 = vpack.c.b16 %v1608, %v1605
    %v1645 = vpack.c.b16 %v1609, %v1606
    %v1646 = vpack.c.b16 %v1613, %v1610
    %v1647 = vpack.c.b16 %v1614, %v1611
    %v1648 = vpack.c.b16 %v1615, %v1612
    %v1649 = vpack.c.b16 %v1619, %v1616
    %v1650 = vpack.c.b16 %v1620, %v1617
    %v1651 = vpack.c.b16 %v1621, %v1618
    %v1652 = vpack.c.b16 %v1625, %v1622
    %v1653 = vpack.c.b16 %v1626, %v1623
    %v1654 = vpack.c.b16 %v1627, %v1624
    %v1655 = vpack.c.b16 %v1631, %v1628
    %v1656 = vpack.c.b16 %v1632, %v1629
    %v1657 = vpack.c.b16 %v1633, %v1630
    %1682 = vmatprep.subr.bf16.mxu0 %v1656
    %1683 = vmatpush1.bf16.msra.mxu0 %v1655
    %1684 = vmatprep.subr.bf16.mxu0 %v1653
    %1685 = vmatpush1.bf16.msra.mxu0 %v1652
    %1686 = vmatprep.subr.bf16.mxu0 %v1650
    %1687 = vmatpush1.bf16.msra.mxu0 %v1649
    %1688 = vmatprep.subr.bf16.mxu0 %v1647
    %1689 = vmatpush1.bf16.msra.mxu0 %v1646
    %1690 = vmatprep.subr.bf16.mxu0 %v1644
    %1691 = vmatpush1.bf16.msra.mxu0 %v1643
    %1692 = vmatprep.subr.bf16.mxu0 %v1641
    %1693 = vmatpush1.bf16.msra.mxu0 %v1640
    %1694 = vmatprep.subr.bf16.mxu0 %v1638
    %1695 = vmatpush1.bf16.msra.mxu0 %v1637
    %1696 = vmatprep.subr.bf16.mxu0 %v1635
    %1697 = vmatpush1.bf16.msra.mxu0 %v1634
    %1698 = vmatprep.subr.bf16.mxu0 0
    %1699 = vmatpush2.bf16.msra.mxu0 0
    %1700 = vmatprep.subr.bf16.mxu0 0
    %1701 = vmatpush2.bf16.msra.mxu0 0
    %1702 = vmatprep.subr.bf16.mxu0 0
    %1703 = vmatpush2.bf16.msra.mxu0 0
    %1704 = vmatprep.subr.bf16.mxu0 0
    %1705 = vmatpush2.bf16.msra.mxu0 0
    %1706 = vmatprep.subr.bf16.mxu0 0
    %1707 = vmatpush2.bf16.msra.mxu0 0
    %1708 = vmatprep.subr.bf16.mxu0 0
    %1709 = vmatpush2.bf16.msra.mxu0 0
    %1710 = vmatprep.subr.bf16.mxu0 0
    %1711 = vmatpush2.bf16.msra.mxu0 0
    %1712 = vmatprep.subr.bf16.mxu0 0
    %1713 = vmatpush2.bf16.msra.mxu0 0
    %1714 = vmatprep.mubr.bf16.mxu0 0
    %1715 = vmatmul.mubr.bf16.gmra.mxu0 %v1546
    %v1716 = vpop.f32.mrf.mxu0
    %v1717 = vadd.f32 %v1518, %v1716
    %v1718 = vpop.f32.mrf.mxu0
    %v1719 = vadd.f32 %v1522, %v1718
    %v1720 = vpop.f32.mrf.mxu0
    %v1721 = vadd.f32 %v1518, %v1720
    %v1722 = vpop.f32.mrf.mxu0
    %v1723 = vadd.f32 %v1522, %v1722
    %1724 = vmatprep.mubr.bf16.mxu0 0
    %1725 = vmatmul.mubr.bf16.gmra.mxu0 %v1547
    %v1726 = vpop.f32.mrf.mxu0
    %v1727 = vadd.f32 %v1518, %v1726
    %v1728 = vpop.f32.mrf.mxu0
    %v1729 = vadd.f32 %v1522, %v1728
    %v1730 = vpop.f32.mrf.mxu0
    %v1731 = vadd.f32 %v1518, %v1730
    %v1732 = vpop.f32.mrf.mxu0
    %v1733 = vadd.f32 %v1522, %v1732
    %1734 = vmatprep.mubr.bf16.mxu0 0
    %1735 = vmatmul.mubr.bf16.gmra.mxu0 %v1548
    %v1736 = vpop.f32.mrf.mxu0
    %v1737 = vadd.f32 %v1518, %v1736
    %v1738 = vpop.f32.mrf.mxu0
    %v1739 = vadd.f32 %v1522, %v1738
    %v1740 = vpop.f32.mrf.mxu0
    %v1741 = vadd.f32 %v1518, %v1740
    %v1742 = vpop.f32.mrf.mxu0
    %v1743 = vadd.f32 %v1522, %v1742
    %1744 = vmatprep.mubr.bf16.mxu0 0
    %1745 = vmatmul.mubr.bf16.gmra.mxu0 %v1549
    %v1746 = vpop.f32.mrf.mxu0
    %v1747 = vadd.f32 %v1518, %v1746
    %v1748 = vpop.f32.mrf.mxu0
    %v1749 = vadd.f32 %v1522, %v1748
    %v1750 = vpop.f32.mrf.mxu0
    %v1751 = vadd.f32 %v1518, %v1750
    %v1752 = vpop.f32.mrf.mxu0
    %v1753 = vadd.f32 %v1522, %v1752
    %1754 = vdwg.mxu0
    %1755 = vmatprep.subr.bf16.mxu0 0
    %1756 = vmatpush1.bf16.msra.mxu0 %v1657
    %1757 = vmatprep.subr.bf16.mxu0 0
    %1758 = vmatpush1.bf16.msra.mxu0 %v1654
    %1759 = vmatprep.subr.bf16.mxu0 0
    %1760 = vmatpush1.bf16.msra.mxu0 %v1651
    %1761 = vmatprep.subr.bf16.mxu0 0
    %1762 = vmatpush1.bf16.msra.mxu0 %v1648
    %1763 = vmatprep.subr.bf16.mxu0 0
    %1764 = vmatpush1.bf16.msra.mxu0 %v1645
    %1765 = vmatprep.subr.bf16.mxu0 0
    %1766 = vmatpush1.bf16.msra.mxu0 %v1642
    %1767 = vmatprep.subr.bf16.mxu0 0
    %1768 = vmatpush1.bf16.msra.mxu0 %v1639
    %1769 = vmatprep.subr.bf16.mxu0 0
    %1770 = vmatpush1.bf16.msra.mxu0 %v1636
    %1771 = vmatprep.subr.bf16.mxu0 0
    %1772 = vmatpush2.bf16.msra.mxu0 0
    %1773 = vmatprep.subr.bf16.mxu0 0
    %1774 = vmatpush2.bf16.msra.mxu0 0
    %1775 = vmatprep.subr.bf16.mxu0 0
    %1776 = vmatpush2.bf16.msra.mxu0 0
    %1777 = vmatprep.subr.bf16.mxu0 0
    %1778 = vmatpush2.bf16.msra.mxu0 0
    %1779 = vmatprep.subr.bf16.mxu0 0
    %1780 = vmatpush2.bf16.msra.mxu0 0
    %1781 = vmatprep.subr.bf16.mxu0 0
    %1782 = vmatpush2.bf16.msra.mxu0 0
    %1783 = vmatprep.subr.bf16.mxu0 0
    %1784 = vmatpush2.bf16.msra.mxu0 0
    %1785 = vmatprep.subr.bf16.mxu0 0
    %1786 = vmatpush2.bf16.msra.mxu0 0
    %1787 = vmatprep.mubr.bf16.mxu0 0
    %1788 = vmatmul.mubr.bf16.gmra.mxu0 %v1546
    %v1789 = vpop.f32.mrf.mxu0
    %v1790 = vadd.f32 %v1526, %v1789
    %v1791 = vpop.f32.mrf.mxu0
    %v1792 = vpop.f32.mrf.mxu0
    %v1793 = vadd.f32 %v1526, %v1792
    %v1794 = vpop.f32.mrf.mxu0
    %1795 = vmatprep.mubr.bf16.mxu0 0
    %1796 = vmatmul.mubr.bf16.gmra.mxu0 %v1547
    %v1797 = vpop.f32.mrf.mxu0
    %v1798 = vadd.f32 %v1526, %v1797
    %v1799 = vpop.f32.mrf.mxu0
    %v1800 = vpop.f32.mrf.mxu0
    %v1801 = vadd.f32 %v1526, %v1800
    %v1802 = vpop.f32.mrf.mxu0
    %1803 = vmatprep.mubr.bf16.mxu0 0
    %1804 = vmatmul.mubr.bf16.gmra.mxu0 %v1548
    %v1805 = vpop.f32.mrf.mxu0
    %v1806 = vadd.f32 %v1526, %v1805
    %v1807 = vpop.f32.mrf.mxu0
    %v1808 = vpop.f32.mrf.mxu0
    %v1809 = vadd.f32 %v1526, %v1808
    %v1810 = vpop.f32.mrf.mxu0
    %1811 = vmatprep.mubr.bf16.mxu0 0
    %1812 = vmatmul.mubr.bf16.gmra.mxu0 %v1549
    %v1813 = vpop.f32.mrf.mxu0
    %v1814 = vadd.f32 %v1526, %v1813
    %v1815 = vpop.f32.mrf.mxu0
    %v1816 = vpop.f32.mrf.mxu0
    %v1817 = vadd.f32 %v1526, %v1816
    %v1818 = vpop.f32.mrf.mxu0
    %1819 = vdwg.mxu0
    %1820 = vst [vmem:[#allocation2] sm:$0xff] %v1717
    %1821 = vst [vmem:[#allocation2 + $0x8] sm:$0xff] %v1719
    %1822 = vst [vmem:[#allocation2 + $0x10] sm:$0xff] %v1790
    %1823 = vst [vmem:[#allocation2 + $0x18] sm:$0xff] %v1721
    %1824 = vst [vmem:[#allocation2 + $0x20] sm:$0xff] %v1723
    %1825 = vst [vmem:[#allocation2 + $0x28] sm:$0xff] %v1793
    %1826 = vst [vmem:[#allocation2 + $0x30] sm:$0xff] %v1727
    %1827 = vst [vmem:[#allocation2 + $0x38] sm:$0xff] %v1729
    %1828 = vst [vmem:[#allocation2 + $0x40] sm:$0xff] %v1798
    %1829 = vst [vmem:[#allocation2 + $0x48] sm:$0xff] %v1731
    %1830 = vst [vmem:[#allocation2 + $0x50] sm:$0xff] %v1733
    %1831 = vst [vmem:[#allocation2 + $0x58] sm:$0xff] %v1801
    %1832 = vst [vmem:[#allocation2 + $0x60] sm:$0xff] %v1737
    %1833 = vst [vmem:[#allocation2 + $0x68] sm:$0xff] %v1739
    %1834 = vst [vmem:[#allocation2 + $0x70] sm:$0xff] %v1806
    %1835 = vst [vmem:[#allocation2 + $0x78] sm:$0xff] %v1741
    %1836 = vst [vmem:[#allocation2 + $0x80] sm:$0xff] %v1743
    %1837 = vst [vmem:[#allocation2 + $0x88] sm:$0xff] %v1809
    %1838 = vst [vmem:[#allocation2 + $0x90] sm:$0xff] %v1747
    %1839 = vst [vmem:[#allocation2 + $0x98] sm:$0xff] %v1749
    %1840 = vst [vmem:[#allocation2 + $0xa0] sm:$0xff] %v1814
    %1841 = vst [vmem:[#allocation2 + $0xa8] sm:$0xff] %v1751
    %1842 = vst [vmem:[#allocation2 + $0xb0] sm:$0xff] %v1753
    %1843 = vst [vmem:[#allocation2 + $0xb8] sm:$0xff] %v1817
    %v1844 = vld [vmem:[%s6] sm:$0xff]
    %v1845 = vld [vmem:[%s6 + $0x8] sm:$0xf]
    %v1846 = vld [vmem:[%s6 + $0xc] sm:$0xff]
    %v1847 = vld [vmem:[%s6 + $0x14] sm:$0xf]
    %v1848 = vld [vmem:[%s6 + $0x18] sm:$0xff]
    %v1849 = vld [vmem:[%s6 + $0x20] sm:$0xf]
    %v1850 = vld [vmem:[%s6 + $0x24] sm:$0xff]
    %v1851 = vld [vmem:[%s6 + $0x2c] sm:$0xf]
    %v1852 = vld [vmem:[%s6 + $0x30] sm:$0xff]
    %v1853 = vld [vmem:[%s6 + $0x38] sm:$0xf]
    %v1854 = vld [vmem:[%s6 + $0x3c] sm:$0xff]
    %v1855 = vld [vmem:[%s6 + $0x44] sm:$0xf]
    %v1856 = vld [vmem:[%s6 + $0x48] sm:$0xff]
    %v1857 = vld [vmem:[%s6 + $0x50] sm:$0xf]
    %v1858 = vld [vmem:[%s6 + $0x54] sm:$0xff]
    %v1859 = vld [vmem:[%s6 + $0x5c] sm:$0xf]
    %v1860 = vld [vmem:[%s6 + $0x60] sm:$0xff]
    %v1861 = vld [vmem:[%s6 + $0x68] sm:$0xf]
    %v1862 = vld [vmem:[%s6 + $0x6c] sm:$0xff]
    %v1863 = vld [vmem:[%s6 + $0x74] sm:$0xf]
    %v1864 = vld [vmem:[%s6 + $0x78] sm:$0xff]
    %v1865 = vld [vmem:[%s6 + $0x80] sm:$0xf]
    %v1866 = vld [vmem:[%s6 + $0x84] sm:$0xff]
    %v1867 = vld [vmem:[%s6 + $0x8c] sm:$0xf]
    %v1868 = vld [vmem:[%s6 + $0x90] sm:$0xff]
    %v1869 = vld [vmem:[%s6 + $0x98] sm:$0xf]
    %v1870 = vld [vmem:[%s6 + $0x9c] sm:$0xff]
    %v1871 = vld [vmem:[%s6 + $0xa4] sm:$0xf]
    %v1872 = vld [vmem:[%s6 + $0xa8] sm:$0xff]
    %v1873 = vld [vmem:[%s6 + $0xb0] sm:$0xf]
    %v1874 = vld [vmem:[%s6 + $0xb4] sm:$0xff]
    %v1875 = vld [vmem:[%s6 + $0xbc] sm:$0xf]
    %v1876 = vld [vmem:[%s8] sm:$0x1]
    %v1878 = vlaneseq
    %v1879 = vshrl.u32 %v1878, 7
    %v1880 = vsub.s32 0, %v1879
    %v1881 = vrot.slane %v1876, %v1880
    %v1883 = vld [vmem:[#allocation2] sm:$0xff]
    %v1884 = vld [vmem:[#allocation2 + $0x8] sm:$0xff]
    %v1885 = vld [vmem:[#allocation2 + $0x10] sm:$0xff]
    %v1918 = vunpack.c.l.b16 %v1844
    %v1919 = vunpack.c.h.b16 %v1844
    %v1920 = vunpack.c.l.b16 %v1845
    %v1921 = vunpack.c.l.b16 %v1846
    %v1922 = vunpack.c.h.b16 %v1846
    %v1923 = vunpack.c.l.b16 %v1847
    %v1924 = vunpack.c.l.b16 %v1848
    %v1925 = vunpack.c.h.b16 %v1848
    %v1926 = vunpack.c.l.b16 %v1849
    %v1927 = vunpack.c.l.b16 %v1850
    %v1928 = vunpack.c.h.b16 %v1850
    %v1929 = vunpack.c.l.b16 %v1851
    %v1930 = vunpack.c.l.b16 %v1852
    %v1931 = vunpack.c.h.b16 %v1852
    %v1932 = vunpack.c.l.b16 %v1853
    %v1933 = vunpack.c.l.b16 %v1854
    %v1934 = vunpack.c.h.b16 %v1854
    %v1935 = vunpack.c.l.b16 %v1855
    %v1936 = vunpack.c.l.b16 %v1856
    %v1937 = vunpack.c.h.b16 %v1856
    %v1938 = vunpack.c.l.b16 %v1857
    %v1939 = vunpack.c.l.b16 %v1858
    %v1940 = vunpack.c.h.b16 %v1858
    %v1941 = vunpack.c.l.b16 %v1859
    %v1942 = vunpack.c.l.b16 %v1860
    %v1943 = vunpack.c.h.b16 %v1860
    %v1944 = vunpack.c.l.b16 %v1861
    %v1945 = vunpack.c.l.b16 %v1862
    %v1946 = vunpack.c.h.b16 %v1862
    %v1947 = vunpack.c.l.b16 %v1863
    %v1948 = vunpack.c.l.b16 %v1864
    %v1949 = vunpack.c.h.b16 %v1864
    %v1950 = vunpack.c.l.b16 %v1865
    %v1951 = vunpack.c.l.b16 %v1866
    %v1952 = vunpack.c.h.b16 %v1866
    %v1953 = vunpack.c.l.b16 %v1867
    %v1954 = vunpack.c.l.b16 %v1868
    %v1955 = vunpack.c.h.b16 %v1868
    %v1956 = vunpack.c.l.b16 %v1869
    %v1957 = vunpack.c.l.b16 %v1870
    %v1958 = vunpack.c.h.b16 %v1870
    %v1959 = vunpack.c.l.b16 %v1871
    %v1960 = vunpack.c.l.b16 %v1872
    %v1961 = vunpack.c.h.b16 %v1872
    %v1962 = vunpack.c.l.b16 %v1873
    %v1963 = vunpack.c.l.b16 %v1874
    %v1964 = vunpack.c.h.b16 %v1874
    %v1965 = vunpack.c.l.b16 %v1875
    %v1966 = vpack.c.b16 %v1921, %v1918
    %v1967 = vpack.c.b16 %v1922, %v1919
    %v1968 = vpack.c.b16 %v1923, %v1920
    %v1969 = vpack.c.b16 %v1927, %v1924
    %v1970 = vpack.c.b16 %v1928, %v1925
    %v1971 = vpack.c.b16 %v1929, %v1926
    %v1972 = vpack.c.b16 %v1933, %v1930
    %v1973 = vpack.c.b16 %v1934, %v1931
    %v1974 = vpack.c.b16 %v1935, %v1932
    %v1975 = vpack.c.b16 %v1939, %v1936
    %v1976 = vpack.c.b16 %v1940, %v1937
    %v1977 = vpack.c.b16 %v1941, %v1938
    %v1978 = vpack.c.b16 %v1945, %v1942
    %v1979 = vpack.c.b16 %v1946, %v1943
    %v1980 = vpack.c.b16 %v1947, %v1944
    %v1981 = vpack.c.b16 %v1951, %v1948
    %v1982 = vpack.c.b16 %v1952, %v1949
    %v1983 = vpack.c.b16 %v1953, %v1950
    %v1984 = vpack.c.b16 %v1957, %v1954
    %v1985 = vpack.c.b16 %v1958, %v1955
    %v1986 = vpack.c.b16 %v1959, %v1956
    %v1987 = vpack.c.b16 %v1963, %v1960
    %v1988 = vpack.c.b16 %v1964, %v1961
    %v1989 = vpack.c.b16 %v1965, %v1962
    %2014 = vmatprep.subr.bf16.mxu0 %v1988
    %2015 = vmatpush1.bf16.msra.mxu0 %v1987
    %2016 = vmatprep.subr.bf16.mxu0 %v1985
    %2017 = vmatpush1.bf16.msra.mxu0 %v1984
    %2018 = vmatprep.subr.bf16.mxu0 %v1982
    %2019 = vmatpush1.bf16.msra.mxu0 %v1981
    %2020 = vmatprep.subr.bf16.mxu0 %v1979
    %2021 = vmatpush1.bf16.msra.mxu0 %v1978
    %2022 = vmatprep.subr.bf16.mxu0 %v1976
    %2023 = vmatpush1.bf16.msra.mxu0 %v1975
    %2024 = vmatprep.subr.bf16.mxu0 %v1973
    %2025 = vmatpush1.bf16.msra.mxu0 %v1972
    %2026 = vmatprep.subr.bf16.mxu0 %v1970
    %2027 = vmatpush1.bf16.msra.mxu0 %v1969
    %2028 = vmatprep.subr.bf16.mxu0 %v1967
    %2029 = vmatpush1.bf16.msra.mxu0 %v1966
    %2030 = vmatprep.subr.bf16.mxu0 0
    %2031 = vmatpush2.bf16.msra.mxu0 0
    %2032 = vmatprep.subr.bf16.mxu0 0
    %2033 = vmatpush2.bf16.msra.mxu0 0
    %2034 = vmatprep.subr.bf16.mxu0 0
    %2035 = vmatpush2.bf16.msra.mxu0 0
    %2036 = vmatprep.subr.bf16.mxu0 0
    %2037 = vmatpush2.bf16.msra.mxu0 0
    %2038 = vmatprep.subr.bf16.mxu0 0
    %2039 = vmatpush2.bf16.msra.mxu0 0
    %2040 = vmatprep.subr.bf16.mxu0 0
    %2041 = vmatpush2.bf16.msra.mxu0 0
    %2042 = vmatprep.subr.bf16.mxu0 0
    %2043 = vmatpush2.bf16.msra.mxu0 0
    %2044 = vmatprep.subr.bf16.mxu0 0
    %2045 = vmatpush2.bf16.msra.mxu0 0
    %2046 = vmatprep.mubr.bf16.mxu0 0
    %2047 = vmatmul.mubr.bf16.gmra.mxu0 0
    %v2048 = vpop.f32.mrf.mxu0
    %v2049 = vadd.f32 0.0, %v2048
    %v2050 = vpop.f32.mrf.mxu0
    %v2051 = vadd.f32 0.0, %v2050
    %v2052 = vpop.f32.mrf.mxu0
    %v2053 = vpop.f32.mrf.mxu0
    %2054 = vdwg.mxu0
    %2055 = vmatprep.subr.bf16.mxu0 0
    %2056 = vmatpush1.bf16.msra.mxu0 %v1989
    %2057 = vmatprep.subr.bf16.mxu0 0
    %2058 = vmatpush1.bf16.msra.mxu0 %v1986
    %2059 = vmatprep.subr.bf16.mxu0 0
    %2060 = vmatpush1.bf16.msra.mxu0 %v1983
    %2061 = vmatprep.subr.bf16.mxu0 0
    %2062 = vmatpush1.bf16.msra.mxu0 %v1980
    %2063 = vmatprep.subr.bf16.mxu0 0
    %2064 = vmatpush1.bf16.msra.mxu0 %v1977
    %2065 = vmatprep.subr.bf16.mxu0 0
    %2066 = vmatpush1.bf16.msra.mxu0 %v1974
    %2067 = vmatprep.subr.bf16.mxu0 0
    %2068 = vmatpush1.bf16.msra.mxu0 %v1971
    %2069 = vmatprep.subr.bf16.mxu0 0
    %2070 = vmatpush1.bf16.msra.mxu0 %v1968
    %2071 = vmatprep.subr.bf16.mxu0 0
    %2072 = vmatpush2.bf16.msra.mxu0 0
    %2073 = vmatprep.subr.bf16.mxu0 0
    %2074 = vmatpush2.bf16.msra.mxu0 0
    %2075 = vmatprep.subr.bf16.mxu0 0
    %2076 = vmatpush2.bf16.msra.mxu0 0
    %2077 = vmatprep.subr.bf16.mxu0 0
    %2078 = vmatpush2.bf16.msra.mxu0 0
    %2079 = vmatprep.subr.bf16.mxu0 0
    %2080 = vmatpush2.bf16.msra.mxu0 0
    %2081 = vmatprep.subr.bf16.mxu0 0
    %2082 = vmatpush2.bf16.msra.mxu0 0
    %2083 = vmatprep.subr.bf16.mxu0 0
    %2084 = vmatpush2.bf16.msra.mxu0 0
    %2085 = vmatprep.subr.bf16.mxu0 0
    %2086 = vmatpush2.bf16.msra.mxu0 0
    %2087 = vmatprep.mubr.bf16.mxu0 0
    %2088 = vmatmul.mubr.bf16.gmra.mxu0 0
    %v2089 = vpop.f32.mrf.mxu0
    %v2090 = vadd.f32 0.0, %v2089
    %v2091 = vpop.f32.mrf.mxu0
    %v2092 = vpop.f32.mrf.mxu0
    %v2093 = vpop.f32.mrf.mxu0
    %2094 = vdwg.mxu0
    %v2095 = vadd.f32 %v1883, %v2049
    %v2096 = vadd.f32 %v1884, %v2051
    %v2097 = vxor.u32 %v2095, 2147483648
    %v2098 = vxor.u32 %v2096, 2147483648
    %v2099 = vmul.f32 %v2097, 1.442695
    %v2100 = vpow.pop %v2099
    %v2101 = vmul.f32 %v2098, 1.442695
    %v2102 = vpow.pop %v2101
    %v2103 = vadd.f32 %v2100, 1.0
    %v2104 = vadd.f32 %v2102, 1.0
    %v2105 = vrcp.pop %v2103
    %v2106 = vmul.f32 1.0, %v2105
    %v2107 = vrcp.pop %v2104
    %v2108 = vmul.f32 1.0, %v2107
    %v2109 = vadd.f32 %v2090, %v1881
    %v2110 = vmul.f32 %v2106, %v2109
    %v2111 = vadd.f32 %v1885, %v2110
    %v2112 = vtanh.pop %v2111
    %v2113 = vsub.f32 0.0, %v2112
    %v2114 = vmul.f32 %v2108, %v2113
    %v2115 = vadd.f32 %v2112, %v2114
    %v2116 = vpack.c.bf16 %v2115, %v2115
    %2117 = vst [vmem:[#allocation4] sm:$0xf] %v2116
    %v2118 = vld [vmem:[%s709] sm:$0xff]
    %v2119 = vld [vmem:[%s709 + $0x8] sm:$0xff]
    %v2120 = vld [vmem:[%s709 + $0x10] sm:$0xff]
    %2121 = vmatprep.subr.bf16.mxu0 %v1988
    %2122 = vmatpush1.bf16.msra.mxu0 %v1987
    %2123 = vmatprep.subr.bf16.mxu0 %v1985
    %2124 = vmatpush1.bf16.msra.mxu0 %v1984
    %2125 = vmatprep.subr.bf16.mxu0 %v1982
    %2126 = vmatpush1.bf16.msra.mxu0 %v1981
    %2127 = vmatprep.subr.bf16.mxu0 %v1979
    %2128 = vmatpush1.bf16.msra.mxu0 %v1978
    %2129 = vmatprep.subr.bf16.mxu0 %v1976
    %2130 = vmatpush1.bf16.msra.mxu0 %v1975
    %2131 = vmatprep.subr.bf16.mxu0 %v1973
    %2132 = vmatpush1.bf16.msra.mxu0 %v1972
    %2133 = vmatprep.subr.bf16.mxu0 %v1970
    %2134 = vmatpush1.bf16.msra.mxu0 %v1969
    %2135 = vmatprep.subr.bf16.mxu0 %v1967
    %2136 = vmatpush1.bf16.msra.mxu0 %v1966
    %2137 = vmatprep.subr.bf16.mxu0 0
    %2138 = vmatpush2.bf16.msra.mxu0 0
    %2139 = vmatprep.subr.bf16.mxu0 0
    %2140 = vmatpush2.bf16.msra.mxu0 0
    %2141 = vmatprep.subr.bf16.mxu0 0
    %2142 = vmatpush2.bf16.msra.mxu0 0
    %2143 = vmatprep.subr.bf16.mxu0 0
    %2144 = vmatpush2.bf16.msra.mxu0 0
    %2145 = vmatprep.subr.bf16.mxu0 0
    %2146 = vmatpush2.bf16.msra.mxu0 0
    %2147 = vmatprep.subr.bf16.mxu0 0
    %2148 = vmatpush2.bf16.msra.mxu0 0
    %2149 = vmatprep.subr.bf16.mxu0 0
    %2150 = vmatpush2.bf16.msra.mxu0 0
    %2151 = vmatprep.subr.bf16.mxu0 0
    %2152 = vmatpush2.bf16.msra.mxu0 0
    %2153 = vmatprep.mubr.bf16.mxu0 0
    %2154 = vmatmul.mubr.bf16.gmra.mxu0 %v2116
    %v2155 = vpop.f32.mrf.mxu0
    %v2156 = vadd.f32 0.0, %v2155
    %v2157 = vpop.f32.mrf.mxu0
    %v2158 = vadd.f32 0.0, %v2157
    %v2159 = vpop.f32.mrf.mxu0
    %v2160 = vpop.f32.mrf.mxu0
    %2161 = vdwg.mxu0
    %2162 = vmatprep.subr.bf16.mxu0 0
    %2163 = vmatpush1.bf16.msra.mxu0 %v1989
    %2164 = vmatprep.subr.bf16.mxu0 0
    %2165 = vmatpush1.bf16.msra.mxu0 %v1986
    %2166 = vmatprep.subr.bf16.mxu0 0
    %2167 = vmatpush1.bf16.msra.mxu0 %v1983
    %2168 = vmatprep.subr.bf16.mxu0 0
    %2169 = vmatpush1.bf16.msra.mxu0 %v1980
    %2170 = vmatprep.subr.bf16.mxu0 0
    %2171 = vmatpush1.bf16.msra.mxu0 %v1977
    %2172 = vmatprep.subr.bf16.mxu0 0
    %2173 = vmatpush1.bf16.msra.mxu0 %v1974
    %2174 = vmatprep.subr.bf16.mxu0 0
    %2175 = vmatpush1.bf16.msra.mxu0 %v1971
    %2176 = vmatprep.subr.bf16.mxu0 0
    %2177 = vmatpush1.bf16.msra.mxu0 %v1968
    %2178 = vmatprep.subr.bf16.mxu0 0
    %2179 = vmatpush2.bf16.msra.mxu0 0
    %2180 = vmatprep.subr.bf16.mxu0 0
    %2181 = vmatpush2.bf16.msra.mxu0 0
    %2182 = vmatprep.subr.bf16.mxu0 0
    %2183 = vmatpush2.bf16.msra.mxu0 0
    %2184 = vmatprep.subr.bf16.mxu0 0
    %2185 = vmatpush2.bf16.msra.mxu0 0
    %2186 = vmatprep.subr.bf16.mxu0 0
    %2187 = vmatpush2.bf16.msra.mxu0 0
    %2188 = vmatprep.subr.bf16.mxu0 0
    %2189 = vmatpush2.bf16.msra.mxu0 0
    %2190 = vmatprep.subr.bf16.mxu0 0
    %2191 = vmatpush2.bf16.msra.mxu0 0
    %2192 = vmatprep.subr.bf16.mxu0 0
    %2193 = vmatpush2.bf16.msra.mxu0 0
    %2194 = vmatprep.mubr.bf16.mxu0 0
    %2195 = vmatmul.mubr.bf16.gmra.mxu0 %v2116
    %v2196 = vpop.f32.mrf.mxu0
    %v2197 = vadd.f32 0.0, %v2196
    %v2198 = vpop.f32.mrf.mxu0
    %v2199 = vpop.f32.mrf.mxu0
    %v2200 = vpop.f32.mrf.mxu0
    %2201 = vdwg.mxu0
    %v2202 = vadd.f32 %v2118, %v2156
    %v2203 = vadd.f32 %v2119, %v2158
    %v2204 = vxor.u32 %v2202, 2147483648
    %v2205 = vxor.u32 %v2203, 2147483648
    %v2206 = vmul.f32 %v2204, 1.442695
    %v2207 = vpow.pop %v2206
    %v2208 = vmul.f32 %v2205, 1.442695
    %v2209 = vpow.pop %v2208
    %v2210 = vadd.f32 %v2207, 1.0
    %v2211 = vadd.f32 %v2209, 1.0
    %v2212 = vrcp.pop %v2210
    %v2213 = vmul.f32 1.0, %v2212
    %v2214 = vrcp.pop %v2211
    %v2215 = vmul.f32 1.0, %v2214
    %v2216 = vadd.f32 %v2197, %v1881
    %v2217 = vmul.f32 %v2213, %v2216
    %v2218 = vadd.f32 %v2120, %v2217
    %v2219 = vtanh.pop %v2218
    %v2220 = vsub.f32 %v2115, %v2219
    %v2221 = vmul.f32 %v2215, %v2220
    %v2222 = vadd.f32 %v2219, %v2221
    %v2223 = vpack.c.bf16 %v2222, %v2222
    %2224 = vst [vmem:[%s816] sm:$0xf] %v2223
    %v2225 = vld [vmem:[%s818] sm:$0xff]
    %v2226 = vld [vmem:[%s818 + $0x8] sm:$0xff]
    %v2227 = vld [vmem:[%s818 + $0x10] sm:$0xff]
    %2228 = vmatprep.subr.bf16.mxu0 %v1988
    %2229 = vmatpush1.bf16.msra.mxu0 %v1987
    %2230 = vmatprep.subr.bf16.mxu0 %v1985
    %2231 = vmatpush1.bf16.msra.mxu0 %v1984
    %2232 = vmatprep.subr.bf16.mxu0 %v1982
    %2233 = vmatpush1.bf16.msra.mxu0 %v1981
    %2234 = vmatprep.subr.bf16.mxu0 %v1979
    %2235 = vmatpush1.bf16.msra.mxu0 %v1978
    %2236 = vmatprep.subr.bf16.mxu0 %v1976
    %2237 = vmatpush1.bf16.msra.mxu0 %v1975
    %2238 = vmatprep.subr.bf16.mxu0 %v1973
    %2239 = vmatpush1.bf16.msra.mxu0 %v1972
    %2240 = vmatprep.subr.bf16.mxu0 %v1970
    %2241 = vmatpush1.bf16.msra.mxu0 %v1969
    %2242 = vmatprep.subr.bf16.mxu0 %v1967
    %2243 = vmatpush1.bf16.msra.mxu0 %v1966
    %2244 = vmatprep.subr.bf16.mxu0 0
    %2245 = vmatpush2.bf16.msra.mxu0 0
    %2246 = vmatprep.subr.bf16.mxu0 0
    %2247 = vmatpush2.bf16.msra.mxu0 0
    %2248 = vmatprep.subr.bf16.mxu0 0
    %2249 = vmatpush2.bf16.msra.mxu0 0
    %2250 = vmatprep.subr.bf16.mxu0 0
    %2251 = vmatpush2.bf16.msra.mxu0 0
    %2252 = vmatprep.subr.bf16.mxu0 0
    %2253 = vmatpush2.bf16.msra.mxu0 0
    %2254 = vmatprep.subr.bf16.mxu0 0
    %2255 = vmatpush2.bf16.msra.mxu0 0
    %2256 = vmatprep.subr.bf16.mxu0 0
    %2257 = vmatpush2.bf16.msra.mxu0 0
    %2258 = vmatprep.subr.bf16.mxu0 0
    %2259 = vmatpush2.bf16.msra.mxu0 0
    %2260 = vmatprep.mubr.bf16.mxu0 0
    %2261 = vmatmul.mubr.bf16.gmra.mxu0 %v2223
    %v2262 = vpop.f32.mrf.mxu0
    %v2263 = vadd.f32 0.0, %v2262
    %v2264 = vpop.f32.mrf.mxu0
    %v2265 = vadd.f32 0.0, %v2264
    %v2266 = vpop.f32.mrf.mxu0
    %v2267 = vpop.f32.mrf.mxu0
    %2268 = vdwg.mxu0
    %2269 = vmatprep.subr.bf16.mxu0 0
    %2270 = vmatpush1.bf16.msra.mxu0 %v1989
    %2271 = vmatprep.subr.bf16.mxu0 0
    %2272 = vmatpush1.bf16.msra.mxu0 %v1986
    %2273 = vmatprep.subr.bf16.mxu0 0
    %2274 = vmatpush1.bf16.msra.mxu0 %v1983
    %2275 = vmatprep.subr.bf16.mxu0 0
    %2276 = vmatpush1.bf16.msra.mxu0 %v1980
    %2277 = vmatprep.subr.bf16.mxu0 0
    %2278 = vmatpush1.bf16.msra.mxu0 %v1977
    %2279 = vmatprep.subr.bf16.mxu0 0
    %2280 = vmatpush1.bf16.msra.mxu0 %v1974
    %2281 = vmatprep.subr.bf16.mxu0 0
    %2282 = vmatpush1.bf16.msra.mxu0 %v1971
    %2283 = vmatprep.subr.bf16.mxu0 0
    %2284 = vmatpush1.bf16.msra.mxu0 %v1968
    %2285 = vmatprep.subr.bf16.mxu0 0
    %2286 = vmatpush2.bf16.msra.mxu0 0
    %2287 = vmatprep.subr.bf16.mxu0 0
    %2288 = vmatpush2.bf16.msra.mxu0 0
    %2289 = vmatprep.subr.bf16.mxu0 0
    %2290 = vmatpush2.bf16.msra.mxu0 0
    %2291 = vmatprep.subr.bf16.mxu0 0
    %2292 = vmatpush2.bf16.msra.mxu0 0
    %2293 = vmatprep.subr.bf16.mxu0 0
    %2294 = vmatpush2.bf16.msra.mxu0 0
    %2295 = vmatprep.subr.bf16.mxu0 0
    %2296 = vmatpush2.bf16.msra.mxu0 0
    %2297 = vmatprep.subr.bf16.mxu0 0
    %2298 = vmatpush2.bf16.msra.mxu0 0
    %2299 = vmatprep.subr.bf16.mxu0 0
    %2300 = vmatpush2.bf16.msra.mxu0 0
    %2301 = vmatprep.mubr.bf16.mxu0 0
    %2302 = vmatmul.mubr.bf16.gmra.mxu0 %v2223
    %v2303 = vpop.f32.mrf.mxu0
    %v2304 = vadd.f32 0.0, %v2303
    %v2305 = vpop.f32.mrf.mxu0
    %v2306 = vpop.f32.mrf.mxu0
    %v2307 = vpop.f32.mrf.mxu0
    %2308 = vdwg.mxu0
    %v2309 = vadd.f32 %v2225, %v2263
    %v2310 = vadd.f32 %v2226, %v2265
    %v2311 = vxor.u32 %v2309, 2147483648
    %v2312 = vxor.u32 %v2310, 2147483648
    %v2313 = vmul.f32 %v2311, 1.442695
    %v2314 = vpow.pop %v2313
    %v2315 = vmul.f32 %v2312, 1.442695
    %v2316 = vpow.pop %v2315
    %v2317 = vadd.f32 %v2314, 1.0
    %v2318 = vadd.f32 %v2316, 1.0
    %v2319 = vrcp.pop %v2317
    %v2320 = vmul.f32 1.0, %v2319
    %v2321 = vrcp.pop %v2318
    %v2322 = vmul.f32 1.0, %v2321
    %v2323 = vadd.f32 %v2304, %v1881
    %v2324 = vmul.f32 %v2320, %v2323
    %v2325 = vadd.f32 %v2227, %v2324
    %v2326 = vtanh.pop %v2325
    %v2327 = vsub.f32 %v2222, %v2326
    %v2328 = vmul.f32 %v2322, %v2327
    %v2329 = vadd.f32 %v2326, %v2328
    %v2330 = vpack.c.bf16 %v2329, %v2329
    %2331 = vst [vmem:[%s925] sm:$0xf] %v2330
    %v2332 = vld [vmem:[%s927] sm:$0xff]
    %v2333 = vld [vmem:[%s927 + $0x8] sm:$0xff]
    %v2334 = vld [vmem:[%s927 + $0x10] sm:$0xff]
    %2335 = vmatprep.subr.bf16.mxu0 %v1988
    %2336 = vmatpush1.bf16.msra.mxu0 %v1987
    %2337 = vmatprep.subr.bf16.mxu0 %v1985
    %2338 = vmatpush1.bf16.msra.mxu0 %v1984
    %2339 = vmatprep.subr.bf16.mxu0 %v1982
    %2340 = vmatpush1.bf16.msra.mxu0 %v1981
    %2341 = vmatprep.subr.bf16.mxu0 %v1979
    %2342 = vmatpush1.bf16.msra.mxu0 %v1978
    %2343 = vmatprep.subr.bf16.mxu0 %v1976
    %2344 = vmatpush1.bf16.msra.mxu0 %v1975
    %2345 = vmatprep.subr.bf16.mxu0 %v1973
    %2346 = vmatpush1.bf16.msra.mxu0 %v1972
    %2347 = vmatprep.subr.bf16.mxu0 %v1970
    %2348 = vmatpush1.bf16.msra.mxu0 %v1969
    %2349 = vmatprep.subr.bf16.mxu0 %v1967
    %2350 = vmatpush1.bf16.msra.mxu0 %v1966
    %2351 = vmatprep.subr.bf16.mxu0 0
    %2352 = vmatpush2.bf16.msra.mxu0 0
    %2353 = vmatprep.subr.bf16.mxu0 0
    %2354 = vmatpush2.bf16.msra.mxu0 0
    %2355 = vmatprep.subr.bf16.mxu0 0
    %2356 = vmatpush2.bf16.msra.mxu0 0
    %2357 = vmatprep.subr.bf16.mxu0 0
    %2358 = vmatpush2.bf16.msra.mxu0 0
    %2359 = vmatprep.subr.bf16.mxu0 0
    %2360 = vmatpush2.bf16.msra.mxu0 0
    %2361 = vmatprep.subr.bf16.mxu0 0
    %2362 = vmatpush2.bf16.msra.mxu0 0
    %2363 = vmatprep.subr.bf16.mxu0 0
    %2364 = vmatpush2.bf16.msra.mxu0 0
    %2365 = vmatprep.subr.bf16.mxu0 0
    %2366 = vmatpush2.bf16.msra.mxu0 0
    %2367 = vmatprep.mubr.bf16.mxu0 0
    %2368 = vmatmul.mubr.bf16.gmra.mxu0 %v2330
    %v2369 = vpop.f32.mrf.mxu0
    %v2370 = vadd.f32 0.0, %v2369
    %v2371 = vpop.f32.mrf.mxu0
    %v2372 = vadd.f32 0.0, %v2371
    %v2373 = vpop.f32.mrf.mxu0
    %v2374 = vpop.f32.mrf.mxu0
    %2375 = vdwg.mxu0
    %2376 = vmatprep.subr.bf16.mxu0 0
    %2377 = vmatpush1.bf16.msra.mxu0 %v1989
    %2378 = vmatprep.subr.bf16.mxu0 0
    %2379 = vmatpush1.bf16.msra.mxu0 %v1986
    %2380 = vmatprep.subr.bf16.mxu0 0
    %2381 = vmatpush1.bf16.msra.mxu0 %v1983
    %2382 = vmatprep.subr.bf16.mxu0 0
    %2383 = vmatpush1.bf16.msra.mxu0 %v1980
    %2384 = vmatprep.subr.bf16.mxu0 0
    %2385 = vmatpush1.bf16.msra.mxu0 %v1977
    %2386 = vmatprep.subr.bf16.mxu0 0
    %2387 = vmatpush1.bf16.msra.mxu0 %v1974
    %2388 = vmatprep.subr.bf16.mxu0 0
    %2389 = vmatpush1.bf16.msra.mxu0 %v1971
    %2390 = vmatprep.subr.bf16.mxu0 0
    %2391 = vmatpush1.bf16.msra.mxu0 %v1968
    %2392 = vmatprep.subr.bf16.mxu0 0
    %2393 = vmatpush2.bf16.msra.mxu0 0
    %2394 = vmatprep.subr.bf16.mxu0 0
    %2395 = vmatpush2.bf16.msra.mxu0 0
    %2396 = vmatprep.subr.bf16.mxu0 0
    %2397 = vmatpush2.bf16.msra.mxu0 0
    %2398 = vmatprep.subr.bf16.mxu0 0
    %2399 = vmatpush2.bf16.msra.mxu0 0
    %2400 = vmatprep.subr.bf16.mxu0 0
    %2401 = vmatpush2.bf16.msra.mxu0 0
    %2402 = vmatprep.subr.bf16.mxu0 0
    %2403 = vmatpush2.bf16.msra.mxu0 0
    %2404 = vmatprep.subr.bf16.mxu0 0
    %2405 = vmatpush2.bf16.msra.mxu0 0
    %2406 = vmatprep.subr.bf16.mxu0 0
    %2407 = vmatpush2.bf16.msra.mxu0 0
    %2408 = vmatprep.mubr.bf16.mxu0 0
    %2409 = vmatmul.mubr.bf16.gmra.mxu0 %v2330
    %v2410 = vpop.f32.mrf.mxu0
    %v2411 = vadd.f32 0.0, %v2410
    %v2412 = vpop.f32.mrf.mxu0
    %v2413 = vpop.f32.mrf.mxu0
    %v2414 = vpop.f32.mrf.mxu0
    %2415 = vdwg.mxu0
    %v2416 = vadd.f32 %v2332, %v2370
    %v2417 = vadd.f32 %v2333, %v2372
    %v2418 = vxor.u32 %v2416, 2147483648
    %v2419 = vxor.u32 %v2417, 2147483648
    %v2420 = vmul.f32 %v2418, 1.442695
    %v2421 = vpow.pop %v2420
    %v2422 = vmul.f32 %v2419, 1.442695
    %v2423 = vpow.pop %v2422
    %v2424 = vadd.f32 %v2421, 1.0
    %v2425 = vadd.f32 %v2423, 1.0
    %v2426 = vrcp.pop %v2424
    %v2427 = vmul.f32 1.0, %v2426
    %v2428 = vrcp.pop %v2425
    %v2429 = vmul.f32 1.0, %v2428
    %v2430 = vadd.f32 %v2411, %v1881
    %v2431 = vmul.f32 %v2427, %v2430
    %v2432 = vadd.f32 %v2334, %v2431
    %v2433 = vtanh.pop %v2432
    %v2434 = vsub.f32 %v2329, %v2433
    %v2435 = vmul.f32 %v2429, %v2434
    %v2436 = vadd.f32 %v2433, %v2435
    %v2437 = vpack.c.bf16 %v2436, %v2436
    %2438 = vst [vmem:[%s1034] sm:$0xf] %v2437
    %v2439 = vld [vmem:[%s1036] sm:$0xff]
    %v2440 = vld [vmem:[%s1036 + $0x8] sm:$0xff]
    %v2441 = vld [vmem:[%s1036 + $0x10] sm:$0xff]
    %2442 = vmatprep.subr.bf16.mxu0 %v1988
    %2443 = vmatpush1.bf16.msra.mxu0 %v1987
    %2444 = vmatprep.subr.bf16.mxu0 %v1985
    %2445 = vmatpush1.bf16.msra.mxu0 %v1984
    %2446 = vmatprep.subr.bf16.mxu0 %v1982
    %2447 = vmatpush1.bf16.msra.mxu0 %v1981
    %2448 = vmatprep.subr.bf16.mxu0 %v1979
    %2449 = vmatpush1.bf16.msra.mxu0 %v1978
    %2450 = vmatprep.subr.bf16.mxu0 %v1976
    %2451 = vmatpush1.bf16.msra.mxu0 %v1975
    %2452 = vmatprep.subr.bf16.mxu0 %v1973
    %2453 = vmatpush1.bf16.msra.mxu0 %v1972
    %2454 = vmatprep.subr.bf16.mxu0 %v1970
    %2455 = vmatpush1.bf16.msra.mxu0 %v1969
    %2456 = vmatprep.subr.bf16.mxu0 %v1967
    %2457 = vmatpush1.bf16.msra.mxu0 %v1966
    %2458 = vmatprep.subr.bf16.mxu0 0
    %2459 = vmatpush2.bf16.msra.mxu0 0
    %2460 = vmatprep.subr.bf16.mxu0 0
    %2461 = vmatpush2.bf16.msra.mxu0 0
    %2462 = vmatprep.subr.bf16.mxu0 0
    %2463 = vmatpush2.bf16.msra.mxu0 0
    %2464 = vmatprep.subr.bf16.mxu0 0
    %2465 = vmatpush2.bf16.msra.mxu0 0
    %2466 = vmatprep.subr.bf16.mxu0 0
    %2467 = vmatpush2.bf16.msra.mxu0 0
    %2468 = vmatprep.subr.bf16.mxu0 0
    %2469 = vmatpush2.bf16.msra.mxu0 0
    %2470 = vmatprep.subr.bf16.mxu0 0
    %2471 = vmatpush2.bf16.msra.mxu0 0
    %2472 = vmatprep.subr.bf16.mxu0 0
    %2473 = vmatpush2.bf16.msra.mxu0 0
    %2474 = vmatprep.mubr.bf16.mxu0 0
    %2475 = vmatmul.mubr.bf16.gmra.mxu0 %v2437
    %v2476 = vpop.f32.mrf.mxu0
    %v2477 = vadd.f32 0.0, %v2476
    %v2478 = vpop.f32.mrf.mxu0
    %v2479 = vadd.f32 0.0, %v2478
    %v2480 = vpop.f32.mrf.mxu0
    %v2481 = vpop.f32.mrf.mxu0
    %2482 = vdwg.mxu0
    %2483 = vmatprep.subr.bf16.mxu0 0
    %2484 = vmatpush1.bf16.msra.mxu0 %v1989
    %2485 = vmatprep.subr.bf16.mxu0 0
    %2486 = vmatpush1.bf16.msra.mxu0 %v1986
    %2487 = vmatprep.subr.bf16.mxu0 0
    %2488 = vmatpush1.bf16.msra.mxu0 %v1983
    %2489 = vmatprep.subr.bf16.mxu0 0
    %2490 = vmatpush1.bf16.msra.mxu0 %v1980
    %2491 = vmatprep.subr.bf16.mxu0 0
    %2492 = vmatpush1.bf16.msra.mxu0 %v1977
    %2493 = vmatprep.subr.bf16.mxu0 0
    %2494 = vmatpush1.bf16.msra.mxu0 %v1974
    %2495 = vmatprep.subr.bf16.mxu0 0
    %2496 = vmatpush1.bf16.msra.mxu0 %v1971
    %2497 = vmatprep.subr.bf16.mxu0 0
    %2498 = vmatpush1.bf16.msra.mxu0 %v1968
    %2499 = vmatprep.subr.bf16.mxu0 0
    %2500 = vmatpush2.bf16.msra.mxu0 0
    %2501 = vmatprep.subr.bf16.mxu0 0
    %2502 = vmatpush2.bf16.msra.mxu0 0
    %2503 = vmatprep.subr.bf16.mxu0 0
    %2504 = vmatpush2.bf16.msra.mxu0 0
    %2505 = vmatprep.subr.bf16.mxu0 0
    %2506 = vmatpush2.bf16.msra.mxu0 0
    %2507 = vmatprep.subr.bf16.mxu0 0
    %2508 = vmatpush2.bf16.msra.mxu0 0
    %2509 = vmatprep.subr.bf16.mxu0 0
    %2510 = vmatpush2.bf16.msra.mxu0 0
    %2511 = vmatprep.subr.bf16.mxu0 0
    %2512 = vmatpush2.bf16.msra.mxu0 0
    %2513 = vmatprep.subr.bf16.mxu0 0
    %2514 = vmatpush2.bf16.msra.mxu0 0
    %2515 = vmatprep.mubr.bf16.mxu0 0
    %2516 = vmatmul.mubr.bf16.gmra.mxu0 %v2437
    %v2517 = vpop.f32.mrf.mxu0
    %v2518 = vadd.f32 0.0, %v2517
    %v2519 = vpop.f32.mrf.mxu0
    %v2520 = vpop.f32.mrf.mxu0
    %v2521 = vpop.f32.mrf.mxu0
    %2522 = vdwg.mxu0
    %v2523 = vadd.f32 %v2439, %v2477
    %v2524 = vadd.f32 %v2440, %v2479
    %v2525 = vxor.u32 %v2523, 2147483648
    %v2526 = vxor.u32 %v2524, 2147483648
    %v2527 = vmul.f32 %v2525, 1.442695
    %v2528 = vpow.pop %v2527
    %v2529 = vmul.f32 %v2526, 1.442695
    %v2530 = vpow.pop %v2529
    %v2531 = vadd.f32 %v2528, 1.0
    %v2532 = vadd.f32 %v2530, 1.0
    %v2533 = vrcp.pop %v2531
    %v2534 = vmul.f32 1.0, %v2533
    %v2535 = vrcp.pop %v2532
    %v2536 = vmul.f32 1.0, %v2535
    %v2537 = vadd.f32 %v2518, %v1881
    %v2538 = vmul.f32 %v2534, %v2537
    %v2539 = vadd.f32 %v2441, %v2538
    %v2540 = vtanh.pop %v2539
    %v2541 = vsub.f32 %v2436, %v2540
    %v2542 = vmul.f32 %v2536, %v2541
    %v2543 = vadd.f32 %v2540, %v2542
    %v2544 = vpack.c.bf16 %v2543, %v2543
    %2545 = vst [vmem:[%s1143] sm:$0xf] %v2544
    %v2546 = vld [vmem:[%s1145] sm:$0xff]
    %v2547 = vld [vmem:[%s1145 + $0x8] sm:$0xff]
    %v2548 = vld [vmem:[%s1145 + $0x10] sm:$0xff]
    %2549 = vmatprep.subr.bf16.mxu0 %v1988
    %2550 = vmatpush1.bf16.msra.mxu0 %v1987
    %2551 = vmatprep.subr.bf16.mxu0 %v1985
    %2552 = vmatpush1.bf16.msra.mxu0 %v1984
    %2553 = vmatprep.subr.bf16.mxu0 %v1982
    %2554 = vmatpush1.bf16.msra.mxu0 %v1981
    %2555 = vmatprep.subr.bf16.mxu0 %v1979
    %2556 = vmatpush1.bf16.msra.mxu0 %v1978
    %2557 = vmatprep.subr.bf16.mxu0 %v1976
    %2558 = vmatpush1.bf16.msra.mxu0 %v1975
    %2559 = vmatprep.subr.bf16.mxu0 %v1973
    %2560 = vmatpush1.bf16.msra.mxu0 %v1972
    %2561 = vmatprep.subr.bf16.mxu0 %v1970
    %2562 = vmatpush1.bf16.msra.mxu0 %v1969
    %2563 = vmatprep.subr.bf16.mxu0 %v1967
    %2564 = vmatpush1.bf16.msra.mxu0 %v1966
    %2565 = vmatprep.subr.bf16.mxu0 0
    %2566 = vmatpush2.bf16.msra.mxu0 0
    %2567 = vmatprep.subr.bf16.mxu0 0
    %2568 = vmatpush2.bf16.msra.mxu0 0
    %2569 = vmatprep.subr.bf16.mxu0 0
    %2570 = vmatpush2.bf16.msra.mxu0 0
    %2571 = vmatprep.subr.bf16.mxu0 0
    %2572 = vmatpush2.bf16.msra.mxu0 0
    %2573 = vmatprep.subr.bf16.mxu0 0
    %2574 = vmatpush2.bf16.msra.mxu0 0
    %2575 = vmatprep.subr.bf16.mxu0 0
    %2576 = vmatpush2.bf16.msra.mxu0 0
    %2577 = vmatprep.subr.bf16.mxu0 0
    %2578 = vmatpush2.bf16.msra.mxu0 0
    %2579 = vmatprep.subr.bf16.mxu0 0
    %2580 = vmatpush2.bf16.msra.mxu0 0
    %2581 = vmatprep.mubr.bf16.mxu0 0
    %2582 = vmatmul.mubr.bf16.gmra.mxu0 %v2544
    %v2583 = vpop.f32.mrf.mxu0
    %v2584 = vadd.f32 0.0, %v2583
    %v2585 = vpop.f32.mrf.mxu0
    %v2586 = vadd.f32 0.0, %v2585
    %v2587 = vpop.f32.mrf.mxu0
    %v2588 = vpop.f32.mrf.mxu0
    %2589 = vdwg.mxu0
    %2590 = vmatprep.subr.bf16.mxu0 0
    %2591 = vmatpush1.bf16.msra.mxu0 %v1989
    %2592 = vmatprep.subr.bf16.mxu0 0
    %2593 = vmatpush1.bf16.msra.mxu0 %v1986
    %2594 = vmatprep.subr.bf16.mxu0 0
    %2595 = vmatpush1.bf16.msra.mxu0 %v1983
    %2596 = vmatprep.subr.bf16.mxu0 0
    %2597 = vmatpush1.bf16.msra.mxu0 %v1980
    %2598 = vmatprep.subr.bf16.mxu0 0
    %2599 = vmatpush1.bf16.msra.mxu0 %v1977
    %2600 = vmatprep.subr.bf16.mxu0 0
    %2601 = vmatpush1.bf16.msra.mxu0 %v1974
    %2602 = vmatprep.subr.bf16.mxu0 0
    %2603 = vmatpush1.bf16.msra.mxu0 %v1971
    %2604 = vmatprep.subr.bf16.mxu0 0
    %2605 = vmatpush1.bf16.msra.mxu0 %v1968
    %2606 = vmatprep.subr.bf16.mxu0 0
    %2607 = vmatpush2.bf16.msra.mxu0 0
    %2608 = vmatprep.subr.bf16.mxu0 0
    %2609 = vmatpush2.bf16.msra.mxu0 0
    %2610 = vmatprep.subr.bf16.mxu0 0
    %2611 = vmatpush2.bf16.msra.mxu0 0
    %2612 = vmatprep.subr.bf16.mxu0 0
    %2613 = vmatpush2.bf16.msra.mxu0 0
    %2614 = vmatprep.subr.bf16.mxu0 0
    %2615 = vmatpush2.bf16.msra.mxu0 0
    %2616 = vmatprep.subr.bf16.mxu0 0
    %2617 = vmatpush2.bf16.msra.mxu0 0
    %2618 = vmatprep.subr.bf16.mxu0 0
    %2619 = vmatpush2.bf16.msra.mxu0 0
    %2620 = vmatprep.subr.bf16.mxu0 0
    %2621 = vmatpush2.bf16.msra.mxu0 0
    %2622 = vmatprep.mubr.bf16.mxu0 0
    %2623 = vmatmul.mubr.bf16.gmra.mxu0 %v2544
    %v2624 = vpop.f32.mrf.mxu0
    %v2625 = vadd.f32 0.0, %v2624
    %v2626 = vpop.f32.mrf.mxu0
    %v2627 = vpop.f32.mrf.mxu0
    %v2628 = vpop.f32.mrf.mxu0
    %2629 = vdwg.mxu0
    %v2630 = vadd.f32 %v2546, %v2584
    %v2631 = vadd.f32 %v2547, %v2586
    %v2632 = vxor.u32 %v2630, 2147483648
    %v2633 = vxor.u32 %v2631, 2147483648
    %v2634 = vmul.f32 %v2632, 1.442695
    %v2635 = vpow.pop %v2634
    %v2636 = vmul.f32 %v2633, 1.442695
    %v2637 = vpow.pop %v2636
    %v2638 = vadd.f32 %v2635, 1.0
    %v2639 = vadd.f32 %v2637, 1.0
    %v2640 = vrcp.pop %v2638
    %v2641 = vmul.f32 1.0, %v2640
    %v2642 = vrcp.pop %v2639
    %v2643 = vmul.f32 1.0, %v2642
    %v2644 = vadd.f32 %v2625, %v1881
    %v2645 = vmul.f32 %v2641, %v2644
    %v2646 = vadd.f32 %v2548, %v2645
    %v2647 = vtanh.pop %v2646
    %v2648 = vsub.f32 %v2543, %v2647
    %v2649 = vmul.f32 %v2643, %v2648
    %v2650 = vadd.f32 %v2647, %v2649
    %v2651 = vpack.c.bf16 %v2650, %v2650
    %2652 = vst [vmem:[%s1252] sm:$0xf] %v2651
    %v2653 = vld [vmem:[%s1254] sm:$0xff]
    %v2654 = vld [vmem:[%s1254 + $0x8] sm:$0xff]
    %v2655 = vld [vmem:[%s1254 + $0x10] sm:$0xff]
    %2656 = vmatprep.subr.bf16.mxu0 %v1988
    %2657 = vmatpush1.bf16.msra.mxu0 %v1987
    %2658 = vmatprep.subr.bf16.mxu0 %v1985
    %2659 = vmatpush1.bf16.msra.mxu0 %v1984
    %2660 = vmatprep.subr.bf16.mxu0 %v1982
    %2661 = vmatpush1.bf16.msra.mxu0 %v1981
    %2662 = vmatprep.subr.bf16.mxu0 %v1979
    %2663 = vmatpush1.bf16.msra.mxu0 %v1978
    %2664 = vmatprep.subr.bf16.mxu0 %v1976
    %2665 = vmatpush1.bf16.msra.mxu0 %v1975
    %2666 = vmatprep.subr.bf16.mxu0 %v1973
    %2667 = vmatpush1.bf16.msra.mxu0 %v1972
    %2668 = vmatprep.subr.bf16.mxu0 %v1970
    %2669 = vmatpush1.bf16.msra.mxu0 %v1969
    %2670 = vmatprep.subr.bf16.mxu0 %v1967
    %2671 = vmatpush1.bf16.msra.mxu0 %v1966
    %2672 = vmatprep.subr.bf16.mxu0 0
    %2673 = vmatpush2.bf16.msra.mxu0 0
    %2674 = vmatprep.subr.bf16.mxu0 0
    %2675 = vmatpush2.bf16.msra.mxu0 0
    %2676 = vmatprep.subr.bf16.mxu0 0
    %2677 = vmatpush2.bf16.msra.mxu0 0
    %2678 = vmatprep.subr.bf16.mxu0 0
    %2679 = vmatpush2.bf16.msra.mxu0 0
    %2680 = vmatprep.subr.bf16.mxu0 0
    %2681 = vmatpush2.bf16.msra.mxu0 0
    %2682 = vmatprep.subr.bf16.mxu0 0
    %2683 = vmatpush2.bf16.msra.mxu0 0
    %2684 = vmatprep.subr.bf16.mxu0 0
    %2685 = vmatpush2.bf16.msra.mxu0 0
    %2686 = vmatprep.subr.bf16.mxu0 0
    %2687 = vmatpush2.bf16.msra.mxu0 0
    %2688 = vmatprep.mubr.bf16.mxu0 0
    %2689 = vmatmul.mubr.bf16.gmra.mxu0 %v2651
    %v2690 = vpop.f32.mrf.mxu0
    %v2691 = vadd.f32 0.0, %v2690
    %v2692 = vpop.f32.mrf.mxu0
    %v2693 = vadd.f32 0.0, %v2692
    %v2694 = vpop.f32.mrf.mxu0
    %v2695 = vpop.f32.mrf.mxu0
    %2696 = vdwg.mxu0
    %2697 = vmatprep.subr.bf16.mxu0 0
    %2698 = vmatpush1.bf16.msra.mxu0 %v1989
    %2699 = vmatprep.subr.bf16.mxu0 0
    %2700 = vmatpush1.bf16.msra.mxu0 %v1986
    %2701 = vmatprep.subr.bf16.mxu0 0
    %2702 = vmatpush1.bf16.msra.mxu0 %v1983
    %2703 = vmatprep.subr.bf16.mxu0 0
    %2704 = vmatpush1.bf16.msra.mxu0 %v1980
    %2705 = vmatprep.subr.bf16.mxu0 0
    %2706 = vmatpush1.bf16.msra.mxu0 %v1977
    %2707 = vmatprep.subr.bf16.mxu0 0
    %2708 = vmatpush1.bf16.msra.mxu0 %v1974
    %2709 = vmatprep.subr.bf16.mxu0 0
    %2710 = vmatpush1.bf16.msra.mxu0 %v1971
    %2711 = vmatprep.subr.bf16.mxu0 0
    %2712 = vmatpush1.bf16.msra.mxu0 %v1968
    %2713 = vmatprep.subr.bf16.mxu0 0
    %2714 = vmatpush2.bf16.msra.mxu0 0
    %2715 = vmatprep.subr.bf16.mxu0 0
    %2716 = vmatpush2.bf16.msra.mxu0 0
    %2717 = vmatprep.subr.bf16.mxu0 0
    %2718 = vmatpush2.bf16.msra.mxu0 0
    %2719 = vmatprep.subr.bf16.mxu0 0
    %2720 = vmatpush2.bf16.msra.mxu0 0
    %2721 = vmatprep.subr.bf16.mxu0 0
    %2722 = vmatpush2.bf16.msra.mxu0 0
    %2723 = vmatprep.subr.bf16.mxu0 0
    %2724 = vmatpush2.bf16.msra.mxu0 0
    %2725 = vmatprep.subr.bf16.mxu0 0
    %2726 = vmatpush2.bf16.msra.mxu0 0
    %2727 = vmatprep.subr.bf16.mxu0 0
    %2728 = vmatpush2.bf16.msra.mxu0 0
    %2729 = vmatprep.mubr.bf16.mxu0 0
    %2730 = vmatmul.mubr.bf16.gmra.mxu0 %v2651
    %v2731 = vpop.f32.mrf.mxu0
    %v2732 = vadd.f32 0.0, %v2731
    %v2733 = vpop.f32.mrf.mxu0
    %v2734 = vpop.f32.mrf.mxu0
    %v2735 = vpop.f32.mrf.mxu0
    %2736 = vdwg.mxu0
    %v2737 = vadd.f32 %v2653, %v2691
    %v2738 = vadd.f32 %v2654, %v2693
    %v2739 = vxor.u32 %v2737, 2147483648
    %v2740 = vxor.u32 %v2738, 2147483648
    %v2741 = vmul.f32 %v2739, 1.442695
    %v2742 = vpow.pop %v2741
    %v2743 = vmul.f32 %v2740, 1.442695
    %v2744 = vpow.pop %v2743
    %v2745 = vadd.f32 %v2742, 1.0
    %v2746 = vadd.f32 %v2744, 1.0
    %v2747 = vrcp.pop %v2745
    %v2748 = vmul.f32 1.0, %v2747
    %v2749 = vrcp.pop %v2746
    %v2750 = vmul.f32 1.0, %v2749
    %v2751 = vadd.f32 %v2732, %v1881
    %v2752 = vmul.f32 %v2748, %v2751
    %v2753 = vadd.f32 %v2655, %v2752
    %v2754 = vtanh.pop %v2753
    %v2755 = vsub.f32 %v2650, %v2754
    %v2756 = vmul.f32 %v2750, %v2755
    %v2757 = vadd.f32 %v2754, %v2756
    %v2758 = vpack.c.bf16 %v2757, %v2757
    %2759 = vst [vmem:[%s1361] sm:$0xf] %v2758
    %v2760 = vld [vmem:[%s1363] sm:$0xff]
    %v2761 = vld [vmem:[%s1363 + $0x8] sm:$0xff]
    %v2762 = vld [vmem:[%s1363 + $0x10] sm:$0xff]
    %2763 = vmatprep.subr.bf16.mxu0 %v1988
    %2764 = vmatpush1.bf16.msra.mxu0 %v1987
    %2765 = vmatprep.subr.bf16.mxu0 %v1985
    %2766 = vmatpush1.bf16.msra.mxu0 %v1984
    %2767 = vmatprep.subr.bf16.mxu0 %v1982
    %2768 = vmatpush1.bf16.msra.mxu0 %v1981
    %2769 = vmatprep.subr.bf16.mxu0 %v1979
    %2770 = vmatpush1.bf16.msra.mxu0 %v1978
    %2771 = vmatprep.subr.bf16.mxu0 %v1976
    %2772 = vmatpush1.bf16.msra.mxu0 %v1975
    %2773 = vmatprep.subr.bf16.mxu0 %v1973
    %2774 = vmatpush1.bf16.msra.mxu0 %v1972
    %2775 = vmatprep.subr.bf16.mxu0 %v1970
    %2776 = vmatpush1.bf16.msra.mxu0 %v1969
    %2777 = vmatprep.subr.bf16.mxu0 %v1967
    %2778 = vmatpush1.bf16.msra.mxu0 %v1966
    %2779 = vmatprep.subr.bf16.mxu0 0
    %2780 = vmatpush2.bf16.msra.mxu0 0
    %2781 = vmatprep.subr.bf16.mxu0 0
    %2782 = vmatpush2.bf16.msra.mxu0 0
    %2783 = vmatprep.subr.bf16.mxu0 0
    %2784 = vmatpush2.bf16.msra.mxu0 0
    %2785 = vmatprep.subr.bf16.mxu0 0
    %2786 = vmatpush2.bf16.msra.mxu0 0
    %2787 = vmatprep.subr.bf16.mxu0 0
    %2788 = vmatpush2.bf16.msra.mxu0 0
    %2789 = vmatprep.subr.bf16.mxu0 0
    %2790 = vmatpush2.bf16.msra.mxu0 0
    %2791 = vmatprep.subr.bf16.mxu0 0
    %2792 = vmatpush2.bf16.msra.mxu0 0
    %2793 = vmatprep.subr.bf16.mxu0 0
    %2794 = vmatpush2.bf16.msra.mxu0 0
    %2795 = vmatprep.mubr.bf16.mxu0 0
    %2796 = vmatmul.mubr.bf16.gmra.mxu0 %v2758
    %v2797 = vpop.f32.mrf.mxu0
    %v2798 = vadd.f32 0.0, %v2797
    %v2799 = vpop.f32.mrf.mxu0
    %v2800 = vadd.f32 0.0, %v2799
    %v2801 = vpop.f32.mrf.mxu0
    %v2802 = vpop.f32.mrf.mxu0
    %2803 = vdwg.mxu0
    %2804 = vmatprep.subr.bf16.mxu0 0
    %2805 = vmatpush1.bf16.msra.mxu0 %v1989
    %2806 = vmatprep.subr.bf16.mxu0 0
    %2807 = vmatpush1.bf16.msra.mxu0 %v1986
    %2808 = vmatprep.subr.bf16.mxu0 0
    %2809 = vmatpush1.bf16.msra.mxu0 %v1983
    %2810 = vmatprep.subr.bf16.mxu0 0
    %2811 = vmatpush1.bf16.msra.mxu0 %v1980
    %2812 = vmatprep.subr.bf16.mxu0 0
    %2813 = vmatpush1.bf16.msra.mxu0 %v1977
    %2814 = vmatprep.subr.bf16.mxu0 0
    %2815 = vmatpush1.bf16.msra.mxu0 %v1974
    %2816 = vmatprep.subr.bf16.mxu0 0
    %2817 = vmatpush1.bf16.msra.mxu0 %v1971
    %2818 = vmatprep.subr.bf16.mxu0 0
    %2819 = vmatpush1.bf16.msra.mxu0 %v1968
    %2820 = vmatprep.subr.bf16.mxu0 0
    %2821 = vmatpush2.bf16.msra.mxu0 0
    %2822 = vmatprep.subr.bf16.mxu0 0
    %2823 = vmatpush2.bf16.msra.mxu0 0
    %2824 = vmatprep.subr.bf16.mxu0 0
    %2825 = vmatpush2.bf16.msra.mxu0 0
    %2826 = vmatprep.subr.bf16.mxu0 0
    %2827 = vmatpush2.bf16.msra.mxu0 0
    %2828 = vmatprep.subr.bf16.mxu0 0
    %2829 = vmatpush2.bf16.msra.mxu0 0
    %2830 = vmatprep.subr.bf16.mxu0 0
    %2831 = vmatpush2.bf16.msra.mxu0 0
    %2832 = vmatprep.subr.bf16.mxu0 0
    %2833 = vmatpush2.bf16.msra.mxu0 0
    %2834 = vmatprep.subr.bf16.mxu0 0
    %2835 = vmatpush2.bf16.msra.mxu0 0
    %2836 = vmatprep.mubr.bf16.mxu0 0
    %2837 = vmatmul.mubr.bf16.gmra.mxu0 %v2758
    %v2838 = vpop.f32.mrf.mxu0
    %v2839 = vadd.f32 0.0, %v2838
    %v2840 = vpop.f32.mrf.mxu0
    %v2841 = vpop.f32.mrf.mxu0
    %v2842 = vpop.f32.mrf.mxu0
    %2843 = vdwg.mxu0
    %v2844 = vadd.f32 %v2760, %v2798
    %v2845 = vadd.f32 %v2761, %v2800
    %v2846 = vxor.u32 %v2844, 2147483648
    %v2847 = vxor.u32 %v2845, 2147483648
    %v2848 = vmul.f32 %v2846, 1.442695
    %v2849 = vpow.pop %v2848
    %v2850 = vmul.f32 %v2847, 1.442695
    %v2851 = vpow.pop %v2850
    %v2852 = vadd.f32 %v2849, 1.0
    %v2853 = vadd.f32 %v2851, 1.0
    %v2854 = vrcp.pop %v2852
    %v2855 = vmul.f32 1.0, %v2854
    %v2856 = vrcp.pop %v2853
    %v2857 = vmul.f32 1.0, %v2856
    %v2858 = vadd.f32 %v2839, %v1881
    %v2859 = vmul.f32 %v2855, %v2858
    %v2860 = vadd.f32 %v2762, %v2859
    %v2861 = vtanh.pop %v2860
    %v2862 = vsub.f32 %v2757, %v2861
    %v2863 = vmul.f32 %v2857, %v2862
    %v2864 = vadd.f32 %v2861, %v2863
    %v2865 = vpack.c.bf16 %v2864, %v2864
    %2866 = vst [vmem:[%s1470] sm:$0xf] %v2865
    %2867 = vst [vmem:[#allocation3 + $0x8] sm:$0xff] %v2864
    %v2868 = vld [vmem:[#allocation4] sm:$0xf]
    %v2869 = vld [vmem:[#allocation4 + $0x4] sm:$0xf]
    %v2870 = vld [vmem:[#allocation4 + $0x8] sm:$0xf]
    %v2871 = vld [vmem:[#allocation4 + $0xc] sm:$0xf]
    %v2872 = vld [vmem:[#allocation4 + $0x10] sm:$0xf]
    %v2873 = vld [vmem:[#allocation4 + $0x14] sm:$0xf]
    %v2874 = vld [vmem:[#allocation4 + $0x18] sm:$0xf]
    %v2875 = vld [vmem:[#allocation4 + $0x1c] sm:$0xf]
    %v2876 = vld [vmem:[%s9] sm:$0xff]
    %v2877 = vld [vmem:[%s9 + $0x8] sm:$0xf]
    %v2878 = vld [vmem:[%s9 + $0xc] sm:$0xff]
    %v2879 = vld [vmem:[%s9 + $0x14] sm:$0xf]
    %v2880 = vld [vmem:[%s9 + $0x18] sm:$0xff]
    %v2881 = vld [vmem:[%s9 + $0x20] sm:$0xf]
    %v2882 = vld [vmem:[%s9 + $0x24] sm:$0xff]
    %v2883 = vld [vmem:[%s9 + $0x2c] sm:$0xf]
    %v2884 = vld [vmem:[%s9 + $0x30] sm:$0xff]
    %v2885 = vld [vmem:[%s9 + $0x38] sm:$0xf]
    %v2886 = vld [vmem:[%s9 + $0x3c] sm:$0xff]
    %v2887 = vld [vmem:[%s9 + $0x44] sm:$0xf]
    %v2888 = vld [vmem:[%s9 + $0x48] sm:$0xff]
    %v2889 = vld [vmem:[%s9 + $0x50] sm:$0xf]
    %v2890 = vld [vmem:[%s9 + $0x54] sm:$0xff]
    %v2891 = vld [vmem:[%s9 + $0x5c] sm:$0xf]
    %v2892 = vld [vmem:[%s9 + $0x60] sm:$0xff]
    %v2893 = vld [vmem:[%s9 + $0x68] sm:$0xf]
    %v2894 = vld [vmem:[%s9 + $0x6c] sm:$0xff]
    %v2895 = vld [vmem:[%s9 + $0x74] sm:$0xf]
    %v2896 = vld [vmem:[%s9 + $0x78] sm:$0xff]
    %v2897 = vld [vmem:[%s9 + $0x80] sm:$0xf]
    %v2898 = vld [vmem:[%s9 + $0x84] sm:$0xff]
    %v2899 = vld [vmem:[%s9 + $0x8c] sm:$0xf]
    %v2900 = vld [vmem:[%s9 + $0x90] sm:$0xff]
    %v2901 = vld [vmem:[%s9 + $0x98] sm:$0xf]
    %v2902 = vld [vmem:[%s9 + $0x9c] sm:$0xff]
    %v2903 = vld [vmem:[%s9 + $0xa4] sm:$0xf]
    %v2904 = vld [vmem:[%s9 + $0xa8] sm:$0xff]
    %v2905 = vld [vmem:[%s9 + $0xb0] sm:$0xf]
    %v2906 = vld [vmem:[%s9 + $0xb4] sm:$0xff]
    %v2907 = vld [vmem:[%s9 + $0xbc] sm:$0xf]
    %v2908 = vld [vmem:[%s11] sm:$0x7]
    %v2910 = vlaneseq
    %v2911 = vshrl.u32 %v2910, 7
    %v2912 = vsub.s32 0, %v2911
    %v2913 = vrot.slane %v2908, %v2912
    %v2914 = vlaneseq
    %v2915 = vshrl.u32 %v2914, 7
    %v2916 = vsub.s32 1, %v2915
    %v2917 = vrot.slane %v2908, %v2916
    %v2918 = vlaneseq
    %v2919 = vshrl.u32 %v2918, 7
    %v2920 = vsub.s32 2, %v2919
    %v2921 = vrot.slane %v2908, %v2920
    %v2933 = vunpack.c.l.b16 %v2868
    %v2934 = vunpack.c.l.b16 %v2869
    %v2935 = vunpack.c.l.b16 %v2870
    %v2936 = vunpack.c.l.b16 %v2871
    %v2937 = vunpack.c.l.b16 %v2872
    %v2938 = vunpack.c.l.b16 %v2873
    %v2939 = vunpack.c.l.b16 %v2874
    %v2940 = vunpack.c.l.b16 %v2875
    %v2941 = vpack.c.b16 %v2934, %v2933
    %v2942 = vpack.c.b16 %v2936, %v2935
    %v2943 = vpack.c.b16 %v2938, %v2937
    %v2944 = vpack.c.b16 %v2940, %v2939
    %v2981 = vunpack.c.l.b16 %v2876
    %v2982 = vunpack.c.h.b16 %v2876
    %v2983 = vunpack.c.l.b16 %v2877
    %v2984 = vunpack.c.l.b16 %v2878
    %v2985 = vunpack.c.h.b16 %v2878
    %v2986 = vunpack.c.l.b16 %v2879
    %v2987 = vunpack.c.l.b16 %v2880
    %v2988 = vunpack.c.h.b16 %v2880
    %v2989 = vunpack.c.l.b16 %v2881
    %v2990 = vunpack.c.l.b16 %v2882
    %v2991 = vunpack.c.h.b16 %v2882
    %v2992 = vunpack.c.l.b16 %v2883
    %v2993 = vunpack.c.l.b16 %v2884
    %v2994 = vunpack.c.h.b16 %v2884
    %v2995 = vunpack.c.l.b16 %v2885
    %v2996 = vunpack.c.l.b16 %v2886
    %v2997 = vunpack.c.h.b16 %v2886
    %v2998 = vunpack.c.l.b16 %v2887
    %v2999 = vunpack.c.l.b16 %v2888
    %v3000 = vunpack.c.h.b16 %v2888
    %v3001 = vunpack.c.l.b16 %v2889
    %v3002 = vunpack.c.l.b16 %v2890
    %v3003 = vunpack.c.h.b16 %v2890
    %v3004 = vunpack.c.l.b16 %v2891
    %v3005 = vunpack.c.l.b16 %v2892
    %v3006 = vunpack.c.h.b16 %v2892
    %v3007 = vunpack.c.l.b16 %v2893
    %v3008 = vunpack.c.l.b16 %v2894
    %v3009 = vunpack.c.h.b16 %v2894
    %v3010 = vunpack.c.l.b16 %v2895
    %v3011 = vunpack.c.l.b16 %v2896
    %v3012 = vunpack.c.h.b16 %v2896
    %v3013 = vunpack.c.l.b16 %v2897
    %v3014 = vunpack.c.l.b16 %v2898
    %v3015 = vunpack.c.h.b16 %v2898
    %v3016 = vunpack.c.l.b16 %v2899
    %v3017 = vunpack.c.l.b16 %v2900
    %v3018 = vunpack.c.h.b16 %v2900
    %v3019 = vunpack.c.l.b16 %v2901
    %v3020 = vunpack.c.l.b16 %v2902
    %v3021 = vunpack.c.h.b16 %v2902
    %v3022 = vunpack.c.l.b16 %v2903
    %v3023 = vunpack.c.l.b16 %v2904
    %v3024 = vunpack.c.h.b16 %v2904
    %v3025 = vunpack.c.l.b16 %v2905
    %v3026 = vunpack.c.l.b16 %v2906
    %v3027 = vunpack.c.h.b16 %v2906
    %v3028 = vunpack.c.l.b16 %v2907
    %v3029 = vpack.c.b16 %v2984, %v2981
    %v3030 = vpack.c.b16 %v2985, %v2982
    %v3031 = vpack.c.b16 %v2986, %v2983
    %v3032 = vpack.c.b16 %v2990, %v2987
    %v3033 = vpack.c.b16 %v2991, %v2988
    %v3034 = vpack.c.b16 %v2992, %v2989
    %v3035 = vpack.c.b16 %v2996, %v2993
    %v3036 = vpack.c.b16 %v2997, %v2994
    %v3037 = vpack.c.b16 %v2998, %v2995
    %v3038 = vpack.c.b16 %v3002, %v2999
    %v3039 = vpack.c.b16 %v3003, %v3000
    %v3040 = vpack.c.b16 %v3004, %v3001
    %v3041 = vpack.c.b16 %v3008, %v3005
    %v3042 = vpack.c.b16 %v3009, %v3006
    %v3043 = vpack.c.b16 %v3010, %v3007
    %v3044 = vpack.c.b16 %v3014, %v3011
    %v3045 = vpack.c.b16 %v3015, %v3012
    %v3046 = vpack.c.b16 %v3016, %v3013
    %v3047 = vpack.c.b16 %v3020, %v3017
    %v3048 = vpack.c.b16 %v3021, %v3018
    %v3049 = vpack.c.b16 %v3022, %v3019
    %v3050 = vpack.c.b16 %v3026, %v3023
    %v3051 = vpack.c.b16 %v3027, %v3024
    %v3052 = vpack.c.b16 %v3028, %v3025
    %3077 = vmatprep.subr.bf16.mxu0 %v3051
    %3078 = vmatpush1.bf16.msra.mxu0 %v3050
    %3079 = vmatprep.subr.bf16.mxu0 %v3048
    %3080 = vmatpush1.bf16.msra.mxu0 %v3047
    %3081 = vmatprep.subr.bf16.mxu0 %v3045
    %3082 = vmatpush1.bf16.msra.mxu0 %v3044
    %3083 = vmatprep.subr.bf16.mxu0 %v3042
    %3084 = vmatpush1.bf16.msra.mxu0 %v3041
    %3085 = vmatprep.subr.bf16.mxu0 %v3039
    %3086 = vmatpush1.bf16.msra.mxu0 %v3038
    %3087 = vmatprep.subr.bf16.mxu0 %v3036
    %3088 = vmatpush1.bf16.msra.mxu0 %v3035
    %3089 = vmatprep.subr.bf16.mxu0 %v3033
    %3090 = vmatpush1.bf16.msra.mxu0 %v3032
    %3091 = vmatprep.subr.bf16.mxu0 %v3030
    %3092 = vmatpush1.bf16.msra.mxu0 %v3029
    %3093 = vmatprep.subr.bf16.mxu0 0
    %3094 = vmatpush2.bf16.msra.mxu0 0
    %3095 = vmatprep.subr.bf16.mxu0 0
    %3096 = vmatpush2.bf16.msra.mxu0 0
    %3097 = vmatprep.subr.bf16.mxu0 0
    %3098 = vmatpush2.bf16.msra.mxu0 0
    %3099 = vmatprep.subr.bf16.mxu0 0
    %3100 = vmatpush2.bf16.msra.mxu0 0
    %3101 = vmatprep.subr.bf16.mxu0 0
    %3102 = vmatpush2.bf16.msra.mxu0 0
    %3103 = vmatprep.subr.bf16.mxu0 0
    %3104 = vmatpush2.bf16.msra.mxu0 0
    %3105 = vmatprep.subr.bf16.mxu0 0
    %3106 = vmatpush2.bf16.msra.mxu0 0
    %3107 = vmatprep.subr.bf16.mxu0 0
    %3108 = vmatpush2.bf16.msra.mxu0 0
    %3109 = vmatprep.mubr.bf16.mxu0 0
    %3110 = vmatmul.mubr.bf16.gmra.mxu0 %v2941
    %v3111 = vpop.f32.mrf.mxu0
    %v3112 = vadd.f32 %v2913, %v3111
    %v3113 = vpop.f32.mrf.mxu0
    %v3114 = vadd.f32 %v2917, %v3113
    %v3115 = vpop.f32.mrf.mxu0
    %v3116 = vadd.f32 %v2913, %v3115
    %v3117 = vpop.f32.mrf.mxu0
    %v3118 = vadd.f32 %v2917, %v3117
    %3119 = vmatprep.mubr.bf16.mxu0 0
    %3120 = vmatmul.mubr.bf16.gmra.mxu0 %v2942
    %v3121 = vpop.f32.mrf.mxu0
    %v3122 = vadd.f32 %v2913, %v3121
    %v3123 = vpop.f32.mrf.mxu0
    %v3124 = vadd.f32 %v2917, %v3123
    %v3125 = vpop.f32.mrf.mxu0
    %v3126 = vadd.f32 %v2913, %v3125
    %v3127 = vpop.f32.mrf.mxu0
    %v3128 = vadd.f32 %v2917, %v3127
    %3129 = vmatprep.mubr.bf16.mxu0 0
    %3130 = vmatmul.mubr.bf16.gmra.mxu0 %v2943
    %v3131 = vpop.f32.mrf.mxu0
    %v3132 = vadd.f32 %v2913, %v3131
    %v3133 = vpop.f32.mrf.mxu0
    %v3134 = vadd.f32 %v2917, %v3133
    %v3135 = vpop.f32.mrf.mxu0
    %v3136 = vadd.f32 %v2913, %v3135
    %v3137 = vpop.f32.mrf.mxu0
    %v3138 = vadd.f32 %v2917, %v3137
    %3139 = vmatprep.mubr.bf16.mxu0 0
    %3140 = vmatmul.mubr.bf16.gmra.mxu0 %v2944
    %v3141 = vpop.f32.mrf.mxu0
    %v3142 = vadd.f32 %v2913, %v3141
    %v3143 = vpop.f32.mrf.mxu0
    %v3144 = vadd.f32 %v2917, %v3143
    %v3145 = vpop.f32.mrf.mxu0
    %v3146 = vadd.f32 %v2913, %v3145
    %v3147 = vpop.f32.mrf.mxu0
    %v3148 = vadd.f32 %v2917, %v3147
    %3149 = vdwg.mxu0
    %3150 = vmatprep.subr.bf16.mxu0 0
    %3151 = vmatpush1.bf16.msra.mxu0 %v3052
    %3152 = vmatprep.subr.bf16.mxu0 0
    %3153 = vmatpush1.bf16.msra.mxu0 %v3049
    %3154 = vmatprep.subr.bf16.mxu0 0
    %3155 = vmatpush1.bf16.msra.mxu0 %v3046
    %3156 = vmatprep.subr.bf16.mxu0 0
    %3157 = vmatpush1.bf16.msra.mxu0 %v3043
    %3158 = vmatprep.subr.bf16.mxu0 0
    %3159 = vmatpush1.bf16.msra.mxu0 %v3040
    %3160 = vmatprep.subr.bf16.mxu0 0
    %3161 = vmatpush1.bf16.msra.mxu0 %v3037
    %3162 = vmatprep.subr.bf16.mxu0 0
    %3163 = vmatpush1.bf16.msra.mxu0 %v3034
    %3164 = vmatprep.subr.bf16.mxu0 0
    %3165 = vmatpush1.bf16.msra.mxu0 %v3031
    %3166 = vmatprep.subr.bf16.mxu0 0
    %3167 = vmatpush2.bf16.msra.mxu0 0
    %3168 = vmatprep.subr.bf16.mxu0 0
    %3169 = vmatpush2.bf16.msra.mxu0 0
    %3170 = vmatprep.subr.bf16.mxu0 0
    %3171 = vmatpush2.bf16.msra.mxu0 0
    %3172 = vmatprep.subr.bf16.mxu0 0
    %3173 = vmatpush2.bf16.msra.mxu0 0
    %3174 = vmatprep.subr.bf16.mxu0 0
    %3175 = vmatpush2.bf16.msra.mxu0 0
    %3176 = vmatprep.subr.bf16.mxu0 0
    %3177 = vmatpush2.bf16.msra.mxu0 0
    %3178 = vmatprep.subr.bf16.mxu0 0
    %3179 = vmatpush2.bf16.msra.mxu0 0
    %3180 = vmatprep.subr.bf16.mxu0 0
    %3181 = vmatpush2.bf16.msra.mxu0 0
    %3182 = vmatprep.mubr.bf16.mxu0 0
    %3183 = vmatmul.mubr.bf16.gmra.mxu0 %v2941
    %v3184 = vpop.f32.mrf.mxu0
    %v3185 = vadd.f32 %v2921, %v3184
    %v3186 = vpop.f32.mrf.mxu0
    %v3187 = vpop.f32.mrf.mxu0
    %v3188 = vadd.f32 %v2921, %v3187
    %v3189 = vpop.f32.mrf.mxu0
    %3190 = vmatprep.mubr.bf16.mxu0 0
    %3191 = vmatmul.mubr.bf16.gmra.mxu0 %v2942
    %v3192 = vpop.f32.mrf.mxu0
    %v3193 = vadd.f32 %v2921, %v3192
    %v3194 = vpop.f32.mrf.mxu0
    %v3195 = vpop.f32.mrf.mxu0
    %v3196 = vadd.f32 %v2921, %v3195
    %v3197 = vpop.f32.mrf.mxu0
    %3198 = vmatprep.mubr.bf16.mxu0 0
    %3199 = vmatmul.mubr.bf16.gmra.mxu0 %v2943
    %v3200 = vpop.f32.mrf.mxu0
    %v3201 = vadd.f32 %v2921, %v3200
    %v3202 = vpop.f32.mrf.mxu0
    %v3203 = vpop.f32.mrf.mxu0
    %v3204 = vadd.f32 %v2921, %v3203
    %v3205 = vpop.f32.mrf.mxu0
    %3206 = vmatprep.mubr.bf16.mxu0 0
    %3207 = vmatmul.mubr.bf16.gmra.mxu0 %v2944
    %v3208 = vpop.f32.mrf.mxu0
    %v3209 = vadd.f32 %v2921, %v3208
    %v3210 = vpop.f32.mrf.mxu0
    %v3211 = vpop.f32.mrf.mxu0
    %v3212 = vadd.f32 %v2921, %v3211
    %v3213 = vpop.f32.mrf.mxu0
    %3214 = vdwg.mxu0
    %3215 = vst [vmem:[#allocation2] sm:$0xff] %v3112
    %3216 = vst [vmem:[#allocation2 + $0x8] sm:$0xff] %v3114
    %3217 = vst [vmem:[#allocation2 + $0x10] sm:$0xff] %v3185
    %3218 = vst [vmem:[#allocation2 + $0x18] sm:$0xff] %v3116
    %3219 = vst [vmem:[#allocation2 + $0x20] sm:$0xff] %v3118
    %3220 = vst [vmem:[#allocation2 + $0x28] sm:$0xff] %v3188
    %3221 = vst [vmem:[#allocation2 + $0x30] sm:$0xff] %v3122
    %3222 = vst [vmem:[#allocation2 + $0x38] sm:$0xff] %v3124
    %3223 = vst [vmem:[#allocation2 + $0x40] sm:$0xff] %v3193
    %3224 = vst [vmem:[#allocation2 + $0x48] sm:$0xff] %v3126
    %3225 = vst [vmem:[#allocation2 + $0x50] sm:$0xff] %v3128
    %3226 = vst [vmem:[#allocation2 + $0x58] sm:$0xff] %v3196
    %3227 = vst [vmem:[#allocation2 + $0x60] sm:$0xff] %v3132
    %3228 = vst [vmem:[#allocation2 + $0x68] sm:$0xff] %v3134
    %3229 = vst [vmem:[#allocation2 + $0x70] sm:$0xff] %v3201
    %3230 = vst [vmem:[#allocation2 + $0x78] sm:$0xff] %v3136
    %3231 = vst [vmem:[#allocation2 + $0x80] sm:$0xff] %v3138
    %3232 = vst [vmem:[#allocation2 + $0x88] sm:$0xff] %v3204
    %3233 = vst [vmem:[#allocation2 + $0x90] sm:$0xff] %v3142
    %3234 = vst [vmem:[#allocation2 + $0x98] sm:$0xff] %v3144
    %3235 = vst [vmem:[#allocation2 + $0xa0] sm:$0xff] %v3209
    %3236 = vst [vmem:[#allocation2 + $0xa8] sm:$0xff] %v3146
    %3237 = vst [vmem:[#allocation2 + $0xb0] sm:$0xff] %v3148
    %3238 = vst [vmem:[#allocation2 + $0xb8] sm:$0xff] %v3212
    %v3239 = vld [vmem:[%s10] sm:$0xff]
    %v3240 = vld [vmem:[%s10 + $0x8] sm:$0xf]
    %v3241 = vld [vmem:[%s10 + $0xc] sm:$0xff]
    %v3242 = vld [vmem:[%s10 + $0x14] sm:$0xf]
    %v3243 = vld [vmem:[%s10 + $0x18] sm:$0xff]
    %v3244 = vld [vmem:[%s10 + $0x20] sm:$0xf]
    %v3245 = vld [vmem:[%s10 + $0x24] sm:$0xff]
    %v3246 = vld [vmem:[%s10 + $0x2c] sm:$0xf]
    %v3247 = vld [vmem:[%s10 + $0x30] sm:$0xff]
    %v3248 = vld [vmem:[%s10 + $0x38] sm:$0xf]
    %v3249 = vld [vmem:[%s10 + $0x3c] sm:$0xff]
    %v3250 = vld [vmem:[%s10 + $0x44] sm:$0xf]
    %v3251 = vld [vmem:[%s10 + $0x48] sm:$0xff]
    %v3252 = vld [vmem:[%s10 + $0x50] sm:$0xf]
    %v3253 = vld [vmem:[%s10 + $0x54] sm:$0xff]
    %v3254 = vld [vmem:[%s10 + $0x5c] sm:$0xf]
    %v3255 = vld [vmem:[%s10 + $0x60] sm:$0xff]
    %v3256 = vld [vmem:[%s10 + $0x68] sm:$0xf]
    %v3257 = vld [vmem:[%s10 + $0x6c] sm:$0xff]
    %v3258 = vld [vmem:[%s10 + $0x74] sm:$0xf]
    %v3259 = vld [vmem:[%s10 + $0x78] sm:$0xff]
    %v3260 = vld [vmem:[%s10 + $0x80] sm:$0xf]
    %v3261 = vld [vmem:[%s10 + $0x84] sm:$0xff]
    %v3262 = vld [vmem:[%s10 + $0x8c] sm:$0xf]
    %v3263 = vld [vmem:[%s10 + $0x90] sm:$0xff]
    %v3264 = vld [vmem:[%s10 + $0x98] sm:$0xf]
    %v3265 = vld [vmem:[%s10 + $0x9c] sm:$0xff]
    %v3266 = vld [vmem:[%s10 + $0xa4] sm:$0xf]
    %v3267 = vld [vmem:[%s10 + $0xa8] sm:$0xff]
    %v3268 = vld [vmem:[%s10 + $0xb0] sm:$0xf]
    %v3269 = vld [vmem:[%s10 + $0xb4] sm:$0xff]
    %v3270 = vld [vmem:[%s10 + $0xbc] sm:$0xf]
    %v3271 = vld [vmem:[%s12] sm:$0x1]
    %v3273 = vlaneseq
    %v3274 = vshrl.u32 %v3273, 7
    %v3275 = vsub.s32 0, %v3274
    %v3276 = vrot.slane %v3271, %v3275
    %v3278 = vld [vmem:[#allocation2] sm:$0xff]
    %v3279 = vld [vmem:[#allocation2 + $0x8] sm:$0xff]
    %v3280 = vld [vmem:[#allocation2 + $0x10] sm:$0xff]
    %v3313 = vunpack.c.l.b16 %v3239
    %v3314 = vunpack.c.h.b16 %v3239
    %v3315 = vunpack.c.l.b16 %v3240
    %v3316 = vunpack.c.l.b16 %v3241
    %v3317 = vunpack.c.h.b16 %v3241
    %v3318 = vunpack.c.l.b16 %v3242
    %v3319 = vunpack.c.l.b16 %v3243
    %v3320 = vunpack.c.h.b16 %v3243
    %v3321 = vunpack.c.l.b16 %v3244
    %v3322 = vunpack.c.l.b16 %v3245
    %v3323 = vunpack.c.h.b16 %v3245
    %v3324 = vunpack.c.l.b16 %v3246
    %v3325 = vunpack.c.l.b16 %v3247
    %v3326 = vunpack.c.h.b16 %v3247
    %v3327 = vunpack.c.l.b16 %v3248
    %v3328 = vunpack.c.l.b16 %v3249
    %v3329 = vunpack.c.h.b16 %v3249
    %v3330 = vunpack.c.l.b16 %v3250
    %v3331 = vunpack.c.l.b16 %v3251
    %v3332 = vunpack.c.h.b16 %v3251
    %v3333 = vunpack.c.l.b16 %v3252
    %v3334 = vunpack.c.l.b16 %v3253
    %v3335 = vunpack.c.h.b16 %v3253
    %v3336 = vunpack.c.l.b16 %v3254
    %v3337 = vunpack.c.l.b16 %v3255
    %v3338 = vunpack.c.h.b16 %v3255
    %v3339 = vunpack.c.l.b16 %v3256
    %v3340 = vunpack.c.l.b16 %v3257
    %v3341 = vunpack.c.h.b16 %v3257
    %v3342 = vunpack.c.l.b16 %v3258
    %v3343 = vunpack.c.l.b16 %v3259
    %v3344 = vunpack.c.h.b16 %v3259
    %v3345 = vunpack.c.l.b16 %v3260
    %v3346 = vunpack.c.l.b16 %v3261
    %v3347 = vunpack.c.h.b16 %v3261
    %v3348 = vunpack.c.l.b16 %v3262
    %v3349 = vunpack.c.l.b16 %v3263
    %v3350 = vunpack.c.h.b16 %v3263
    %v3351 = vunpack.c.l.b16 %v3264
    %v3352 = vunpack.c.l.b16 %v3265
    %v3353 = vunpack.c.h.b16 %v3265
    %v3354 = vunpack.c.l.b16 %v3266
    %v3355 = vunpack.c.l.b16 %v3267
    %v3356 = vunpack.c.h.b16 %v3267
    %v3357 = vunpack.c.l.b16 %v3268
    %v3358 = vunpack.c.l.b16 %v3269
    %v3359 = vunpack.c.h.b16 %v3269
    %v3360 = vunpack.c.l.b16 %v3270
    %v3361 = vpack.c.b16 %v3316, %v3313
    %v3362 = vpack.c.b16 %v3317, %v3314
    %v3363 = vpack.c.b16 %v3318, %v3315
    %v3364 = vpack.c.b16 %v3322, %v3319
    %v3365 = vpack.c.b16 %v3323, %v3320
    %v3366 = vpack.c.b16 %v3324, %v3321
    %v3367 = vpack.c.b16 %v3328, %v3325
    %v3368 = vpack.c.b16 %v3329, %v3326
    %v3369 = vpack.c.b16 %v3330, %v3327
    %v3370 = vpack.c.b16 %v3334, %v3331
    %v3371 = vpack.c.b16 %v3335, %v3332
    %v3372 = vpack.c.b16 %v3336, %v3333
    %v3373 = vpack.c.b16 %v3340, %v3337
    %v3374 = vpack.c.b16 %v3341, %v3338
    %v3375 = vpack.c.b16 %v3342, %v3339
    %v3376 = vpack.c.b16 %v3346, %v3343
    %v3377 = vpack.c.b16 %v3347, %v3344
    %v3378 = vpack.c.b16 %v3348, %v3345
    %v3379 = vpack.c.b16 %v3352, %v3349
    %v3380 = vpack.c.b16 %v3353, %v3350
    %v3381 = vpack.c.b16 %v3354, %v3351
    %v3382 = vpack.c.b16 %v3358, %v3355
    %v3383 = vpack.c.b16 %v3359, %v3356
    %v3384 = vpack.c.b16 %v3360, %v3357
    %3409 = vmatprep.subr.bf16.mxu0 %v3383
    %3410 = vmatpush1.bf16.msra.mxu0 %v3382
    %3411 = vmatprep.subr.bf16.mxu0 %v3380
    %3412 = vmatpush1.bf16.msra.mxu0 %v3379
    %3413 = vmatprep.subr.bf16.mxu0 %v3377
    %3414 = vmatpush1.bf16.msra.mxu0 %v3376
    %3415 = vmatprep.subr.bf16.mxu0 %v3374
    %3416 = vmatpush1.bf16.msra.mxu0 %v3373
    %3417 = vmatprep.subr.bf16.mxu0 %v3371
    %3418 = vmatpush1.bf16.msra.mxu0 %v3370
    %3419 = vmatprep.subr.bf16.mxu0 %v3368
    %3420 = vmatpush1.bf16.msra.mxu0 %v3367
    %3421 = vmatprep.subr.bf16.mxu0 %v3365
    %3422 = vmatpush1.bf16.msra.mxu0 %v3364
    %3423 = vmatprep.subr.bf16.mxu0 %v3362
    %3424 = vmatpush1.bf16.msra.mxu0 %v3361
    %3425 = vmatprep.subr.bf16.mxu0 0
    %3426 = vmatpush2.bf16.msra.mxu0 0
    %3427 = vmatprep.subr.bf16.mxu0 0
    %3428 = vmatpush2.bf16.msra.mxu0 0
    %3429 = vmatprep.subr.bf16.mxu0 0
    %3430 = vmatpush2.bf16.msra.mxu0 0
    %3431 = vmatprep.subr.bf16.mxu0 0
    %3432 = vmatpush2.bf16.msra.mxu0 0
    %3433 = vmatprep.subr.bf16.mxu0 0
    %3434 = vmatpush2.bf16.msra.mxu0 0
    %3435 = vmatprep.subr.bf16.mxu0 0
    %3436 = vmatpush2.bf16.msra.mxu0 0
    %3437 = vmatprep.subr.bf16.mxu0 0
    %3438 = vmatpush2.bf16.msra.mxu0 0
    %3439 = vmatprep.subr.bf16.mxu0 0
    %3440 = vmatpush2.bf16.msra.mxu0 0
    %3441 = vmatprep.mubr.bf16.mxu0 0
    %3442 = vmatmul.mubr.bf16.gmra.mxu0 0
    %v3443 = vpop.f32.mrf.mxu0
    %v3444 = vadd.f32 0.0, %v3443
    %v3445 = vpop.f32.mrf.mxu0
    %v3446 = vadd.f32 0.0, %v3445
    %v3447 = vpop.f32.mrf.mxu0
    %v3448 = vpop.f32.mrf.mxu0
    %3449 = vdwg.mxu0
    %3450 = vmatprep.subr.bf16.mxu0 0
    %3451 = vmatpush1.bf16.msra.mxu0 %v3384
    %3452 = vmatprep.subr.bf16.mxu0 0
    %3453 = vmatpush1.bf16.msra.mxu0 %v3381
    %3454 = vmatprep.subr.bf16.mxu0 0
    %3455 = vmatpush1.bf16.msra.mxu0 %v3378
    %3456 = vmatprep.subr.bf16.mxu0 0
    %3457 = vmatpush1.bf16.msra.mxu0 %v3375
    %3458 = vmatprep.subr.bf16.mxu0 0
    %3459 = vmatpush1.bf16.msra.mxu0 %v3372
    %3460 = vmatprep.subr.bf16.mxu0 0
    %3461 = vmatpush1.bf16.msra.mxu0 %v3369
    %3462 = vmatprep.subr.bf16.mxu0 0
    %3463 = vmatpush1.bf16.msra.mxu0 %v3366
    %3464 = vmatprep.subr.bf16.mxu0 0
    %3465 = vmatpush1.bf16.msra.mxu0 %v3363
    %3466 = vmatprep.subr.bf16.mxu0 0
    %3467 = vmatpush2.bf16.msra.mxu0 0
    %3468 = vmatprep.subr.bf16.mxu0 0
    %3469 = vmatpush2.bf16.msra.mxu0 0
    %3470 = vmatprep.subr.bf16.mxu0 0
    %3471 = vmatpush2.bf16.msra.mxu0 0
    %3472 = vmatprep.subr.bf16.mxu0 0
    %3473 = vmatpush2.bf16.msra.mxu0 0
    %3474 = vmatprep.subr.bf16.mxu0 0
    %3475 = vmatpush2.bf16.msra.mxu0 0
    %3476 = vmatprep.subr.bf16.mxu0 0
    %3477 = vmatpush2.bf16.msra.mxu0 0
    %3478 = vmatprep.subr.bf16.mxu0 0
    %3479 = vmatpush2.bf16.msra.mxu0 0
    %3480 = vmatprep.subr.bf16.mxu0 0
    %3481 = vmatpush2.bf16.msra.mxu0 0
    %3482 = vmatprep.mubr.bf16.mxu0 0
    %3483 = vmatmul.mubr.bf16.gmra.mxu0 0
    %v3484 = vpop.f32.mrf.mxu0
    %v3485 = vadd.f32 0.0, %v3484
    %v3486 = vpop.f32.mrf.mxu0
    %v3487 = vpop.f32.mrf.mxu0
    %v3488 = vpop.f32.mrf.mxu0
    %3489 = vdwg.mxu0
    %v3490 = vadd.f32 %v3278, %v3444
    %v3491 = vadd.f32 %v3279, %v3446
    %v3492 = vxor.u32 %v3490, 2147483648
    %v3493 = vxor.u32 %v3491, 2147483648
    %v3494 = vmul.f32 %v3492, 1.442695
    %v3495 = vpow.pop %v3494
    %v3496 = vmul.f32 %v3493, 1.442695
    %v3497 = vpow.pop %v3496
    %v3498 = vadd.f32 %v3495, 1.0
    %v3499 = vadd.f32 %v3497, 1.0
    %v3500 = vrcp.pop %v3498
    %v3501 = vmul.f32 1.0, %v3500
    %v3502 = vrcp.pop %v3499
    %v3503 = vmul.f32 1.0, %v3502
    %v3504 = vadd.f32 %v3485, %v3276
    %v3505 = vmul.f32 %v3501, %v3504
    %v3506 = vadd.f32 %v3280, %v3505
    %v3507 = vtanh.pop %v3506
    %v3508 = vsub.f32 0.0, %v3507
    %v3509 = vmul.f32 %v3503, %v3508
    %v3510 = vadd.f32 %v3507, %v3509
    %v3511 = vpack.c.bf16 %v3510, %v3510
    %3512 = vst [vmem:[#allocation4] sm:$0xf] %v3511
    %v3513 = vld [vmem:[%s709] sm:$0xff]
    %v3514 = vld [vmem:[%s709 + $0x8] sm:$0xff]
    %v3515 = vld [vmem:[%s709 + $0x10] sm:$0xff]
    %3516 = vmatprep.subr.bf16.mxu0 %v3383
    %3517 = vmatpush1.bf16.msra.mxu0 %v3382
    %3518 = vmatprep.subr.bf16.mxu0 %v3380
    %3519 = vmatpush1.bf16.msra.mxu0 %v3379
    %3520 = vmatprep.subr.bf16.mxu0 %v3377
    %3521 = vmatpush1.bf16.msra.mxu0 %v3376
    %3522 = vmatprep.subr.bf16.mxu0 %v3374
    %3523 = vmatpush1.bf16.msra.mxu0 %v3373
    %3524 = vmatprep.subr.bf16.mxu0 %v3371
    %3525 = vmatpush1.bf16.msra.mxu0 %v3370
    %3526 = vmatprep.subr.bf16.mxu0 %v3368
    %3527 = vmatpush1.bf16.msra.mxu0 %v3367
    %3528 = vmatprep.subr.bf16.mxu0 %v3365
    %3529 = vmatpush1.bf16.msra.mxu0 %v3364
    %3530 = vmatprep.subr.bf16.mxu0 %v3362
    %3531 = vmatpush1.bf16.msra.mxu0 %v3361
    %3532 = vmatprep.subr.bf16.mxu0 0
    %3533 = vmatpush2.bf16.msra.mxu0 0
    %3534 = vmatprep.subr.bf16.mxu0 0
    %3535 = vmatpush2.bf16.msra.mxu0 0
    %3536 = vmatprep.subr.bf16.mxu0 0
    %3537 = vmatpush2.bf16.msra.mxu0 0
    %3538 = vmatprep.subr.bf16.mxu0 0
    %3539 = vmatpush2.bf16.msra.mxu0 0
    %3540 = vmatprep.subr.bf16.mxu0 0
    %3541 = vmatpush2.bf16.msra.mxu0 0
    %3542 = vmatprep.subr.bf16.mxu0 0
    %3543 = vmatpush2.bf16.msra.mxu0 0
    %3544 = vmatprep.subr.bf16.mxu0 0
    %3545 = vmatpush2.bf16.msra.mxu0 0
    %3546 = vmatprep.subr.bf16.mxu0 0
    %3547 = vmatpush2.bf16.msra.mxu0 0
    %3548 = vmatprep.mubr.bf16.mxu0 0
    %3549 = vmatmul.mubr.bf16.gmra.mxu0 %v3511
    %v3550 = vpop.f32.mrf.mxu0
    %v3551 = vadd.f32 0.0, %v3550
    %v3552 = vpop.f32.mrf.mxu0
    %v3553 = vadd.f32 0.0, %v3552
    %v3554 = vpop.f32.mrf.mxu0
    %v3555 = vpop.f32.mrf.mxu0
    %3556 = vdwg.mxu0
    %3557 = vmatprep.subr.bf16.mxu0 0
    %3558 = vmatpush1.bf16.msra.mxu0 %v3384
    %3559 = vmatprep.subr.bf16.mxu0 0
    %3560 = vmatpush1.bf16.msra.mxu0 %v3381
    %3561 = vmatprep.subr.bf16.mxu0 0
    %3562 = vmatpush1.bf16.msra.mxu0 %v3378
    %3563 = vmatprep.subr.bf16.mxu0 0
    %3564 = vmatpush1.bf16.msra.mxu0 %v3375
    %3565 = vmatprep.subr.bf16.mxu0 0
    %3566 = vmatpush1.bf16.msra.mxu0 %v3372
    %3567 = vmatprep.subr.bf16.mxu0 0
    %3568 = vmatpush1.bf16.msra.mxu0 %v3369
    %3569 = vmatprep.subr.bf16.mxu0 0
    %3570 = vmatpush1.bf16.msra.mxu0 %v3366
    %3571 = vmatprep.subr.bf16.mxu0 0
    %3572 = vmatpush1.bf16.msra.mxu0 %v3363
    %3573 = vmatprep.subr.bf16.mxu0 0
    %3574 = vmatpush2.bf16.msra.mxu0 0
    %3575 = vmatprep.subr.bf16.mxu0 0
    %3576 = vmatpush2.bf16.msra.mxu0 0
    %3577 = vmatprep.subr.bf16.mxu0 0
    %3578 = vmatpush2.bf16.msra.mxu0 0
    %3579 = vmatprep.subr.bf16.mxu0 0
    %3580 = vmatpush2.bf16.msra.mxu0 0
    %3581 = vmatprep.subr.bf16.mxu0 0
    %3582 = vmatpush2.bf16.msra.mxu0 0
    %3583 = vmatprep.subr.bf16.mxu0 0
    %3584 = vmatpush2.bf16.msra.mxu0 0
    %3585 = vmatprep.subr.bf16.mxu0 0
    %3586 = vmatpush2.bf16.msra.mxu0 0
    %3587 = vmatprep.subr.bf16.mxu0 0
    %3588 = vmatpush2.bf16.msra.mxu0 0
    %3589 = vmatprep.mubr.bf16.mxu0 0
    %3590 = vmatmul.mubr.bf16.gmra.mxu0 %v3511
    %v3591 = vpop.f32.mrf.mxu0
    %v3592 = vadd.f32 0.0, %v3591
    %v3593 = vpop.f32.mrf.mxu0
    %v3594 = vpop.f32.mrf.mxu0
    %v3595 = vpop.f32.mrf.mxu0
    %3596 = vdwg.mxu0
    %v3597 = vadd.f32 %v3513, %v3551
    %v3598 = vadd.f32 %v3514, %v3553
    %v3599 = vxor.u32 %v3597, 2147483648
    %v3600 = vxor.u32 %v3598, 2147483648
    %v3601 = vmul.f32 %v3599, 1.442695
    %v3602 = vpow.pop %v3601
    %v3603 = vmul.f32 %v3600, 1.442695
    %v3604 = vpow.pop %v3603
    %v3605 = vadd.f32 %v3602, 1.0
    %v3606 = vadd.f32 %v3604, 1.0
    %v3607 = vrcp.pop %v3605
    %v3608 = vmul.f32 1.0, %v3607
    %v3609 = vrcp.pop %v3606
    %v3610 = vmul.f32 1.0, %v3609
    %v3611 = vadd.f32 %v3592, %v3276
    %v3612 = vmul.f32 %v3608, %v3611
    %v3613 = vadd.f32 %v3515, %v3612
    %v3614 = vtanh.pop %v3613
    %v3615 = vsub.f32 %v3510, %v3614
    %v3616 = vmul.f32 %v3610, %v3615
    %v3617 = vadd.f32 %v3614, %v3616
    %v3618 = vpack.c.bf16 %v3617, %v3617
    %3619 = vst [vmem:[%s816] sm:$0xf] %v3618
    %v3620 = vld [vmem:[%s818] sm:$0xff]
    %v3621 = vld [vmem:[%s818 + $0x8] sm:$0xff]
    %v3622 = vld [vmem:[%s818 + $0x10] sm:$0xff]
    %3623 = vmatprep.subr.bf16.mxu0 %v3383
    %3624 = vmatpush1.bf16.msra.mxu0 %v3382
    %3625 = vmatprep.subr.bf16.mxu0 %v3380
    %3626 = vmatpush1.bf16.msra.mxu0 %v3379
    %3627 = vmatprep.subr.bf16.mxu0 %v3377
    %3628 = vmatpush1.bf16.msra.mxu0 %v3376
    %3629 = vmatprep.subr.bf16.mxu0 %v3374
    %3630 = vmatpush1.bf16.msra.mxu0 %v3373
    %3631 = vmatprep.subr.bf16.mxu0 %v3371
    %3632 = vmatpush1.bf16.msra.mxu0 %v3370
    %3633 = vmatprep.subr.bf16.mxu0 %v3368
    %3634 = vmatpush1.bf16.msra.mxu0 %v3367
    %3635 = vmatprep.subr.bf16.mxu0 %v3365
    %3636 = vmatpush1.bf16.msra.mxu0 %v3364
    %3637 = vmatprep.subr.bf16.mxu0 %v3362
    %3638 = vmatpush1.bf16.msra.mxu0 %v3361
    %3639 = vmatprep.subr.bf16.mxu0 0
    %3640 = vmatpush2.bf16.msra.mxu0 0
    %3641 = vmatprep.subr.bf16.mxu0 0
    %3642 = vmatpush2.bf16.msra.mxu0 0
    %3643 = vmatprep.subr.bf16.mxu0 0
    %3644 = vmatpush2.bf16.msra.mxu0 0
    %3645 = vmatprep.subr.bf16.mxu0 0
    %3646 = vmatpush2.bf16.msra.mxu0 0
    %3647 = vmatprep.subr.bf16.mxu0 0
    %3648 = vmatpush2.bf16.msra.mxu0 0
    %3649 = vmatprep.subr.bf16.mxu0 0
    %3650 = vmatpush2.bf16.msra.mxu0 0
    %3651 = vmatprep.subr.bf16.mxu0 0
    %3652 = vmatpush2.bf16.msra.mxu0 0
    %3653 = vmatprep.subr.bf16.mxu0 0
    %3654 = vmatpush2.bf16.msra.mxu0 0
    %3655 = vmatprep.mubr.bf16.mxu0 0
    %3656 = vmatmul.mubr.bf16.gmra.mxu0 %v3618
    %v3657 = vpop.f32.mrf.mxu0
    %v3658 = vadd.f32 0.0, %v3657
    %v3659 = vpop.f32.mrf.mxu0
    %v3660 = vadd.f32 0.0, %v3659
    %v3661 = vpop.f32.mrf.mxu0
    %v3662 = vpop.f32.mrf.mxu0
    %3663 = vdwg.mxu0
    %3664 = vmatprep.subr.bf16.mxu0 0
    %3665 = vmatpush1.bf16.msra.mxu0 %v3384
    %3666 = vmatprep.subr.bf16.mxu0 0
    %3667 = vmatpush1.bf16.msra.mxu0 %v3381
    %3668 = vmatprep.subr.bf16.mxu0 0
    %3669 = vmatpush1.bf16.msra.mxu0 %v3378
    %3670 = vmatprep.subr.bf16.mxu0 0
    %3671 = vmatpush1.bf16.msra.mxu0 %v3375
    %3672 = vmatprep.subr.bf16.mxu0 0
    %3673 = vmatpush1.bf16.msra.mxu0 %v3372
    %3674 = vmatprep.subr.bf16.mxu0 0
    %3675 = vmatpush1.bf16.msra.mxu0 %v3369
    %3676 = vmatprep.subr.bf16.mxu0 0
    %3677 = vmatpush1.bf16.msra.mxu0 %v3366
    %3678 = vmatprep.subr.bf16.mxu0 0
    %3679 = vmatpush1.bf16.msra.mxu0 %v3363
    %3680 = vmatprep.subr.bf16.mxu0 0
    %3681 = vmatpush2.bf16.msra.mxu0 0
    %3682 = vmatprep.subr.bf16.mxu0 0
    %3683 = vmatpush2.bf16.msra.mxu0 0
    %3684 = vmatprep.subr.bf16.mxu0 0
    %3685 = vmatpush2.bf16.msra.mxu0 0
    %3686 = vmatprep.subr.bf16.mxu0 0
    %3687 = vmatpush2.bf16.msra.mxu0 0
    %3688 = vmatprep.subr.bf16.mxu0 0
    %3689 = vmatpush2.bf16.msra.mxu0 0
    %3690 = vmatprep.subr.bf16.mxu0 0
    %3691 = vmatpush2.bf16.msra.mxu0 0
    %3692 = vmatprep.subr.bf16.mxu0 0
    %3693 = vmatpush2.bf16.msra.mxu0 0
    %3694 = vmatprep.subr.bf16.mxu0 0
    %3695 = vmatpush2.bf16.msra.mxu0 0
    %3696 = vmatprep.mubr.bf16.mxu0 0
    %3697 = vmatmul.mubr.bf16.gmra.mxu0 %v3618
    %v3698 = vpop.f32.mrf.mxu0
    %v3699 = vadd.f32 0.0, %v3698
    %v3700 = vpop.f32.mrf.mxu0
    %v3701 = vpop.f32.mrf.mxu0
    %v3702 = vpop.f32.mrf.mxu0
    %3703 = vdwg.mxu0
    %v3704 = vadd.f32 %v3620, %v3658
    %v3705 = vadd.f32 %v3621, %v3660
    %v3706 = vxor.u32 %v3704, 2147483648
    %v3707 = vxor.u32 %v3705, 2147483648
    %v3708 = vmul.f32 %v3706, 1.442695
    %v3709 = vpow.pop %v3708
    %v3710 = vmul.f32 %v3707, 1.442695
    %v3711 = vpow.pop %v3710
    %v3712 = vadd.f32 %v3709, 1.0
    %v3713 = vadd.f32 %v3711, 1.0
    %v3714 = vrcp.pop %v3712
    %v3715 = vmul.f32 1.0, %v3714
    %v3716 = vrcp.pop %v3713
    %v3717 = vmul.f32 1.0, %v3716
    %v3718 = vadd.f32 %v3699, %v3276
    %v3719 = vmul.f32 %v3715, %v3718
    %v3720 = vadd.f32 %v3622, %v3719
    %v3721 = vtanh.pop %v3720
    %v3722 = vsub.f32 %v3617, %v3721
    %v3723 = vmul.f32 %v3717, %v3722
    %v3724 = vadd.f32 %v3721, %v3723
    %v3725 = vpack.c.bf16 %v3724, %v3724
    %3726 = vst [vmem:[%s925] sm:$0xf] %v3725
    %v3727 = vld [vmem:[%s927] sm:$0xff]
    %v3728 = vld [vmem:[%s927 + $0x8] sm:$0xff]
    %v3729 = vld [vmem:[%s927 + $0x10] sm:$0xff]
    %3730 = vmatprep.subr.bf16.mxu0 %v3383
    %3731 = vmatpush1.bf16.msra.mxu0 %v3382
    %3732 = vmatprep.subr.bf16.mxu0 %v3380
    %3733 = vmatpush1.bf16.msra.mxu0 %v3379
    %3734 = vmatprep.subr.bf16.mxu0 %v3377
    %3735 = vmatpush1.bf16.msra.mxu0 %v3376
    %3736 = vmatprep.subr.bf16.mxu0 %v3374
    %3737 = vmatpush1.bf16.msra.mxu0 %v3373
    %3738 = vmatprep.subr.bf16.mxu0 %v3371
    %3739 = vmatpush1.bf16.msra.mxu0 %v3370
    %3740 = vmatprep.subr.bf16.mxu0 %v3368
    %3741 = vmatpush1.bf16.msra.mxu0 %v3367
    %3742 = vmatprep.subr.bf16.mxu0 %v3365
    %3743 = vmatpush1.bf16.msra.mxu0 %v3364
    %3744 = vmatprep.subr.bf16.mxu0 %v3362
    %3745 = vmatpush1.bf16.msra.mxu0 %v3361
    %3746 = vmatprep.subr.bf16.mxu0 0
    %3747 = vmatpush2.bf16.msra.mxu0 0
    %3748 = vmatprep.subr.bf16.mxu0 0
    %3749 = vmatpush2.bf16.msra.mxu0 0
    %3750 = vmatprep.subr.bf16.mxu0 0
    %3751 = vmatpush2.bf16.msra.mxu0 0
    %3752 = vmatprep.subr.bf16.mxu0 0
    %3753 = vmatpush2.bf16.msra.mxu0 0
    %3754 = vmatprep.subr.bf16.mxu0 0
    %3755 = vmatpush2.bf16.msra.mxu0 0
    %3756 = vmatprep.subr.bf16.mxu0 0
    %3757 = vmatpush2.bf16.msra.mxu0 0
    %3758 = vmatprep.subr.bf16.mxu0 0
    %3759 = vmatpush2.bf16.msra.mxu0 0
    %3760 = vmatprep.subr.bf16.mxu0 0
    %3761 = vmatpush2.bf16.msra.mxu0 0
    %3762 = vmatprep.mubr.bf16.mxu0 0
    %3763 = vmatmul.mubr.bf16.gmra.mxu0 %v3725
    %v3764 = vpop.f32.mrf.mxu0
    %v3765 = vadd.f32 0.0, %v3764
    %v3766 = vpop.f32.mrf.mxu0
    %v3767 = vadd.f32 0.0, %v3766
    %v3768 = vpop.f32.mrf.mxu0
    %v3769 = vpop.f32.mrf.mxu0
    %3770 = vdwg.mxu0
    %3771 = vmatprep.subr.bf16.mxu0 0
    %3772 = vmatpush1.bf16.msra.mxu0 %v3384
    %3773 = vmatprep.subr.bf16.mxu0 0
    %3774 = vmatpush1.bf16.msra.mxu0 %v3381
    %3775 = vmatprep.subr.bf16.mxu0 0
    %3776 = vmatpush1.bf16.msra.mxu0 %v3378
    %3777 = vmatprep.subr.bf16.mxu0 0
    %3778 = vmatpush1.bf16.msra.mxu0 %v3375
    %3779 = vmatprep.subr.bf16.mxu0 0
    %3780 = vmatpush1.bf16.msra.mxu0 %v3372
    %3781 = vmatprep.subr.bf16.mxu0 0
    %3782 = vmatpush1.bf16.msra.mxu0 %v3369
    %3783 = vmatprep.subr.bf16.mxu0 0
    %3784 = vmatpush1.bf16.msra.mxu0 %v3366
    %3785 = vmatprep.subr.bf16.mxu0 0
    %3786 = vmatpush1.bf16.msra.mxu0 %v3363
    %3787 = vmatprep.subr.bf16.mxu0 0
    %3788 = vmatpush2.bf16.msra.mxu0 0
    %3789 = vmatprep.subr.bf16.mxu0 0
    %3790 = vmatpush2.bf16.msra.mxu0 0
    %3791 = vmatprep.subr.bf16.mxu0 0
    %3792 = vmatpush2.bf16.msra.mxu0 0
    %3793 = vmatprep.subr.bf16.mxu0 0
    %3794 = vmatpush2.bf16.msra.mxu0 0
    %3795 = vmatprep.subr.bf16.mxu0 0
    %3796 = vmatpush2.bf16.msra.mxu0 0
    %3797 = vmatprep.subr.bf16.mxu0 0
    %3798 = vmatpush2.bf16.msra.mxu0 0
    %3799 = vmatprep.subr.bf16.mxu0 0
    %3800 = vmatpush2.bf16.msra.mxu0 0
    %3801 = vmatprep.subr.bf16.mxu0 0
    %3802 = vmatpush2.bf16.msra.mxu0 0
    %3803 = vmatprep.mubr.bf16.mxu0 0
    %3804 = vmatmul.mubr.bf16.gmra.mxu0 %v3725
    %v3805 = vpop.f32.mrf.mxu0
    %v3806 = vadd.f32 0.0, %v3805
    %v3807 = vpop.f32.mrf.mxu0
    %v3808 = vpop.f32.mrf.mxu0
    %v3809 = vpop.f32.mrf.mxu0
    %3810 = vdwg.mxu0
    %v3811 = vadd.f32 %v3727, %v3765
    %v3812 = vadd.f32 %v3728, %v3767
    %v3813 = vxor.u32 %v3811, 2147483648
    %v3814 = vxor.u32 %v3812, 2147483648
    %v3815 = vmul.f32 %v3813, 1.442695
    %v3816 = vpow.pop %v3815
    %v3817 = vmul.f32 %v3814, 1.442695
    %v3818 = vpow.pop %v3817
    %v3819 = vadd.f32 %v3816, 1.0
    %v3820 = vadd.f32 %v3818, 1.0
    %v3821 = vrcp.pop %v3819
    %v3822 = vmul.f32 1.0, %v3821
    %v3823 = vrcp.pop %v3820
    %v3824 = vmul.f32 1.0, %v3823
    %v3825 = vadd.f32 %v3806, %v3276
    %v3826 = vmul.f32 %v3822, %v3825
    %v3827 = vadd.f32 %v3729, %v3826
    %v3828 = vtanh.pop %v3827
    %v3829 = vsub.f32 %v3724, %v3828
    %v3830 = vmul.f32 %v3824, %v3829
    %v3831 = vadd.f32 %v3828, %v3830
    %v3832 = vpack.c.bf16 %v3831, %v3831
    %3833 = vst [vmem:[%s1034] sm:$0xf] %v3832
    %v3834 = vld [vmem:[%s1036] sm:$0xff]
    %v3835 = vld [vmem:[%s1036 + $0x8] sm:$0xff]
    %v3836 = vld [vmem:[%s1036 + $0x10] sm:$0xff]
    %3837 = vmatprep.subr.bf16.mxu0 %v3383
    %3838 = vmatpush1.bf16.msra.mxu0 %v3382
    %3839 = vmatprep.subr.bf16.mxu0 %v3380
    %3840 = vmatpush1.bf16.msra.mxu0 %v3379
    %3841 = vmatprep.subr.bf16.mxu0 %v3377
    %3842 = vmatpush1.bf16.msra.mxu0 %v3376
    %3843 = vmatprep.subr.bf16.mxu0 %v3374
    %3844 = vmatpush1.bf16.msra.mxu0 %v3373
    %3845 = vmatprep.subr.bf16.mxu0 %v3371
    %3846 = vmatpush1.bf16.msra.mxu0 %v3370
    %3847 = vmatprep.subr.bf16.mxu0 %v3368
    %3848 = vmatpush1.bf16.msra.mxu0 %v3367
    %3849 = vmatprep.subr.bf16.mxu0 %v3365
    %3850 = vmatpush1.bf16.msra.mxu0 %v3364
    %3851 = vmatprep.subr.bf16.mxu0 %v3362
    %3852 = vmatpush1.bf16.msra.mxu0 %v3361
    %3853 = vmatprep.subr.bf16.mxu0 0
    %3854 = vmatpush2.bf16.msra.mxu0 0
    %3855 = vmatprep.subr.bf16.mxu0 0
    %3856 = vmatpush2.bf16.msra.mxu0 0
    %3857 = vmatprep.subr.bf16.mxu0 0
    %3858 = vmatpush2.bf16.msra.mxu0 0
    %3859 = vmatprep.subr.bf16.mxu0 0
    %3860 = vmatpush2.bf16.msra.mxu0 0
    %3861 = vmatprep.subr.bf16.mxu0 0
    %3862 = vmatpush2.bf16.msra.mxu0 0
    %3863 = vmatprep.subr.bf16.mxu0 0
    %3864 = vmatpush2.bf16.msra.mxu0 0
    %3865 = vmatprep.subr.bf16.mxu0 0
    %3866 = vmatpush2.bf16.msra.mxu0 0
    %3867 = vmatprep.subr.bf16.mxu0 0
    %3868 = vmatpush2.bf16.msra.mxu0 0
    %3869 = vmatprep.mubr.bf16.mxu0 0
    %3870 = vmatmul.mubr.bf16.gmra.mxu0 %v3832
    %v3871 = vpop.f32.mrf.mxu0
    %v3872 = vadd.f32 0.0, %v3871
    %v3873 = vpop.f32.mrf.mxu0
    %v3874 = vadd.f32 0.0, %v3873
    %v3875 = vpop.f32.mrf.mxu0
    %v3876 = vpop.f32.mrf.mxu0
    %3877 = vdwg.mxu0
    %3878 = vmatprep.subr.bf16.mxu0 0
    %3879 = vmatpush1.bf16.msra.mxu0 %v3384
    %3880 = vmatprep.subr.bf16.mxu0 0
    %3881 = vmatpush1.bf16.msra.mxu0 %v3381
    %3882 = vmatprep.subr.bf16.mxu0 0
    %3883 = vmatpush1.bf16.msra.mxu0 %v3378
    %3884 = vmatprep.subr.bf16.mxu0 0
    %3885 = vmatpush1.bf16.msra.mxu0 %v3375
    %3886 = vmatprep.subr.bf16.mxu0 0
    %3887 = vmatpush1.bf16.msra.mxu0 %v3372
    %3888 = vmatprep.subr.bf16.mxu0 0
    %3889 = vmatpush1.bf16.msra.mxu0 %v3369
    %3890 = vmatprep.subr.bf16.mxu0 0
    %3891 = vmatpush1.bf16.msra.mxu0 %v3366
    %3892 = vmatprep.subr.bf16.mxu0 0
    %3893 = vmatpush1.bf16.msra.mxu0 %v3363
    %3894 = vmatprep.subr.bf16.mxu0 0
    %3895 = vmatpush2.bf16.msra.mxu0 0
    %3896 = vmatprep.subr.bf16.mxu0 0
    %3897 = vmatpush2.bf16.msra.mxu0 0
    %3898 = vmatprep.subr.bf16.mxu0 0
    %3899 = vmatpush2.bf16.msra.mxu0 0
    %3900 = vmatprep.subr.bf16.mxu0 0
    %3901 = vmatpush2.bf16.msra.mxu0 0
    %3902 = vmatprep.subr.bf16.mxu0 0
    %3903 = vmatpush2.bf16.msra.mxu0 0
    %3904 = vmatprep.subr.bf16.mxu0 0
    %3905 = vmatpush2.bf16.msra.mxu0 0
    %3906 = vmatprep.subr.bf16.mxu0 0
    %3907 = vmatpush2.bf16.msra.mxu0 0
    %3908 = vmatprep.subr.bf16.mxu0 0
    %3909 = vmatpush2.bf16.msra.mxu0 0
    %3910 = vmatprep.mubr.bf16.mxu0 0
    %3911 = vmatmul.mubr.bf16.gmra.mxu0 %v3832
    %v3912 = vpop.f32.mrf.mxu0
    %v3913 = vadd.f32 0.0, %v3912
    %v3914 = vpop.f32.mrf.mxu0
    %v3915 = vpop.f32.mrf.mxu0
    %v3916 = vpop.f32.mrf.mxu0
    %3917 = vdwg.mxu0
    %v3918 = vadd.f32 %v3834, %v3872
    %v3919 = vadd.f32 %v3835, %v3874
    %v3920 = vxor.u32 %v3918, 2147483648
    %v3921 = vxor.u32 %v3919, 2147483648
    %v3922 = vmul.f32 %v3920, 1.442695
    %v3923 = vpow.pop %v3922
    %v3924 = vmul.f32 %v3921, 1.442695
    %v3925 = vpow.pop %v3924
    %v3926 = vadd.f32 %v3923, 1.0
    %v3927 = vadd.f32 %v3925, 1.0
    %v3928 = vrcp.pop %v3926
    %v3929 = vmul.f32 1.0, %v3928
    %v3930 = vrcp.pop %v3927
    %v3931 = vmul.f32 1.0, %v3930
    %v3932 = vadd.f32 %v3913, %v3276
    %v3933 = vmul.f32 %v3929, %v3932
    %v3934 = vadd.f32 %v3836, %v3933
    %v3935 = vtanh.pop %v3934
    %v3936 = vsub.f32 %v3831, %v3935
    %v3937 = vmul.f32 %v3931, %v3936
    %v3938 = vadd.f32 %v3935, %v3937
    %v3939 = vpack.c.bf16 %v3938, %v3938
    %3940 = vst [vmem:[%s1143] sm:$0xf] %v3939
    %v3941 = vld [vmem:[%s1145] sm:$0xff]
    %v3942 = vld [vmem:[%s1145 + $0x8] sm:$0xff]
    %v3943 = vld [vmem:[%s1145 + $0x10] sm:$0xff]
    %3944 = vmatprep.subr.bf16.mxu0 %v3383
    %3945 = vmatpush1.bf16.msra.mxu0 %v3382
    %3946 = vmatprep.subr.bf16.mxu0 %v3380
    %3947 = vmatpush1.bf16.msra.mxu0 %v3379
    %3948 = vmatprep.subr.bf16.mxu0 %v3377
    %3949 = vmatpush1.bf16.msra.mxu0 %v3376
    %3950 = vmatprep.subr.bf16.mxu0 %v3374
    %3951 = vmatpush1.bf16.msra.mxu0 %v3373
    %3952 = vmatprep.subr.bf16.mxu0 %v3371
    %3953 = vmatpush1.bf16.msra.mxu0 %v3370
    %3954 = vmatprep.subr.bf16.mxu0 %v3368
    %3955 = vmatpush1.bf16.msra.mxu0 %v3367
    %3956 = vmatprep.subr.bf16.mxu0 %v3365
    %3957 = vmatpush1.bf16.msra.mxu0 %v3364
    %3958 = vmatprep.subr.bf16.mxu0 %v3362
    %3959 = vmatpush1.bf16.msra.mxu0 %v3361
    %3960 = vmatprep.subr.bf16.mxu0 0
    %3961 = vmatpush2.bf16.msra.mxu0 0
    %3962 = vmatprep.subr.bf16.mxu0 0
    %3963 = vmatpush2.bf16.msra.mxu0 0
    %3964 = vmatprep.subr.bf16.mxu0 0
    %3965 = vmatpush2.bf16.msra.mxu0 0
    %3966 = vmatprep.subr.bf16.mxu0 0
    %3967 = vmatpush2.bf16.msra.mxu0 0
    %3968 = vmatprep.subr.bf16.mxu0 0
    %3969 = vmatpush2.bf16.msra.mxu0 0
    %3970 = vmatprep.subr.bf16.mxu0 0
    %3971 = vmatpush2.bf16.msra.mxu0 0
    %3972 = vmatprep.subr.bf16.mxu0 0
    %3973 = vmatpush2.bf16.msra.mxu0 0
    %3974 = vmatprep.subr.bf16.mxu0 0
    %3975 = vmatpush2.bf16.msra.mxu0 0
    %3976 = vmatprep.mubr.bf16.mxu0 0
    %3977 = vmatmul.mubr.bf16.gmra.mxu0 %v3939
    %v3978 = vpop.f32.mrf.mxu0
    %v3979 = vadd.f32 0.0, %v3978
    %v3980 = vpop.f32.mrf.mxu0
    %v3981 = vadd.f32 0.0, %v3980
    %v3982 = vpop.f32.mrf.mxu0
    %v3983 = vpop.f32.mrf.mxu0
    %3984 = vdwg.mxu0
    %3985 = vmatprep.subr.bf16.mxu0 0
    %3986 = vmatpush1.bf16.msra.mxu0 %v3384
    %3987 = vmatprep.subr.bf16.mxu0 0
    %3988 = vmatpush1.bf16.msra.mxu0 %v3381
    %3989 = vmatprep.subr.bf16.mxu0 0
    %3990 = vmatpush1.bf16.msra.mxu0 %v3378
    %3991 = vmatprep.subr.bf16.mxu0 0
    %3992 = vmatpush1.bf16.msra.mxu0 %v3375
    %3993 = vmatprep.subr.bf16.mxu0 0
    %3994 = vmatpush1.bf16.msra.mxu0 %v3372
    %3995 = vmatprep.subr.bf16.mxu0 0
    %3996 = vmatpush1.bf16.msra.mxu0 %v3369
    %3997 = vmatprep.subr.bf16.mxu0 0
    %3998 = vmatpush1.bf16.msra.mxu0 %v3366
    %3999 = vmatprep.subr.bf16.mxu0 0
    %4000 = vmatpush1.bf16.msra.mxu0 %v3363
    %4001 = vmatprep.subr.bf16.mxu0 0
    %4002 = vmatpush2.bf16.msra.mxu0 0
    %4003 = vmatprep.subr.bf16.mxu0 0
    %4004 = vmatpush2.bf16.msra.mxu0 0
    %4005 = vmatprep.subr.bf16.mxu0 0
    %4006 = vmatpush2.bf16.msra.mxu0 0
    %4007 = vmatprep.subr.bf16.mxu0 0
    %4008 = vmatpush2.bf16.msra.mxu0 0
    %4009 = vmatprep.subr.bf16.mxu0 0
    %4010 = vmatpush2.bf16.msra.mxu0 0
    %4011 = vmatprep.subr.bf16.mxu0 0
    %4012 = vmatpush2.bf16.msra.mxu0 0
    %4013 = vmatprep.subr.bf16.mxu0 0
    %4014 = vmatpush2.bf16.msra.mxu0 0
    %4015 = vmatprep.subr.bf16.mxu0 0
    %4016 = vmatpush2.bf16.msra.mxu0 0
    %4017 = vmatprep.mubr.bf16.mxu0 0
    %4018 = vmatmul.mubr.bf16.gmra.mxu0 %v3939
    %v4019 = vpop.f32.mrf.mxu0
    %v4020 = vadd.f32 0.0, %v4019
    %v4021 = vpop.f32.mrf.mxu0
    %v4022 = vpop.f32.mrf.mxu0
    %v4023 = vpop.f32.mrf.mxu0
    %4024 = vdwg.mxu0
    %v4025 = vadd.f32 %v3941, %v3979
    %v4026 = vadd.f32 %v3942, %v3981
    %v4027 = vxor.u32 %v4025, 2147483648
    %v4028 = vxor.u32 %v4026, 2147483648
    %v4029 = vmul.f32 %v4027, 1.442695
    %v4030 = vpow.pop %v4029
    %v4031 = vmul.f32 %v4028, 1.442695
    %v4032 = vpow.pop %v4031
    %v4033 = vadd.f32 %v4030, 1.0
    %v4034 = vadd.f32 %v4032, 1.0
    %v4035 = vrcp.pop %v4033
    %v4036 = vmul.f32 1.0, %v4035
    %v4037 = vrcp.pop %v4034
    %v4038 = vmul.f32 1.0, %v4037
    %v4039 = vadd.f32 %v4020, %v3276
    %v4040 = vmul.f32 %v4036, %v4039
    %v4041 = vadd.f32 %v3943, %v4040
    %v4042 = vtanh.pop %v4041
    %v4043 = vsub.f32 %v3938, %v4042
    %v4044 = vmul.f32 %v4038, %v4043
    %v4045 = vadd.f32 %v4042, %v4044
    %v4046 = vpack.c.bf16 %v4045, %v4045
    %4047 = vst [vmem:[%s1252] sm:$0xf] %v4046
    %v4048 = vld [vmem:[%s1254] sm:$0xff]
    %v4049 = vld [vmem:[%s1254 + $0x8] sm:$0xff]
    %v4050 = vld [vmem:[%s1254 + $0x10] sm:$0xff]
    %4051 = vmatprep.subr.bf16.mxu0 %v3383
    %4052 = vmatpush1.bf16.msra.mxu0 %v3382
    %4053 = vmatprep.subr.bf16.mxu0 %v3380
    %4054 = vmatpush1.bf16.msra.mxu0 %v3379
    %4055 = vmatprep.subr.bf16.mxu0 %v3377
    %4056 = vmatpush1.bf16.msra.mxu0 %v3376
    %4057 = vmatprep.subr.bf16.mxu0 %v3374
    %4058 = vmatpush1.bf16.msra.mxu0 %v3373
    %4059 = vmatprep.subr.bf16.mxu0 %v3371
    %4060 = vmatpush1.bf16.msra.mxu0 %v3370
    %4061 = vmatprep.subr.bf16.mxu0 %v3368
    %4062 = vmatpush1.bf16.msra.mxu0 %v3367
    %4063 = vmatprep.subr.bf16.mxu0 %v3365
    %4064 = vmatpush1.bf16.msra.mxu0 %v3364
    %4065 = vmatprep.subr.bf16.mxu0 %v3362
    %4066 = vmatpush1.bf16.msra.mxu0 %v3361
    %4067 = vmatprep.subr.bf16.mxu0 0
    %4068 = vmatpush2.bf16.msra.mxu0 0
    %4069 = vmatprep.subr.bf16.mxu0 0
    %4070 = vmatpush2.bf16.msra.mxu0 0
    %4071 = vmatprep.subr.bf16.mxu0 0
    %4072 = vmatpush2.bf16.msra.mxu0 0
    %4073 = vmatprep.subr.bf16.mxu0 0
    %4074 = vmatpush2.bf16.msra.mxu0 0
    %4075 = vmatprep.subr.bf16.mxu0 0
    %4076 = vmatpush2.bf16.msra.mxu0 0
    %4077 = vmatprep.subr.bf16.mxu0 0
    %4078 = vmatpush2.bf16.msra.mxu0 0
    %4079 = vmatprep.subr.bf16.mxu0 0
    %4080 = vmatpush2.bf16.msra.mxu0 0
    %4081 = vmatprep.subr.bf16.mxu0 0
    %4082 = vmatpush2.bf16.msra.mxu0 0
    %4083 = vmatprep.mubr.bf16.mxu0 0
    %4084 = vmatmul.mubr.bf16.gmra.mxu0 %v4046
    %v4085 = vpop.f32.mrf.mxu0
    %v4086 = vadd.f32 0.0, %v4085
    %v4087 = vpop.f32.mrf.mxu0
    %v4088 = vadd.f32 0.0, %v4087
    %v4089 = vpop.f32.mrf.mxu0
    %v4090 = vpop.f32.mrf.mxu0
    %4091 = vdwg.mxu0
    %4092 = vmatprep.subr.bf16.mxu0 0
    %4093 = vmatpush1.bf16.msra.mxu0 %v3384
    %4094 = vmatprep.subr.bf16.mxu0 0
    %4095 = vmatpush1.bf16.msra.mxu0 %v3381
    %4096 = vmatprep.subr.bf16.mxu0 0
    %4097 = vmatpush1.bf16.msra.mxu0 %v3378
    %4098 = vmatprep.subr.bf16.mxu0 0
    %4099 = vmatpush1.bf16.msra.mxu0 %v3375
    %4100 = vmatprep.subr.bf16.mxu0 0
    %4101 = vmatpush1.bf16.msra.mxu0 %v3372
    %4102 = vmatprep.subr.bf16.mxu0 0
    %4103 = vmatpush1.bf16.msra.mxu0 %v3369
    %4104 = vmatprep.subr.bf16.mxu0 0
    %4105 = vmatpush1.bf16.msra.mxu0 %v3366
    %4106 = vmatprep.subr.bf16.mxu0 0
    %4107 = vmatpush1.bf16.msra.mxu0 %v3363
    %4108 = vmatprep.subr.bf16.mxu0 0
    %4109 = vmatpush2.bf16.msra.mxu0 0
    %4110 = vmatprep.subr.bf16.mxu0 0
    %4111 = vmatpush2.bf16.msra.mxu0 0
    %4112 = vmatprep.subr.bf16.mxu0 0
    %4113 = vmatpush2.bf16.msra.mxu0 0
    %4114 = vmatprep.subr.bf16.mxu0 0
    %4115 = vmatpush2.bf16.msra.mxu0 0
    %4116 = vmatprep.subr.bf16.mxu0 0
    %4117 = vmatpush2.bf16.msra.mxu0 0
    %4118 = vmatprep.subr.bf16.mxu0 0
    %4119 = vmatpush2.bf16.msra.mxu0 0
    %4120 = vmatprep.subr.bf16.mxu0 0
    %4121 = vmatpush2.bf16.msra.mxu0 0
    %4122 = vmatprep.subr.bf16.mxu0 0
    %4123 = vmatpush2.bf16.msra.mxu0 0
    %4124 = vmatprep.mubr.bf16.mxu0 0
    %4125 = vmatmul.mubr.bf16.gmra.mxu0 %v4046
    %v4126 = vpop.f32.mrf.mxu0
    %v4127 = vadd.f32 0.0, %v4126
    %v4128 = vpop.f32.mrf.mxu0
    %v4129 = vpop.f32.mrf.mxu0
    %v4130 = vpop.f32.mrf.mxu0
    %4131 = vdwg.mxu0
    %v4132 = vadd.f32 %v4048, %v4086
    %v4133 = vadd.f32 %v4049, %v4088
    %v4134 = vxor.u32 %v4132, 2147483648
    %v4135 = vxor.u32 %v4133, 2147483648
    %v4136 = vmul.f32 %v4134, 1.442695
    %v4137 = vpow.pop %v4136
    %v4138 = vmul.f32 %v4135, 1.442695
    %v4139 = vpow.pop %v4138
    %v4140 = vadd.f32 %v4137, 1.0
    %v4141 = vadd.f32 %v4139, 1.0
    %v4142 = vrcp.pop %v4140
    %v4143 = vmul.f32 1.0, %v4142
    %v4144 = vrcp.pop %v4141
    %v4145 = vmul.f32 1.0, %v4144
    %v4146 = vadd.f32 %v4127, %v3276
    %v4147 = vmul.f32 %v4143, %v4146
    %v4148 = vadd.f32 %v4050, %v4147
    %v4149 = vtanh.pop %v4148
    %v4150 = vsub.f32 %v4045, %v4149
    %v4151 = vmul.f32 %v4145, %v4150
    %v4152 = vadd.f32 %v4149, %v4151
    %v4153 = vpack.c.bf16 %v4152, %v4152
    %4154 = vst [vmem:[%s1361] sm:$0xf] %v4153
    %v4155 = vld [vmem:[%s1363] sm:$0xff]
    %v4156 = vld [vmem:[%s1363 + $0x8] sm:$0xff]
    %v4157 = vld [vmem:[%s1363 + $0x10] sm:$0xff]
    %4158 = vmatprep.subr.bf16.mxu0 %v3383
    %4159 = vmatpush1.bf16.msra.mxu0 %v3382
    %4160 = vmatprep.subr.bf16.mxu0 %v3380
    %4161 = vmatpush1.bf16.msra.mxu0 %v3379
    %4162 = vmatprep.subr.bf16.mxu0 %v3377
    %4163 = vmatpush1.bf16.msra.mxu0 %v3376
    %4164 = vmatprep.subr.bf16.mxu0 %v3374
    %4165 = vmatpush1.bf16.msra.mxu0 %v3373
    %4166 = vmatprep.subr.bf16.mxu0 %v3371
    %4167 = vmatpush1.bf16.msra.mxu0 %v3370
    %4168 = vmatprep.subr.bf16.mxu0 %v3368
    %4169 = vmatpush1.bf16.msra.mxu0 %v3367
    %4170 = vmatprep.subr.bf16.mxu0 %v3365
    %4171 = vmatpush1.bf16.msra.mxu0 %v3364
    %4172 = vmatprep.subr.bf16.mxu0 %v3362
    %4173 = vmatpush1.bf16.msra.mxu0 %v3361
    %4174 = vmatprep.subr.bf16.mxu0 0
    %4175 = vmatpush2.bf16.msra.mxu0 0
    %4176 = vmatprep.subr.bf16.mxu0 0
    %4177 = vmatpush2.bf16.msra.mxu0 0
    %4178 = vmatprep.subr.bf16.mxu0 0
    %4179 = vmatpush2.bf16.msra.mxu0 0
    %4180 = vmatprep.subr.bf16.mxu0 0
    %4181 = vmatpush2.bf16.msra.mxu0 0
    %4182 = vmatprep.subr.bf16.mxu0 0
    %4183 = vmatpush2.bf16.msra.mxu0 0
    %4184 = vmatprep.subr.bf16.mxu0 0
    %4185 = vmatpush2.bf16.msra.mxu0 0
    %4186 = vmatprep.subr.bf16.mxu0 0
    %4187 = vmatpush2.bf16.msra.mxu0 0
    %4188 = vmatprep.subr.bf16.mxu0 0
    %4189 = vmatpush2.bf16.msra.mxu0 0
    %4190 = vmatprep.mubr.bf16.mxu0 0
    %4191 = vmatmul.mubr.bf16.gmra.mxu0 %v4153
    %v4192 = vpop.f32.mrf.mxu0
    %v4193 = vadd.f32 0.0, %v4192
    %v4194 = vpop.f32.mrf.mxu0
    %v4195 = vadd.f32 0.0, %v4194
    %v4196 = vpop.f32.mrf.mxu0
    %v4197 = vpop.f32.mrf.mxu0
    %4198 = vdwg.mxu0
    %4199 = vmatprep.subr.bf16.mxu0 0
    %4200 = vmatpush1.bf16.msra.mxu0 %v3384
    %4201 = vmatprep.subr.bf16.mxu0 0
    %4202 = vmatpush1.bf16.msra.mxu0 %v3381
    %4203 = vmatprep.subr.bf16.mxu0 0
    %4204 = vmatpush1.bf16.msra.mxu0 %v3378
    %4205 = vmatprep.subr.bf16.mxu0 0
    %4206 = vmatpush1.bf16.msra.mxu0 %v3375
    %4207 = vmatprep.subr.bf16.mxu0 0
    %4208 = vmatpush1.bf16.msra.mxu0 %v3372
    %4209 = vmatprep.subr.bf16.mxu0 0
    %4210 = vmatpush1.bf16.msra.mxu0 %v3369
    %4211 = vmatprep.subr.bf16.mxu0 0
    %4212 = vmatpush1.bf16.msra.mxu0 %v3366
    %4213 = vmatprep.subr.bf16.mxu0 0
    %4214 = vmatpush1.bf16.msra.mxu0 %v3363
    %4215 = vmatprep.subr.bf16.mxu0 0
    %4216 = vmatpush2.bf16.msra.mxu0 0
    %4217 = vmatprep.subr.bf16.mxu0 0
    %4218 = vmatpush2.bf16.msra.mxu0 0
    %4219 = vmatprep.subr.bf16.mxu0 0
    %4220 = vmatpush2.bf16.msra.mxu0 0
    %4221 = vmatprep.subr.bf16.mxu0 0
    %4222 = vmatpush2.bf16.msra.mxu0 0
    %4223 = vmatprep.subr.bf16.mxu0 0
    %4224 = vmatpush2.bf16.msra.mxu0 0
    %4225 = vmatprep.subr.bf16.mxu0 0
    %4226 = vmatpush2.bf16.msra.mxu0 0
    %4227 = vmatprep.subr.bf16.mxu0 0
    %4228 = vmatpush2.bf16.msra.mxu0 0
    %4229 = vmatprep.subr.bf16.mxu0 0
    %4230 = vmatpush2.bf16.msra.mxu0 0
    %4231 = vmatprep.mubr.bf16.mxu0 0
    %4232 = vmatmul.mubr.bf16.gmra.mxu0 %v4153
    %v4233 = vpop.f32.mrf.mxu0
    %v4234 = vadd.f32 0.0, %v4233
    %v4235 = vpop.f32.mrf.mxu0
    %v4236 = vpop.f32.mrf.mxu0
    %v4237 = vpop.f32.mrf.mxu0
    %4238 = vdwg.mxu0
    %v4239 = vadd.f32 %v4155, %v4193
    %v4240 = vadd.f32 %v4156, %v4195
    %v4241 = vxor.u32 %v4239, 2147483648
    %v4242 = vxor.u32 %v4240, 2147483648
    %v4243 = vmul.f32 %v4241, 1.442695
    %v4244 = vpow.pop %v4243
    %v4245 = vmul.f32 %v4242, 1.442695
    %v4246 = vpow.pop %v4245
    %v4247 = vadd.f32 %v4244, 1.0
    %v4248 = vadd.f32 %v4246, 1.0
    %v4249 = vrcp.pop %v4247
    %v4250 = vmul.f32 1.0, %v4249
    %v4251 = vrcp.pop %v4248
    %v4252 = vmul.f32 1.0, %v4251
    %v4253 = vadd.f32 %v4234, %v3276
    %v4254 = vmul.f32 %v4250, %v4253
    %v4255 = vadd.f32 %v4157, %v4254
    %v4256 = vtanh.pop %v4255
    %v4257 = vsub.f32 %v4152, %v4256
    %v4258 = vmul.f32 %v4252, %v4257
    %v4259 = vadd.f32 %v4256, %v4258
    %v4260 = vpack.c.bf16 %v4259, %v4259
    %4261 = vst [vmem:[%s1470] sm:$0xf] %v4260
    %4262 = vst [vmem:[#allocation3 + $0x10] sm:$0xff] %v4259
    %v4263 = vld [vmem:[#allocation4] sm:$0xf]
    %v4264 = vld [vmem:[#allocation4 + $0x4] sm:$0xf]
    %v4265 = vld [vmem:[#allocation4 + $0x8] sm:$0xf]
    %v4266 = vld [vmem:[#allocation4 + $0xc] sm:$0xf]
    %v4267 = vld [vmem:[#allocation4 + $0x10] sm:$0xf]
    %v4268 = vld [vmem:[#allocation4 + $0x14] sm:$0xf]
    %v4269 = vld [vmem:[#allocation4 + $0x18] sm:$0xf]
    %v4270 = vld [vmem:[#allocation4 + $0x1c] sm:$0xf]
    %v4271 = vld [vmem:[%s13] sm:$0xff]
    %v4272 = vld [vmem:[%s13 + $0x8] sm:$0xf]
    %v4273 = vld [vmem:[%s13 + $0xc] sm:$0xff]
    %v4274 = vld [vmem:[%s13 + $0x14] sm:$0xf]
    %v4275 = vld [vmem:[%s13 + $0x18] sm:$0xff]
    %v4276 = vld [vmem:[%s13 + $0x20] sm:$0xf]
    %v4277 = vld [vmem:[%s13 + $0x24] sm:$0xff]
    %v4278 = vld [vmem:[%s13 + $0x2c] sm:$0xf]
    %v4279 = vld [vmem:[%s13 + $0x30] sm:$0xff]
    %v4280 = vld [vmem:[%s13 + $0x38] sm:$0xf]
    %v4281 = vld [vmem:[%s13 + $0x3c] sm:$0xff]
    %v4282 = vld [vmem:[%s13 + $0x44] sm:$0xf]
    %v4283 = vld [vmem:[%s13 + $0x48] sm:$0xff]
    %v4284 = vld [vmem:[%s13 + $0x50] sm:$0xf]
    %v4285 = vld [vmem:[%s13 + $0x54] sm:$0xff]
    %v4286 = vld [vmem:[%s13 + $0x5c] sm:$0xf]
    %v4287 = vld [vmem:[%s13 + $0x60] sm:$0xff]
    %v4288 = vld [vmem:[%s13 + $0x68] sm:$0xf]
    %v4289 = vld [vmem:[%s13 + $0x6c] sm:$0xff]
    %v4290 = vld [vmem:[%s13 + $0x74] sm:$0xf]
    %v4291 = vld [vmem:[%s13 + $0x78] sm:$0xff]
    %v4292 = vld [vmem:[%s13 + $0x80] sm:$0xf]
    %v4293 = vld [vmem:[%s13 + $0x84] sm:$0xff]
    %v4294 = vld [vmem:[%s13 + $0x8c] sm:$0xf]
    %v4295 = vld [vmem:[%s13 + $0x90] sm:$0xff]
    %v4296 = vld [vmem:[%s13 + $0x98] sm:$0xf]
    %v4297 = vld [vmem:[%s13 + $0x9c] sm:$0xff]
    %v4298 = vld [vmem:[%s13 + $0xa4] sm:$0xf]
    %v4299 = vld [vmem:[%s13 + $0xa8] sm:$0xff]
    %v4300 = vld [vmem:[%s13 + $0xb0] sm:$0xf]
    %v4301 = vld [vmem:[%s13 + $0xb4] sm:$0xff]
    %v4302 = vld [vmem:[%s13 + $0xbc] sm:$0xf]
    %v4303 = vld [vmem:[%s15] sm:$0x7]
    %v4305 = vlaneseq
    %v4306 = vshrl.u32 %v4305, 7
    %v4307 = vsub.s32 0, %v4306
    %v4308 = vrot.slane %v4303, %v4307
    %v4309 = vlaneseq
    %v4310 = vshrl.u32 %v4309, 7
    %v4311 = vsub.s32 1, %v4310
    %v4312 = vrot.slane %v4303, %v4311
    %v4313 = vlaneseq
    %v4314 = vshrl.u32 %v4313, 7
    %v4315 = vsub.s32 2, %v4314
    %v4316 = vrot.slane %v4303, %v4315
    %v4328 = vunpack.c.l.b16 %v4263
    %v4329 = vunpack.c.l.b16 %v4264
    %v4330 = vunpack.c.l.b16 %v4265
    %v4331 = vunpack.c.l.b16 %v4266
    %v4332 = vunpack.c.l.b16 %v4267
    %v4333 = vunpack.c.l.b16 %v4268
    %v4334 = vunpack.c.l.b16 %v4269
    %v4335 = vunpack.c.l.b16 %v4270
    %v4336 = vpack.c.b16 %v4329, %v4328
    %v4337 = vpack.c.b16 %v4331, %v4330
    %v4338 = vpack.c.b16 %v4333, %v4332
    %v4339 = vpack.c.b16 %v4335, %v4334
    %v4376 = vunpack.c.l.b16 %v4271
    %v4377 = vunpack.c.h.b16 %v4271
    %v4378 = vunpack.c.l.b16 %v4272
    %v4379 = vunpack.c.l.b16 %v4273
    %v4380 = vunpack.c.h.b16 %v4273
    %v4381 = vunpack.c.l.b16 %v4274
    %v4382 = vunpack.c.l.b16 %v4275
    %v4383 = vunpack.c.h.b16 %v4275
    %v4384 = vunpack.c.l.b16 %v4276
    %v4385 = vunpack.c.l.b16 %v4277
    %v4386 = vunpack.c.h.b16 %v4277
    %v4387 = vunpack.c.l.b16 %v4278
    %v4388 = vunpack.c.l.b16 %v4279
    %v4389 = vunpack.c.h.b16 %v4279
    %v4390 = vunpack.c.l.b16 %v4280
    %v4391 = vunpack.c.l.b16 %v4281
    %v4392 = vunpack.c.h.b16 %v4281
    %v4393 = vunpack.c.l.b16 %v4282
    %v4394 = vunpack.c.l.b16 %v4283
    %v4395 = vunpack.c.h.b16 %v4283
    %v4396 = vunpack.c.l.b16 %v4284
    %v4397 = vunpack.c.l.b16 %v4285
    %v4398 = vunpack.c.h.b16 %v4285
    %v4399 = vunpack.c.l.b16 %v4286
    %v4400 = vunpack.c.l.b16 %v4287
    %v4401 = vunpack.c.h.b16 %v4287
    %v4402 = vunpack.c.l.b16 %v4288
    %v4403 = vunpack.c.l.b16 %v4289
    %v4404 = vunpack.c.h.b16 %v4289
    %v4405 = vunpack.c.l.b16 %v4290
    %v4406 = vunpack.c.l.b16 %v4291
    %v4407 = vunpack.c.h.b16 %v4291
    %v4408 = vunpack.c.l.b16 %v4292
    %v4409 = vunpack.c.l.b16 %v4293
    %v4410 = vunpack.c.h.b16 %v4293
    %v4411 = vunpack.c.l.b16 %v4294
    %v4412 = vunpack.c.l.b16 %v4295
    %v4413 = vunpack.c.h.b16 %v4295
    %v4414 = vunpack.c.l.b16 %v4296
    %v4415 = vunpack.c.l.b16 %v4297
    %v4416 = vunpack.c.h.b16 %v4297
    %v4417 = vunpack.c.l.b16 %v4298
    %v4418 = vunpack.c.l.b16 %v4299
    %v4419 = vunpack.c.h.b16 %v4299
    %v4420 = vunpack.c.l.b16 %v4300
    %v4421 = vunpack.c.l.b16 %v4301
    %v4422 = vunpack.c.h.b16 %v4301
    %v4423 = vunpack.c.l.b16 %v4302
    %v4424 = vpack.c.b16 %v4379, %v4376
    %v4425 = vpack.c.b16 %v4380, %v4377
    %v4426 = vpack.c.b16 %v4381, %v4378
    %v4427 = vpack.c.b16 %v4385, %v4382
    %v4428 = vpack.c.b16 %v4386, %v4383
    %v4429 = vpack.c.b16 %v4387, %v4384
    %v4430 = vpack.c.b16 %v4391, %v4388
    %v4431 = vpack.c.b16 %v4392, %v4389
    %v4432 = vpack.c.b16 %v4393, %v4390
    %v4433 = vpack.c.b16 %v4397, %v4394
    %v4434 = vpack.c.b16 %v4398, %v4395
    %v4435 = vpack.c.b16 %v4399, %v4396
    %v4436 = vpack.c.b16 %v4403, %v4400
    %v4437 = vpack.c.b16 %v4404, %v4401
    %v4438 = vpack.c.b16 %v4405, %v4402
    %v4439 = vpack.c.b16 %v4409, %v4406
    %v4440 = vpack.c.b16 %v4410, %v4407
    %v4441 = vpack.c.b16 %v4411, %v4408
    %v4442 = vpack.c.b16 %v4415, %v4412
    %v4443 = vpack.c.b16 %v4416, %v4413
    %v4444 = vpack.c.b16 %v4417, %v4414
    %v4445 = vpack.c.b16 %v4421, %v4418
    %v4446 = vpack.c.b16 %v4422, %v4419
    %v4447 = vpack.c.b16 %v4423, %v4420
    %4472 = vmatprep.subr.bf16.mxu0 %v4446
    %4473 = vmatpush1.bf16.msra.mxu0 %v4445
    %4474 = vmatprep.subr.bf16.mxu0 %v4443
    %4475 = vmatpush1.bf16.msra.mxu0 %v4442
    %4476 = vmatprep.subr.bf16.mxu0 %v4440
    %4477 = vmatpush1.bf16.msra.mxu0 %v4439
    %4478 = vmatprep.subr.bf16.mxu0 %v4437
    %4479 = vmatpush1.bf16.msra.mxu0 %v4436
    %4480 = vmatprep.subr.bf16.mxu0 %v4434
    %4481 = vmatpush1.bf16.msra.mxu0 %v4433
    %4482 = vmatprep.subr.bf16.mxu0 %v4431
    %4483 = vmatpush1.bf16.msra.mxu0 %v4430
    %4484 = vmatprep.subr.bf16.mxu0 %v4428
    %4485 = vmatpush1.bf16.msra.mxu0 %v4427
    %4486 = vmatprep.subr.bf16.mxu0 %v4425
    %4487 = vmatpush1.bf16.msra.mxu0 %v4424
    %4488 = vmatprep.subr.bf16.mxu0 0
    %4489 = vmatpush2.bf16.msra.mxu0 0
    %4490 = vmatprep.subr.bf16.mxu0 0
    %4491 = vmatpush2.bf16.msra.mxu0 0
    %4492 = vmatprep.subr.bf16.mxu0 0
    %4493 = vmatpush2.bf16.msra.mxu0 0
    %4494 = vmatprep.subr.bf16.mxu0 0
    %4495 = vmatpush2.bf16.msra.mxu0 0
    %4496 = vmatprep.subr.bf16.mxu0 0
    %4497 = vmatpush2.bf16.msra.mxu0 0
    %4498 = vmatprep.subr.bf16.mxu0 0
    %4499 = vmatpush2.bf16.msra.mxu0 0
    %4500 = vmatprep.subr.bf16.mxu0 0
    %4501 = vmatpush2.bf16.msra.mxu0 0
    %4502 = vmatprep.subr.bf16.mxu0 0
    %4503 = vmatpush2.bf16.msra.mxu0 0
    %4504 = vmatprep.mubr.bf16.mxu0 0
    %4505 = vmatmul.mubr.bf16.gmra.mxu0 %v4336
    %v4506 = vpop.f32.mrf.mxu0
    %v4507 = vadd.f32 %v4308, %v4506
    %v4508 = vpop.f32.mrf.mxu0
    %v4509 = vadd.f32 %v4312, %v4508
    %v4510 = vpop.f32.mrf.mxu0
    %v4511 = vadd.f32 %v4308, %v4510
    %v4512 = vpop.f32.mrf.mxu0
    %v4513 = vadd.f32 %v4312, %v4512
    %4514 = vmatprep.mubr.bf16.mxu0 0
    %4515 = vmatmul.mubr.bf16.gmra.mxu0 %v4337
    %v4516 = vpop.f32.mrf.mxu0
    %v4517 = vadd.f32 %v4308, %v4516
    %v4518 = vpop.f32.mrf.mxu0
    %v4519 = vadd.f32 %v4312, %v4518
    %v4520 = vpop.f32.mrf.mxu0
    %v4521 = vadd.f32 %v4308, %v4520
    %v4522 = vpop.f32.mrf.mxu0
    %v4523 = vadd.f32 %v4312, %v4522
    %4524 = vmatprep.mubr.bf16.mxu0 0
    %4525 = vmatmul.mubr.bf16.gmra.mxu0 %v4338
    %v4526 = vpop.f32.mrf.mxu0
    %v4527 = vadd.f32 %v4308, %v4526
    %v4528 = vpop.f32.mrf.mxu0
    %v4529 = vadd.f32 %v4312, %v4528
    %v4530 = vpop.f32.mrf.mxu0
    %v4531 = vadd.f32 %v4308, %v4530
    %v4532 = vpop.f32.mrf.mxu0
    %v4533 = vadd.f32 %v4312, %v4532
    %4534 = vmatprep.mubr.bf16.mxu0 0
    %4535 = vmatmul.mubr.bf16.gmra.mxu0 %v4339
    %v4536 = vpop.f32.mrf.mxu0
    %v4537 = vadd.f32 %v4308, %v4536
    %v4538 = vpop.f32.mrf.mxu0
    %v4539 = vadd.f32 %v4312, %v4538
    %v4540 = vpop.f32.mrf.mxu0
    %v4541 = vadd.f32 %v4308, %v4540
    %v4542 = vpop.f32.mrf.mxu0
    %v4543 = vadd.f32 %v4312, %v4542
    %4544 = vdwg.mxu0
    %4545 = vmatprep.subr.bf16.mxu0 0
    %4546 = vmatpush1.bf16.msra.mxu0 %v4447
    %4547 = vmatprep.subr.bf16.mxu0 0
    %4548 = vmatpush1.bf16.msra.mxu0 %v4444
    %4549 = vmatprep.subr.bf16.mxu0 0
    %4550 = vmatpush1.bf16.msra.mxu0 %v4441
    %4551 = vmatprep.subr.bf16.mxu0 0
    %4552 = vmatpush1.bf16.msra.mxu0 %v4438
    %4553 = vmatprep.subr.bf16.mxu0 0
    %4554 = vmatpush1.bf16.msra.mxu0 %v4435
    %4555 = vmatprep.subr.bf16.mxu0 0
    %4556 = vmatpush1.bf16.msra.mxu0 %v4432
    %4557 = vmatprep.subr.bf16.mxu0 0
    %4558 = vmatpush1.bf16.msra.mxu0 %v4429
    %4559 = vmatprep.subr.bf16.mxu0 0
    %4560 = vmatpush1.bf16.msra.mxu0 %v4426
    %4561 = vmatprep.subr.bf16.mxu0 0
    %4562 = vmatpush2.bf16.msra.mxu0 0
    %4563 = vmatprep.subr.bf16.mxu0 0
    %4564 = vmatpush2.bf16.msra.mxu0 0
    %4565 = vmatprep.subr.bf16.mxu0 0
    %4566 = vmatpush2.bf16.msra.mxu0 0
    %4567 = vmatprep.subr.bf16.mxu0 0
    %4568 = vmatpush2.bf16.msra.mxu0 0
    %4569 = vmatprep.subr.bf16.mxu0 0
    %4570 = vmatpush2.bf16.msra.mxu0 0
    %4571 = vmatprep.subr.bf16.mxu0 0
    %4572 = vmatpush2.bf16.msra.mxu0 0
    %4573 = vmatprep.subr.bf16.mxu0 0
    %4574 = vmatpush2.bf16.msra.mxu0 0
    %4575 = vmatprep.subr.bf16.mxu0 0
    %4576 = vmatpush2.bf16.msra.mxu0 0
    %4577 = vmatprep.mubr.bf16.mxu0 0
    %4578 = vmatmul.mubr.bf16.gmra.mxu0 %v4336
    %v4579 = vpop.f32.mrf.mxu0
    %v4580 = vadd.f32 %v4316, %v4579
    %v4581 = vpop.f32.mrf.mxu0
    %v4582 = vpop.f32.mrf.mxu0
    %v4583 = vadd.f32 %v4316, %v4582
    %v4584 = vpop.f32.mrf.mxu0
    %4585 = vmatprep.mubr.bf16.mxu0 0
    %4586 = vmatmul.mubr.bf16.gmra.mxu0 %v4337
    %v4587 = vpop.f32.mrf.mxu0
    %v4588 = vadd.f32 %v4316, %v4587
    %v4589 = vpop.f32.mrf.mxu0
    %v4590 = vpop.f32.mrf.mxu0
    %v4591 = vadd.f32 %v4316, %v4590
    %v4592 = vpop.f32.mrf.mxu0
    %4593 = vmatprep.mubr.bf16.mxu0 0
    %4594 = vmatmul.mubr.bf16.gmra.mxu0 %v4338
    %v4595 = vpop.f32.mrf.mxu0
    %v4596 = vadd.f32 %v4316, %v4595
    %v4597 = vpop.f32.mrf.mxu0
    %v4598 = vpop.f32.mrf.mxu0
    %v4599 = vadd.f32 %v4316, %v4598
    %v4600 = vpop.f32.mrf.mxu0
    %4601 = vmatprep.mubr.bf16.mxu0 0
    %4602 = vmatmul.mubr.bf16.gmra.mxu0 %v4339
    %v4603 = vpop.f32.mrf.mxu0
    %v4604 = vadd.f32 %v4316, %v4603
    %v4605 = vpop.f32.mrf.mxu0
    %v4606 = vpop.f32.mrf.mxu0
    %v4607 = vadd.f32 %v4316, %v4606
    %v4608 = vpop.f32.mrf.mxu0
    %4609 = vdwg.mxu0
    %4610 = vst [vmem:[#allocation2] sm:$0xff] %v4507
    %4611 = vst [vmem:[#allocation2 + $0x8] sm:$0xff] %v4509
    %4612 = vst [vmem:[#allocation2 + $0x10] sm:$0xff] %v4580
    %4613 = vst [vmem:[#allocation2 + $0x18] sm:$0xff] %v4511
    %4614 = vst [vmem:[#allocation2 + $0x20] sm:$0xff] %v4513
    %4615 = vst [vmem:[#allocation2 + $0x28] sm:$0xff] %v4583
    %4616 = vst [vmem:[#allocation2 + $0x30] sm:$0xff] %v4517
    %4617 = vst [vmem:[#allocation2 + $0x38] sm:$0xff] %v4519
    %4618 = vst [vmem:[#allocation2 + $0x40] sm:$0xff] %v4588
    %4619 = vst [vmem:[#allocation2 + $0x48] sm:$0xff] %v4521
    %4620 = vst [vmem:[#allocation2 + $0x50] sm:$0xff] %v4523
    %4621 = vst [vmem:[#allocation2 + $0x58] sm:$0xff] %v4591
    %4622 = vst [vmem:[#allocation2 + $0x60] sm:$0xff] %v4527
    %4623 = vst [vmem:[#allocation2 + $0x68] sm:$0xff] %v4529
    %4624 = vst [vmem:[#allocation2 + $0x70] sm:$0xff] %v4596
    %4625 = vst [vmem:[#allocation2 + $0x78] sm:$0xff] %v4531
    %4626 = vst [vmem:[#allocation2 + $0x80] sm:$0xff] %v4533
    %4627 = vst [vmem:[#allocation2 + $0x88] sm:$0xff] %v4599
    %4628 = vst [vmem:[#allocation2 + $0x90] sm:$0xff] %v4537
    %4629 = vst [vmem:[#allocation2 + $0x98] sm:$0xff] %v4539
    %4630 = vst [vmem:[#allocation2 + $0xa0] sm:$0xff] %v4604
    %4631 = vst [vmem:[#allocation2 + $0xa8] sm:$0xff] %v4541
    %4632 = vst [vmem:[#allocation2 + $0xb0] sm:$0xff] %v4543
    %4633 = vst [vmem:[#allocation2 + $0xb8] sm:$0xff] %v4607
    %v4634 = vld [vmem:[%s14] sm:$0xff]
    %v4635 = vld [vmem:[%s14 + $0x8] sm:$0xf]
    %v4636 = vld [vmem:[%s14 + $0xc] sm:$0xff]
    %v4637 = vld [vmem:[%s14 + $0x14] sm:$0xf]
    %v4638 = vld [vmem:[%s14 + $0x18] sm:$0xff]
    %v4639 = vld [vmem:[%s14 + $0x20] sm:$0xf]
    %v4640 = vld [vmem:[%s14 + $0x24] sm:$0xff]
    %v4641 = vld [vmem:[%s14 + $0x2c] sm:$0xf]
    %v4642 = vld [vmem:[%s14 + $0x30] sm:$0xff]
    %v4643 = vld [vmem:[%s14 + $0x38] sm:$0xf]
    %v4644 = vld [vmem:[%s14 + $0x3c] sm:$0xff]
    %v4645 = vld [vmem:[%s14 + $0x44] sm:$0xf]
    %v4646 = vld [vmem:[%s14 + $0x48] sm:$0xff]
    %v4647 = vld [vmem:[%s14 + $0x50] sm:$0xf]
    %v4648 = vld [vmem:[%s14 + $0x54] sm:$0xff]
    %v4649 = vld [vmem:[%s14 + $0x5c] sm:$0xf]
    %v4650 = vld [vmem:[%s14 + $0x60] sm:$0xff]
    %v4651 = vld [vmem:[%s14 + $0x68] sm:$0xf]
    %v4652 = vld [vmem:[%s14 + $0x6c] sm:$0xff]
    %v4653 = vld [vmem:[%s14 + $0x74] sm:$0xf]
    %v4654 = vld [vmem:[%s14 + $0x78] sm:$0xff]
    %v4655 = vld [vmem:[%s14 + $0x80] sm:$0xf]
    %v4656 = vld [vmem:[%s14 + $0x84] sm:$0xff]
    %v4657 = vld [vmem:[%s14 + $0x8c] sm:$0xf]
    %v4658 = vld [vmem:[%s14 + $0x90] sm:$0xff]
    %v4659 = vld [vmem:[%s14 + $0x98] sm:$0xf]
    %v4660 = vld [vmem:[%s14 + $0x9c] sm:$0xff]
    %v4661 = vld [vmem:[%s14 + $0xa4] sm:$0xf]
    %v4662 = vld [vmem:[%s14 + $0xa8] sm:$0xff]
    %v4663 = vld [vmem:[%s14 + $0xb0] sm:$0xf]
    %v4664 = vld [vmem:[%s14 + $0xb4] sm:$0xff]
    %v4665 = vld [vmem:[%s14 + $0xbc] sm:$0xf]
    %v4666 = vld [vmem:[%s16] sm:$0x1]
    %v4668 = vlaneseq
    %v4669 = vshrl.u32 %v4668, 7
    %v4670 = vsub.s32 0, %v4669
    %v4671 = vrot.slane %v4666, %v4670
    %v4673 = vld [vmem:[#allocation2] sm:$0xff]
    %v4674 = vld [vmem:[#allocation2 + $0x8] sm:$0xff]
    %v4675 = vld [vmem:[#allocation2 + $0x10] sm:$0xff]
    %v4708 = vunpack.c.l.b16 %v4634
    %v4709 = vunpack.c.h.b16 %v4634
    %v4710 = vunpack.c.l.b16 %v4635
    %v4711 = vunpack.c.l.b16 %v4636
    %v4712 = vunpack.c.h.b16 %v4636
    %v4713 = vunpack.c.l.b16 %v4637
    %v4714 = vunpack.c.l.b16 %v4638
    %v4715 = vunpack.c.h.b16 %v4638
    %v4716 = vunpack.c.l.b16 %v4639
    %v4717 = vunpack.c.l.b16 %v4640
    %v4718 = vunpack.c.h.b16 %v4640
    %v4719 = vunpack.c.l.b16 %v4641
    %v4720 = vunpack.c.l.b16 %v4642
    %v4721 = vunpack.c.h.b16 %v4642
    %v4722 = vunpack.c.l.b16 %v4643
    %v4723 = vunpack.c.l.b16 %v4644
    %v4724 = vunpack.c.h.b16 %v4644
    %v4725 = vunpack.c.l.b16 %v4645
    %v4726 = vunpack.c.l.b16 %v4646
    %v4727 = vunpack.c.h.b16 %v4646
    %v4728 = vunpack.c.l.b16 %v4647
    %v4729 = vunpack.c.l.b16 %v4648
    %v4730 = vunpack.c.h.b16 %v4648
    %v4731 = vunpack.c.l.b16 %v4649
    %v4732 = vunpack.c.l.b16 %v4650
    %v4733 = vunpack.c.h.b16 %v4650
    %v4734 = vunpack.c.l.b16 %v4651
    %v4735 = vunpack.c.l.b16 %v4652
    %v4736 = vunpack.c.h.b16 %v4652
    %v4737 = vunpack.c.l.b16 %v4653
    %v4738 = vunpack.c.l.b16 %v4654
    %v4739 = vunpack.c.h.b16 %v4654
    %v4740 = vunpack.c.l.b16 %v4655
    %v4741 = vunpack.c.l.b16 %v4656
    %v4742 = vunpack.c.h.b16 %v4656
    %v4743 = vunpack.c.l.b16 %v4657
    %v4744 = vunpack.c.l.b16 %v4658
    %v4745 = vunpack.c.h.b16 %v4658
    %v4746 = vunpack.c.l.b16 %v4659
    %v4747 = vunpack.c.l.b16 %v4660
    %v4748 = vunpack.c.h.b16 %v4660
    %v4749 = vunpack.c.l.b16 %v4661
    %v4750 = vunpack.c.l.b16 %v4662
    %v4751 = vunpack.c.h.b16 %v4662
    %v4752 = vunpack.c.l.b16 %v4663
    %v4753 = vunpack.c.l.b16 %v4664
    %v4754 = vunpack.c.h.b16 %v4664
    %v4755 = vunpack.c.l.b16 %v4665
    %v4756 = vpack.c.b16 %v4711, %v4708
    %v4757 = vpack.c.b16 %v4712, %v4709
    %v4758 = vpack.c.b16 %v4713, %v4710
    %v4759 = vpack.c.b16 %v4717, %v4714
    %v4760 = vpack.c.b16 %v4718, %v4715
    %v4761 = vpack.c.b16 %v4719, %v4716
    %v4762 = vpack.c.b16 %v4723, %v4720
    %v4763 = vpack.c.b16 %v4724, %v4721
    %v4764 = vpack.c.b16 %v4725, %v4722
    %v4765 = vpack.c.b16 %v4729, %v4726
    %v4766 = vpack.c.b16 %v4730, %v4727
    %v4767 = vpack.c.b16 %v4731, %v4728
    %v4768 = vpack.c.b16 %v4735, %v4732
    %v4769 = vpack.c.b16 %v4736, %v4733
    %v4770 = vpack.c.b16 %v4737, %v4734
    %v4771 = vpack.c.b16 %v4741, %v4738
    %v4772 = vpack.c.b16 %v4742, %v4739
    %v4773 = vpack.c.b16 %v4743, %v4740
    %v4774 = vpack.c.b16 %v4747, %v4744
    %v4775 = vpack.c.b16 %v4748, %v4745
    %v4776 = vpack.c.b16 %v4749, %v4746
    %v4777 = vpack.c.b16 %v4753, %v4750
    %v4778 = vpack.c.b16 %v4754, %v4751
    %v4779 = vpack.c.b16 %v4755, %v4752
    %4804 = vmatprep.subr.bf16.mxu0 %v4778
    %4805 = vmatpush1.bf16.msra.mxu0 %v4777
    %4806 = vmatprep.subr.bf16.mxu0 %v4775
    %4807 = vmatpush1.bf16.msra.mxu0 %v4774
    %4808 = vmatprep.subr.bf16.mxu0 %v4772
    %4809 = vmatpush1.bf16.msra.mxu0 %v4771
    %4810 = vmatprep.subr.bf16.mxu0 %v4769
    %4811 = vmatpush1.bf16.msra.mxu0 %v4768
    %4812 = vmatprep.subr.bf16.mxu0 %v4766
    %4813 = vmatpush1.bf16.msra.mxu0 %v4765
    %4814 = vmatprep.subr.bf16.mxu0 %v4763
    %4815 = vmatpush1.bf16.msra.mxu0 %v4762
    %4816 = vmatprep.subr.bf16.mxu0 %v4760
    %4817 = vmatpush1.bf16.msra.mxu0 %v4759
    %4818 = vmatprep.subr.bf16.mxu0 %v4757
    %4819 = vmatpush1.bf16.msra.mxu0 %v4756
    %4820 = vmatprep.subr.bf16.mxu0 0
    %4821 = vmatpush2.bf16.msra.mxu0 0
    %4822 = vmatprep.subr.bf16.mxu0 0
    %4823 = vmatpush2.bf16.msra.mxu0 0
    %4824 = vmatprep.subr.bf16.mxu0 0
    %4825 = vmatpush2.bf16.msra.mxu0 0
    %4826 = vmatprep.subr.bf16.mxu0 0
    %4827 = vmatpush2.bf16.msra.mxu0 0
    %4828 = vmatprep.subr.bf16.mxu0 0
    %4829 = vmatpush2.bf16.msra.mxu0 0
    %4830 = vmatprep.subr.bf16.mxu0 0
    %4831 = vmatpush2.bf16.msra.mxu0 0
    %4832 = vmatprep.subr.bf16.mxu0 0
    %4833 = vmatpush2.bf16.msra.mxu0 0
    %4834 = vmatprep.subr.bf16.mxu0 0
    %4835 = vmatpush2.bf16.msra.mxu0 0
    %4836 = vmatprep.mubr.bf16.mxu0 0
    %4837 = vmatmul.mubr.bf16.gmra.mxu0 0
    %v4838 = vpop.f32.mrf.mxu0
    %v4839 = vadd.f32 0.0, %v4838
    %v4840 = vpop.f32.mrf.mxu0
    %v4841 = vadd.f32 0.0, %v4840
    %v4842 = vpop.f32.mrf.mxu0
    %v4843 = vpop.f32.mrf.mxu0
    %4844 = vdwg.mxu0
    %4845 = vmatprep.subr.bf16.mxu0 0
    %4846 = vmatpush1.bf16.msra.mxu0 %v4779
    %4847 = vmatprep.subr.bf16.mxu0 0
    %4848 = vmatpush1.bf16.msra.mxu0 %v4776
    %4849 = vmatprep.subr.bf16.mxu0 0
    %4850 = vmatpush1.bf16.msra.mxu0 %v4773
    %4851 = vmatprep.subr.bf16.mxu0 0
    %4852 = vmatpush1.bf16.msra.mxu0 %v4770
    %4853 = vmatprep.subr.bf16.mxu0 0
    %4854 = vmatpush1.bf16.msra.mxu0 %v4767
    %4855 = vmatprep.subr.bf16.mxu0 0
    %4856 = vmatpush1.bf16.msra.mxu0 %v4764
    %4857 = vmatprep.subr.bf16.mxu0 0
    %4858 = vmatpush1.bf16.msra.mxu0 %v4761
    %4859 = vmatprep.subr.bf16.mxu0 0
    %4860 = vmatpush1.bf16.msra.mxu0 %v4758
    %4861 = vmatprep.subr.bf16.mxu0 0
    %4862 = vmatpush2.bf16.msra.mxu0 0
    %4863 = vmatprep.subr.bf16.mxu0 0
    %4864 = vmatpush2.bf16.msra.mxu0 0
    %4865 = vmatprep.subr.bf16.mxu0 0
    %4866 = vmatpush2.bf16.msra.mxu0 0
    %4867 = vmatprep.subr.bf16.mxu0 0
    %4868 = vmatpush2.bf16.msra.mxu0 0
    %4869 = vmatprep.subr.bf16.mxu0 0
    %4870 = vmatpush2.bf16.msra.mxu0 0
    %4871 = vmatprep.subr.bf16.mxu0 0
    %4872 = vmatpush2.bf16.msra.mxu0 0
    %4873 = vmatprep.subr.bf16.mxu0 0
    %4874 = vmatpush2.bf16.msra.mxu0 0
    %4875 = vmatprep.subr.bf16.mxu0 0
    %4876 = vmatpush2.bf16.msra.mxu0 0
    %4877 = vmatprep.mubr.bf16.mxu0 0
    %4878 = vmatmul.mubr.bf16.gmra.mxu0 0
    %v4879 = vpop.f32.mrf.mxu0
    %v4880 = vadd.f32 0.0, %v4879
    %v4881 = vpop.f32.mrf.mxu0
    %v4882 = vpop.f32.mrf.mxu0
    %v4883 = vpop.f32.mrf.mxu0
    %4884 = vdwg.mxu0
    %v4885 = vadd.f32 %v4673, %v4839
    %v4886 = vadd.f32 %v4674, %v4841
    %v4887 = vxor.u32 %v4885, 2147483648
    %v4888 = vxor.u32 %v4886, 2147483648
    %v4889 = vmul.f32 %v4887, 1.442695
    %v4890 = vpow.pop %v4889
    %v4891 = vmul.f32 %v4888, 1.442695
    %v4892 = vpow.pop %v4891
    %v4893 = vadd.f32 %v4890, 1.0
    %v4894 = vadd.f32 %v4892, 1.0
    %v4895 = vrcp.pop %v4893
    %v4896 = vmul.f32 1.0, %v4895
    %v4897 = vrcp.pop %v4894
    %v4898 = vmul.f32 1.0, %v4897
    %v4899 = vadd.f32 %v4880, %v4671
    %v4900 = vmul.f32 %v4896, %v4899
    %v4901 = vadd.f32 %v4675, %v4900
    %v4902 = vtanh.pop %v4901
    %v4903 = vsub.f32 0.0, %v4902
    %v4904 = vmul.f32 %v4898, %v4903
    %v4905 = vadd.f32 %v4902, %v4904
    %v4906 = vld [vmem:[%s709] sm:$0xff]
    %v4907 = vld [vmem:[%s709 + $0x8] sm:$0xff]
    %v4908 = vld [vmem:[%s709 + $0x10] sm:$0xff]
    %v4909 = vpack.c.bf16 %v4905, %v4905
    %4910 = vmatprep.subr.bf16.mxu0 %v4778
    %4911 = vmatpush1.bf16.msra.mxu0 %v4777
    %4912 = vmatprep.subr.bf16.mxu0 %v4775
    %4913 = vmatpush1.bf16.msra.mxu0 %v4774
    %4914 = vmatprep.subr.bf16.mxu0 %v4772
    %4915 = vmatpush1.bf16.msra.mxu0 %v4771
    %4916 = vmatprep.subr.bf16.mxu0 %v4769
    %4917 = vmatpush1.bf16.msra.mxu0 %v4768
    %4918 = vmatprep.subr.bf16.mxu0 %v4766
    %4919 = vmatpush1.bf16.msra.mxu0 %v4765
    %4920 = vmatprep.subr.bf16.mxu0 %v4763
    %4921 = vmatpush1.bf16.msra.mxu0 %v4762
    %4922 = vmatprep.subr.bf16.mxu0 %v4760
    %4923 = vmatpush1.bf16.msra.mxu0 %v4759
    %4924 = vmatprep.subr.bf16.mxu0 %v4757
    %4925 = vmatpush1.bf16.msra.mxu0 %v4756
    %4926 = vmatprep.subr.bf16.mxu0 0
    %4927 = vmatpush2.bf16.msra.mxu0 0
    %4928 = vmatprep.subr.bf16.mxu0 0
    %4929 = vmatpush2.bf16.msra.mxu0 0
    %4930 = vmatprep.subr.bf16.mxu0 0
    %4931 = vmatpush2.bf16.msra.mxu0 0
    %4932 = vmatprep.subr.bf16.mxu0 0
    %4933 = vmatpush2.bf16.msra.mxu0 0
    %4934 = vmatprep.subr.bf16.mxu0 0
    %4935 = vmatpush2.bf16.msra.mxu0 0
    %4936 = vmatprep.subr.bf16.mxu0 0
    %4937 = vmatpush2.bf16.msra.mxu0 0
    %4938 = vmatprep.subr.bf16.mxu0 0
    %4939 = vmatpush2.bf16.msra.mxu0 0
    %4940 = vmatprep.subr.bf16.mxu0 0
    %4941 = vmatpush2.bf16.msra.mxu0 0
    %4942 = vmatprep.mubr.bf16.mxu0 0
    %4943 = vmatmul.mubr.bf16.gmra.mxu0 %v4909
    %v4944 = vpop.f32.mrf.mxu0
    %v4945 = vadd.f32 0.0, %v4944
    %v4946 = vpop.f32.mrf.mxu0
    %v4947 = vadd.f32 0.0, %v4946
    %v4948 = vpop.f32.mrf.mxu0
    %v4949 = vpop.f32.mrf.mxu0
    %4950 = vdwg.mxu0
    %4951 = vmatprep.subr.bf16.mxu0 0
    %4952 = vmatpush1.bf16.msra.mxu0 %v4779
    %4953 = vmatprep.subr.bf16.mxu0 0
    %4954 = vmatpush1.bf16.msra.mxu0 %v4776
    %4955 = vmatprep.subr.bf16.mxu0 0
    %4956 = vmatpush1.bf16.msra.mxu0 %v4773
    %4957 = vmatprep.subr.bf16.mxu0 0
    %4958 = vmatpush1.bf16.msra.mxu0 %v4770
    %4959 = vmatprep.subr.bf16.mxu0 0
    %4960 = vmatpush1.bf16.msra.mxu0 %v4767
    %4961 = vmatprep.subr.bf16.mxu0 0
    %4962 = vmatpush1.bf16.msra.mxu0 %v4764
    %4963 = vmatprep.subr.bf16.mxu0 0
    %4964 = vmatpush1.bf16.msra.mxu0 %v4761
    %4965 = vmatprep.subr.bf16.mxu0 0
    %4966 = vmatpush1.bf16.msra.mxu0 %v4758
    %4967 = vmatprep.subr.bf16.mxu0 0
    %4968 = vmatpush2.bf16.msra.mxu0 0
    %4969 = vmatprep.subr.bf16.mxu0 0
    %4970 = vmatpush2.bf16.msra.mxu0 0
    %4971 = vmatprep.subr.bf16.mxu0 0
    %4972 = vmatpush2.bf16.msra.mxu0 0
    %4973 = vmatprep.subr.bf16.mxu0 0
    %4974 = vmatpush2.bf16.msra.mxu0 0
    %4975 = vmatprep.subr.bf16.mxu0 0
    %4976 = vmatpush2.bf16.msra.mxu0 0
    %4977 = vmatprep.subr.bf16.mxu0 0
    %4978 = vmatpush2.bf16.msra.mxu0 0
    %4979 = vmatprep.subr.bf16.mxu0 0
    %4980 = vmatpush2.bf16.msra.mxu0 0
    %4981 = vmatprep.subr.bf16.mxu0 0
    %4982 = vmatpush2.bf16.msra.mxu0 0
    %4983 = vmatprep.mubr.bf16.mxu0 0
    %4984 = vmatmul.mubr.bf16.gmra.mxu0 %v4909
    %v4985 = vpop.f32.mrf.mxu0
    %v4986 = vadd.f32 0.0, %v4985
    %v4987 = vpop.f32.mrf.mxu0
    %v4988 = vpop.f32.mrf.mxu0
    %v4989 = vpop.f32.mrf.mxu0
    %4990 = vdwg.mxu0
    %v4991 = vadd.f32 %v4906, %v4945
    %v4992 = vadd.f32 %v4907, %v4947
    %v4993 = vxor.u32 %v4991, 2147483648
    %v4994 = vxor.u32 %v4992, 2147483648
    %v4995 = vmul.f32 %v4993, 1.442695
    %v4996 = vpow.pop %v4995
    %v4997 = vmul.f32 %v4994, 1.442695
    %v4998 = vpow.pop %v4997
    %v4999 = vadd.f32 %v4996, 1.0
    %v5000 = vadd.f32 %v4998, 1.0
    %v5001 = vrcp.pop %v4999
    %v5002 = vmul.f32 1.0, %v5001
    %v5003 = vrcp.pop %v5000
    %v5004 = vmul.f32 1.0, %v5003
    %v5005 = vadd.f32 %v4986, %v4671
    %v5006 = vmul.f32 %v5002, %v5005
    %v5007 = vadd.f32 %v4908, %v5006
    %v5008 = vtanh.pop %v5007
    %v5009 = vsub.f32 %v4905, %v5008
    %v5010 = vmul.f32 %v5004, %v5009
    %v5011 = vadd.f32 %v5008, %v5010
    %v5012 = vld [vmem:[%s818] sm:$0xff]
    %v5013 = vld [vmem:[%s818 + $0x8] sm:$0xff]
    %v5014 = vld [vmem:[%s818 + $0x10] sm:$0xff]
    %v5015 = vpack.c.bf16 %v5011, %v5011
    %5016 = vmatprep.subr.bf16.mxu0 %v4778
    %5017 = vmatpush1.bf16.msra.mxu0 %v4777
    %5018 = vmatprep.subr.bf16.mxu0 %v4775
    %5019 = vmatpush1.bf16.msra.mxu0 %v4774
    %5020 = vmatprep.subr.bf16.mxu0 %v4772
    %5021 = vmatpush1.bf16.msra.mxu0 %v4771
    %5022 = vmatprep.subr.bf16.mxu0 %v4769
    %5023 = vmatpush1.bf16.msra.mxu0 %v4768
    %5024 = vmatprep.subr.bf16.mxu0 %v4766
    %5025 = vmatpush1.bf16.msra.mxu0 %v4765
    %5026 = vmatprep.subr.bf16.mxu0 %v4763
    %5027 = vmatpush1.bf16.msra.mxu0 %v4762
    %5028 = vmatprep.subr.bf16.mxu0 %v4760
    %5029 = vmatpush1.bf16.msra.mxu0 %v4759
    %5030 = vmatprep.subr.bf16.mxu0 %v4757
    %5031 = vmatpush1.bf16.msra.mxu0 %v4756
    %5032 = vmatprep.subr.bf16.mxu0 0
    %5033 = vmatpush2.bf16.msra.mxu0 0
    %5034 = vmatprep.subr.bf16.mxu0 0
    %5035 = vmatpush2.bf16.msra.mxu0 0
    %5036 = vmatprep.subr.bf16.mxu0 0
    %5037 = vmatpush2.bf16.msra.mxu0 0
    %5038 = vmatprep.subr.bf16.mxu0 0
    %5039 = vmatpush2.bf16.msra.mxu0 0
    %5040 = vmatprep.subr.bf16.mxu0 0
    %5041 = vmatpush2.bf16.msra.mxu0 0
    %5042 = vmatprep.subr.bf16.mxu0 0
    %5043 = vmatpush2.bf16.msra.mxu0 0
    %5044 = vmatprep.subr.bf16.mxu0 0
    %5045 = vmatpush2.bf16.msra.mxu0 0
    %5046 = vmatprep.subr.bf16.mxu0 0
    %5047 = vmatpush2.bf16.msra.mxu0 0
    %5048 = vmatprep.mubr.bf16.mxu0 0
    %5049 = vmatmul.mubr.bf16.gmra.mxu0 %v5015
    %v5050 = vpop.f32.mrf.mxu0
    %v5051 = vadd.f32 0.0, %v5050
    %v5052 = vpop.f32.mrf.mxu0
    %v5053 = vadd.f32 0.0, %v5052
    %v5054 = vpop.f32.mrf.mxu0
    %v5055 = vpop.f32.mrf.mxu0
    %5056 = vdwg.mxu0
    %5057 = vmatprep.subr.bf16.mxu0 0
    %5058 = vmatpush1.bf16.msra.mxu0 %v4779
    %5059 = vmatprep.subr.bf16.mxu0 0
    %5060 = vmatpush1.bf16.msra.mxu0 %v4776
    %5061 = vmatprep.subr.bf16.mxu0 0
    %5062 = vmatpush1.bf16.msra.mxu0 %v4773
    %5063 = vmatprep.subr.bf16.mxu0 0
    %5064 = vmatpush1.bf16.msra.mxu0 %v4770
    %5065 = vmatprep.subr.bf16.mxu0 0
    %5066 = vmatpush1.bf16.msra.mxu0 %v4767
    %5067 = vmatprep.subr.bf16.mxu0 0
    %5068 = vmatpush1.bf16.msra.mxu0 %v4764
    %5069 = vmatprep.subr.bf16.mxu0 0
    %5070 = vmatpush1.bf16.msra.mxu0 %v4761
    %5071 = vmatprep.subr.bf16.mxu0 0
    %5072 = vmatpush1.bf16.msra.mxu0 %v4758
    %5073 = vmatprep.subr.bf16.mxu0 0
    %5074 = vmatpush2.bf16.msra.mxu0 0
    %5075 = vmatprep.subr.bf16.mxu0 0
    %5076 = vmatpush2.bf16.msra.mxu0 0
    %5077 = vmatprep.subr.bf16.mxu0 0
    %5078 = vmatpush2.bf16.msra.mxu0 0
    %5079 = vmatprep.subr.bf16.mxu0 0
    %5080 = vmatpush2.bf16.msra.mxu0 0
    %5081 = vmatprep.subr.bf16.mxu0 0
    %5082 = vmatpush2.bf16.msra.mxu0 0
    %5083 = vmatprep.subr.bf16.mxu0 0
    %5084 = vmatpush2.bf16.msra.mxu0 0
    %5085 = vmatprep.subr.bf16.mxu0 0
    %5086 = vmatpush2.bf16.msra.mxu0 0
    %5087 = vmatprep.subr.bf16.mxu0 0
    %5088 = vmatpush2.bf16.msra.mxu0 0
    %5089 = vmatprep.mubr.bf16.mxu0 0
    %5090 = vmatmul.mubr.bf16.gmra.mxu0 %v5015
    %v5091 = vpop.f32.mrf.mxu0
    %v5092 = vadd.f32 0.0, %v5091
    %v5093 = vpop.f32.mrf.mxu0
    %v5094 = vpop.f32.mrf.mxu0
    %v5095 = vpop.f32.mrf.mxu0
    %5096 = vdwg.mxu0
    %v5097 = vadd.f32 %v5012, %v5051
    %v5098 = vadd.f32 %v5013, %v5053
    %v5099 = vxor.u32 %v5097, 2147483648
    %v5100 = vxor.u32 %v5098, 2147483648
    %v5101 = vmul.f32 %v5099, 1.442695
    %v5102 = vpow.pop %v5101
    %v5103 = vmul.f32 %v5100, 1.442695
    %v5104 = vpow.pop %v5103
    %v5105 = vadd.f32 %v5102, 1.0
    %v5106 = vadd.f32 %v5104, 1.0
    %v5107 = vrcp.pop %v5105
    %v5108 = vmul.f32 1.0, %v5107
    %v5109 = vrcp.pop %v5106
    %v5110 = vmul.f32 1.0, %v5109
    %v5111 = vadd.f32 %v5092, %v4671
    %v5112 = vmul.f32 %v5108, %v5111
    %v5113 = vadd.f32 %v5014, %v5112
    %v5114 = vtanh.pop %v5113
    %v5115 = vsub.f32 %v5011, %v5114
    %v5116 = vmul.f32 %v5110, %v5115
    %v5117 = vadd.f32 %v5114, %v5116
    %v5118 = vld [vmem:[%s927] sm:$0xff]
    %v5119 = vld [vmem:[%s927 + $0x8] sm:$0xff]
    %v5120 = vld [vmem:[%s927 + $0x10] sm:$0xff]
    %v5121 = vpack.c.bf16 %v5117, %v5117
    %5122 = vmatprep.subr.bf16.mxu0 %v4778
    %5123 = vmatpush1.bf16.msra.mxu0 %v4777
    %5124 = vmatprep.subr.bf16.mxu0 %v4775
    %5125 = vmatpush1.bf16.msra.mxu0 %v4774
    %5126 = vmatprep.subr.bf16.mxu0 %v4772
    %5127 = vmatpush1.bf16.msra.mxu0 %v4771
    %5128 = vmatprep.subr.bf16.mxu0 %v4769
    %5129 = vmatpush1.bf16.msra.mxu0 %v4768
    %5130 = vmatprep.subr.bf16.mxu0 %v4766
    %5131 = vmatpush1.bf16.msra.mxu0 %v4765
    %5132 = vmatprep.subr.bf16.mxu0 %v4763
    %5133 = vmatpush1.bf16.msra.mxu0 %v4762
    %5134 = vmatprep.subr.bf16.mxu0 %v4760
    %5135 = vmatpush1.bf16.msra.mxu0 %v4759
    %5136 = vmatprep.subr.bf16.mxu0 %v4757
    %5137 = vmatpush1.bf16.msra.mxu0 %v4756
    %5138 = vmatprep.subr.bf16.mxu0 0
    %5139 = vmatpush2.bf16.msra.mxu0 0
    %5140 = vmatprep.subr.bf16.mxu0 0
    %5141 = vmatpush2.bf16.msra.mxu0 0
    %5142 = vmatprep.subr.bf16.mxu0 0
    %5143 = vmatpush2.bf16.msra.mxu0 0
    %5144 = vmatprep.subr.bf16.mxu0 0
    %5145 = vmatpush2.bf16.msra.mxu0 0
    %5146 = vmatprep.subr.bf16.mxu0 0
    %5147 = vmatpush2.bf16.msra.mxu0 0
    %5148 = vmatprep.subr.bf16.mxu0 0
    %5149 = vmatpush2.bf16.msra.mxu0 0
    %5150 = vmatprep.subr.bf16.mxu0 0
    %5151 = vmatpush2.bf16.msra.mxu0 0
    %5152 = vmatprep.subr.bf16.mxu0 0
    %5153 = vmatpush2.bf16.msra.mxu0 0
    %5154 = vmatprep.mubr.bf16.mxu0 0
    %5155 = vmatmul.mubr.bf16.gmra.mxu0 %v5121
    %v5156 = vpop.f32.mrf.mxu0
    %v5157 = vadd.f32 0.0, %v5156
    %v5158 = vpop.f32.mrf.mxu0
    %v5159 = vadd.f32 0.0, %v5158
    %v5160 = vpop.f32.mrf.mxu0
    %v5161 = vpop.f32.mrf.mxu0
    %5162 = vdwg.mxu0
    %5163 = vmatprep.subr.bf16.mxu0 0
    %5164 = vmatpush1.bf16.msra.mxu0 %v4779
    %5165 = vmatprep.subr.bf16.mxu0 0
    %5166 = vmatpush1.bf16.msra.mxu0 %v4776
    %5167 = vmatprep.subr.bf16.mxu0 0
    %5168 = vmatpush1.bf16.msra.mxu0 %v4773
    %5169 = vmatprep.subr.bf16.mxu0 0
    %5170 = vmatpush1.bf16.msra.mxu0 %v4770
    %5171 = vmatprep.subr.bf16.mxu0 0
    %5172 = vmatpush1.bf16.msra.mxu0 %v4767
    %5173 = vmatprep.subr.bf16.mxu0 0
    %5174 = vmatpush1.bf16.msra.mxu0 %v4764
    %5175 = vmatprep.subr.bf16.mxu0 0
    %5176 = vmatpush1.bf16.msra.mxu0 %v4761
    %5177 = vmatprep.subr.bf16.mxu0 0
    %5178 = vmatpush1.bf16.msra.mxu0 %v4758
    %5179 = vmatprep.subr.bf16.mxu0 0
    %5180 = vmatpush2.bf16.msra.mxu0 0
    %5181 = vmatprep.subr.bf16.mxu0 0
    %5182 = vmatpush2.bf16.msra.mxu0 0
    %5183 = vmatprep.subr.bf16.mxu0 0
    %5184 = vmatpush2.bf16.msra.mxu0 0
    %5185 = vmatprep.subr.bf16.mxu0 0
    %5186 = vmatpush2.bf16.msra.mxu0 0
    %5187 = vmatprep.subr.bf16.mxu0 0
    %5188 = vmatpush2.bf16.msra.mxu0 0
    %5189 = vmatprep.subr.bf16.mxu0 0
    %5190 = vmatpush2.bf16.msra.mxu0 0
    %5191 = vmatprep.subr.bf16.mxu0 0
    %5192 = vmatpush2.bf16.msra.mxu0 0
    %5193 = vmatprep.subr.bf16.mxu0 0
    %5194 = vmatpush2.bf16.msra.mxu0 0
    %5195 = vmatprep.mubr.bf16.mxu0 0
    %5196 = vmatmul.mubr.bf16.gmra.mxu0 %v5121
    %v5197 = vpop.f32.mrf.mxu0
    %v5198 = vadd.f32 0.0, %v5197
    %v5199 = vpop.f32.mrf.mxu0
    %v5200 = vpop.f32.mrf.mxu0
    %v5201 = vpop.f32.mrf.mxu0
    %5202 = vdwg.mxu0
    %v5203 = vadd.f32 %v5118, %v5157
    %v5204 = vadd.f32 %v5119, %v5159
    %v5205 = vxor.u32 %v5203, 2147483648
    %v5206 = vxor.u32 %v5204, 2147483648
    %v5207 = vmul.f32 %v5205, 1.442695
    %v5208 = vpow.pop %v5207
    %v5209 = vmul.f32 %v5206, 1.442695
    %v5210 = vpow.pop %v5209
    %v5211 = vadd.f32 %v5208, 1.0
    %v5212 = vadd.f32 %v5210, 1.0
    %v5213 = vrcp.pop %v5211
    %v5214 = vmul.f32 1.0, %v5213
    %v5215 = vrcp.pop %v5212
    %v5216 = vmul.f32 1.0, %v5215
    %v5217 = vadd.f32 %v5198, %v4671
    %v5218 = vmul.f32 %v5214, %v5217
    %v5219 = vadd.f32 %v5120, %v5218
    %v5220 = vtanh.pop %v5219
    %v5221 = vsub.f32 %v5117, %v5220
    %v5222 = vmul.f32 %v5216, %v5221
    %v5223 = vadd.f32 %v5220, %v5222
    %v5224 = vld [vmem:[%s1036] sm:$0xff]
    %v5225 = vld [vmem:[%s1036 + $0x8] sm:$0xff]
    %v5226 = vld [vmem:[%s1036 + $0x10] sm:$0xff]
    %v5227 = vpack.c.bf16 %v5223, %v5223
    %5228 = vmatprep.subr.bf16.mxu0 %v4778
    %5229 = vmatpush1.bf16.msra.mxu0 %v4777
    %5230 = vmatprep.subr.bf16.mxu0 %v4775
    %5231 = vmatpush1.bf16.msra.mxu0 %v4774
    %5232 = vmatprep.subr.bf16.mxu0 %v4772
    %5233 = vmatpush1.bf16.msra.mxu0 %v4771
    %5234 = vmatprep.subr.bf16.mxu0 %v4769
    %5235 = vmatpush1.bf16.msra.mxu0 %v4768
    %5236 = vmatprep.subr.bf16.mxu0 %v4766
    %5237 = vmatpush1.bf16.msra.mxu0 %v4765
    %5238 = vmatprep.subr.bf16.mxu0 %v4763
    %5239 = vmatpush1.bf16.msra.mxu0 %v4762
    %5240 = vmatprep.subr.bf16.mxu0 %v4760
    %5241 = vmatpush1.bf16.msra.mxu0 %v4759
    %5242 = vmatprep.subr.bf16.mxu0 %v4757
    %5243 = vmatpush1.bf16.msra.mxu0 %v4756
    %5244 = vmatprep.subr.bf16.mxu0 0
    %5245 = vmatpush2.bf16.msra.mxu0 0
    %5246 = vmatprep.subr.bf16.mxu0 0
    %5247 = vmatpush2.bf16.msra.mxu0 0
    %5248 = vmatprep.subr.bf16.mxu0 0
    %5249 = vmatpush2.bf16.msra.mxu0 0
    %5250 = vmatprep.subr.bf16.mxu0 0
    %5251 = vmatpush2.bf16.msra.mxu0 0
    %5252 = vmatprep.subr.bf16.mxu0 0
    %5253 = vmatpush2.bf16.msra.mxu0 0
    %5254 = vmatprep.subr.bf16.mxu0 0
    %5255 = vmatpush2.bf16.msra.mxu0 0
    %5256 = vmatprep.subr.bf16.mxu0 0
    %5257 = vmatpush2.bf16.msra.mxu0 0
    %5258 = vmatprep.subr.bf16.mxu0 0
    %5259 = vmatpush2.bf16.msra.mxu0 0
    %5260 = vmatprep.mubr.bf16.mxu0 0
    %5261 = vmatmul.mubr.bf16.gmra.mxu0 %v5227
    %v5262 = vpop.f32.mrf.mxu0
    %v5263 = vadd.f32 0.0, %v5262
    %v5264 = vpop.f32.mrf.mxu0
    %v5265 = vadd.f32 0.0, %v5264
    %v5266 = vpop.f32.mrf.mxu0
    %v5267 = vpop.f32.mrf.mxu0
    %5268 = vdwg.mxu0
    %5269 = vmatprep.subr.bf16.mxu0 0
    %5270 = vmatpush1.bf16.msra.mxu0 %v4779
    %5271 = vmatprep.subr.bf16.mxu0 0
    %5272 = vmatpush1.bf16.msra.mxu0 %v4776
    %5273 = vmatprep.subr.bf16.mxu0 0
    %5274 = vmatpush1.bf16.msra.mxu0 %v4773
    %5275 = vmatprep.subr.bf16.mxu0 0
    %5276 = vmatpush1.bf16.msra.mxu0 %v4770
    %5277 = vmatprep.subr.bf16.mxu0 0
    %5278 = vmatpush1.bf16.msra.mxu0 %v4767
    %5279 = vmatprep.subr.bf16.mxu0 0
    %5280 = vmatpush1.bf16.msra.mxu0 %v4764
    %5281 = vmatprep.subr.bf16.mxu0 0
    %5282 = vmatpush1.bf16.msra.mxu0 %v4761
    %5283 = vmatprep.subr.bf16.mxu0 0
    %5284 = vmatpush1.bf16.msra.mxu0 %v4758
    %5285 = vmatprep.subr.bf16.mxu0 0
    %5286 = vmatpush2.bf16.msra.mxu0 0
    %5287 = vmatprep.subr.bf16.mxu0 0
    %5288 = vmatpush2.bf16.msra.mxu0 0
    %5289 = vmatprep.subr.bf16.mxu0 0
    %5290 = vmatpush2.bf16.msra.mxu0 0
    %5291 = vmatprep.subr.bf16.mxu0 0
    %5292 = vmatpush2.bf16.msra.mxu0 0
    %5293 = vmatprep.subr.bf16.mxu0 0
    %5294 = vmatpush2.bf16.msra.mxu0 0
    %5295 = vmatprep.subr.bf16.mxu0 0
    %5296 = vmatpush2.bf16.msra.mxu0 0
    %5297 = vmatprep.subr.bf16.mxu0 0
    %5298 = vmatpush2.bf16.msra.mxu0 0
    %5299 = vmatprep.subr.bf16.mxu0 0
    %5300 = vmatpush2.bf16.msra.mxu0 0
    %5301 = vmatprep.mubr.bf16.mxu0 0
    %5302 = vmatmul.mubr.bf16.gmra.mxu0 %v5227
    %v5303 = vpop.f32.mrf.mxu0
    %v5304 = vadd.f32 0.0, %v5303
    %v5305 = vpop.f32.mrf.mxu0
    %v5306 = vpop.f32.mrf.mxu0
    %v5307 = vpop.f32.mrf.mxu0
    %5308 = vdwg.mxu0
    %v5309 = vadd.f32 %v5224, %v5263
    %v5310 = vadd.f32 %v5225, %v5265
    %v5311 = vxor.u32 %v5309, 2147483648
    %v5312 = vxor.u32 %v5310, 2147483648
    %v5313 = vmul.f32 %v5311, 1.442695
    %v5314 = vpow.pop %v5313
    %v5315 = vmul.f32 %v5312, 1.442695
    %v5316 = vpow.pop %v5315
    %v5317 = vadd.f32 %v5314, 1.0
    %v5318 = vadd.f32 %v5316, 1.0
    %v5319 = vrcp.pop %v5317
    %v5320 = vmul.f32 1.0, %v5319
    %v5321 = vrcp.pop %v5318
    %v5322 = vmul.f32 1.0, %v5321
    %v5323 = vadd.f32 %v5304, %v4671
    %v5324 = vmul.f32 %v5320, %v5323
    %v5325 = vadd.f32 %v5226, %v5324
    %v5326 = vtanh.pop %v5325
    %v5327 = vsub.f32 %v5223, %v5326
    %v5328 = vmul.f32 %v5322, %v5327
    %v5329 = vadd.f32 %v5326, %v5328
    %v5330 = vld [vmem:[%s1145] sm:$0xff]
    %v5331 = vld [vmem:[%s1145 + $0x8] sm:$0xff]
    %v5332 = vld [vmem:[%s1145 + $0x10] sm:$0xff]
    %v5333 = vpack.c.bf16 %v5329, %v5329
    %5334 = vmatprep.subr.bf16.mxu0 %v4778
    %5335 = vmatpush1.bf16.msra.mxu0 %v4777
    %5336 = vmatprep.subr.bf16.mxu0 %v4775
    %5337 = vmatpush1.bf16.msra.mxu0 %v4774
    %5338 = vmatprep.subr.bf16.mxu0 %v4772
    %5339 = vmatpush1.bf16.msra.mxu0 %v4771
    %5340 = vmatprep.subr.bf16.mxu0 %v4769
    %5341 = vmatpush1.bf16.msra.mxu0 %v4768
    %5342 = vmatprep.subr.bf16.mxu0 %v4766
    %5343 = vmatpush1.bf16.msra.mxu0 %v4765
    %5344 = vmatprep.subr.bf16.mxu0 %v4763
    %5345 = vmatpush1.bf16.msra.mxu0 %v4762
    %5346 = vmatprep.subr.bf16.mxu0 %v4760
    %5347 = vmatpush1.bf16.msra.mxu0 %v4759
    %5348 = vmatprep.subr.bf16.mxu0 %v4757
    %5349 = vmatpush1.bf16.msra.mxu0 %v4756
    %5350 = vmatprep.subr.bf16.mxu0 0
    %5351 = vmatpush2.bf16.msra.mxu0 0
    %5352 = vmatprep.subr.bf16.mxu0 0
    %5353 = vmatpush2.bf16.msra.mxu0 0
    %5354 = vmatprep.subr.bf16.mxu0 0
    %5355 = vmatpush2.bf16.msra.mxu0 0
    %5356 = vmatprep.subr.bf16.mxu0 0
    %5357 = vmatpush2.bf16.msra.mxu0 0
    %5358 = vmatprep.subr.bf16.mxu0 0
    %5359 = vmatpush2.bf16.msra.mxu0 0
    %5360 = vmatprep.subr.bf16.mxu0 0
    %5361 = vmatpush2.bf16.msra.mxu0 0
    %5362 = vmatprep.subr.bf16.mxu0 0
    %5363 = vmatpush2.bf16.msra.mxu0 0
    %5364 = vmatprep.subr.bf16.mxu0 0
    %5365 = vmatpush2.bf16.msra.mxu0 0
    %5366 = vmatprep.mubr.bf16.mxu0 0
    %5367 = vmatmul.mubr.bf16.gmra.mxu0 %v5333
    %v5368 = vpop.f32.mrf.mxu0
    %v5369 = vadd.f32 0.0, %v5368
    %v5370 = vpop.f32.mrf.mxu0
    %v5371 = vadd.f32 0.0, %v5370
    %v5372 = vpop.f32.mrf.mxu0
    %v5373 = vpop.f32.mrf.mxu0
    %5374 = vdwg.mxu0
    %5375 = vmatprep.subr.bf16.mxu0 0
    %5376 = vmatpush1.bf16.msra.mxu0 %v4779
    %5377 = vmatprep.subr.bf16.mxu0 0
    %5378 = vmatpush1.bf16.msra.mxu0 %v4776
    %5379 = vmatprep.subr.bf16.mxu0 0
    %5380 = vmatpush1.bf16.msra.mxu0 %v4773
    %5381 = vmatprep.subr.bf16.mxu0 0
    %5382 = vmatpush1.bf16.msra.mxu0 %v4770
    %5383 = vmatprep.subr.bf16.mxu0 0
    %5384 = vmatpush1.bf16.msra.mxu0 %v4767
    %5385 = vmatprep.subr.bf16.mxu0 0
    %5386 = vmatpush1.bf16.msra.mxu0 %v4764
    %5387 = vmatprep.subr.bf16.mxu0 0
    %5388 = vmatpush1.bf16.msra.mxu0 %v4761
    %5389 = vmatprep.subr.bf16.mxu0 0
    %5390 = vmatpush1.bf16.msra.mxu0 %v4758
    %5391 = vmatprep.subr.bf16.mxu0 0
    %5392 = vmatpush2.bf16.msra.mxu0 0
    %5393 = vmatprep.subr.bf16.mxu0 0
    %5394 = vmatpush2.bf16.msra.mxu0 0
    %5395 = vmatprep.subr.bf16.mxu0 0
    %5396 = vmatpush2.bf16.msra.mxu0 0
    %5397 = vmatprep.subr.bf16.mxu0 0
    %5398 = vmatpush2.bf16.msra.mxu0 0
    %5399 = vmatprep.subr.bf16.mxu0 0
    %5400 = vmatpush2.bf16.msra.mxu0 0
    %5401 = vmatprep.subr.bf16.mxu0 0
    %5402 = vmatpush2.bf16.msra.mxu0 0
    %5403 = vmatprep.subr.bf16.mxu0 0
    %5404 = vmatpush2.bf16.msra.mxu0 0
    %5405 = vmatprep.subr.bf16.mxu0 0
    %5406 = vmatpush2.bf16.msra.mxu0 0
    %5407 = vmatprep.mubr.bf16.mxu0 0
    %5408 = vmatmul.mubr.bf16.gmra.mxu0 %v5333
    %v5409 = vpop.f32.mrf.mxu0
    %v5410 = vadd.f32 0.0, %v5409
    %v5411 = vpop.f32.mrf.mxu0
    %v5412 = vpop.f32.mrf.mxu0
    %v5413 = vpop.f32.mrf.mxu0
    %5414 = vdwg.mxu0
    %v5415 = vadd.f32 %v5330, %v5369
    %v5416 = vadd.f32 %v5331, %v5371
    %v5417 = vxor.u32 %v5415, 2147483648
    %v5418 = vxor.u32 %v5416, 2147483648
    %v5419 = vmul.f32 %v5417, 1.442695
    %v5420 = vpow.pop %v5419
    %v5421 = vmul.f32 %v5418, 1.442695
    %v5422 = vpow.pop %v5421
    %v5423 = vadd.f32 %v5420, 1.0
    %v5424 = vadd.f32 %v5422, 1.0
    %v5425 = vrcp.pop %v5423
    %v5426 = vmul.f32 1.0, %v5425
    %v5427 = vrcp.pop %v5424
    %v5428 = vmul.f32 1.0, %v5427
    %v5429 = vadd.f32 %v5410, %v4671
    %v5430 = vmul.f32 %v5426, %v5429
    %v5431 = vadd.f32 %v5332, %v5430
    %v5432 = vtanh.pop %v5431
    %v5433 = vsub.f32 %v5329, %v5432
    %v5434 = vmul.f32 %v5428, %v5433
    %v5435 = vadd.f32 %v5432, %v5434
    %v5436 = vld [vmem:[%s1254] sm:$0xff]
    %v5437 = vld [vmem:[%s1254 + $0x8] sm:$0xff]
    %v5438 = vld [vmem:[%s1254 + $0x10] sm:$0xff]
    %v5439 = vpack.c.bf16 %v5435, %v5435
    %5440 = vmatprep.subr.bf16.mxu0 %v4778
    %5441 = vmatpush1.bf16.msra.mxu0 %v4777
    %5442 = vmatprep.subr.bf16.mxu0 %v4775
    %5443 = vmatpush1.bf16.msra.mxu0 %v4774
    %5444 = vmatprep.subr.bf16.mxu0 %v4772
    %5445 = vmatpush1.bf16.msra.mxu0 %v4771
    %5446 = vmatprep.subr.bf16.mxu0 %v4769
    %5447 = vmatpush1.bf16.msra.mxu0 %v4768
    %5448 = vmatprep.subr.bf16.mxu0 %v4766
    %5449 = vmatpush1.bf16.msra.mxu0 %v4765
    %5450 = vmatprep.subr.bf16.mxu0 %v4763
    %5451 = vmatpush1.bf16.msra.mxu0 %v4762
    %5452 = vmatprep.subr.bf16.mxu0 %v4760
    %5453 = vmatpush1.bf16.msra.mxu0 %v4759
    %5454 = vmatprep.subr.bf16.mxu0 %v4757
    %5455 = vmatpush1.bf16.msra.mxu0 %v4756
    %5456 = vmatprep.subr.bf16.mxu0 0
    %5457 = vmatpush2.bf16.msra.mxu0 0
    %5458 = vmatprep.subr.bf16.mxu0 0
    %5459 = vmatpush2.bf16.msra.mxu0 0
    %5460 = vmatprep.subr.bf16.mxu0 0
    %5461 = vmatpush2.bf16.msra.mxu0 0
    %5462 = vmatprep.subr.bf16.mxu0 0
    %5463 = vmatpush2.bf16.msra.mxu0 0
    %5464 = vmatprep.subr.bf16.mxu0 0
    %5465 = vmatpush2.bf16.msra.mxu0 0
    %5466 = vmatprep.subr.bf16.mxu0 0
    %5467 = vmatpush2.bf16.msra.mxu0 0
    %5468 = vmatprep.subr.bf16.mxu0 0
    %5469 = vmatpush2.bf16.msra.mxu0 0
    %5470 = vmatprep.subr.bf16.mxu0 0
    %5471 = vmatpush2.bf16.msra.mxu0 0
    %5472 = vmatprep.mubr.bf16.mxu0 0
    %5473 = vmatmul.mubr.bf16.gmra.mxu0 %v5439
    %v5474 = vpop.f32.mrf.mxu0
    %v5475 = vadd.f32 0.0, %v5474
    %v5476 = vpop.f32.mrf.mxu0
    %v5477 = vadd.f32 0.0, %v5476
    %v5478 = vpop.f32.mrf.mxu0
    %v5479 = vpop.f32.mrf.mxu0
    %5480 = vdwg.mxu0
    %5481 = vmatprep.subr.bf16.mxu0 0
    %5482 = vmatpush1.bf16.msra.mxu0 %v4779
    %5483 = vmatprep.subr.bf16.mxu0 0
    %5484 = vmatpush1.bf16.msra.mxu0 %v4776
    %5485 = vmatprep.subr.bf16.mxu0 0
    %5486 = vmatpush1.bf16.msra.mxu0 %v4773
    %5487 = vmatprep.subr.bf16.mxu0 0
    %5488 = vmatpush1.bf16.msra.mxu0 %v4770
    %5489 = vmatprep.subr.bf16.mxu0 0
    %5490 = vmatpush1.bf16.msra.mxu0 %v4767
    %5491 = vmatprep.subr.bf16.mxu0 0
    %5492 = vmatpush1.bf16.msra.mxu0 %v4764
    %5493 = vmatprep.subr.bf16.mxu0 0
    %5494 = vmatpush1.bf16.msra.mxu0 %v4761
    %5495 = vmatprep.subr.bf16.mxu0 0
    %5496 = vmatpush1.bf16.msra.mxu0 %v4758
    %5497 = vmatprep.subr.bf16.mxu0 0
    %5498 = vmatpush2.bf16.msra.mxu0 0
    %5499 = vmatprep.subr.bf16.mxu0 0
    %5500 = vmatpush2.bf16.msra.mxu0 0
    %5501 = vmatprep.subr.bf16.mxu0 0
    %5502 = vmatpush2.bf16.msra.mxu0 0
    %5503 = vmatprep.subr.bf16.mxu0 0
    %5504 = vmatpush2.bf16.msra.mxu0 0
    %5505 = vmatprep.subr.bf16.mxu0 0
    %5506 = vmatpush2.bf16.msra.mxu0 0
    %5507 = vmatprep.subr.bf16.mxu0 0
    %5508 = vmatpush2.bf16.msra.mxu0 0
    %5509 = vmatprep.subr.bf16.mxu0 0
    %5510 = vmatpush2.bf16.msra.mxu0 0
    %5511 = vmatprep.subr.bf16.mxu0 0
    %5512 = vmatpush2.bf16.msra.mxu0 0
    %5513 = vmatprep.mubr.bf16.mxu0 0
    %5514 = vmatmul.mubr.bf16.gmra.mxu0 %v5439
    %v5515 = vpop.f32.mrf.mxu0
    %v5516 = vadd.f32 0.0, %v5515
    %v5517 = vpop.f32.mrf.mxu0
    %v5518 = vpop.f32.mrf.mxu0
    %v5519 = vpop.f32.mrf.mxu0
    %5520 = vdwg.mxu0
    %v5521 = vadd.f32 %v5436, %v5475
    %v5522 = vadd.f32 %v5437, %v5477
    %v5523 = vxor.u32 %v5521, 2147483648
    %v5524 = vxor.u32 %v5522, 2147483648
    %v5525 = vmul.f32 %v5523, 1.442695
    %v5526 = vpow.pop %v5525
    %v5527 = vmul.f32 %v5524, 1.442695
    %v5528 = vpow.pop %v5527
    %v5529 = vadd.f32 %v5526, 1.0
    %v5530 = vadd.f32 %v5528, 1.0
    %v5531 = vrcp.pop %v5529
    %v5532 = vmul.f32 1.0, %v5531
    %v5533 = vrcp.pop %v5530
    %v5534 = vmul.f32 1.0, %v5533
    %v5535 = vadd.f32 %v5516, %v4671
    %v5536 = vmul.f32 %v5532, %v5535
    %v5537 = vadd.f32 %v5438, %v5536
    %v5538 = vtanh.pop %v5537
    %v5539 = vsub.f32 %v5435, %v5538
    %v5540 = vmul.f32 %v5534, %v5539
    %v5541 = vadd.f32 %v5538, %v5540
    %v5542 = vld [vmem:[%s1363] sm:$0xff]
    %v5543 = vld [vmem:[%s1363 + $0x8] sm:$0xff]
    %v5544 = vld [vmem:[%s1363 + $0x10] sm:$0xff]
    %v5545 = vpack.c.bf16 %v5541, %v5541
    %5546 = vmatprep.subr.bf16.mxu0 %v4778
    %5547 = vmatpush1.bf16.msra.mxu0 %v4777
    %5548 = vmatprep.subr.bf16.mxu0 %v4775
    %5549 = vmatpush1.bf16.msra.mxu0 %v4774
    %5550 = vmatprep.subr.bf16.mxu0 %v4772
    %5551 = vmatpush1.bf16.msra.mxu0 %v4771
    %5552 = vmatprep.subr.bf16.mxu0 %v4769
    %5553 = vmatpush1.bf16.msra.mxu0 %v4768
    %5554 = vmatprep.subr.bf16.mxu0 %v4766
    %5555 = vmatpush1.bf16.msra.mxu0 %v4765
    %5556 = vmatprep.subr.bf16.mxu0 %v4763
    %5557 = vmatpush1.bf16.msra.mxu0 %v4762
    %5558 = vmatprep.subr.bf16.mxu0 %v4760
    %5559 = vmatpush1.bf16.msra.mxu0 %v4759
    %5560 = vmatprep.subr.bf16.mxu0 %v4757
    %5561 = vmatpush1.bf16.msra.mxu0 %v4756
    %5562 = vmatprep.subr.bf16.mxu0 0
    %5563 = vmatpush2.bf16.msra.mxu0 0
    %5564 = vmatprep.subr.bf16.mxu0 0
    %5565 = vmatpush2.bf16.msra.mxu0 0
    %5566 = vmatprep.subr.bf16.mxu0 0
    %5567 = vmatpush2.bf16.msra.mxu0 0
    %5568 = vmatprep.subr.bf16.mxu0 0
    %5569 = vmatpush2.bf16.msra.mxu0 0
    %5570 = vmatprep.subr.bf16.mxu0 0
    %5571 = vmatpush2.bf16.msra.mxu0 0
    %5572 = vmatprep.subr.bf16.mxu0 0
    %5573 = vmatpush2.bf16.msra.mxu0 0
    %5574 = vmatprep.subr.bf16.mxu0 0
    %5575 = vmatpush2.bf16.msra.mxu0 0
    %5576 = vmatprep.subr.bf16.mxu0 0
    %5577 = vmatpush2.bf16.msra.mxu0 0
    %5578 = vmatprep.mubr.bf16.mxu0 0
    %5579 = vmatmul.mubr.bf16.gmra.mxu0 %v5545
    %v5580 = vpop.f32.mrf.mxu0
    %v5581 = vadd.f32 0.0, %v5580
    %v5582 = vpop.f32.mrf.mxu0
    %v5583 = vadd.f32 0.0, %v5582
    %v5584 = vpop.f32.mrf.mxu0
    %v5585 = vpop.f32.mrf.mxu0
    %5586 = vdwg.mxu0
    %5587 = vmatprep.subr.bf16.mxu0 0
    %5588 = vmatpush1.bf16.msra.mxu0 %v4779
    %5589 = vmatprep.subr.bf16.mxu0 0
    %5590 = vmatpush1.bf16.msra.mxu0 %v4776
    %5591 = vmatprep.subr.bf16.mxu0 0
    %5592 = vmatpush1.bf16.msra.mxu0 %v4773
    %5593 = vmatprep.subr.bf16.mxu0 0
    %5594 = vmatpush1.bf16.msra.mxu0 %v4770
    %5595 = vmatprep.subr.bf16.mxu0 0
    %5596 = vmatpush1.bf16.msra.mxu0 %v4767
    %5597 = vmatprep.subr.bf16.mxu0 0
    %5598 = vmatpush1.bf16.msra.mxu0 %v4764
    %5599 = vmatprep.subr.bf16.mxu0 0
    %5600 = vmatpush1.bf16.msra.mxu0 %v4761
    %5601 = vmatprep.subr.bf16.mxu0 0
    %5602 = vmatpush1.bf16.msra.mxu0 %v4758
    %5603 = vmatprep.subr.bf16.mxu0 0
    %5604 = vmatpush2.bf16.msra.mxu0 0
    %5605 = vmatprep.subr.bf16.mxu0 0
    %5606 = vmatpush2.bf16.msra.mxu0 0
    %5607 = vmatprep.subr.bf16.mxu0 0
    %5608 = vmatpush2.bf16.msra.mxu0 0
    %5609 = vmatprep.subr.bf16.mxu0 0
    %5610 = vmatpush2.bf16.msra.mxu0 0
    %5611 = vmatprep.subr.bf16.mxu0 0
    %5612 = vmatpush2.bf16.msra.mxu0 0
    %5613 = vmatprep.subr.bf16.mxu0 0
    %5614 = vmatpush2.bf16.msra.mxu0 0
    %5615 = vmatprep.subr.bf16.mxu0 0
    %5616 = vmatpush2.bf16.msra.mxu0 0
    %5617 = vmatprep.subr.bf16.mxu0 0
    %5618 = vmatpush2.bf16.msra.mxu0 0
    %5619 = vmatprep.mubr.bf16.mxu0 0
    %5620 = vmatmul.mubr.bf16.gmra.mxu0 %v5545
    %v5621 = vpop.f32.mrf.mxu0
    %v5622 = vadd.f32 0.0, %v5621
    %v5623 = vpop.f32.mrf.mxu0
    %v5624 = vpop.f32.mrf.mxu0
    %v5625 = vpop.f32.mrf.mxu0
    %5626 = vdwg.mxu0
    %v5627 = vadd.f32 %v5542, %v5581
    %v5628 = vadd.f32 %v5543, %v5583
    %v5629 = vxor.u32 %v5627, 2147483648
    %v5630 = vxor.u32 %v5628, 2147483648
    %v5631 = vmul.f32 %v5629, 1.442695
    %v5632 = vpow.pop %v5631
    %v5633 = vmul.f32 %v5630, 1.442695
    %v5634 = vpow.pop %v5633
    %v5635 = vadd.f32 %v5632, 1.0
    %v5636 = vadd.f32 %v5634, 1.0
    %v5637 = vrcp.pop %v5635
    %v5638 = vmul.f32 1.0, %v5637
    %v5639 = vrcp.pop %v5636
    %v5640 = vmul.f32 1.0, %v5639
    %v5641 = vadd.f32 %v5622, %v4671
    %v5642 = vmul.f32 %v5638, %v5641
    %v5643 = vadd.f32 %v5544, %v5642
    %v5644 = vtanh.pop %v5643
    %v5645 = vsub.f32 %v5541, %v5644
    %v5646 = vmul.f32 %v5640, %v5645
    %v5647 = vadd.f32 %v5644, %v5646
    %5648 = vst [vmem:[#allocation3 + $0x18] sm:$0xff] %v5647
    %v5649 = vld [vmem:[#allocation3] sm:$0xff]
    %v5650 = vld [vmem:[#allocation3 + $0x8] sm:$0xff]
    %v5651 = vld [vmem:[#allocation3 + $0x10] sm:$0xff]
    %v5652 = vld [vmem:[#allocation3 + $0x18] sm:$0xff]
    %v5653 = vld [vmem:[%s17] sm:$0xff]
    %v5654 = vld [vmem:[%s17 + $0x8] sm:$0xff]
    %v5655 = vld [vmem:[%s17 + $0x10] sm:$0xff]
    %v5656 = vld [vmem:[%s17 + $0x18] sm:$0xff]
    %v5657 = vld [vmem:[%s17 + $0x20] sm:$0xff]
    %v5658 = vld [vmem:[%s17 + $0x28] sm:$0xff]
    %v5659 = vld [vmem:[%s17 + $0x30] sm:$0xff]
    %v5660 = vld [vmem:[%s17 + $0x38] sm:$0xff]
    %v5661 = vld [vmem:[%s17 + $0x40] sm:$0xff]
    %v5662 = vld [vmem:[%s17 + $0x48] sm:$0xff]
    %v5663 = vld [vmem:[%s17 + $0x50] sm:$0xff]
    %v5664 = vld [vmem:[%s17 + $0x58] sm:$0xff]
    %v5665 = vld [vmem:[%s17 + $0x60] sm:$0xff]
    %v5666 = vld [vmem:[%s17 + $0x68] sm:$0xff]
    %v5667 = vld [vmem:[%s17 + $0x70] sm:$0xff]
    %v5668 = vld [vmem:[%s17 + $0x78] sm:$0xff]
    %v5669 = vld [vmem:[%s17 + $0x80] sm:$0xff]
    %v5670 = vld [vmem:[%s17 + $0x88] sm:$0xff]
    %v5671 = vld [vmem:[%s17 + $0x90] sm:$0xff]
    %v5672 = vld [vmem:[%s17 + $0x98] sm:$0xff]
    %v5673 = vld [vmem:[%s17 + $0xa0] sm:$0xff]
    %v5674 = vld [vmem:[%s17 + $0xa8] sm:$0xff]
    %v5675 = vld [vmem:[%s17 + $0xb0] sm:$0xff]
    %v5676 = vld [vmem:[%s17 + $0xb8] sm:$0xff]
    %v5677 = vld [vmem:[%s17 + $0xc0] sm:$0xff]
    %v5678 = vld [vmem:[%s17 + $0xc8] sm:$0xff]
    %v5679 = vld [vmem:[%s17 + $0xd0] sm:$0xff]
    %v5680 = vld [vmem:[%s17 + $0xd8] sm:$0xff]
    %v5681 = vld [vmem:[%s17 + $0xe0] sm:$0xff]
    %v5682 = vld [vmem:[%s17 + $0xe8] sm:$0xff]
    %v5683 = vld [vmem:[%s17 + $0xf0] sm:$0xff]
    %v5684 = vld [vmem:[%s17 + $0xf8] sm:$0xff]
    %v5685 = vld [vmem:[%s17 + $0x100] sm:$0xff]
    %v5686 = vld [vmem:[%s17 + $0x108] sm:$0xff]
    %v5687 = vld [vmem:[%s17 + $0x110] sm:$0xff]
    %v5688 = vld [vmem:[%s17 + $0x118] sm:$0xff]
    %v5689 = vld [vmem:[%s17 + $0x120] sm:$0xff]
    %v5690 = vld [vmem:[%s17 + $0x128] sm:$0xff]
    %v5691 = vld [vmem:[%s17 + $0x130] sm:$0xff]
    %v5692 = vld [vmem:[%s17 + $0x138] sm:$0xff]
    %v5693 = vld [vmem:[%s17 + $0x140] sm:$0xff]
    %v5694 = vld [vmem:[%s17 + $0x148] sm:$0xff]
    %v5695 = vld [vmem:[%s17 + $0x150] sm:$0xff]
    %v5696 = vld [vmem:[%s17 + $0x158] sm:$0xff]
    %v5697 = vld [vmem:[%s17 + $0x160] sm:$0xff]
    %v5698 = vld [vmem:[%s17 + $0x168] sm:$0xff]
    %v5699 = vld [vmem:[%s17 + $0x170] sm:$0xff]
    %v5700 = vld [vmem:[%s17 + $0x178] sm:$0xff]
    %v5701 = vld [vmem:[%s17 + $0x180] sm:$0xff]
    %v5702 = vld [vmem:[%s17 + $0x188] sm:$0xff]
    %v5703 = vld [vmem:[%s17 + $0x190] sm:$0xff]
    %v5704 = vld [vmem:[%s17 + $0x198] sm:$0xff]
    %v5705 = vld [vmem:[%s17 + $0x1a0] sm:$0xff]
    %v5706 = vld [vmem:[%s17 + $0x1a8] sm:$0xff]
    %v5707 = vld [vmem:[%s17 + $0x1b0] sm:$0xff]
    %v5708 = vld [vmem:[%s17 + $0x1b8] sm:$0xff]
    %v5709 = vld [vmem:[%s17 + $0x1c0] sm:$0xff]
    %v5710 = vld [vmem:[%s17 + $0x1c8] sm:$0xff]
    %v5711 = vld [vmem:[%s17 + $0x1d0] sm:$0xff]
    %v5712 = vld [vmem:[%s17 + $0x1d8] sm:$0xff]
    %v5713 = vld [vmem:[%s17 + $0x1e0] sm:$0xff]
    %v5714 = vld [vmem:[%s17 + $0x1e8] sm:$0xff]
    %v5715 = vld [vmem:[%s17 + $0x1f0] sm:$0xff]
    %v5716 = vld [vmem:[%s17 + $0x1f8] sm:$0xff]
    %v5717 = vld [vmem:[%s17 + $0x200] sm:$0xff]
    %v5718 = vld [vmem:[%s17 + $0x208] sm:$0xff]
    %v5719 = vld [vmem:[%s17 + $0x210] sm:$0xff]
    %v5720 = vld [vmem:[%s17 + $0x218] sm:$0xff]
    %v5721 = vld [vmem:[%s17 + $0x220] sm:$0xff]
    %v5722 = vld [vmem:[%s17 + $0x228] sm:$0xff]
    %v5723 = vld [vmem:[%s17 + $0x230] sm:$0xff]
    %v5724 = vld [vmem:[%s17 + $0x238] sm:$0xff]
    %v5725 = vld [vmem:[%s17 + $0x240] sm:$0xff]
    %v5726 = vld [vmem:[%s17 + $0x248] sm:$0xff]
    %v5727 = vld [vmem:[%s17 + $0x250] sm:$0xff]
    %v5728 = vld [vmem:[%s17 + $0x258] sm:$0xff]
    %v5729 = vld [vmem:[%s17 + $0x260] sm:$0xff]
    %v5730 = vld [vmem:[%s17 + $0x268] sm:$0xff]
    %v5731 = vld [vmem:[%s17 + $0x270] sm:$0xff]
    %v5732 = vld [vmem:[%s17 + $0x278] sm:$0xff]
    %v5733 = vld [vmem:[%s17 + $0x280] sm:$0xff]
    %v5734 = vld [vmem:[%s17 + $0x288] sm:$0xff]
    %v5735 = vld [vmem:[%s17 + $0x290] sm:$0xff]
    %v5736 = vld [vmem:[%s17 + $0x298] sm:$0xff]
    %v5737 = vld [vmem:[%s17 + $0x2a0] sm:$0xff]
    %v5738 = vld [vmem:[%s17 + $0x2a8] sm:$0xff]
    %v5739 = vld [vmem:[%s17 + $0x2b0] sm:$0xff]
    %v5740 = vld [vmem:[%s17 + $0x2b8] sm:$0xff]
    %v5741 = vld [vmem:[%s17 + $0x2c0] sm:$0xff]
    %v5742 = vld [vmem:[%s17 + $0x2c8] sm:$0xff]
    %v5743 = vld [vmem:[%s17 + $0x2d0] sm:$0xff]
    %v5744 = vld [vmem:[%s17 + $0x2d8] sm:$0xff]
    %v5745 = vld [vmem:[%s17 + $0x2e0] sm:$0xff]
    %v5746 = vld [vmem:[%s17 + $0x2e8] sm:$0xff]
    %v5747 = vld [vmem:[%s17 + $0x2f0] sm:$0xff]
    %v5748 = vld [vmem:[%s17 + $0x2f8] sm:$0xff]
    %v5749 = vld [vmem:[%s17 + $0x300] sm:$0xff]
    %v5750 = vld [vmem:[%s17 + $0x308] sm:$0xff]
    %v5751 = vld [vmem:[%s17 + $0x310] sm:$0xff]
    %v5752 = vld [vmem:[%s17 + $0x318] sm:$0xff]
    %v5753 = vld [vmem:[%s17 + $0x320] sm:$0xff]
    %v5754 = vld [vmem:[%s17 + $0x328] sm:$0xff]
    %v5755 = vld [vmem:[%s17 + $0x330] sm:$0xff]
    %v5756 = vld [vmem:[%s17 + $0x338] sm:$0xff]
    %v5757 = vld [vmem:[%s17 + $0x340] sm:$0xff]
    %v5758 = vld [vmem:[%s17 + $0x348] sm:$0xff]
    %v5759 = vld [vmem:[%s17 + $0x350] sm:$0xff]
    %v5760 = vld [vmem:[%s17 + $0x358] sm:$0xff]
    %v5761 = vld [vmem:[%s17 + $0x360] sm:$0xff]
    %v5762 = vld [vmem:[%s17 + $0x368] sm:$0xff]
    %v5763 = vld [vmem:[%s17 + $0x370] sm:$0xff]
    %v5764 = vld [vmem:[%s17 + $0x378] sm:$0xff]
    %v5765 = vld [vmem:[%s17 + $0x380] sm:$0xff]
    %v5766 = vld [vmem:[%s17 + $0x388] sm:$0xff]
    %v5767 = vld [vmem:[%s17 + $0x390] sm:$0xff]
    %v5768 = vld [vmem:[%s17 + $0x398] sm:$0xff]
    %v5769 = vld [vmem:[%s17 + $0x3a0] sm:$0xff]
    %v5770 = vld [vmem:[%s17 + $0x3a8] sm:$0xff]
    %v5771 = vld [vmem:[%s17 + $0x3b0] sm:$0xff]
    %v5772 = vld [vmem:[%s17 + $0x3b8] sm:$0xff]
    %v5773 = vld [vmem:[%s17 + $0x3c0] sm:$0xff]
    %v5774 = vld [vmem:[%s17 + $0x3c8] sm:$0xff]
    %v5775 = vld [vmem:[%s17 + $0x3d0] sm:$0xff]
    %v5776 = vld [vmem:[%s17 + $0x3d8] sm:$0xff]
    %v5777 = vld [vmem:[%s17 + $0x3e0] sm:$0xff]
    %v5778 = vld [vmem:[%s17 + $0x3e8] sm:$0xff]
    %v5779 = vld [vmem:[%s17 + $0x3f0] sm:$0xff]
    %v5780 = vld [vmem:[%s17 + $0x3f8] sm:$0xff]
    %v5781 = vld [vmem:[%s18] sm:$0x3]
    %v5783 = vlaneseq
    %v5784 = vshrl.u32 %v5783, 7
    %v5785 = vsub.s32 0, %v5784
    %v5786 = vrot.slane %v5781, %v5785
    %v5787 = vlaneseq
    %v5788 = vshrl.u32 %v5787, 7
    %v5789 = vsub.s32 1, %v5788
    %v5790 = vrot.slane %v5781, %v5789
    %5793 = vmatprep.subr.mxu0 %v5684
    %5794 = vmatpush1.msra.mxu0 %v5683
    %5795 = vmatprep.subr.mxu0 %v5682
    %5796 = vmatpush1.msra.mxu0 %v5681
    %5797 = vmatprep.subr.mxu0 %v5680
    %5798 = vmatpush1.msra.mxu0 %v5679
    %5799 = vmatprep.subr.mxu0 %v5678
    %5800 = vmatpush1.msra.mxu0 %v5677
    %5801 = vmatprep.subr.mxu0 %v5676
    %5802 = vmatpush1.msra.mxu0 %v5675
    %5803 = vmatprep.subr.mxu0 %v5674
    %5804 = vmatpush1.msra.mxu0 %v5673
    %5805 = vmatprep.subr.mxu0 %v5672
    %5806 = vmatpush1.msra.mxu0 %v5671
    %5807 = vmatprep.subr.mxu0 %v5670
    %5808 = vmatpush1.msra.mxu0 %v5669
    %5809 = vmatprep.subr.mxu0 %v5668
    %5810 = vmatpush1.msra.mxu0 %v5667
    %5811 = vmatprep.subr.mxu0 %v5666
    %5812 = vmatpush1.msra.mxu0 %v5665
    %5813 = vmatprep.subr.mxu0 %v5664
    %5814 = vmatpush1.msra.mxu0 %v5663
    %5815 = vmatprep.subr.mxu0 %v5662
    %5816 = vmatpush1.msra.mxu0 %v5661
    %5817 = vmatprep.subr.mxu0 %v5660
    %5818 = vmatpush1.msra.mxu0 %v5659
    %5819 = vmatprep.subr.mxu0 %v5658
    %5820 = vmatpush1.msra.mxu0 %v5657
    %5821 = vmatprep.subr.mxu0 %v5656
    %5822 = vmatpush1.msra.mxu0 %v5655
    %5823 = vmatprep.subr.mxu0 %v5654
    %5824 = vmatpush1.msra.mxu0 %v5653
    %5825 = vmatprep.subr.mxu0 %v5716
    %5826 = vmatpush2.msra.mxu0 %v5715
    %5827 = vmatprep.subr.mxu0 %v5714
    %5828 = vmatpush2.msra.mxu0 %v5713
    %5829 = vmatprep.subr.mxu0 %v5712
    %5830 = vmatpush2.msra.mxu0 %v5711
    %5831 = vmatprep.subr.mxu0 %v5710
    %5832 = vmatpush2.msra.mxu0 %v5709
    %5833 = vmatprep.subr.mxu0 %v5708
    %5834 = vmatpush2.msra.mxu0 %v5707
    %5835 = vmatprep.subr.mxu0 %v5706
    %5836 = vmatpush2.msra.mxu0 %v5705
    %5837 = vmatprep.subr.mxu0 %v5704
    %5838 = vmatpush2.msra.mxu0 %v5703
    %5839 = vmatprep.subr.mxu0 %v5702
    %5840 = vmatpush2.msra.mxu0 %v5701
    %5841 = vmatprep.subr.mxu0 %v5700
    %5842 = vmatpush2.msra.mxu0 %v5699
    %5843 = vmatprep.subr.mxu0 %v5698
    %5844 = vmatpush2.msra.mxu0 %v5697
    %5845 = vmatprep.subr.mxu0 %v5696
    %5846 = vmatpush2.msra.mxu0 %v5695
    %5847 = vmatprep.subr.mxu0 %v5694
    %5848 = vmatpush2.msra.mxu0 %v5693
    %5849 = vmatprep.subr.mxu0 %v5692
    %5850 = vmatpush2.msra.mxu0 %v5691
    %5851 = vmatprep.subr.mxu0 %v5690
    %5852 = vmatpush2.msra.mxu0 %v5689
    %5853 = vmatprep.subr.mxu0 %v5688
    %5854 = vmatpush2.msra.mxu0 %v5687
    %5855 = vmatprep.subr.mxu0 %v5686
    %5856 = vmatpush2.msra.mxu0 %v5685
    %5857 = vmatprep.mubr.f32.mxu0 %v5650
    %5858 = vmatmul.mubr.f32.gmra.mxu0 %v5649
    %v5859 = vpop.f32.mrf.mxu0
    %v5860 = vadd.f32 %v5786, %v5859
    %v5861 = vpop.f32.mrf.mxu0
    %v5862 = vadd.f32 %v5790, %v5861
    %5863 = vdwg.mxu0
    %5864 = vmatprep.subr.mxu0 %v5748
    %5865 = vmatpush1.msra.mxu0 %v5747
    %5866 = vmatprep.subr.mxu0 %v5746
    %5867 = vmatpush1.msra.mxu0 %v5745
    %5868 = vmatprep.subr.mxu0 %v5744
    %5869 = vmatpush1.msra.mxu0 %v5743
    %5870 = vmatprep.subr.mxu0 %v5742
    %5871 = vmatpush1.msra.mxu0 %v5741
    %5872 = vmatprep.subr.mxu0 %v5740
    %5873 = vmatpush1.msra.mxu0 %v5739
    %5874 = vmatprep.subr.mxu0 %v5738
    %5875 = vmatpush1.msra.mxu0 %v5737
    %5876 = vmatprep.subr.mxu0 %v5736
    %5877 = vmatpush1.msra.mxu0 %v5735
    %5878 = vmatprep.subr.mxu0 %v5734
    %5879 = vmatpush1.msra.mxu0 %v5733
    %5880 = vmatprep.subr.mxu0 %v5732
    %5881 = vmatpush1.msra.mxu0 %v5731
    %5882 = vmatprep.subr.mxu0 %v5730
    %5883 = vmatpush1.msra.mxu0 %v5729
    %5884 = vmatprep.subr.mxu0 %v5728
    %5885 = vmatpush1.msra.mxu0 %v5727
    %5886 = vmatprep.subr.mxu0 %v5726
    %5887 = vmatpush1.msra.mxu0 %v5725
    %5888 = vmatprep.subr.mxu0 %v5724
    %5889 = vmatpush1.msra.mxu0 %v5723
    %5890 = vmatprep.subr.mxu0 %v5722
    %5891 = vmatpush1.msra.mxu0 %v5721
    %5892 = vmatprep.subr.mxu0 %v5720
    %5893 = vmatpush1.msra.mxu0 %v5719
    %5894 = vmatprep.subr.mxu0 %v5718
    %5895 = vmatpush1.msra.mxu0 %v5717
    %5896 = vmatprep.subr.mxu0 %v5780
    %5897 = vmatpush2.msra.mxu0 %v5779
    %5898 = vmatprep.subr.mxu0 %v5778
    %5899 = vmatpush2.msra.mxu0 %v5777
    %5900 = vmatprep.subr.mxu0 %v5776
    %5901 = vmatpush2.msra.mxu0 %v5775
    %5902 = vmatprep.subr.mxu0 %v5774
    %5903 = vmatpush2.msra.mxu0 %v5773
    %5904 = vmatprep.subr.mxu0 %v5772
    %5905 = vmatpush2.msra.mxu0 %v5771
    %5906 = vmatprep.subr.mxu0 %v5770
    %5907 = vmatpush2.msra.mxu0 %v5769
    %5908 = vmatprep.subr.mxu0 %v5768
    %5909 = vmatpush2.msra.mxu0 %v5767
    %5910 = vmatprep.subr.mxu0 %v5766
    %5911 = vmatpush2.msra.mxu0 %v5765
    %5912 = vmatprep.subr.mxu0 %v5764
    %5913 = vmatpush2.msra.mxu0 %v5763
    %5914 = vmatprep.subr.mxu0 %v5762
    %5915 = vmatpush2.msra.mxu0 %v5761
    %5916 = vmatprep.subr.mxu0 %v5760
    %5917 = vmatpush2.msra.mxu0 %v5759
    %5918 = vmatprep.subr.mxu0 %v5758
    %5919 = vmatpush2.msra.mxu0 %v5757
    %5920 = vmatprep.subr.mxu0 %v5756
    %5921 = vmatpush2.msra.mxu0 %v5755
    %5922 = vmatprep.subr.mxu0 %v5754
    %5923 = vmatpush2.msra.mxu0 %v5753
    %5924 = vmatprep.subr.mxu0 %v5752
    %5925 = vmatpush2.msra.mxu0 %v5751
    %5926 = vmatprep.subr.mxu0 %v5750
    %5927 = vmatpush2.msra.mxu0 %v5749
    %5928 = vmatprep.mubr.f32.mxu0 %v5652
    %5929 = vmatmul.mubr.f32.gmra.mxu0 %v5651
    %v5930 = vpop.f32.mrf.mxu0
    %v5931 = vadd.f32 %v5860, %v5930
    %v5932 = vpop.f32.mrf.mxu0
    %v5933 = vadd.f32 %v5862, %v5932
    %5934 = vdwg.mxu0
    %5935 = vst [vmem:[#allocation5] sm:$0xff] %v5931
    %5936 = vst [vmem:[#allocation5 + $0x8] sm:$0xff] %v5933
    // Predicated region
    $region78: #{gru_compress_forward.1} parent=1 // pred_check
      _
    $region79: #{gru_compress_forward.1} parent=1 // pred_check_branch
      %5938 = sbr.rel (0) target = $region81
    $region80: #{gru_compress_forward.1} parent=1 // pred_region
      %s5940 = ssub.s32 256, 256
      %5941 = vsyncadd [#allocation6], %s5940
      %s5943 = sshll.u32 [#allocation5], 4
      %s5944 = int_to_ptr.vmem [resolvable:$true] %s5943
      %5946 = dma.vmem_to_hbm [thread:$0]  %s5944, 256, %s19, [#allocation6]
    $region81: #{gru_compress_forward.1} parent=1 // pred_fallthru
      _
    // Predicated region
    $region82: #{gru_compress_forward.1} parent=1 // pred_check
      _
    $region83: #{gru_compress_forward.1} parent=1 // pred_check_branch
      %5948 = sbr.rel (0) target = $region85
    $region84: #{gru_compress_forward.1} parent=1 // pred_region
      %5949 = dma.done [#allocation6], 256
    $region85: #{gru_compress_forward.1} parent=1 // pred_fallthru
      _
    %5950 = vsyncpa [#allocation6], 1

</llo_original>
